<compile_context>
chip_gen: v7x
topology: tpu7x:2x2x1
jax: 0.10.0
libtpu: 0.0.40
codegen_flags: <defaults>
</compile_context>

<pallas_src>
import functools

import jax
import jax.numpy as jnp
from jax import lax
from jax.experimental import pallas as pl
from jax.experimental.pallas import tpu as pltpu


# --------------------------------------------------------------------------
# Fused ConvBlock kernel: 4x4 conv (+bias) and either InstanceNorm+LeakyReLU
# or Sigmoid, for ONE sample per grid step.
# --------------------------------------------------------------------------
def _conv_block_kernel(x_ref, w_ref, b_ref, valid_ref, o_ref, *,
                       taps, count, eps, slope, mode):
    """
    x_ref:     (T, HWpad, Cin) f32  flattened parity planes of the padded input
    w_ref:     (16, Cin, Cp)  bf16  per-tap weight matrices, Cout padded to Cp
    b_ref:     (1, Cp)        f32   bias (padded columns are zero)
    valid_ref: (M, 1)         f32   1.0 for real output columns, 0.0 for junk
    o_ref:     (1, M, Cp)     f32   M = Ho * Ws flattened output rows
    """
    m, cp = o_ref.shape[1], o_ref.shape[2]

    # 16 shifted views of the flattened plane -> accumulated bf16 MXU matmuls
    # with f32 accumulation.  Slices are static and contiguous (no reshape,
    # no im2col materialization).
    acc = jnp.zeros((m, cp), jnp.float32)
    for k, (t, off) in enumerate(taps):
        patch = x_ref[t, off:off + m, :].astype(jnp.bfloat16)
        acc = acc + jnp.dot(patch, w_ref[k], preferred_element_type=jnp.float32)
    acc = acc + b_ref[...]                               # (1, Cp) broadcasts

    if mode == "in_lrelu":
        # InstanceNorm2d (affine=False, biased var) fused into the epilogue.
        # Single-pass stats: var = E[x^2] - mean^2, masked so the Ws-Wo junk
        # columns (and only they) are excluded.
        valid = valid_ref[...]                           # (M, 1)
        inv_n = 1.0 / float(count)                       # count = Ho * Wo
        mean = jnp.sum(acc * valid, axis=0, keepdims=True) * inv_n
        ex2 = jnp.sum(acc * acc * valid, axis=0, keepdims=True) * inv_n
        var = jnp.maximum(ex2 - mean * mean, 0.0)
        y = (acc - mean) * lax.rsqrt(var + eps)
        acc = jnp.where(y >= 0.0, y, slope * y)          # LeakyReLU(0.2), f32
    elif mode == "sigmoid":
        acc = jax.nn.sigmoid(acc)                        # final layer, f32

    o_ref[0] = acc


# --------------------------------------------------------------------------
# Host-side glue: reflect pad + parity-plane re-layout (no data blow-up)
# --------------------------------------------------------------------------
def _prep_planes(x_nhwc, stride):
    """Reflect-pad by 1 and re-layout into stride**2 parity planes with the
    spatial dims flattened.  Pure re-layout: bytes ~= input bytes."""
    xp = jnp.pad(x_nhwc, ((0, 0), (1, 1), (1, 1), (0, 0)), mode="reflect")
    n, hp, wp, c = xp.shape
    if stride == 1:
        t, hs, ws = 1, hp, wp
        planes = xp.reshape(n, 1, hs, ws, c)
    else:
        assert stride == 2 and hp % 2 == 0 and wp % 2 == 0
        t, hs, ws = 4, hp // 2, wp // 2
        # xp[n, 2u+p, 2v+q, c] -> planes[n, p*2+q, u, v, c]
        planes = xp.reshape(n, hs, 2, ws, 2, c).transpose(0, 2, 4, 1, 3, 5)
        planes = planes.reshape(n, t, hs, ws, c)
    ho = (hp - 4) // stride + 1
    wo = (wp - 4) // stride + 1
    planes = planes.reshape(n, t, hs * ws, c)
    # Pad a few zero rows so every tap's contiguous slice [off, off + Ho*Ws)
    # stays inside the buffer (the junk end-of-row columns get sliced off).
    a_max = (4 - 1) // stride
    extra = max(0, a_max * ws + a_max + ho * ws - hs * ws)
    if extra:
        planes = jnp.pad(planes, ((0, 0), (0, 0), (0, extra), (0, 0)))
    return planes.reshape(n * t, hs * ws + extra, c), t, ws, ho, wo


def _tap_offsets(stride, ws):
    """For kernel tap (i, j): parity-plane index and flattened row offset."""
    taps = []
    for i in range(4):
        for j in range(4):
            a, p = divmod(i, stride)
            b, q = divmod(j, stride)
            taps.append((p * stride + q, a * ws + b))
    return taps


def conv_block_pallas(x_nhwc, w_hwio, bias, stride, mode, eps=1e-5, slope=0.2):
    """One ConvBlock (or the final conv+sigmoid) of the discriminator, fused."""
    n = x_nhwc.shape[0]
    cin, cout = w_hwio.shape[2], w_hwio.shape[3]
    planes, t, ws, ho, wo = _prep_planes(x_nhwc, stride)
    hwpad = planes.shape[1]
    m = ho * ws

    cp = ((cout + 127) // 128) * 128                     # lane-dense Cout
    w_flat = jnp.pad(w_hwio.reshape(16, cin, cout),
                     ((0, 0), (0, 0), (0, cp - cout))).astype(jnp.bfloat16)
    b_pad = jnp.pad(bias, (0, cp - cout)).reshape(1, cp).astype(jnp.float32)

    # 1.0 for real output columns (col < Wo), 0.0 for the Ws-Wo junk columns.
    valid = (jnp.arange(m, dtype=jnp.int32) % ws < wo)
    valid = valid.astype(jnp.float32).reshape(m, 1)

    kernel = functools.partial(
        _conv_block_kernel, taps=_tap_offsets(stride, ws),
        count=ho * wo, eps=eps, slope=slope, mode=mode)

    out = pl.pallas_call(
        kernel,
        out_shape=jax.ShapeDtypeStruct((n, m, cp), jnp.float32),
        grid=(n,),
        in_specs=[
            # per-sample parity planes (block = whole sample)
            pl.BlockSpec((t, hwpad, cin), lambda i: (i, 0, 0)),
            # grid-invariant weight / bias / mask blocks (resident in VMEM)
            pl.BlockSpec((16, cin, cp), lambda i: (0, 0, 0)),
            pl.BlockSpec((1, cp), lambda i: (0, 0)),
            pl.BlockSpec((m, 1), lambda i: (0, 0)),
        ],
        out_specs=pl.BlockSpec((1, m, cp), lambda i: (i, 0, 0)),
        compiler_params=pltpu.CompilerParams(
            dimension_semantics=("parallel",)),
    )(planes, w_flat, b_pad, valid)

    # Drop junk columns and padded channels -> (N, Ho, Wo, Cout)
    return out.reshape(n, ho, ws, cp)[:, :, :wo, :cout]


# --------------------------------------------------------------------------
# Discriminator: parameter construction + forward
# --------------------------------------------------------------------------
def init_discriminator_params(channels, key):
    """Deterministic synthetic init. Weights stored in HWIO layout."""
    in_ch, out_ch = channels[:-1], channels[1:]
    blocks = []
    for ci, co in zip(in_ch, out_ch):
        key, kw_, kb_ = jax.random.split(key, 3)
        w = 0.05 * jax.random.normal(kw_, (4, 4, ci, co), jnp.float32)
        b = 0.01 * jax.random.normal(kb_, (co,), jnp.float32)
        stride = 2 if co != out_ch[-1] else 1            # exactly per the spec
        blocks.append((w, b, stride))
    key, kw_, kb_ = jax.random.split(key, 3)
    wf = 0.05 * jax.random.normal(kw_, (4, 4, out_ch[-1], 1), jnp.float32)
    bf = 0.01 * jax.random.normal(kb_, (1,), jnp.float32)
    return {"blocks": blocks, "final": (wf, bf)}


def discriminator_forward(x_nchw, params):
    x = jnp.transpose(x_nchw, (0, 2, 3, 1))              # NCHW -> NHWC
    for w, b, stride in params["blocks"]:
        x = conv_block_pallas(x, w, b, stride, mode="in_lrelu")
    wf, bf = params["final"]
    x = conv_block_pallas(x, wf, bf, stride=1, mode="sigmoid")
    return jnp.transpose(x, (0, 3, 1, 2))                # NHWC -> NCHW


# --------------------------------------------------------------------------
# Pure-JAX f32 reference (for correctness check)
# --------------------------------------------------------------------------
def _ref_conv(x_nhwc, w_hwio, b, stride):
    xp = jnp.pad(x_nhwc, ((0, 0), (1, 1), (1, 1), (0, 0)), mode="reflect")
    y = lax.conv_general_dilated(
        xp, w_hwio, window_strides=(stride, stride), padding="VALID",
        dimension_numbers=("NHWC", "HWIO", "NHWC"))
    return y + b


def _ref_forward(x_nchw, params):
    x = jnp.transpose(x_nchw, (0, 2, 3, 1))
    for w, b, stride in params["blocks"]:
        x = _ref_conv(x, w, b, stride)
        mean = jnp.mean(x, axis=(1, 2), keepdims=True)
        var = jnp.mean((x - mean) ** 2, axis=(1, 2), keepdims=True)
        x = (x - mean) * lax.rsqrt(var + 1e-5)
        x = jnp.where(x >= 0, x, 0.2 * x)
    wf, bf = params["final"]
    x = jax.nn.sigmoid(_ref_conv(x, wf, bf, 1))
    return jnp.transpose(x, (0, 3, 1, 2))


# --------------------------------------------------------------------------
if __name__ == "__main__":
    key = jax.random.PRNGKey(0)
    k_in, k_par = jax.random.split(key)

    channels = [4, 8, 16, 32]                            # small synthetic config
    x = jax.random.normal(k_in, (2, 4, 16, 16), jnp.float32)   # NCHW input
    params = init_discriminator_params(channels, k_par)

    fwd = jax.jit(lambda inp: discriminator_forward(inp, params))
    out = jax.block_until_ready(fwd(x))

    ref = jax.block_until_ready(_ref_forward(x, params))
    assert out.shape == (2, 1, 2, 2), out.shape
    # bf16 MXU operands -> compare against the f32 reference with a
    # correspondingly relaxed tolerance.
    err = float(jnp.max(jnp.abs(out - ref)))
    assert jnp.allclose(out, ref, atol=3e-2, rtol=3e-2), f"mismatch, max err={err}"

    print("KERNEL_OK")
</pallas_src>

<mosaic_0001>
module attributes {stable_mosaic.version = 11 : i64} {
  func.func @_conv_block_kernel(%arg0: i32, %arg1: memref<4x82x4xf32, #tpu.memory_space<vmem>>, %arg2: memref<16x4x128xbf16, #tpu.memory_space<vmem>>, %arg3: memref<1x128xf32, #tpu.memory_space<vmem>>, %arg4: memref<72x1xf32, #tpu.memory_space<vmem>>, %arg5: memref<1x72x128xf32, #tpu.memory_space<vmem>>) attributes {dimension_semantics = [#tpu.dimension_semantics<parallel>], iteration_bounds = array<i64: 2>, scalar_prefetch = 0 : i64, scratch_operands = 0 : i64, tpu.core_type = #tpu.core_type<tc>, window_params = [{transform_indices = @transform_0, window_bounds = array<i64: 4, 82, 4>}, {pipeline_mode = #tpu.pipeline_mode<synchronous>, transform_indices = @transform_1, window_bounds = array<i64: 16, 4, 128>}, {pipeline_mode = #tpu.pipeline_mode<synchronous>, transform_indices = @transform_2, window_bounds = array<i64: 1, 128>}, {pipeline_mode = #tpu.pipeline_mode<synchronous>, transform_indices = @transform_3, window_bounds = array<i64: 72, 1>}, {transform_indices = @transform_4, window_bounds = array<i64: 1, 72, 128>}]} {
    %cst = arith.constant 0.000000e+00 : f32
    %0 = vector.broadcast %cst : f32 to vector<72x128xf32>
    %c0 = arith.constant 0 : index
    %c0_0 = arith.constant 0 : index
    %c0_1 = arith.constant 0 : index
    %1 = vector.load %arg1[%c0, %c0_0, %c0_1] : memref<4x82x4xf32, #tpu.memory_space<vmem>>, vector<1x72x4xf32>
    %2 = vector.shape_cast %1 : vector<1x72x4xf32> to vector<72x4xf32>
    %3 = arith.truncf %2 : vector<72x4xf32> to vector<72x4xbf16>
    %c0_2 = arith.constant 0 : index
    %c0_3 = arith.constant 0 : index
    %c0_4 = arith.constant 0 : index
    %4 = vector.load %arg2[%c0_2, %c0_3, %c0_4] : memref<16x4x128xbf16, #tpu.memory_space<vmem>>, vector<1x4x128xbf16>
    %5 = vector.shape_cast %4 : vector<1x4x128xbf16> to vector<4x128xbf16>
    %cst_5 = arith.constant dense<0.000000e+00> : vector<72x128xf32>
    %6 = tpu.matmul %3, %5, %cst_5 {dimension_numbers = #tpu.dot_dimension_numbers<[1], [0], [0], [1], [0, 0, 1, 1], [], []>} : vector<72x4xbf16>, vector<4x128xbf16>, vector<72x128xf32> -> vector<72x128xf32>
    %7 = arith.addf %0, %6 : vector<72x128xf32>
    %c1 = arith.constant 1 : index
    %c0_6 = arith.constant 0 : index
    %c0_7 = arith.constant 0 : index
    %8 = vector.load %arg1[%c1, %c0_6, %c0_7] : memref<4x82x4xf32, #tpu.memory_space<vmem>>, vector<1x72x4xf32>
    %9 = vector.shape_cast %8 : vector<1x72x4xf32> to vector<72x4xf32>
    %10 = arith.truncf %9 : vector<72x4xf32> to vector<72x4xbf16>
    %c1_8 = arith.constant 1 : index
    %c0_9 = arith.constant 0 : index
    %c0_10 = arith.constant 0 : index
    %11 = vector.load %arg2[%c1_8, %c0_9, %c0_10] : memref<16x4x128xbf16, #tpu.memory_space<vmem>>, vector<1x4x128xbf16>
    %12 = vector.shape_cast %11 : vector<1x4x128xbf16> to vector<4x128xbf16>
    %cst_11 = arith.constant dense<0.000000e+00> : vector<72x128xf32>
    %13 = tpu.matmul %10, %12, %cst_11 {dimension_numbers = #tpu.dot_dimension_numbers<[1], [0], [0], [1], [0, 0, 1, 1], [], []>} : vector<72x4xbf16>, vector<4x128xbf16>, vector<72x128xf32> -> vector<72x128xf32>
    %14 = arith.addf %7, %13 : vector<72x128xf32>
    %c0_12 = arith.constant 0 : index
    %c1_13 = arith.constant 1 : index
    %c0_14 = arith.constant 0 : index
    %15 = vector.load %arg1[%c0_12, %c1_13, %c0_14] : memref<4x82x4xf32, #tpu.memory_space<vmem>>, vector<1x72x4xf32>
    %16 = vector.shape_cast %15 : vector<1x72x4xf32> to vector<72x4xf32>
    %17 = arith.truncf %16 : vector<72x4xf32> to vector<72x4xbf16>
    %c2 = arith.constant 2 : index
    %c0_15 = arith.constant 0 : index
    %c0_16 = arith.constant 0 : index
    %18 = vector.load %arg2[%c2, %c0_15, %c0_16] : memref<16x4x128xbf16, #tpu.memory_space<vmem>>, vector<1x4x128xbf16>
    %19 = vector.shape_cast %18 : vector<1x4x128xbf16> to vector<4x128xbf16>
    %cst_17 = arith.constant dense<0.000000e+00> : vector<72x128xf32>
    %20 = tpu.matmul %17, %19, %cst_17 {dimension_numbers = #tpu.dot_dimension_numbers<[1], [0], [0], [1], [0, 0, 1, 1], [], []>} : vector<72x4xbf16>, vector<4x128xbf16>, vector<72x128xf32> -> vector<72x128xf32>
    %21 = arith.addf %14, %20 : vector<72x128xf32>
    %c1_18 = arith.constant 1 : index
    %c1_19 = arith.constant 1 : index
    %c0_20 = arith.constant 0 : index
    %22 = vector.load %arg1[%c1_18, %c1_19, %c0_20] : memref<4x82x4xf32, #tpu.memory_space<vmem>>, vector<1x72x4xf32>
    %23 = vector.shape_cast %22 : vector<1x72x4xf32> to vector<72x4xf32>
    %24 = arith.truncf %23 : vector<72x4xf32> to vector<72x4xbf16>
    %c3 = arith.constant 3 : index
    %c0_21 = arith.constant 0 : index
    %c0_22 = arith.constant 0 : index
    %25 = vector.load %arg2[%c3, %c0_21, %c0_22] : memref<16x4x128xbf16, #tpu.memory_space<vmem>>, vector<1x4x128xbf16>
    %26 = vector.shape_cast %25 : vector<1x4x128xbf16> to vector<4x128xbf16>
    %cst_23 = arith.constant dense<0.000000e+00> : vector<72x128xf32>
    %27 = tpu.matmul %24, %26, %cst_23 {dimension_numbers = #tpu.dot_dimension_numbers<[1], [0], [0], [1], [0, 0, 1, 1], [], []>} : vector<72x4xbf16>, vector<4x128xbf16>, vector<72x128xf32> -> vector<72x128xf32>
    %28 = arith.addf %21, %27 : vector<72x128xf32>
    %c2_24 = arith.constant 2 : index
    %c0_25 = arith.constant 0 : index
    %c0_26 = arith.constant 0 : index
    %29 = vector.load %arg1[%c2_24, %c0_25, %c0_26] : memref<4x82x4xf32, #tpu.memory_space<vmem>>, vector<1x72x4xf32>
    %30 = vector.shape_cast %29 : vector<1x72x4xf32> to vector<72x4xf32>
    %31 = arith.truncf %30 : vector<72x4xf32> to vector<72x4xbf16>
    %c4 = arith.constant 4 : index
    %c0_27 = arith.constant 0 : index
    %c0_28 = arith.constant 0 : index
    %32 = vector.load %arg2[%c4, %c0_27, %c0_28] : memref<16x4x128xbf16, #tpu.memory_space<vmem>>, vector<1x4x128xbf16>
    %33 = vector.shape_cast %32 : vector<1x4x128xbf16> to vector<4x128xbf16>
    %cst_29 = arith.constant dense<0.000000e+00> : vector<72x128xf32>
    %34 = tpu.matmul %31, %33, %cst_29 {dimension_numbers = #tpu.dot_dimension_numbers<[1], [0], [0], [1], [0, 0, 1, 1], [], []>} : vector<72x4xbf16>, vector<4x128xbf16>, vector<72x128xf32> -> vector<72x128xf32>
    %35 = arith.addf %28, %34 : vector<72x128xf32>
    %c3_30 = arith.constant 3 : index
    %c0_31 = arith.constant 0 : index
    %c0_32 = arith.constant 0 : index
    %36 = vector.load %arg1[%c3_30, %c0_31, %c0_32] : memref<4x82x4xf32, #tpu.memory_space<vmem>>, vector<1x72x4xf32>
    %37 = vector.shape_cast %36 : vector<1x72x4xf32> to vector<72x4xf32>
    %38 = arith.truncf %37 : vector<72x4xf32> to vector<72x4xbf16>
    %c5 = arith.constant 5 : index
    %c0_33 = arith.constant 0 : index
    %c0_34 = arith.constant 0 : index
    %39 = vector.load %arg2[%c5, %c0_33, %c0_34] : memref<16x4x128xbf16, #tpu.memory_space<vmem>>, vector<1x4x128xbf16>
    %40 = vector.shape_cast %39 : vector<1x4x128xbf16> to vector<4x128xbf16>
    %cst_35 = arith.constant dense<0.000000e+00> : vector<72x128xf32>
    %41 = tpu.matmul %38, %40, %cst_35 {dimension_numbers = #tpu.dot_dimension_numbers<[1], [0], [0], [1], [0, 0, 1, 1], [], []>} : vector<72x4xbf16>, vector<4x128xbf16>, vector<72x128xf32> -> vector<72x128xf32>
    %42 = arith.addf %35, %41 : vector<72x128xf32>
    %c2_36 = arith.constant 2 : index
    %c1_37 = arith.constant 1 : index
    %c0_38 = arith.constant 0 : index
    %43 = vector.load %arg1[%c2_36, %c1_37, %c0_38] : memref<4x82x4xf32, #tpu.memory_space<vmem>>, vector<1x72x4xf32>
    %44 = vector.shape_cast %43 : vector<1x72x4xf32> to vector<72x4xf32>
    %45 = arith.truncf %44 : vector<72x4xf32> to vector<72x4xbf16>
    %c6 = arith.constant 6 : index
    %c0_39 = arith.constant 0 : index
    %c0_40 = arith.constant 0 : index
    %46 = vector.load %arg2[%c6, %c0_39, %c0_40] : memref<16x4x128xbf16, #tpu.memory_space<vmem>>, vector<1x4x128xbf16>
    %47 = vector.shape_cast %46 : vector<1x4x128xbf16> to vector<4x128xbf16>
    %cst_41 = arith.constant dense<0.000000e+00> : vector<72x128xf32>
    %48 = tpu.matmul %45, %47, %cst_41 {dimension_numbers = #tpu.dot_dimension_numbers<[1], [0], [0], [1], [0, 0, 1, 1], [], []>} : vector<72x4xbf16>, vector<4x128xbf16>, vector<72x128xf32> -> vector<72x128xf32>
    %49 = arith.addf %42, %48 : vector<72x128xf32>
    %c3_42 = arith.constant 3 : index
    %c1_43 = arith.constant 1 : index
    %c0_44 = arith.constant 0 : index
    %50 = vector.load %arg1[%c3_42, %c1_43, %c0_44] : memref<4x82x4xf32, #tpu.memory_space<vmem>>, vector<1x72x4xf32>
    %51 = vector.shape_cast %50 : vector<1x72x4xf32> to vector<72x4xf32>
    %52 = arith.truncf %51 : vector<72x4xf32> to vector<72x4xbf16>
    %c7 = arith.constant 7 : index
    %c0_45 = arith.constant 0 : index
    %c0_46 = arith.constant 0 : index
    %53 = vector.load %arg2[%c7, %c0_45, %c0_46] : memref<16x4x128xbf16, #tpu.memory_space<vmem>>, vector<1x4x128xbf16>
    %54 = vector.shape_cast %53 : vector<1x4x128xbf16> to vector<4x128xbf16>
    %cst_47 = arith.constant dense<0.000000e+00> : vector<72x128xf32>
    %55 = tpu.matmul %52, %54, %cst_47 {dimension_numbers = #tpu.dot_dimension_numbers<[1], [0], [0], [1], [0, 0, 1, 1], [], []>} : vector<72x4xbf16>, vector<4x128xbf16>, vector<72x128xf32> -> vector<72x128xf32>
    %56 = arith.addf %49, %55 : vector<72x128xf32>
    %c0_48 = arith.constant 0 : index
    %c9 = arith.constant 9 : index
    %c0_49 = arith.constant 0 : index
    %57 = vector.load %arg1[%c0_48, %c9, %c0_49] : memref<4x82x4xf32, #tpu.memory_space<vmem>>, vector<1x72x4xf32>
    %58 = vector.shape_cast %57 : vector<1x72x4xf32> to vector<72x4xf32>
    %59 = arith.truncf %58 : vector<72x4xf32> to vector<72x4xbf16>
    %c8 = arith.constant 8 : index
    %c0_50 = arith.constant 0 : index
    %c0_51 = arith.constant 0 : index
    %60 = vector.load %arg2[%c8, %c0_50, %c0_51] : memref<16x4x128xbf16, #tpu.memory_space<vmem>>, vector<1x4x128xbf16>
    %61 = vector.shape_cast %60 : vector<1x4x128xbf16> to vector<4x128xbf16>
    %cst_52 = arith.constant dense<0.000000e+00> : vector<72x128xf32>
    %62 = tpu.matmul %59, %61, %cst_52 {dimension_numbers = #tpu.dot_dimension_numbers<[1], [0], [0], [1], [0, 0, 1, 1], [], []>} : vector<72x4xbf16>, vector<4x128xbf16>, vector<72x128xf32> -> vector<72x128xf32>
    %63 = arith.addf %56, %62 : vector<72x128xf32>
    %c1_53 = arith.constant 1 : index
    %c9_54 = arith.constant 9 : index
    %c0_55 = arith.constant 0 : index
    %64 = vector.load %arg1[%c1_53, %c9_54, %c0_55] : memref<4x82x4xf32, #tpu.memory_space<vmem>>, vector<1x72x4xf32>
    %65 = vector.shape_cast %64 : vector<1x72x4xf32> to vector<72x4xf32>
    %66 = arith.truncf %65 : vector<72x4xf32> to vector<72x4xbf16>
    %c9_56 = arith.constant 9 : index
    %c0_57 = arith.constant 0 : index
    %c0_58 = arith.constant 0 : index
    %67 = vector.load %arg2[%c9_56, %c0_57, %c0_58] : memref<16x4x128xbf16, #tpu.memory_space<vmem>>, vector<1x4x128xbf16>
    %68 = vector.shape_cast %67 : vector<1x4x128xbf16> to vector<4x128xbf16>
    %cst_59 = arith.constant dense<0.000000e+00> : vector<72x128xf32>
    %69 = tpu.matmul %66, %68, %cst_59 {dimension_numbers = #tpu.dot_dimension_numbers<[1], [0], [0], [1], [0, 0, 1, 1], [], []>} : vector<72x4xbf16>, vector<4x128xbf16>, vector<72x128xf32> -> vector<72x128xf32>
    %70 = arith.addf %63, %69 : vector<72x128xf32>
    %c0_60 = arith.constant 0 : index
    %c10 = arith.constant 10 : index
    %c0_61 = arith.constant 0 : index
    %71 = vector.load %arg1[%c0_60, %c10, %c0_61] : memref<4x82x4xf32, #tpu.memory_space<vmem>>, vector<1x72x4xf32>
    %72 = vector.shape_cast %71 : vector<1x72x4xf32> to vector<72x4xf32>
    %73 = arith.truncf %72 : vector<72x4xf32> to vector<72x4xbf16>
    %c10_62 = arith.constant 10 : index
    %c0_63 = arith.constant 0 : index
    %c0_64 = arith.constant 0 : index
    %74 = vector.load %arg2[%c10_62, %c0_63, %c0_64] : memref<16x4x128xbf16, #tpu.memory_space<vmem>>, vector<1x4x128xbf16>
    %75 = vector.shape_cast %74 : vector<1x4x128xbf16> to vector<4x128xbf16>
    %cst_65 = arith.constant dense<0.000000e+00> : vector<72x128xf32>
    %76 = tpu.matmul %73, %75, %cst_65 {dimension_numbers = #tpu.dot_dimension_numbers<[1], [0], [0], [1], [0, 0, 1, 1], [], []>} : vector<72x4xbf16>, vector<4x128xbf16>, vector<72x128xf32> -> vector<72x128xf32>
    %77 = arith.addf %70, %76 : vector<72x128xf32>
    %c1_66 = arith.constant 1 : index
    %c10_67 = arith.constant 10 : index
    %c0_68 = arith.constant 0 : index
    %78 = vector.load %arg1[%c1_66, %c10_67, %c0_68] : memref<4x82x4xf32, #tpu.memory_space<vmem>>, vector<1x72x4xf32>
    %79 = vector.shape_cast %78 : vector<1x72x4xf32> to vector<72x4xf32>
    %80 = arith.truncf %79 : vector<72x4xf32> to vector<72x4xbf16>
    %c11 = arith.constant 11 : index
    %c0_69 = arith.constant 0 : index
    %c0_70 = arith.constant 0 : index
    %81 = vector.load %arg2[%c11, %c0_69, %c0_70] : memref<16x4x128xbf16, #tpu.memory_space<vmem>>, vector<1x4x128xbf16>
    %82 = vector.shape_cast %81 : vector<1x4x128xbf16> to vector<4x128xbf16>
    %cst_71 = arith.constant dense<0.000000e+00> : vector<72x128xf32>
    %83 = tpu.matmul %80, %82, %cst_71 {dimension_numbers = #tpu.dot_dimension_numbers<[1], [0], [0], [1], [0, 0, 1, 1], [], []>} : vector<72x4xbf16>, vector<4x128xbf16>, vector<72x128xf32> -> vector<72x128xf32>
    %84 = arith.addf %77, %83 : vector<72x128xf32>
    %c2_72 = arith.constant 2 : index
    %c9_73 = arith.constant 9 : index
    %c0_74 = arith.constant 0 : index
    %85 = vector.load %arg1[%c2_72, %c9_73, %c0_74] : memref<4x82x4xf32, #tpu.memory_space<vmem>>, vector<1x72x4xf32>
    %86 = vector.shape_cast %85 : vector<1x72x4xf32> to vector<72x4xf32>
    %87 = arith.truncf %86 : vector<72x4xf32> to vector<72x4xbf16>
    %c12 = arith.constant 12 : index
    %c0_75 = arith.constant 0 : index
    %c0_76 = arith.constant 0 : index
    %88 = vector.load %arg2[%c12, %c0_75, %c0_76] : memref<16x4x128xbf16, #tpu.memory_space<vmem>>, vector<1x4x128xbf16>
    %89 = vector.shape_cast %88 : vector<1x4x128xbf16> to vector<4x128xbf16>
    %cst_77 = arith.constant dense<0.000000e+00> : vector<72x128xf32>
    %90 = tpu.matmul %87, %89, %cst_77 {dimension_numbers = #tpu.dot_dimension_numbers<[1], [0], [0], [1], [0, 0, 1, 1], [], []>} : vector<72x4xbf16>, vector<4x128xbf16>, vector<72x128xf32> -> vector<72x128xf32>
    %91 = arith.addf %84, %90 : vector<72x128xf32>
    %c3_78 = arith.constant 3 : index
    %c9_79 = arith.constant 9 : index
    %c0_80 = arith.constant 0 : index
    %92 = vector.load %arg1[%c3_78, %c9_79, %c0_80] : memref<4x82x4xf32, #tpu.memory_space<vmem>>, vector<1x72x4xf32>
    %93 = vector.shape_cast %92 : vector<1x72x4xf32> to vector<72x4xf32>
    %94 = arith.truncf %93 : vector<72x4xf32> to vector<72x4xbf16>
    %c13 = arith.constant 13 : index
    %c0_81 = arith.constant 0 : index
    %c0_82 = arith.constant 0 : index
    %95 = vector.load %arg2[%c13, %c0_81, %c0_82] : memref<16x4x128xbf16, #tpu.memory_space<vmem>>, vector<1x4x128xbf16>
    %96 = vector.shape_cast %95 : vector<1x4x128xbf16> to vector<4x128xbf16>
    %cst_83 = arith.constant dense<0.000000e+00> : vector<72x128xf32>
    %97 = tpu.matmul %94, %96, %cst_83 {dimension_numbers = #tpu.dot_dimension_numbers<[1], [0], [0], [1], [0, 0, 1, 1], [], []>} : vector<72x4xbf16>, vector<4x128xbf16>, vector<72x128xf32> -> vector<72x128xf32>
    %98 = arith.addf %91, %97 : vector<72x128xf32>
    %c2_84 = arith.constant 2 : index
    %c10_85 = arith.constant 10 : index
    %c0_86 = arith.constant 0 : index
    %99 = vector.load %arg1[%c2_84, %c10_85, %c0_86] : memref<4x82x4xf32, #tpu.memory_space<vmem>>, vector<1x72x4xf32>
    %100 = vector.shape_cast %99 : vector<1x72x4xf32> to vector<72x4xf32>
    %101 = arith.truncf %100 : vector<72x4xf32> to vector<72x4xbf16>
    %c14 = arith.constant 14 : index
    %c0_87 = arith.constant 0 : index
    %c0_88 = arith.constant 0 : index
    %102 = vector.load %arg2[%c14, %c0_87, %c0_88] : memref<16x4x128xbf16, #tpu.memory_space<vmem>>, vector<1x4x128xbf16>
    %103 = vector.shape_cast %102 : vector<1x4x128xbf16> to vector<4x128xbf16>
    %cst_89 = arith.constant dense<0.000000e+00> : vector<72x128xf32>
    %104 = tpu.matmul %101, %103, %cst_89 {dimension_numbers = #tpu.dot_dimension_numbers<[1], [0], [0], [1], [0, 0, 1, 1], [], []>} : vector<72x4xbf16>, vector<4x128xbf16>, vector<72x128xf32> -> vector<72x128xf32>
    %105 = arith.addf %98, %104 : vector<72x128xf32>
    %c3_90 = arith.constant 3 : index
    %c10_91 = arith.constant 10 : index
    %c0_92 = arith.constant 0 : index
    %106 = vector.load %arg1[%c3_90, %c10_91, %c0_92] : memref<4x82x4xf32, #tpu.memory_space<vmem>>, vector<1x72x4xf32>
    %107 = vector.shape_cast %106 : vector<1x72x4xf32> to vector<72x4xf32>
    %108 = arith.truncf %107 : vector<72x4xf32> to vector<72x4xbf16>
    %c15 = arith.constant 15 : index
    %c0_93 = arith.constant 0 : index
    %c0_94 = arith.constant 0 : index
    %109 = vector.load %arg2[%c15, %c0_93, %c0_94] : memref<16x4x128xbf16, #tpu.memory_space<vmem>>, vector<1x4x128xbf16>
    %110 = vector.shape_cast %109 : vector<1x4x128xbf16> to vector<4x128xbf16>
    %cst_95 = arith.constant dense<0.000000e+00> : vector<72x128xf32>
    %111 = tpu.matmul %108, %110, %cst_95 {dimension_numbers = #tpu.dot_dimension_numbers<[1], [0], [0], [1], [0, 0, 1, 1], [], []>} : vector<72x4xbf16>, vector<4x128xbf16>, vector<72x128xf32> -> vector<72x128xf32>
    %112 = arith.addf %105, %111 : vector<72x128xf32>
    %c0_96 = arith.constant 0 : index
    %c0_97 = arith.constant 0 : index
    %113 = vector.load %arg3[%c0_96, %c0_97] : memref<1x128xf32, #tpu.memory_space<vmem>>, vector<1x128xf32>
    %114 = vector.broadcast %113 : vector<1x128xf32> to vector<72x128xf32>
    %115 = arith.addf %112, %114 : vector<72x128xf32>
    %c0_98 = arith.constant 0 : index
    %c0_99 = arith.constant 0 : index
    %116 = vector.load %arg4[%c0_98, %c0_99] : memref<72x1xf32, #tpu.memory_space<vmem>>, vector<72x1xf32>
    %117 = vector.broadcast %116 : vector<72x1xf32> to vector<72x128xf32>
    %118 = arith.mulf %115, %117 : vector<72x128xf32>
    %cst_100 = arith.constant dense<0.000000e+00> : vector<128xf32>
    %119 = vector.multi_reduction <add>, %118, %cst_100 [0] : vector<72x128xf32> to vector<128xf32>
    %120 = vector.shape_cast %119 : vector<128xf32> to vector<1x128xf32>
    %cst_101 = arith.constant 1.562500e-02 : f32
    %121 = vector.broadcast %cst_101 : f32 to vector<1x128xf32>
    %122 = arith.mulf %120, %121 : vector<1x128xf32>
    %123 = arith.mulf %115, %115 : vector<72x128xf32>
    %124 = vector.broadcast %116 : vector<72x1xf32> to vector<72x128xf32>
    %125 = arith.mulf %123, %124 : vector<72x128xf32>
    %cst_102 = arith.constant dense<0.000000e+00> : vector<128xf32>
    %126 = vector.multi_reduction <add>, %125, %cst_102 [0] : vector<72x128xf32> to vector<128xf32>
    %127 = vector.shape_cast %126 : vector<128xf32> to vector<1x128xf32>
    %cst_103 = arith.constant 1.562500e-02 : f32
    %128 = vector.broadcast %cst_103 : f32 to vector<1x128xf32>
    %129 = arith.mulf %127, %128 : vector<1x128xf32>
    %130 = arith.mulf %122, %122 : vector<1x128xf32>
    %131 = arith.subf %129, %130 : vector<1x128xf32>
    %cst_104 = arith.constant 0.000000e+00 : f32
    %132 = vector.broadcast %cst_104 : f32 to vector<1x128xf32>
    %133 = arith.maximumf %131, %132 : vector<1x128xf32>
    %134 = vector.broadcast %122 : vector<1x128xf32> to vector<72x128xf32>
    %135 = arith.subf %115, %134 : vector<72x128xf32>
    %cst_105 = arith.constant 9.99999974E-6 : f32
    %136 = vector.broadcast %cst_105 : f32 to vector<1x128xf32>
    %137 = arith.addf %133, %136 : vector<1x128xf32>
    %138 = math.rsqrt %137 : vector<1x128xf32>
    %139 = vector.broadcast %138 : vector<1x128xf32> to vector<72x128xf32>
    %140 = arith.mulf %135, %139 : vector<72x128xf32>
    %cst_106 = arith.constant 0.000000e+00 : f32
    %141 = vector.broadcast %cst_106 : f32 to vector<72x128xf32>
    %142 = arith.cmpf oge, %140, %141 : vector<72x128xf32>
    %cst_107 = arith.constant 2.000000e-01 : f32
    %143 = vector.broadcast %cst_107 : f32 to vector<72x128xf32>
    %144 = arith.mulf %143, %140 : vector<72x128xf32>
    %145 = arith.select %142, %140, %144 : vector<72x128xi1>, vector<72x128xf32>
    %c0_108 = arith.constant 0 : index
    %c0_109 = arith.constant 0 : index
    %c0_110 = arith.constant 0 : index
    %146 = vector.load %arg5[%c0_108, %c0_109, %c0_110] : memref<1x72x128xf32, #tpu.memory_space<vmem>>, vector<1x72x128xf32>
    %147 = vector.shape_cast %146 : vector<1x72x128xf32> to vector<72x128xf32>
    %148 = vector.shape_cast %145 : vector<72x128xf32> to vector<1x72x128xf32>
    tpu.vector_store %arg5[%c0_108, %c0_109, %c0_110], %148 {strides = array<i32>} : memref<1x72x128xf32, #tpu.memory_space<vmem>>, vector<1x72x128xf32>,
    return
  }
  func.func @transform_0(%arg0: i32) -> (i32, i32, i32) {
    %c0_i32 = arith.constant 0 : i32
    %c0_i32_0 = arith.constant 0 : i32
    %c0_i32_1 = arith.constant 0 : i32
    return %arg0, %c0_i32, %c0_i32_0 : i32, i32, i32
  }
  func.func @transform_1(%arg0: i32) -> (i32, i32, i32) {
    %c0_i32 = arith.constant 0 : i32
    %c0_i32_0 = arith.constant 0 : i32
    %c0_i32_1 = arith.constant 0 : i32
    %c0_i32_2 = arith.constant 0 : i32
    return %c0_i32, %c0_i32_0, %c0_i32_1 : i32, i32, i32
  }
  func.func @transform_2(%arg0: i32) -> (i32, i32) {
    %c0_i32 = arith.constant 0 : i32
    %c0_i32_0 = arith.constant 0 : i32
    %c0_i32_1 = arith.constant 0 : i32
    return %c0_i32, %c0_i32_0 : i32, i32
  }
  func.func @transform_3(%arg0: i32) -> (i32, i32) {
    %c0_i32 = arith.constant 0 : i32
    %c0_i32_0 = arith.constant 0 : i32
    %c0_i32_1 = arith.constant 0 : i32
    return %c0_i32, %c0_i32_0 : i32, i32
  }
  func.func @transform_4(%arg0: i32) -> (i32, i32, i32) {
    %c0_i32 = arith.constant 0 : i32
    %c0_i32_0 = arith.constant 0 : i32
    %c0_i32_1 = arith.constant 0 : i32
    return %arg0, %c0_i32, %c0_i32_0 : i32, i32, i32
  }
}

module attributes {stable_mosaic.version = 11 : i64} {
  func.func @_conv_block_kernel(%arg0: i32, %arg1: memref<4x26x8xf32, #tpu.memory_space<vmem>>, %arg2: memref<16x8x128xbf16, #tpu.memory_space<vmem>>, %arg3: memref<1x128xf32, #tpu.memory_space<vmem>>, %arg4: memref<20x1xf32, #tpu.memory_space<vmem>>, %arg5: memref<1x20x128xf32, #tpu.memory_space<vmem>>) attributes {dimension_semantics = [#tpu.dimension_semantics<parallel>], iteration_bounds = array<i64: 2>, scalar_prefetch = 0 : i64, scratch_operands = 0 : i64, tpu.core_type = #tpu.core_type<tc>, window_params = [{transform_indices = @transform_0, window_bounds = array<i64: 4, 26, 8>}, {pipeline_mode = #tpu.pipeline_mode<synchronous>, transform_indices = @transform_1, window_bounds = array<i64: 16, 8, 128>}, {pipeline_mode = #tpu.pipeline_mode<synchronous>, transform_indices = @transform_2, window_bounds = array<i64: 1, 128>}, {pipeline_mode = #tpu.pipeline_mode<synchronous>, transform_indices = @transform_3, window_bounds = array<i64: 20, 1>}, {transform_indices = @transform_4, window_bounds = array<i64: 1, 20, 128>}]} {
    %cst = arith.constant 0.000000e+00 : f32
    %0 = vector.broadcast %cst : f32 to vector<20x128xf32>
    %c0 = arith.constant 0 : index
    %c0_0 = arith.constant 0 : index
    %c0_1 = arith.constant 0 : index
    %1 = vector.load %arg1[%c0, %c0_0, %c0_1] : memref<4x26x8xf32, #tpu.memory_space<vmem>>, vector<1x20x8xf32>
    %2 = vector.shape_cast %1 : vector<1x20x8xf32> to vector<20x8xf32>
    %3 = arith.truncf %2 : vector<20x8xf32> to vector<20x8xbf16>
    %c0_2 = arith.constant 0 : index
    %c0_3 = arith.constant 0 : index
    %c0_4 = arith.constant 0 : index
    %4 = vector.load %arg2[%c0_2, %c0_3, %c0_4] : memref<16x8x128xbf16, #tpu.memory_space<vmem>>, vector<1x8x128xbf16>
    %5 = vector.shape_cast %4 : vector<1x8x128xbf16> to vector<8x128xbf16>
    %cst_5 = arith.constant dense<0.000000e+00> : vector<20x128xf32>
    %6 = tpu.matmul %3, %5, %cst_5 {dimension_numbers = #tpu.dot_dimension_numbers<[1], [0], [0], [1], [0, 0, 1, 1], [], []>} : vector<20x8xbf16>, vector<8x128xbf16>, vector<20x128xf32> -> vector<20x128xf32>
    %7 = arith.addf %0, %6 : vector<20x128xf32>
    %c1 = arith.constant 1 : index
    %c0_6 = arith.constant 0 : index
    %c0_7 = arith.constant 0 : index
    %8 = vector.load %arg1[%c1, %c0_6, %c0_7] : memref<4x26x8xf32, #tpu.memory_space<vmem>>, vector<1x20x8xf32>
    %9 = vector.shape_cast %8 : vector<1x20x8xf32> to vector<20x8xf32>
    %10 = arith.truncf %9 : vector<20x8xf32> to vector<20x8xbf16>
    %c1_8 = arith.constant 1 : index
    %c0_9 = arith.constant 0 : index
    %c0_10 = arith.constant 0 : index
    %11 = vector.load %arg2[%c1_8, %c0_9, %c0_10] : memref<16x8x128xbf16, #tpu.memory_space<vmem>>, vector<1x8x128xbf16>
    %12 = vector.shape_cast %11 : vector<1x8x128xbf16> to vector<8x128xbf16>
    %cst_11 = arith.constant dense<0.000000e+00> : vector<20x128xf32>
    %13 = tpu.matmul %10, %12, %cst_11 {dimension_numbers = #tpu.dot_dimension_numbers<[1], [0], [0], [1], [0, 0, 1, 1], [], []>} : vector<20x8xbf16>, vector<8x128xbf16>, vector<20x128xf32> -> vector<20x128xf32>
    %14 = arith.addf %7, %13 : vector<20x128xf32>
    %c0_12 = arith.constant 0 : index
    %c1_13 = arith.constant 1 : index
    %c0_14 = arith.constant 0 : index
    %15 = vector.load %arg1[%c0_12, %c1_13, %c0_14] : memref<4x26x8xf32, #tpu.memory_space<vmem>>, vector<1x20x8xf32>
    %16 = vector.shape_cast %15 : vector<1x20x8xf32> to vector<20x8xf32>
    %17 = arith.truncf %16 : vector<20x8xf32> to vector<20x8xbf16>
    %c2 = arith.constant 2 : index
    %c0_15 = arith.constant 0 : index
    %c0_16 = arith.constant 0 : index
    %18 = vector.load %arg2[%c2, %c0_15, %c0_16] : memref<16x8x128xbf16, #tpu.memory_space<vmem>>, vector<1x8x128xbf16>
    %19 = vector.shape_cast %18 : vector<1x8x128xbf16> to vector<8x128xbf16>
    %cst_17 = arith.constant dense<0.000000e+00> : vector<20x128xf32>
    %20 = tpu.matmul %17, %19, %cst_17 {dimension_numbers = #tpu.dot_dimension_numbers<[1], [0], [0], [1], [0, 0, 1, 1], [], []>} : vector<20x8xbf16>, vector<8x128xbf16>, vector<20x128xf32> -> vector<20x128xf32>
    %21 = arith.addf %14, %20 : vector<20x128xf32>
    %c1_18 = arith.constant 1 : index
    %c1_19 = arith.constant 1 : index
    %c0_20 = arith.constant 0 : index
    %22 = vector.load %arg1[%c1_18, %c1_19, %c0_20] : memref<4x26x8xf32, #tpu.memory_space<vmem>>, vector<1x20x8xf32>
    %23 = vector.shape_cast %22 : vector<1x20x8xf32> to vector<20x8xf32>
    %24 = arith.truncf %23 : vector<20x8xf32> to vector<20x8xbf16>
    %c3 = arith.constant 3 : index
    %c0_21 = arith.constant 0 : index
    %c0_22 = arith.constant 0 : index
    %25 = vector.load %arg2[%c3, %c0_21, %c0_22] : memref<16x8x128xbf16, #tpu.memory_space<vmem>>, vector<1x8x128xbf16>
    %26 = vector.shape_cast %25 : vector<1x8x128xbf16> to vector<8x128xbf16>
    %cst_23 = arith.constant dense<0.000000e+00> : vector<20x128xf32>
    %27 = tpu.matmul %24, %26, %cst_23 {dimension_numbers = #tpu.dot_dimension_numbers<[1], [0], [0], [1], [0, 0, 1, 1], [], []>} : vector<20x8xbf16>, vector<8x128xbf16>, vector<20x128xf32> -> vector<20x128xf32>
    %28 = arith.addf %21, %27 : vector<20x128xf32>
    %c2_24 = arith.constant 2 : index
    %c0_25 = arith.constant 0 : index
    %c0_26 = arith.constant 0 : index
    %29 = vector.load %arg1[%c2_24, %c0_25, %c0_26] : memref<4x26x8xf32, #tpu.memory_space<vmem>>, vector<1x20x8xf32>
    %30 = vector.shape_cast %29 : vector<1x20x8xf32> to vector<20x8xf32>
    %31 = arith.truncf %30 : vector<20x8xf32> to vector<20x8xbf16>
    %c4 = arith.constant 4 : index
    %c0_27 = arith.constant 0 : index
    %c0_28 = arith.constant 0 : index
    %32 = vector.load %arg2[%c4, %c0_27, %c0_28] : memref<16x8x128xbf16, #tpu.memory_space<vmem>>, vector<1x8x128xbf16>
    %33 = vector.shape_cast %32 : vector<1x8x128xbf16> to vector<8x128xbf16>
    %cst_29 = arith.constant dense<0.000000e+00> : vector<20x128xf32>
    %34 = tpu.matmul %31, %33, %cst_29 {dimension_numbers = #tpu.dot_dimension_numbers<[1], [0], [0], [1], [0, 0, 1, 1], [], []>} : vector<20x8xbf16>, vector<8x128xbf16>, vector<20x128xf32> -> vector<20x128xf32>
    %35 = arith.addf %28, %34 : vector<20x128xf32>
    %c3_30 = arith.constant 3 : index
    %c0_31 = arith.constant 0 : index
    %c0_32 = arith.constant 0 : index
    %36 = vector.load %arg1[%c3_30, %c0_31, %c0_32] : memref<4x26x8xf32, #tpu.memory_space<vmem>>, vector<1x20x8xf32>
    %37 = vector.shape_cast %36 : vector<1x20x8xf32> to vector<20x8xf32>
    %38 = arith.truncf %37 : vector<20x8xf32> to vector<20x8xbf16>
    %c5 = arith.constant 5 : index
    %c0_33 = arith.constant 0 : index
    %c0_34 = arith.constant 0 : index
    %39 = vector.load %arg2[%c5, %c0_33, %c0_34] : memref<16x8x128xbf16, #tpu.memory_space<vmem>>, vector<1x8x128xbf16>
    %40 = vector.shape_cast %39 : vector<1x8x128xbf16> to vector<8x128xbf16>
    %cst_35 = arith.constant dense<0.000000e+00> : vector<20x128xf32>
    %41 = tpu.matmul %38, %40, %cst_35 {dimension_numbers = #tpu.dot_dimension_numbers<[1], [0], [0], [1], [0, 0, 1, 1], [], []>} : vector<20x8xbf16>, vector<8x128xbf16>, vector<20x128xf32> -> vector<20x128xf32>
    %42 = arith.addf %35, %41 : vector<20x128xf32>
    %c2_36 = arith.constant 2 : index
    %c1_37 = arith.constant 1 : index
    %c0_38 = arith.constant 0 : index
    %43 = vector.load %arg1[%c2_36, %c1_37, %c0_38] : memref<4x26x8xf32, #tpu.memory_space<vmem>>, vector<1x20x8xf32>
    %44 = vector.shape_cast %43 : vector<1x20x8xf32> to vector<20x8xf32>
    %45 = arith.truncf %44 : vector<20x8xf32> to vector<20x8xbf16>
    %c6 = arith.constant 6 : index
    %c0_39 = arith.constant 0 : index
    %c0_40 = arith.constant 0 : index
    %46 = vector.load %arg2[%c6, %c0_39, %c0_40] : memref<16x8x128xbf16, #tpu.memory_space<vmem>>, vector<1x8x128xbf16>
    %47 = vector.shape_cast %46 : vector<1x8x128xbf16> to vector<8x128xbf16>
    %cst_41 = arith.constant dense<0.000000e+00> : vector<20x128xf32>
    %48 = tpu.matmul %45, %47, %cst_41 {dimension_numbers = #tpu.dot_dimension_numbers<[1], [0], [0], [1], [0, 0, 1, 1], [], []>} : vector<20x8xbf16>, vector<8x128xbf16>, vector<20x128xf32> -> vector<20x128xf32>
    %49 = arith.addf %42, %48 : vector<20x128xf32>
    %c3_42 = arith.constant 3 : index
    %c1_43 = arith.constant 1 : index
    %c0_44 = arith.constant 0 : index
    %50 = vector.load %arg1[%c3_42, %c1_43, %c0_44] : memref<4x26x8xf32, #tpu.memory_space<vmem>>, vector<1x20x8xf32>
    %51 = vector.shape_cast %50 : vector<1x20x8xf32> to vector<20x8xf32>
    %52 = arith.truncf %51 : vector<20x8xf32> to vector<20x8xbf16>
    %c7 = arith.constant 7 : index
    %c0_45 = arith.constant 0 : index
    %c0_46 = arith.constant 0 : index
    %53 = vector.load %arg2[%c7, %c0_45, %c0_46] : memref<16x8x128xbf16, #tpu.memory_space<vmem>>, vector<1x8x128xbf16>
    %54 = vector.shape_cast %53 : vector<1x8x128xbf16> to vector<8x128xbf16>
    %cst_47 = arith.constant dense<0.000000e+00> : vector<20x128xf32>
    %55 = tpu.matmul %52, %54, %cst_47 {dimension_numbers = #tpu.dot_dimension_numbers<[1], [0], [0], [1], [0, 0, 1, 1], [], []>} : vector<20x8xbf16>, vector<8x128xbf16>, vector<20x128xf32> -> vector<20x128xf32>
    %56 = arith.addf %49, %55 : vector<20x128xf32>
    %c0_48 = arith.constant 0 : index
    %c5_49 = arith.constant 5 : index
    %c0_50 = arith.constant 0 : index
    %57 = vector.load %arg1[%c0_48, %c5_49, %c0_50] : memref<4x26x8xf32, #tpu.memory_space<vmem>>, vector<1x20x8xf32>
    %58 = vector.shape_cast %57 : vector<1x20x8xf32> to vector<20x8xf32>
    %59 = arith.truncf %58 : vector<20x8xf32> to vector<20x8xbf16>
    %c8 = arith.constant 8 : index
    %c0_51 = arith.constant 0 : index
    %c0_52 = arith.constant 0 : index
    %60 = vector.load %arg2[%c8, %c0_51, %c0_52] : memref<16x8x128xbf16, #tpu.memory_space<vmem>>, vector<1x8x128xbf16>
    %61 = vector.shape_cast %60 : vector<1x8x128xbf16> to vector<8x128xbf16>
    %cst_53 = arith.constant dense<0.000000e+00> : vector<20x128xf32>
    %62 = tpu.matmul %59, %61, %cst_53 {dimension_numbers = #tpu.dot_dimension_numbers<[1], [0], [0], [1], [0, 0, 1, 1], [], []>} : vector<20x8xbf16>, vector<8x128xbf16>, vector<20x128xf32> -> vector<20x128xf32>
    %63 = arith.addf %56, %62 : vector<20x128xf32>
    %c1_54 = arith.constant 1 : index
    %c5_55 = arith.constant 5 : index
    %c0_56 = arith.constant 0 : index
    %64 = vector.load %arg1[%c1_54, %c5_55, %c0_56] : memref<4x26x8xf32, #tpu.memory_space<vmem>>, vector<1x20x8xf32>
    %65 = vector.shape_cast %64 : vector<1x20x8xf32> to vector<20x8xf32>
    %66 = arith.truncf %65 : vector<20x8xf32> to vector<20x8xbf16>
    %c9 = arith.constant 9 : index
    %c0_57 = arith.constant 0 : index
    %c0_58 = arith.constant 0 : index
    %67 = vector.load %arg2[%c9, %c0_57, %c0_58] : memref<16x8x128xbf16, #tpu.memory_space<vmem>>, vector<1x8x128xbf16>
    %68 = vector.shape_cast %67 : vector<1x8x128xbf16> to vector<8x128xbf16>
    %cst_59 = arith.constant dense<0.000000e+00> : vector<20x128xf32>
    %69 = tpu.matmul %66, %68, %cst_59 {dimension_numbers = #tpu.dot_dimension_numbers<[1], [0], [0], [1], [0, 0, 1, 1], [], []>} : vector<20x8xbf16>, vector<8x128xbf16>, vector<20x128xf32> -> vector<20x128xf32>
    %70 = arith.addf %63, %69 : vector<20x128xf32>
    %c0_60 = arith.constant 0 : index
    %c6_61 = arith.constant 6 : index
    %c0_62 = arith.constant 0 : index
    %71 = vector.load %arg1[%c0_60, %c6_61, %c0_62] : memref<4x26x8xf32, #tpu.memory_space<vmem>>, vector<1x20x8xf32>
    %72 = vector.shape_cast %71 : vector<1x20x8xf32> to vector<20x8xf32>
    %73 = arith.truncf %72 : vector<20x8xf32> to vector<20x8xbf16>
    %c10 = arith.constant 10 : index
    %c0_63 = arith.constant 0 : index
    %c0_64 = arith.constant 0 : index
    %74 = vector.load %arg2[%c10, %c0_63, %c0_64] : memref<16x8x128xbf16, #tpu.memory_space<vmem>>, vector<1x8x128xbf16>
    %75 = vector.shape_cast %74 : vector<1x8x128xbf16> to vector<8x128xbf16>
    %cst_65 = arith.constant dense<0.000000e+00> : vector<20x128xf32>
    %76 = tpu.matmul %73, %75, %cst_65 {dimension_numbers = #tpu.dot_dimension_numbers<[1], [0], [0], [1], [0, 0, 1, 1], [], []>} : vector<20x8xbf16>, vector<8x128xbf16>, vector<20x128xf32> -> vector<20x128xf32>
    %77 = arith.addf %70, %76 : vector<20x128xf32>
    %c1_66 = arith.constant 1 : index
    %c6_67 = arith.constant 6 : index
    %c0_68 = arith.constant 0 : index
    %78 = vector.load %arg1[%c1_66, %c6_67, %c0_68] : memref<4x26x8xf32, #tpu.memory_space<vmem>>, vector<1x20x8xf32>
    %79 = vector.shape_cast %78 : vector<1x20x8xf32> to vector<20x8xf32>
    %80 = arith.truncf %79 : vector<20x8xf32> to vector<20x8xbf16>
    %c11 = arith.constant 11 : index
    %c0_69 = arith.constant 0 : index
    %c0_70 = arith.constant 0 : index
    %81 = vector.load %arg2[%c11, %c0_69, %c0_70] : memref<16x8x128xbf16, #tpu.memory_space<vmem>>, vector<1x8x128xbf16>
    %82 = vector.shape_cast %81 : vector<1x8x128xbf16> to vector<8x128xbf16>
    %cst_71 = arith.constant dense<0.000000e+00> : vector<20x128xf32>
    %83 = tpu.matmul %80, %82, %cst_71 {dimension_numbers = #tpu.dot_dimension_numbers<[1], [0], [0], [1], [0, 0, 1, 1], [], []>} : vector<20x8xbf16>, vector<8x128xbf16>, vector<20x128xf32> -> vector<20x128xf32>
    %84 = arith.addf %77, %83 : vector<20x128xf32>
    %c2_72 = arith.constant 2 : index
    %c5_73 = arith.constant 5 : index
    %c0_74 = arith.constant 0 : index
    %85 = vector.load %arg1[%c2_72, %c5_73, %c0_74] : memref<4x26x8xf32, #tpu.memory_space<vmem>>, vector<1x20x8xf32>
    %86 = vector.shape_cast %85 : vector<1x20x8xf32> to vector<20x8xf32>
    %87 = arith.truncf %86 : vector<20x8xf32> to vector<20x8xbf16>
    %c12 = arith.constant 12 : index
    %c0_75 = arith.constant 0 : index
    %c0_76 = arith.constant 0 : index
    %88 = vector.load %arg2[%c12, %c0_75, %c0_76] : memref<16x8x128xbf16, #tpu.memory_space<vmem>>, vector<1x8x128xbf16>
    %89 = vector.shape_cast %88 : vector<1x8x128xbf16> to vector<8x128xbf16>
    %cst_77 = arith.constant dense<0.000000e+00> : vector<20x128xf32>
    %90 = tpu.matmul %87, %89, %cst_77 {dimension_numbers = #tpu.dot_dimension_numbers<[1], [0], [0], [1], [0, 0, 1, 1], [], []>} : vector<20x8xbf16>, vector<8x128xbf16>, vector<20x128xf32> -> vector<20x128xf32>
    %91 = arith.addf %84, %90 : vector<20x128xf32>
    %c3_78 = arith.constant 3 : index
    %c5_79 = arith.constant 5 : index
    %c0_80 = arith.constant 0 : index
    %92 = vector.load %arg1[%c3_78, %c5_79, %c0_80] : memref<4x26x8xf32, #tpu.memory_space<vmem>>, vector<1x20x8xf32>
    %93 = vector.shape_cast %92 : vector<1x20x8xf32> to vector<20x8xf32>
    %94 = arith.truncf %93 : vector<20x8xf32> to vector<20x8xbf16>
    %c13 = arith.constant 13 : index
    %c0_81 = arith.constant 0 : index
    %c0_82 = arith.constant 0 : index
    %95 = vector.load %arg2[%c13, %c0_81, %c0_82] : memref<16x8x128xbf16, #tpu.memory_space<vmem>>, vector<1x8x128xbf16>
    %96 = vector.shape_cast %95 : vector<1x8x128xbf16> to vector<8x128xbf16>
    %cst_83 = arith.constant dense<0.000000e+00> : vector<20x128xf32>
    %97 = tpu.matmul %94, %96, %cst_83 {dimension_numbers = #tpu.dot_dimension_numbers<[1], [0], [0], [1], [0, 0, 1, 1], [], []>} : vector<20x8xbf16>, vector<8x128xbf16>, vector<20x128xf32> -> vector<20x128xf32>
    %98 = arith.addf %91, %97 : vector<20x128xf32>
    %c2_84 = arith.constant 2 : index
    %c6_85 = arith.constant 6 : index
    %c0_86 = arith.constant 0 : index
    %99 = vector.load %arg1[%c2_84, %c6_85, %c0_86] : memref<4x26x8xf32, #tpu.memory_space<vmem>>, vector<1x20x8xf32>
    %100 = vector.shape_cast %99 : vector<1x20x8xf32> to vector<20x8xf32>
    %101 = arith.truncf %100 : vector<20x8xf32> to vector<20x8xbf16>
    %c14 = arith.constant 14 : index
    %c0_87 = arith.constant 0 : index
    %c0_88 = arith.constant 0 : index
    %102 = vector.load %arg2[%c14, %c0_87, %c0_88] : memref<16x8x128xbf16, #tpu.memory_space<vmem>>, vector<1x8x128xbf16>
    %103 = vector.shape_cast %102 : vector<1x8x128xbf16> to vector<8x128xbf16>
    %cst_89 = arith.constant dense<0.000000e+00> : vector<20x128xf32>
    %104 = tpu.matmul %101, %103, %cst_89 {dimension_numbers = #tpu.dot_dimension_numbers<[1], [0], [0], [1], [0, 0, 1, 1], [], []>} : vector<20x8xbf16>, vector<8x128xbf16>, vector<20x128xf32> -> vector<20x128xf32>
    %105 = arith.addf %98, %104 : vector<20x128xf32>
    %c3_90 = arith.constant 3 : index
    %c6_91 = arith.constant 6 : index
    %c0_92 = arith.constant 0 : index
    %106 = vector.load %arg1[%c3_90, %c6_91, %c0_92] : memref<4x26x8xf32, #tpu.memory_space<vmem>>, vector<1x20x8xf32>
    %107 = vector.shape_cast %106 : vector<1x20x8xf32> to vector<20x8xf32>
    %108 = arith.truncf %107 : vector<20x8xf32> to vector<20x8xbf16>
    %c15 = arith.constant 15 : index
    %c0_93 = arith.constant 0 : index
    %c0_94 = arith.constant 0 : index
    %109 = vector.load %arg2[%c15, %c0_93, %c0_94] : memref<16x8x128xbf16, #tpu.memory_space<vmem>>, vector<1x8x128xbf16>
    %110 = vector.shape_cast %109 : vector<1x8x128xbf16> to vector<8x128xbf16>
    %cst_95 = arith.constant dense<0.000000e+00> : vector<20x128xf32>
    %111 = tpu.matmul %108, %110, %cst_95 {dimension_numbers = #tpu.dot_dimension_numbers<[1], [0], [0], [1], [0, 0, 1, 1], [], []>} : vector<20x8xbf16>, vector<8x128xbf16>, vector<20x128xf32> -> vector<20x128xf32>
    %112 = arith.addf %105, %111 : vector<20x128xf32>
    %c0_96 = arith.constant 0 : index
    %c0_97 = arith.constant 0 : index
    %113 = vector.load %arg3[%c0_96, %c0_97] : memref<1x128xf32, #tpu.memory_space<vmem>>, vector<1x128xf32>
    %114 = vector.broadcast %113 : vector<1x128xf32> to vector<20x128xf32>
    %115 = arith.addf %112, %114 : vector<20x128xf32>
    %c0_98 = arith.constant 0 : index
    %c0_99 = arith.constant 0 : index
    %116 = vector.load %arg4[%c0_98, %c0_99] : memref<20x1xf32, #tpu.memory_space<vmem>>, vector<20x1xf32>
    %117 = vector.broadcast %116 : vector<20x1xf32> to vector<20x128xf32>
    %118 = arith.mulf %115, %117 : vector<20x128xf32>
    %cst_100 = arith.constant dense<0.000000e+00> : vector<128xf32>
    %119 = vector.multi_reduction <add>, %118, %cst_100 [0] : vector<20x128xf32> to vector<128xf32>
    %120 = vector.shape_cast %119 : vector<128xf32> to vector<1x128xf32>
    %cst_101 = arith.constant 6.250000e-02 : f32
    %121 = vector.broadcast %cst_101 : f32 to vector<1x128xf32>
    %122 = arith.mulf %120, %121 : vector<1x128xf32>
    %123 = arith.mulf %115, %115 : vector<20x128xf32>
    %124 = vector.broadcast %116 : vector<20x1xf32> to vector<20x128xf32>
    %125 = arith.mulf %123, %124 : vector<20x128xf32>
    %cst_102 = arith.constant dense<0.000000e+00> : vector<128xf32>
    %126 = vector.multi_reduction <add>, %125, %cst_102 [0] : vector<20x128xf32> to vector<128xf32>
    %127 = vector.shape_cast %126 : vector<128xf32> to vector<1x128xf32>
    %cst_103 = arith.constant 6.250000e-02 : f32
    %128 = vector.broadcast %cst_103 : f32 to vector<1x128xf32>
    %129 = arith.mulf %127, %128 : vector<1x128xf32>
    %130 = arith.mulf %122, %122 : vector<1x128xf32>
    %131 = arith.subf %129, %130 : vector<1x128xf32>
    %cst_104 = arith.constant 0.000000e+00 : f32
    %132 = vector.broadcast %cst_104 : f32 to vector<1x128xf32>
    %133 = arith.maximumf %131, %132 : vector<1x128xf32>
    %134 = vector.broadcast %122 : vector<1x128xf32> to vector<20x128xf32>
    %135 = arith.subf %115, %134 : vector<20x128xf32>
    %cst_105 = arith.constant 9.99999974E-6 : f32
    %136 = vector.broadcast %cst_105 : f32 to vector<1x128xf32>
    %137 = arith.addf %133, %136 : vector<1x128xf32>
    %138 = math.rsqrt %137 : vector<1x128xf32>
    %139 = vector.broadcast %138 : vector<1x128xf32> to vector<20x128xf32>
    %140 = arith.mulf %135, %139 : vector<20x128xf32>
    %cst_106 = arith.constant 0.000000e+00 : f32
    %141 = vector.broadcast %cst_106 : f32 to vector<20x128xf32>
    %142 = arith.cmpf oge, %140, %141 : vector<20x128xf32>
    %cst_107 = arith.constant 2.000000e-01 : f32
    %143 = vector.broadcast %cst_107 : f32 to vector<20x128xf32>
    %144 = arith.mulf %143, %140 : vector<20x128xf32>
    %145 = arith.select %142, %140, %144 : vector<20x128xi1>, vector<20x128xf32>
    %c0_108 = arith.constant 0 : index
    %c0_109 = arith.constant 0 : index
    %c0_110 = arith.constant 0 : index
    %146 = vector.load %arg5[%c0_108, %c0_109, %c0_110] : memref<1x20x128xf32, #tpu.memory_space<vmem>>, vector<1x20x128xf32>
    %147 = vector.shape_cast %146 : vector<1x20x128xf32> to vector<20x128xf32>
    %148 = vector.shape_cast %145 : vector<20x128xf32> to vector<1x20x128xf32>
    tpu.vector_store %arg5[%c0_108, %c0_109, %c0_110], %148 {strides = array<i32>} : memref<1x20x128xf32, #tpu.memory_space<vmem>>, vector<1x20x128xf32>,
    return
  }
  func.func @transform_0(%arg0: i32) -> (i32, i32, i32) {
    %c0_i32 = arith.constant 0 : i32
    %c0_i32_0 = arith.constant 0 : i32
    %c0_i32_1 = arith.constant 0 : i32
    return %arg0, %c0_i32, %c0_i32_0 : i32, i32, i32
  }
  func.func @transform_1(%arg0: i32) -> (i32, i32, i32) {
    %c0_i32 = arith.constant 0 : i32
    %c0_i32_0 = arith.constant 0 : i32
    %c0_i32_1 = arith.constant 0 : i32
    %c0_i32_2 = arith.constant 0 : i32
    return %c0_i32, %c0_i32_0, %c0_i32_1 : i32, i32, i32
  }
  func.func @transform_2(%arg0: i32) -> (i32, i32) {
    %c0_i32 = arith.constant 0 : i32
    %c0_i32_0 = arith.constant 0 : i32
    %c0_i32_1 = arith.constant 0 : i32
    return %c0_i32, %c0_i32_0 : i32, i32
  }
  func.func @transform_3(%arg0: i32) -> (i32, i32) {
    %c0_i32 = arith.constant 0 : i32
    %c0_i32_0 = arith.constant 0 : i32
    %c0_i32_1 = arith.constant 0 : i32
    return %c0_i32, %c0_i32_0 : i32, i32
  }
  func.func @transform_4(%arg0: i32) -> (i32, i32, i32) {
    %c0_i32 = arith.constant 0 : i32
    %c0_i32_0 = arith.constant 0 : i32
    %c0_i32_1 = arith.constant 0 : i32
    return %arg0, %c0_i32, %c0_i32_0 : i32, i32, i32
  }
}

module attributes {stable_mosaic.version = 11 : i64} {
  func.func @_conv_block_kernel(%arg0: i32, %arg1: memref<1x39x16xf32, #tpu.memory_space<vmem>>, %arg2: memref<16x16x128xbf16, #tpu.memory_space<vmem>>, %arg3: memref<1x128xf32, #tpu.memory_space<vmem>>, %arg4: memref<18x1xf32, #tpu.memory_space<vmem>>, %arg5: memref<1x18x128xf32, #tpu.memory_space<vmem>>) attributes {dimension_semantics = [#tpu.dimension_semantics<parallel>], iteration_bounds = array<i64: 2>, scalar_prefetch = 0 : i64, scratch_operands = 0 : i64, tpu.core_type = #tpu.core_type<tc>, window_params = [{transform_indices = @transform_0, window_bounds = array<i64: 1, 39, 16>}, {pipeline_mode = #tpu.pipeline_mode<synchronous>, transform_indices = @transform_1, window_bounds = array<i64: 16, 16, 128>}, {pipeline_mode = #tpu.pipeline_mode<synchronous>, transform_indices = @transform_2, window_bounds = array<i64: 1, 128>}, {pipeline_mode = #tpu.pipeline_mode<synchronous>, transform_indices = @transform_3, window_bounds = array<i64: 18, 1>}, {transform_indices = @transform_4, window_bounds = array<i64: 1, 18, 128>}]} {
    %cst = arith.constant 0.000000e+00 : f32
    %0 = vector.broadcast %cst : f32 to vector<18x128xf32>
    %c0 = arith.constant 0 : index
    %c0_0 = arith.constant 0 : index
    %c0_1 = arith.constant 0 : index
    %1 = vector.load %arg1[%c0, %c0_0, %c0_1] : memref<1x39x16xf32, #tpu.memory_space<vmem>>, vector<1x18x16xf32>
    %2 = vector.shape_cast %1 : vector<1x18x16xf32> to vector<18x16xf32>
    %3 = arith.truncf %2 : vector<18x16xf32> to vector<18x16xbf16>
    %c0_2 = arith.constant 0 : index
    %c0_3 = arith.constant 0 : index
    %c0_4 = arith.constant 0 : index
    %4 = vector.load %arg2[%c0_2, %c0_3, %c0_4] : memref<16x16x128xbf16, #tpu.memory_space<vmem>>, vector<1x16x128xbf16>
    %5 = vector.shape_cast %4 : vector<1x16x128xbf16> to vector<16x128xbf16>
    %cst_5 = arith.constant dense<0.000000e+00> : vector<18x128xf32>
    %6 = tpu.matmul %3, %5, %cst_5 {dimension_numbers = #tpu.dot_dimension_numbers<[1], [0], [0], [1], [0, 0, 1, 1], [], []>} : vector<18x16xbf16>, vector<16x128xbf16>, vector<18x128xf32> -> vector<18x128xf32>
    %7 = arith.addf %0, %6 : vector<18x128xf32>
    %c0_6 = arith.constant 0 : index
    %c1 = arith.constant 1 : index
    %c0_7 = arith.constant 0 : index
    %8 = vector.load %arg1[%c0_6, %c1, %c0_7] : memref<1x39x16xf32, #tpu.memory_space<vmem>>, vector<1x18x16xf32>
    %9 = vector.shape_cast %8 : vector<1x18x16xf32> to vector<18x16xf32>
    %10 = arith.truncf %9 : vector<18x16xf32> to vector<18x16xbf16>
    %c1_8 = arith.constant 1 : index
    %c0_9 = arith.constant 0 : index
    %c0_10 = arith.constant 0 : index
    %11 = vector.load %arg2[%c1_8, %c0_9, %c0_10] : memref<16x16x128xbf16, #tpu.memory_space<vmem>>, vector<1x16x128xbf16>
    %12 = vector.shape_cast %11 : vector<1x16x128xbf16> to vector<16x128xbf16>
    %cst_11 = arith.constant dense<0.000000e+00> : vector<18x128xf32>
    %13 = tpu.matmul %10, %12, %cst_11 {dimension_numbers = #tpu.dot_dimension_numbers<[1], [0], [0], [1], [0, 0, 1, 1], [], []>} : vector<18x16xbf16>, vector<16x128xbf16>, vector<18x128xf32> -> vector<18x128xf32>
    %14 = arith.addf %7, %13 : vector<18x128xf32>
    %c0_12 = arith.constant 0 : index
    %c2 = arith.constant 2 : index
    %c0_13 = arith.constant 0 : index
    %15 = vector.load %arg1[%c0_12, %c2, %c0_13] : memref<1x39x16xf32, #tpu.memory_space<vmem>>, vector<1x18x16xf32>
    %16 = vector.shape_cast %15 : vector<1x18x16xf32> to vector<18x16xf32>
    %17 = arith.truncf %16 : vector<18x16xf32> to vector<18x16xbf16>
    %c2_14 = arith.constant 2 : index
    %c0_15 = arith.constant 0 : index
    %c0_16 = arith.constant 0 : index
    %18 = vector.load %arg2[%c2_14, %c0_15, %c0_16] : memref<16x16x128xbf16, #tpu.memory_space<vmem>>, vector<1x16x128xbf16>
    %19 = vector.shape_cast %18 : vector<1x16x128xbf16> to vector<16x128xbf16>
    %cst_17 = arith.constant dense<0.000000e+00> : vector<18x128xf32>
    %20 = tpu.matmul %17, %19, %cst_17 {dimension_numbers = #tpu.dot_dimension_numbers<[1], [0], [0], [1], [0, 0, 1, 1], [], []>} : vector<18x16xbf16>, vector<16x128xbf16>, vector<18x128xf32> -> vector<18x128xf32>
    %21 = arith.addf %14, %20 : vector<18x128xf32>
    %c0_18 = arith.constant 0 : index
    %c3 = arith.constant 3 : index
    %c0_19 = arith.constant 0 : index
    %22 = vector.load %arg1[%c0_18, %c3, %c0_19] : memref<1x39x16xf32, #tpu.memory_space<vmem>>, vector<1x18x16xf32>
    %23 = vector.shape_cast %22 : vector<1x18x16xf32> to vector<18x16xf32>
    %24 = arith.truncf %23 : vector<18x16xf32> to vector<18x16xbf16>
    %c3_20 = arith.constant 3 : index
    %c0_21 = arith.constant 0 : index
    %c0_22 = arith.constant 0 : index
    %25 = vector.load %arg2[%c3_20, %c0_21, %c0_22] : memref<16x16x128xbf16, #tpu.memory_space<vmem>>, vector<1x16x128xbf16>
    %26 = vector.shape_cast %25 : vector<1x16x128xbf16> to vector<16x128xbf16>
    %cst_23 = arith.constant dense<0.000000e+00> : vector<18x128xf32>
    %27 = tpu.matmul %24, %26, %cst_23 {dimension_numbers = #tpu.dot_dimension_numbers<[1], [0], [0], [1], [0, 0, 1, 1], [], []>} : vector<18x16xbf16>, vector<16x128xbf16>, vector<18x128xf32> -> vector<18x128xf32>
    %28 = arith.addf %21, %27 : vector<18x128xf32>
    %c0_24 = arith.constant 0 : index
    %c6 = arith.constant 6 : index
    %c0_25 = arith.constant 0 : index
    %29 = vector.load %arg1[%c0_24, %c6, %c0_25] : memref<1x39x16xf32, #tpu.memory_space<vmem>>, vector<1x18x16xf32>
    %30 = vector.shape_cast %29 : vector<1x18x16xf32> to vector<18x16xf32>
    %31 = arith.truncf %30 : vector<18x16xf32> to vector<18x16xbf16>
    %c4 = arith.constant 4 : index
    %c0_26 = arith.constant 0 : index
    %c0_27 = arith.constant 0 : index
    %32 = vector.load %arg2[%c4, %c0_26, %c0_27] : memref<16x16x128xbf16, #tpu.memory_space<vmem>>, vector<1x16x128xbf16>
    %33 = vector.shape_cast %32 : vector<1x16x128xbf16> to vector<16x128xbf16>
    %cst_28 = arith.constant dense<0.000000e+00> : vector<18x128xf32>
    %34 = tpu.matmul %31, %33, %cst_28 {dimension_numbers = #tpu.dot_dimension_numbers<[1], [0], [0], [1], [0, 0, 1, 1], [], []>} : vector<18x16xbf16>, vector<16x128xbf16>, vector<18x128xf32> -> vector<18x128xf32>
    %35 = arith.addf %28, %34 : vector<18x128xf32>
    %c0_29 = arith.constant 0 : index
    %c7 = arith.constant 7 : index
    %c0_30 = arith.constant 0 : index
    %36 = vector.load %arg1[%c0_29, %c7, %c0_30] : memref<1x39x16xf32, #tpu.memory_space<vmem>>, vector<1x18x16xf32>
    %37 = vector.shape_cast %36 : vector<1x18x16xf32> to vector<18x16xf32>
    %38 = arith.truncf %37 : vector<18x16xf32> to vector<18x16xbf16>
    %c5 = arith.constant 5 : index
    %c0_31 = arith.constant 0 : index
    %c0_32 = arith.constant 0 : index
    %39 = vector.load %arg2[%c5, %c0_31, %c0_32] : memref<16x16x128xbf16, #tpu.memory_space<vmem>>, vector<1x16x128xbf16>
    %40 = vector.shape_cast %39 : vector<1x16x128xbf16> to vector<16x128xbf16>
    %cst_33 = arith.constant dense<0.000000e+00> : vector<18x128xf32>
    %41 = tpu.matmul %38, %40, %cst_33 {dimension_numbers = #tpu.dot_dimension_numbers<[1], [0], [0], [1], [0, 0, 1, 1], [], []>} : vector<18x16xbf16>, vector<16x128xbf16>, vector<18x128xf32> -> vector<18x128xf32>
    %42 = arith.addf %35, %41 : vector<18x128xf32>
    %c0_34 = arith.constant 0 : index
    %c8 = arith.constant 8 : index
    %c0_35 = arith.constant 0 : index
    %43 = vector.load %arg1[%c0_34, %c8, %c0_35] : memref<1x39x16xf32, #tpu.memory_space<vmem>>, vector<1x18x16xf32>
    %44 = vector.shape_cast %43 : vector<1x18x16xf32> to vector<18x16xf32>
    %45 = arith.truncf %44 : vector<18x16xf32> to vector<18x16xbf16>
    %c6_36 = arith.constant 6 : index
    %c0_37 = arith.constant 0 : index
    %c0_38 = arith.constant 0 : index
    %46 = vector.load %arg2[%c6_36, %c0_37, %c0_38] : memref<16x16x128xbf16, #tpu.memory_space<vmem>>, vector<1x16x128xbf16>
    %47 = vector.shape_cast %46 : vector<1x16x128xbf16> to vector<16x128xbf16>
    %cst_39 = arith.constant dense<0.000000e+00> : vector<18x128xf32>
    %48 = tpu.matmul %45, %47, %cst_39 {dimension_numbers = #tpu.dot_dimension_numbers<[1], [0], [0], [1], [0, 0, 1, 1], [], []>} : vector<18x16xbf16>, vector<16x128xbf16>, vector<18x128xf32> -> vector<18x128xf32>
    %49 = arith.addf %42, %48 : vector<18x128xf32>
    %c0_40 = arith.constant 0 : index
    %c9 = arith.constant 9 : index
    %c0_41 = arith.constant 0 : index
    %50 = vector.load %arg1[%c0_40, %c9, %c0_41] : memref<1x39x16xf32, #tpu.memory_space<vmem>>, vector<1x18x16xf32>
    %51 = vector.shape_cast %50 : vector<1x18x16xf32> to vector<18x16xf32>
    %52 = arith.truncf %51 : vector<18x16xf32> to vector<18x16xbf16>
    %c7_42 = arith.constant 7 : index
    %c0_43 = arith.constant 0 : index
    %c0_44 = arith.constant 0 : index
    %53 = vector.load %arg2[%c7_42, %c0_43, %c0_44] : memref<16x16x128xbf16, #tpu.memory_space<vmem>>, vector<1x16x128xbf16>
    %54 = vector.shape_cast %53 : vector<1x16x128xbf16> to vector<16x128xbf16>
    %cst_45 = arith.constant dense<0.000000e+00> : vector<18x128xf32>
    %55 = tpu.matmul %52, %54, %cst_45 {dimension_numbers = #tpu.dot_dimension_numbers<[1], [0], [0], [1], [0, 0, 1, 1], [], []>} : vector<18x16xbf16>, vector<16x128xbf16>, vector<18x128xf32> -> vector<18x128xf32>
    %56 = arith.addf %49, %55 : vector<18x128xf32>
    %c0_46 = arith.constant 0 : index
    %c12 = arith.constant 12 : index
    %c0_47 = arith.constant 0 : index
    %57 = vector.load %arg1[%c0_46, %c12, %c0_47] : memref<1x39x16xf32, #tpu.memory_space<vmem>>, vector<1x18x16xf32>
    %58 = vector.shape_cast %57 : vector<1x18x16xf32> to vector<18x16xf32>
    %59 = arith.truncf %58 : vector<18x16xf32> to vector<18x16xbf16>
    %c8_48 = arith.constant 8 : index
    %c0_49 = arith.constant 0 : index
    %c0_50 = arith.constant 0 : index
    %60 = vector.load %arg2[%c8_48, %c0_49, %c0_50] : memref<16x16x128xbf16, #tpu.memory_space<vmem>>, vector<1x16x128xbf16>
    %61 = vector.shape_cast %60 : vector<1x16x128xbf16> to vector<16x128xbf16>
    %cst_51 = arith.constant dense<0.000000e+00> : vector<18x128xf32>
    %62 = tpu.matmul %59, %61, %cst_51 {dimension_numbers = #tpu.dot_dimension_numbers<[1], [0], [0], [1], [0, 0, 1, 1], [], []>} : vector<18x16xbf16>, vector<16x128xbf16>, vector<18x128xf32> -> vector<18x128xf32>
    %63 = arith.addf %56, %62 : vector<18x128xf32>
    %c0_52 = arith.constant 0 : index
    %c13 = arith.constant 13 : index
    %c0_53 = arith.constant 0 : index
    %64 = vector.load %arg1[%c0_52, %c13, %c0_53] : memref<1x39x16xf32, #tpu.memory_space<vmem>>, vector<1x18x16xf32>
    %65 = vector.shape_cast %64 : vector<1x18x16xf32> to vector<18x16xf32>
    %66 = arith.truncf %65 : vector<18x16xf32> to vector<18x16xbf16>
    %c9_54 = arith.constant 9 : index
    %c0_55 = arith.constant 0 : index
    %c0_56 = arith.constant 0 : index
    %67 = vector.load %arg2[%c9_54, %c0_55, %c0_56] : memref<16x16x128xbf16, #tpu.memory_space<vmem>>, vector<1x16x128xbf16>
    %68 = vector.shape_cast %67 : vector<1x16x128xbf16> to vector<16x128xbf16>
    %cst_57 = arith.constant dense<0.000000e+00> : vector<18x128xf32>
    %69 = tpu.matmul %66, %68, %cst_57 {dimension_numbers = #tpu.dot_dimension_numbers<[1], [0], [0], [1], [0, 0, 1, 1], [], []>} : vector<18x16xbf16>, vector<16x128xbf16>, vector<18x128xf32> -> vector<18x128xf32>
    %70 = arith.addf %63, %69 : vector<18x128xf32>
    %c0_58 = arith.constant 0 : index
    %c14 = arith.constant 14 : index
    %c0_59 = arith.constant 0 : index
    %71 = vector.load %arg1[%c0_58, %c14, %c0_59] : memref<1x39x16xf32, #tpu.memory_space<vmem>>, vector<1x18x16xf32>
    %72 = vector.shape_cast %71 : vector<1x18x16xf32> to vector<18x16xf32>
    %73 = arith.truncf %72 : vector<18x16xf32> to vector<18x16xbf16>
    %c10 = arith.constant 10 : index
    %c0_60 = arith.constant 0 : index
    %c0_61 = arith.constant 0 : index
    %74 = vector.load %arg2[%c10, %c0_60, %c0_61] : memref<16x16x128xbf16, #tpu.memory_space<vmem>>, vector<1x16x128xbf16>
    %75 = vector.shape_cast %74 : vector<1x16x128xbf16> to vector<16x128xbf16>
    %cst_62 = arith.constant dense<0.000000e+00> : vector<18x128xf32>
    %76 = tpu.matmul %73, %75, %cst_62 {dimension_numbers = #tpu.dot_dimension_numbers<[1], [0], [0], [1], [0, 0, 1, 1], [], []>} : vector<18x16xbf16>, vector<16x128xbf16>, vector<18x128xf32> -> vector<18x128xf32>
    %77 = arith.addf %70, %76 : vector<18x128xf32>
    %c0_63 = arith.constant 0 : index
    %c15 = arith.constant 15 : index
    %c0_64 = arith.constant 0 : index
    %78 = vector.load %arg1[%c0_63, %c15, %c0_64] : memref<1x39x16xf32, #tpu.memory_space<vmem>>, vector<1x18x16xf32>
    %79 = vector.shape_cast %78 : vector<1x18x16xf32> to vector<18x16xf32>
    %80 = arith.truncf %79 : vector<18x16xf32> to vector<18x16xbf16>
    %c11 = arith.constant 11 : index
    %c0_65 = arith.constant 0 : index
    %c0_66 = arith.constant 0 : index
    %81 = vector.load %arg2[%c11, %c0_65, %c0_66] : memref<16x16x128xbf16, #tpu.memory_space<vmem>>, vector<1x16x128xbf16>
    %82 = vector.shape_cast %81 : vector<1x16x128xbf16> to vector<16x128xbf16>
    %cst_67 = arith.constant dense<0.000000e+00> : vector<18x128xf32>
    %83 = tpu.matmul %80, %82, %cst_67 {dimension_numbers = #tpu.dot_dimension_numbers<[1], [0], [0], [1], [0, 0, 1, 1], [], []>} : vector<18x16xbf16>, vector<16x128xbf16>, vector<18x128xf32> -> vector<18x128xf32>
    %84 = arith.addf %77, %83 : vector<18x128xf32>
    %c0_68 = arith.constant 0 : index
    %c18 = arith.constant 18 : index
    %c0_69 = arith.constant 0 : index
    %85 = vector.load %arg1[%c0_68, %c18, %c0_69] : memref<1x39x16xf32, #tpu.memory_space<vmem>>, vector<1x18x16xf32>
    %86 = vector.shape_cast %85 : vector<1x18x16xf32> to vector<18x16xf32>
    %87 = arith.truncf %86 : vector<18x16xf32> to vector<18x16xbf16>
    %c12_70 = arith.constant 12 : index
    %c0_71 = arith.constant 0 : index
    %c0_72 = arith.constant 0 : index
    %88 = vector.load %arg2[%c12_70, %c0_71, %c0_72] : memref<16x16x128xbf16, #tpu.memory_space<vmem>>, vector<1x16x128xbf16>
    %89 = vector.shape_cast %88 : vector<1x16x128xbf16> to vector<16x128xbf16>
    %cst_73 = arith.constant dense<0.000000e+00> : vector<18x128xf32>
    %90 = tpu.matmul %87, %89, %cst_73 {dimension_numbers = #tpu.dot_dimension_numbers<[1], [0], [0], [1], [0, 0, 1, 1], [], []>} : vector<18x16xbf16>, vector<16x128xbf16>, vector<18x128xf32> -> vector<18x128xf32>
    %91 = arith.addf %84, %90 : vector<18x128xf32>
    %c0_74 = arith.constant 0 : index
    %c19 = arith.constant 19 : index
    %c0_75 = arith.constant 0 : index
    %92 = vector.load %arg1[%c0_74, %c19, %c0_75] : memref<1x39x16xf32, #tpu.memory_space<vmem>>, vector<1x18x16xf32>
    %93 = vector.shape_cast %92 : vector<1x18x16xf32> to vector<18x16xf32>
    %94 = arith.truncf %93 : vector<18x16xf32> to vector<18x16xbf16>
    %c13_76 = arith.constant 13 : index
    %c0_77 = arith.constant 0 : index
    %c0_78 = arith.constant 0 : index
    %95 = vector.load %arg2[%c13_76, %c0_77, %c0_78] : memref<16x16x128xbf16, #tpu.memory_space<vmem>>, vector<1x16x128xbf16>
    %96 = vector.shape_cast %95 : vector<1x16x128xbf16> to vector<16x128xbf16>
    %cst_79 = arith.constant dense<0.000000e+00> : vector<18x128xf32>
    %97 = tpu.matmul %94, %96, %cst_79 {dimension_numbers = #tpu.dot_dimension_numbers<[1], [0], [0], [1], [0, 0, 1, 1], [], []>} : vector<18x16xbf16>, vector<16x128xbf16>, vector<18x128xf32> -> vector<18x128xf32>
    %98 = arith.addf %91, %97 : vector<18x128xf32>
    %c0_80 = arith.constant 0 : index
    %c20 = arith.constant 20 : index
    %c0_81 = arith.constant 0 : index
    %99 = vector.load %arg1[%c0_80, %c20, %c0_81] : memref<1x39x16xf32, #tpu.memory_space<vmem>>, vector<1x18x16xf32>
    %100 = vector.shape_cast %99 : vector<1x18x16xf32> to vector<18x16xf32>
    %101 = arith.truncf %100 : vector<18x16xf32> to vector<18x16xbf16>
    %c14_82 = arith.constant 14 : index
    %c0_83 = arith.constant 0 : index
    %c0_84 = arith.constant 0 : index
    %102 = vector.load %arg2[%c14_82, %c0_83, %c0_84] : memref<16x16x128xbf16, #tpu.memory_space<vmem>>, vector<1x16x128xbf16>
    %103 = vector.shape_cast %102 : vector<1x16x128xbf16> to vector<16x128xbf16>
    %cst_85 = arith.constant dense<0.000000e+00> : vector<18x128xf32>
    %104 = tpu.matmul %101, %103, %cst_85 {dimension_numbers = #tpu.dot_dimension_numbers<[1], [0], [0], [1], [0, 0, 1, 1], [], []>} : vector<18x16xbf16>, vector<16x128xbf16>, vector<18x128xf32> -> vector<18x128xf32>
    %105 = arith.addf %98, %104 : vector<18x128xf32>
    %c0_86 = arith.constant 0 : index
    %c21 = arith.constant 21 : index
    %c0_87 = arith.constant 0 : index
    %106 = vector.load %arg1[%c0_86, %c21, %c0_87] : memref<1x39x16xf32, #tpu.memory_space<vmem>>, vector<1x18x16xf32>
    %107 = vector.shape_cast %106 : vector<1x18x16xf32> to vector<18x16xf32>
    %108 = arith.truncf %107 : vector<18x16xf32> to vector<18x16xbf16>
    %c15_88 = arith.constant 15 : index
    %c0_89 = arith.constant 0 : index
    %c0_90 = arith.constant 0 : index
    %109 = vector.load %arg2[%c15_88, %c0_89, %c0_90] : memref<16x16x128xbf16, #tpu.memory_space<vmem>>, vector<1x16x128xbf16>
    %110 = vector.shape_cast %109 : vector<1x16x128xbf16> to vector<16x128xbf16>
    %cst_91 = arith.constant dense<0.000000e+00> : vector<18x128xf32>
    %111 = tpu.matmul %108, %110, %cst_91 {dimension_numbers = #tpu.dot_dimension_numbers<[1], [0], [0], [1], [0, 0, 1, 1], [], []>} : vector<18x16xbf16>, vector<16x128xbf16>, vector<18x128xf32> -> vector<18x128xf32>
    %112 = arith.addf %105, %111 : vector<18x128xf32>
    %c0_92 = arith.constant 0 : index
    %c0_93 = arith.constant 0 : index
    %113 = vector.load %arg3[%c0_92, %c0_93] : memref<1x128xf32, #tpu.memory_space<vmem>>, vector<1x128xf32>
    %114 = vector.broadcast %113 : vector<1x128xf32> to vector<18x128xf32>
    %115 = arith.addf %112, %114 : vector<18x128xf32>
    %c0_94 = arith.constant 0 : index
    %c0_95 = arith.constant 0 : index
    %116 = vector.load %arg4[%c0_94, %c0_95] : memref<18x1xf32, #tpu.memory_space<vmem>>, vector<18x1xf32>
    %117 = vector.broadcast %116 : vector<18x1xf32> to vector<18x128xf32>
    %118 = arith.mulf %115, %117 : vector<18x128xf32>
    %cst_96 = arith.constant dense<0.000000e+00> : vector<128xf32>
    %119 = vector.multi_reduction <add>, %118, %cst_96 [0] : vector<18x128xf32> to vector<128xf32>
    %120 = vector.shape_cast %119 : vector<128xf32> to vector<1x128xf32>
    %cst_97 = arith.constant 0.111111112 : f32
    %121 = vector.broadcast %cst_97 : f32 to vector<1x128xf32>
    %122 = arith.mulf %120, %121 : vector<1x128xf32>
    %123 = arith.mulf %115, %115 : vector<18x128xf32>
    %124 = vector.broadcast %116 : vector<18x1xf32> to vector<18x128xf32>
    %125 = arith.mulf %123, %124 : vector<18x128xf32>
    %cst_98 = arith.constant dense<0.000000e+00> : vector<128xf32>
    %126 = vector.multi_reduction <add>, %125, %cst_98 [0] : vector<18x128xf32> to vector<128xf32>
    %127 = vector.shape_cast %126 : vector<128xf32> to vector<1x128xf32>
    %cst_99 = arith.constant 0.111111112 : f32
    %128 = vector.broadcast %cst_99 : f32 to vector<1x128xf32>
    %129 = arith.mulf %127, %128 : vector<1x128xf32>
    %130 = arith.mulf %122, %122 : vector<1x128xf32>
    %131 = arith.subf %129, %130 : vector<1x128xf32>
    %cst_100 = arith.constant 0.000000e+00 : f32
    %132 = vector.broadcast %cst_100 : f32 to vector<1x128xf32>
    %133 = arith.maximumf %131, %132 : vector<1x128xf32>
    %134 = vector.broadcast %122 : vector<1x128xf32> to vector<18x128xf32>
    %135 = arith.subf %115, %134 : vector<18x128xf32>
    %cst_101 = arith.constant 9.99999974E-6 : f32
    %136 = vector.broadcast %cst_101 : f32 to vector<1x128xf32>
    %137 = arith.addf %133, %136 : vector<1x128xf32>
    %138 = math.rsqrt %137 : vector<1x128xf32>
    %139 = vector.broadcast %138 : vector<1x128xf32> to vector<18x128xf32>
    %140 = arith.mulf %135, %139 : vector<18x128xf32>
    %cst_102 = arith.constant 0.000000e+00 : f32
    %141 = vector.broadcast %cst_102 : f32 to vector<18x128xf32>
    %142 = arith.cmpf oge, %140, %141 : vector<18x128xf32>
    %cst_103 = arith.constant 2.000000e-01 : f32
    %143 = vector.broadcast %cst_103 : f32 to vector<18x128xf32>
    %144 = arith.mulf %143, %140 : vector<18x128xf32>
    %145 = arith.select %142, %140, %144 : vector<18x128xi1>, vector<18x128xf32>
    %c0_104 = arith.constant 0 : index
    %c0_105 = arith.constant 0 : index
    %c0_106 = arith.constant 0 : index
    %146 = vector.load %arg5[%c0_104, %c0_105, %c0_106] : memref<1x18x128xf32, #tpu.memory_space<vmem>>, vector<1x18x128xf32>
    %147 = vector.shape_cast %146 : vector<1x18x128xf32> to vector<18x128xf32>
    %148 = vector.shape_cast %145 : vector<18x128xf32> to vector<1x18x128xf32>
    tpu.vector_store %arg5[%c0_104, %c0_105, %c0_106], %148 {strides = array<i32>} : memref<1x18x128xf32, #tpu.memory_space<vmem>>, vector<1x18x128xf32>,
    return
  }
  func.func @transform_0(%arg0: i32) -> (i32, i32, i32) {
    %c0_i32 = arith.constant 0 : i32
    %c0_i32_0 = arith.constant 0 : i32
    %c0_i32_1 = arith.constant 0 : i32
    return %arg0, %c0_i32, %c0_i32_0 : i32, i32, i32
  }
  func.func @transform_1(%arg0: i32) -> (i32, i32, i32) {
    %c0_i32 = arith.constant 0 : i32
    %c0_i32_0 = arith.constant 0 : i32
    %c0_i32_1 = arith.constant 0 : i32
    %c0_i32_2 = arith.constant 0 : i32
    return %c0_i32, %c0_i32_0, %c0_i32_1 : i32, i32, i32
  }
  func.func @transform_2(%arg0: i32) -> (i32, i32) {
    %c0_i32 = arith.constant 0 : i32
    %c0_i32_0 = arith.constant 0 : i32
    %c0_i32_1 = arith.constant 0 : i32
    return %c0_i32, %c0_i32_0 : i32, i32
  }
  func.func @transform_3(%arg0: i32) -> (i32, i32) {
    %c0_i32 = arith.constant 0 : i32
    %c0_i32_0 = arith.constant 0 : i32
    %c0_i32_1 = arith.constant 0 : i32
    return %c0_i32, %c0_i32_0 : i32, i32
  }
  func.func @transform_4(%arg0: i32) -> (i32, i32, i32) {
    %c0_i32 = arith.constant 0 : i32
    %c0_i32_0 = arith.constant 0 : i32
    %c0_i32_1 = arith.constant 0 : i32
    return %arg0, %c0_i32, %c0_i32_0 : i32, i32, i32
  }
}

module attributes {stable_mosaic.version = 11 : i64} {
  func.func @_conv_block_kernel(%arg0: i32, %arg1: memref<1x28x32xf32, #tpu.memory_space<vmem>>, %arg2: memref<16x32x128xbf16, #tpu.memory_space<vmem>>, %arg3: memref<1x128xf32, #tpu.memory_space<vmem>>, %arg4: memref<10x1xf32, #tpu.memory_space<vmem>>, %arg5: memref<1x10x128xf32, #tpu.memory_space<vmem>>) attributes {dimension_semantics = [#tpu.dimension_semantics<parallel>], iteration_bounds = array<i64: 2>, scalar_prefetch = 0 : i64, scratch_operands = 0 : i64, tpu.core_type = #tpu.core_type<tc>, window_params = [{transform_indices = @transform_0, window_bounds = array<i64: 1, 28, 32>}, {pipeline_mode = #tpu.pipeline_mode<synchronous>, transform_indices = @transform_1, window_bounds = array<i64: 16, 32, 128>}, {pipeline_mode = #tpu.pipeline_mode<synchronous>, transform_indices = @transform_2, window_bounds = array<i64: 1, 128>}, {pipeline_mode = #tpu.pipeline_mode<synchronous>, transform_indices = @transform_3, window_bounds = array<i64: 10, 1>}, {transform_indices = @transform_4, window_bounds = array<i64: 1, 10, 128>}]} {
    %cst = arith.constant 0.000000e+00 : f32
    %0 = vector.broadcast %cst : f32 to vector<10x128xf32>
    %c0 = arith.constant 0 : index
    %c0_0 = arith.constant 0 : index
    %c0_1 = arith.constant 0 : index
    %1 = vector.load %arg1[%c0, %c0_0, %c0_1] : memref<1x28x32xf32, #tpu.memory_space<vmem>>, vector<1x10x32xf32>
    %2 = vector.shape_cast %1 : vector<1x10x32xf32> to vector<10x32xf32>
    %3 = arith.truncf %2 : vector<10x32xf32> to vector<10x32xbf16>
    %c0_2 = arith.constant 0 : index
    %c0_3 = arith.constant 0 : index
    %c0_4 = arith.constant 0 : index
    %4 = vector.load %arg2[%c0_2, %c0_3, %c0_4] : memref<16x32x128xbf16, #tpu.memory_space<vmem>>, vector<1x32x128xbf16>
    %5 = vector.shape_cast %4 : vector<1x32x128xbf16> to vector<32x128xbf16>
    %cst_5 = arith.constant dense<0.000000e+00> : vector<10x128xf32>
    %6 = tpu.matmul %3, %5, %cst_5 {dimension_numbers = #tpu.dot_dimension_numbers<[1], [0], [0], [1], [0, 0, 1, 1], [], []>} : vector<10x32xbf16>, vector<32x128xbf16>, vector<10x128xf32> -> vector<10x128xf32>
    %7 = arith.addf %0, %6 : vector<10x128xf32>
    %c0_6 = arith.constant 0 : index
    %c1 = arith.constant 1 : index
    %c0_7 = arith.constant 0 : index
    %8 = vector.load %arg1[%c0_6, %c1, %c0_7] : memref<1x28x32xf32, #tpu.memory_space<vmem>>, vector<1x10x32xf32>
    %9 = vector.shape_cast %8 : vector<1x10x32xf32> to vector<10x32xf32>
    %10 = arith.truncf %9 : vector<10x32xf32> to vector<10x32xbf16>
    %c1_8 = arith.constant 1 : index
    %c0_9 = arith.constant 0 : index
    %c0_10 = arith.constant 0 : index
    %11 = vector.load %arg2[%c1_8, %c0_9, %c0_10] : memref<16x32x128xbf16, #tpu.memory_space<vmem>>, vector<1x32x128xbf16>
    %12 = vector.shape_cast %11 : vector<1x32x128xbf16> to vector<32x128xbf16>
    %cst_11 = arith.constant dense<0.000000e+00> : vector<10x128xf32>
    %13 = tpu.matmul %10, %12, %cst_11 {dimension_numbers = #tpu.dot_dimension_numbers<[1], [0], [0], [1], [0, 0, 1, 1], [], []>} : vector<10x32xbf16>, vector<32x128xbf16>, vector<10x128xf32> -> vector<10x128xf32>
    %14 = arith.addf %7, %13 : vector<10x128xf32>
    %c0_12 = arith.constant 0 : index
    %c2 = arith.constant 2 : index
    %c0_13 = arith.constant 0 : index
    %15 = vector.load %arg1[%c0_12, %c2, %c0_13] : memref<1x28x32xf32, #tpu.memory_space<vmem>>, vector<1x10x32xf32>
    %16 = vector.shape_cast %15 : vector<1x10x32xf32> to vector<10x32xf32>
    %17 = arith.truncf %16 : vector<10x32xf32> to vector<10x32xbf16>
    %c2_14 = arith.constant 2 : index
    %c0_15 = arith.constant 0 : index
    %c0_16 = arith.constant 0 : index
    %18 = vector.load %arg2[%c2_14, %c0_15, %c0_16] : memref<16x32x128xbf16, #tpu.memory_space<vmem>>, vector<1x32x128xbf16>
    %19 = vector.shape_cast %18 : vector<1x32x128xbf16> to vector<32x128xbf16>
    %cst_17 = arith.constant dense<0.000000e+00> : vector<10x128xf32>
    %20 = tpu.matmul %17, %19, %cst_17 {dimension_numbers = #tpu.dot_dimension_numbers<[1], [0], [0], [1], [0, 0, 1, 1], [], []>} : vector<10x32xbf16>, vector<32x128xbf16>, vector<10x128xf32> -> vector<10x128xf32>
    %21 = arith.addf %14, %20 : vector<10x128xf32>
    %c0_18 = arith.constant 0 : index
    %c3 = arith.constant 3 : index
    %c0_19 = arith.constant 0 : index
    %22 = vector.load %arg1[%c0_18, %c3, %c0_19] : memref<1x28x32xf32, #tpu.memory_space<vmem>>, vector<1x10x32xf32>
    %23 = vector.shape_cast %22 : vector<1x10x32xf32> to vector<10x32xf32>
    %24 = arith.truncf %23 : vector<10x32xf32> to vector<10x32xbf16>
    %c3_20 = arith.constant 3 : index
    %c0_21 = arith.constant 0 : index
    %c0_22 = arith.constant 0 : index
    %25 = vector.load %arg2[%c3_20, %c0_21, %c0_22] : memref<16x32x128xbf16, #tpu.memory_space<vmem>>, vector<1x32x128xbf16>
    %26 = vector.shape_cast %25 : vector<1x32x128xbf16> to vector<32x128xbf16>
    %cst_23 = arith.constant dense<0.000000e+00> : vector<10x128xf32>
    %27 = tpu.matmul %24, %26, %cst_23 {dimension_numbers = #tpu.dot_dimension_numbers<[1], [0], [0], [1], [0, 0, 1, 1], [], []>} : vector<10x32xbf16>, vector<32x128xbf16>, vector<10x128xf32> -> vector<10x128xf32>
    %28 = arith.addf %21, %27 : vector<10x128xf32>
    %c0_24 = arith.constant 0 : index
    %c5 = arith.constant 5 : index
    %c0_25 = arith.constant 0 : index
    %29 = vector.load %arg1[%c0_24, %c5, %c0_25] : memref<1x28x32xf32, #tpu.memory_space<vmem>>, vector<1x10x32xf32>
    %30 = vector.shape_cast %29 : vector<1x10x32xf32> to vector<10x32xf32>
    %31 = arith.truncf %30 : vector<10x32xf32> to vector<10x32xbf16>
    %c4 = arith.constant 4 : index
    %c0_26 = arith.constant 0 : index
    %c0_27 = arith.constant 0 : index
    %32 = vector.load %arg2[%c4, %c0_26, %c0_27] : memref<16x32x128xbf16, #tpu.memory_space<vmem>>, vector<1x32x128xbf16>
    %33 = vector.shape_cast %32 : vector<1x32x128xbf16> to vector<32x128xbf16>
    %cst_28 = arith.constant dense<0.000000e+00> : vector<10x128xf32>
    %34 = tpu.matmul %31, %33, %cst_28 {dimension_numbers = #tpu.dot_dimension_numbers<[1], [0], [0], [1], [0, 0, 1, 1], [], []>} : vector<10x32xbf16>, vector<32x128xbf16>, vector<10x128xf32> -> vector<10x128xf32>
    %35 = arith.addf %28, %34 : vector<10x128xf32>
    %c0_29 = arith.constant 0 : index
    %c6 = arith.constant 6 : index
    %c0_30 = arith.constant 0 : index
    %36 = vector.load %arg1[%c0_29, %c6, %c0_30] : memref<1x28x32xf32, #tpu.memory_space<vmem>>, vector<1x10x32xf32>
    %37 = vector.shape_cast %36 : vector<1x10x32xf32> to vector<10x32xf32>
    %38 = arith.truncf %37 : vector<10x32xf32> to vector<10x32xbf16>
    %c5_31 = arith.constant 5 : index
    %c0_32 = arith.constant 0 : index
    %c0_33 = arith.constant 0 : index
    %39 = vector.load %arg2[%c5_31, %c0_32, %c0_33] : memref<16x32x128xbf16, #tpu.memory_space<vmem>>, vector<1x32x128xbf16>
    %40 = vector.shape_cast %39 : vector<1x32x128xbf16> to vector<32x128xbf16>
    %cst_34 = arith.constant dense<0.000000e+00> : vector<10x128xf32>
    %41 = tpu.matmul %38, %40, %cst_34 {dimension_numbers = #tpu.dot_dimension_numbers<[1], [0], [0], [1], [0, 0, 1, 1], [], []>} : vector<10x32xbf16>, vector<32x128xbf16>, vector<10x128xf32> -> vector<10x128xf32>
    %42 = arith.addf %35, %41 : vector<10x128xf32>
    %c0_35 = arith.constant 0 : index
    %c7 = arith.constant 7 : index
    %c0_36 = arith.constant 0 : index
    %43 = vector.load %arg1[%c0_35, %c7, %c0_36] : memref<1x28x32xf32, #tpu.memory_space<vmem>>, vector<1x10x32xf32>
    %44 = vector.shape_cast %43 : vector<1x10x32xf32> to vector<10x32xf32>
    %45 = arith.truncf %44 : vector<10x32xf32> to vector<10x32xbf16>
    %c6_37 = arith.constant 6 : index
    %c0_38 = arith.constant 0 : index
    %c0_39 = arith.constant 0 : index
    %46 = vector.load %arg2[%c6_37, %c0_38, %c0_39] : memref<16x32x128xbf16, #tpu.memory_space<vmem>>, vector<1x32x128xbf16>
    %47 = vector.shape_cast %46 : vector<1x32x128xbf16> to vector<32x128xbf16>
    %cst_40 = arith.constant dense<0.000000e+00> : vector<10x128xf32>
    %48 = tpu.matmul %45, %47, %cst_40 {dimension_numbers = #tpu.dot_dimension_numbers<[1], [0], [0], [1], [0, 0, 1, 1], [], []>} : vector<10x32xbf16>, vector<32x128xbf16>, vector<10x128xf32> -> vector<10x128xf32>
    %49 = arith.addf %42, %48 : vector<10x128xf32>
    %c0_41 = arith.constant 0 : index
    %c8 = arith.constant 8 : index
    %c0_42 = arith.constant 0 : index
    %50 = vector.load %arg1[%c0_41, %c8, %c0_42] : memref<1x28x32xf32, #tpu.memory_space<vmem>>, vector<1x10x32xf32>
    %51 = vector.shape_cast %50 : vector<1x10x32xf32> to vector<10x32xf32>
    %52 = arith.truncf %51 : vector<10x32xf32> to vector<10x32xbf16>
    %c7_43 = arith.constant 7 : index
    %c0_44 = arith.constant 0 : index
    %c0_45 = arith.constant 0 : index
    %53 = vector.load %arg2[%c7_43, %c0_44, %c0_45] : memref<16x32x128xbf16, #tpu.memory_space<vmem>>, vector<1x32x128xbf16>
    %54 = vector.shape_cast %53 : vector<1x32x128xbf16> to vector<32x128xbf16>
    %cst_46 = arith.constant dense<0.000000e+00> : vector<10x128xf32>
    %55 = tpu.matmul %52, %54, %cst_46 {dimension_numbers = #tpu.dot_dimension_numbers<[1], [0], [0], [1], [0, 0, 1, 1], [], []>} : vector<10x32xbf16>, vector<32x128xbf16>, vector<10x128xf32> -> vector<10x128xf32>
    %56 = arith.addf %49, %55 : vector<10x128xf32>
    %c0_47 = arith.constant 0 : index
    %c10 = arith.constant 10 : index
    %c0_48 = arith.constant 0 : index
    %57 = vector.load %arg1[%c0_47, %c10, %c0_48] : memref<1x28x32xf32, #tpu.memory_space<vmem>>, vector<1x10x32xf32>
    %58 = vector.shape_cast %57 : vector<1x10x32xf32> to vector<10x32xf32>
    %59 = arith.truncf %58 : vector<10x32xf32> to vector<10x32xbf16>
    %c8_49 = arith.constant 8 : index
    %c0_50 = arith.constant 0 : index
    %c0_51 = arith.constant 0 : index
    %60 = vector.load %arg2[%c8_49, %c0_50, %c0_51] : memref<16x32x128xbf16, #tpu.memory_space<vmem>>, vector<1x32x128xbf16>
    %61 = vector.shape_cast %60 : vector<1x32x128xbf16> to vector<32x128xbf16>
    %cst_52 = arith.constant dense<0.000000e+00> : vector<10x128xf32>
    %62 = tpu.matmul %59, %61, %cst_52 {dimension_numbers = #tpu.dot_dimension_numbers<[1], [0], [0], [1], [0, 0, 1, 1], [], []>} : vector<10x32xbf16>, vector<32x128xbf16>, vector<10x128xf32> -> vector<10x128xf32>
    %63 = arith.addf %56, %62 : vector<10x128xf32>
    %c0_53 = arith.constant 0 : index
    %c11 = arith.constant 11 : index
    %c0_54 = arith.constant 0 : index
    %64 = vector.load %arg1[%c0_53, %c11, %c0_54] : memref<1x28x32xf32, #tpu.memory_space<vmem>>, vector<1x10x32xf32>
    %65 = vector.shape_cast %64 : vector<1x10x32xf32> to vector<10x32xf32>
    %66 = arith.truncf %65 : vector<10x32xf32> to vector<10x32xbf16>
    %c9 = arith.constant 9 : index
    %c0_55 = arith.constant 0 : index
    %c0_56 = arith.constant 0 : index
    %67 = vector.load %arg2[%c9, %c0_55, %c0_56] : memref<16x32x128xbf16, #tpu.memory_space<vmem>>, vector<1x32x128xbf16>
    %68 = vector.shape_cast %67 : vector<1x32x128xbf16> to vector<32x128xbf16>
    %cst_57 = arith.constant dense<0.000000e+00> : vector<10x128xf32>
    %69 = tpu.matmul %66, %68, %cst_57 {dimension_numbers = #tpu.dot_dimension_numbers<[1], [0], [0], [1], [0, 0, 1, 1], [], []>} : vector<10x32xbf16>, vector<32x128xbf16>, vector<10x128xf32> -> vector<10x128xf32>
    %70 = arith.addf %63, %69 : vector<10x128xf32>
    %c0_58 = arith.constant 0 : index
    %c12 = arith.constant 12 : index
    %c0_59 = arith.constant 0 : index
    %71 = vector.load %arg1[%c0_58, %c12, %c0_59] : memref<1x28x32xf32, #tpu.memory_space<vmem>>, vector<1x10x32xf32>
    %72 = vector.shape_cast %71 : vector<1x10x32xf32> to vector<10x32xf32>
    %73 = arith.truncf %72 : vector<10x32xf32> to vector<10x32xbf16>
    %c10_60 = arith.constant 10 : index
    %c0_61 = arith.constant 0 : index
    %c0_62 = arith.constant 0 : index
    %74 = vector.load %arg2[%c10_60, %c0_61, %c0_62] : memref<16x32x128xbf16, #tpu.memory_space<vmem>>, vector<1x32x128xbf16>
    %75 = vector.shape_cast %74 : vector<1x32x128xbf16> to vector<32x128xbf16>
    %cst_63 = arith.constant dense<0.000000e+00> : vector<10x128xf32>
    %76 = tpu.matmul %73, %75, %cst_63 {dimension_numbers = #tpu.dot_dimension_numbers<[1], [0], [0], [1], [0, 0, 1, 1], [], []>} : vector<10x32xbf16>, vector<32x128xbf16>, vector<10x128xf32> -> vector<10x128xf32>
    %77 = arith.addf %70, %76 : vector<10x128xf32>
    %c0_64 = arith.constant 0 : index
    %c13 = arith.constant 13 : index
    %c0_65 = arith.constant 0 : index
    %78 = vector.load %arg1[%c0_64, %c13, %c0_65] : memref<1x28x32xf32, #tpu.memory_space<vmem>>, vector<1x10x32xf32>
    %79 = vector.shape_cast %78 : vector<1x10x32xf32> to vector<10x32xf32>
    %80 = arith.truncf %79 : vector<10x32xf32> to vector<10x32xbf16>
    %c11_66 = arith.constant 11 : index
    %c0_67 = arith.constant 0 : index
    %c0_68 = arith.constant 0 : index
    %81 = vector.load %arg2[%c11_66, %c0_67, %c0_68] : memref<16x32x128xbf16, #tpu.memory_space<vmem>>, vector<1x32x128xbf16>
    %82 = vector.shape_cast %81 : vector<1x32x128xbf16> to vector<32x128xbf16>
    %cst_69 = arith.constant dense<0.000000e+00> : vector<10x128xf32>
    %83 = tpu.matmul %80, %82, %cst_69 {dimension_numbers = #tpu.dot_dimension_numbers<[1], [0], [0], [1], [0, 0, 1, 1], [], []>} : vector<10x32xbf16>, vector<32x128xbf16>, vector<10x128xf32> -> vector<10x128xf32>
    %84 = arith.addf %77, %83 : vector<10x128xf32>
    %c0_70 = arith.constant 0 : index
    %c15 = arith.constant 15 : index
    %c0_71 = arith.constant 0 : index
    %85 = vector.load %arg1[%c0_70, %c15, %c0_71] : memref<1x28x32xf32, #tpu.memory_space<vmem>>, vector<1x10x32xf32>
    %86 = vector.shape_cast %85 : vector<1x10x32xf32> to vector<10x32xf32>
    %87 = arith.truncf %86 : vector<10x32xf32> to vector<10x32xbf16>
    %c12_72 = arith.constant 12 : index
    %c0_73 = arith.constant 0 : index
    %c0_74 = arith.constant 0 : index
    %88 = vector.load %arg2[%c12_72, %c0_73, %c0_74] : memref<16x32x128xbf16, #tpu.memory_space<vmem>>, vector<1x32x128xbf16>
    %89 = vector.shape_cast %88 : vector<1x32x128xbf16> to vector<32x128xbf16>
    %cst_75 = arith.constant dense<0.000000e+00> : vector<10x128xf32>
    %90 = tpu.matmul %87, %89, %cst_75 {dimension_numbers = #tpu.dot_dimension_numbers<[1], [0], [0], [1], [0, 0, 1, 1], [], []>} : vector<10x32xbf16>, vector<32x128xbf16>, vector<10x128xf32> -> vector<10x128xf32>
    %91 = arith.addf %84, %90 : vector<10x128xf32>
    %c0_76 = arith.constant 0 : index
    %c16 = arith.constant 16 : index
    %c0_77 = arith.constant 0 : index
    %92 = vector.load %arg1[%c0_76, %c16, %c0_77] : memref<1x28x32xf32, #tpu.memory_space<vmem>>, vector<1x10x32xf32>
    %93 = vector.shape_cast %92 : vector<1x10x32xf32> to vector<10x32xf32>
    %94 = arith.truncf %93 : vector<10x32xf32> to vector<10x32xbf16>
    %c13_78 = arith.constant 13 : index
    %c0_79 = arith.constant 0 : index
    %c0_80 = arith.constant 0 : index
    %95 = vector.load %arg2[%c13_78, %c0_79, %c0_80] : memref<16x32x128xbf16, #tpu.memory_space<vmem>>, vector<1x32x128xbf16>
    %96 = vector.shape_cast %95 : vector<1x32x128xbf16> to vector<32x128xbf16>
    %cst_81 = arith.constant dense<0.000000e+00> : vector<10x128xf32>
    %97 = tpu.matmul %94, %96, %cst_81 {dimension_numbers = #tpu.dot_dimension_numbers<[1], [0], [0], [1], [0, 0, 1, 1], [], []>} : vector<10x32xbf16>, vector<32x128xbf16>, vector<10x128xf32> -> vector<10x128xf32>
    %98 = arith.addf %91, %97 : vector<10x128xf32>
    %c0_82 = arith.constant 0 : index
    %c17 = arith.constant 17 : index
    %c0_83 = arith.constant 0 : index
    %99 = vector.load %arg1[%c0_82, %c17, %c0_83] : memref<1x28x32xf32, #tpu.memory_space<vmem>>, vector<1x10x32xf32>
    %100 = vector.shape_cast %99 : vector<1x10x32xf32> to vector<10x32xf32>
    %101 = arith.truncf %100 : vector<10x32xf32> to vector<10x32xbf16>
    %c14 = arith.constant 14 : index
    %c0_84 = arith.constant 0 : index
    %c0_85 = arith.constant 0 : index
    %102 = vector.load %arg2[%c14, %c0_84, %c0_85] : memref<16x32x128xbf16, #tpu.memory_space<vmem>>, vector<1x32x128xbf16>
    %103 = vector.shape_cast %102 : vector<1x32x128xbf16> to vector<32x128xbf16>
    %cst_86 = arith.constant dense<0.000000e+00> : vector<10x128xf32>
    %104 = tpu.matmul %101, %103, %cst_86 {dimension_numbers = #tpu.dot_dimension_numbers<[1], [0], [0], [1], [0, 0, 1, 1], [], []>} : vector<10x32xbf16>, vector<32x128xbf16>, vector<10x128xf32> -> vector<10x128xf32>
    %105 = arith.addf %98, %104 : vector<10x128xf32>
    %c0_87 = arith.constant 0 : index
    %c18 = arith.constant 18 : index
    %c0_88 = arith.constant 0 : index
    %106 = vector.load %arg1[%c0_87, %c18, %c0_88] : memref<1x28x32xf32, #tpu.memory_space<vmem>>, vector<1x10x32xf32>
    %107 = vector.shape_cast %106 : vector<1x10x32xf32> to vector<10x32xf32>
    %108 = arith.truncf %107 : vector<10x32xf32> to vector<10x32xbf16>
    %c15_89 = arith.constant 15 : index
    %c0_90 = arith.constant 0 : index
    %c0_91 = arith.constant 0 : index
    %109 = vector.load %arg2[%c15_89, %c0_90, %c0_91] : memref<16x32x128xbf16, #tpu.memory_space<vmem>>, vector<1x32x128xbf16>
    %110 = vector.shape_cast %109 : vector<1x32x128xbf16> to vector<32x128xbf16>
    %cst_92 = arith.constant dense<0.000000e+00> : vector<10x128xf32>
    %111 = tpu.matmul %108, %110, %cst_92 {dimension_numbers = #tpu.dot_dimension_numbers<[1], [0], [0], [1], [0, 0, 1, 1], [], []>} : vector<10x32xbf16>, vector<32x128xbf16>, vector<10x128xf32> -> vector<10x128xf32>
    %112 = arith.addf %105, %111 : vector<10x128xf32>
    %c0_93 = arith.constant 0 : index
    %c0_94 = arith.constant 0 : index
    %113 = vector.load %arg3[%c0_93, %c0_94] : memref<1x128xf32, #tpu.memory_space<vmem>>, vector<1x128xf32>
    %114 = vector.broadcast %113 : vector<1x128xf32> to vector<10x128xf32>
    %115 = arith.addf %112, %114 : vector<10x128xf32>
    %116 = arith.negf %115 : vector<10x128xf32>
    %117 = math.exp %116 : vector<10x128xf32>
    %cst_95 = arith.constant 1.000000e+00 : f32
    %118 = vector.broadcast %cst_95 : f32 to vector<10x128xf32>
    %119 = arith.addf %118, %117 : vector<10x128xf32>
    %120 = arith.divf %118, %119 : vector<10x128xf32>
    %c0_96 = arith.constant 0 : index
    %c0_97 = arith.constant 0 : index
    %c0_98 = arith.constant 0 : index
    %121 = vector.load %arg5[%c0_96, %c0_97, %c0_98] : memref<1x10x128xf32, #tpu.memory_space<vmem>>, vector<1x10x128xf32>
    %122 = vector.shape_cast %121 : vector<1x10x128xf32> to vector<10x128xf32>
    %123 = vector.shape_cast %120 : vector<10x128xf32> to vector<1x10x128xf32>
    tpu.vector_store %arg5[%c0_96, %c0_97, %c0_98], %123 {strides = array<i32>} : memref<1x10x128xf32, #tpu.memory_space<vmem>>, vector<1x10x128xf32>,
    return
  }
  func.func @transform_0(%arg0: i32) -> (i32, i32, i32) {
    %c0_i32 = arith.constant 0 : i32
    %c0_i32_0 = arith.constant 0 : i32
    %c0_i32_1 = arith.constant 0 : i32
    return %arg0, %c0_i32, %c0_i32_0 : i32, i32, i32
  }
  func.func @transform_1(%arg0: i32) -> (i32, i32, i32) {
    %c0_i32 = arith.constant 0 : i32
    %c0_i32_0 = arith.constant 0 : i32
    %c0_i32_1 = arith.constant 0 : i32
    %c0_i32_2 = arith.constant 0 : i32
    return %c0_i32, %c0_i32_0, %c0_i32_1 : i32, i32, i32
  }
  func.func @transform_2(%arg0: i32) -> (i32, i32) {
    %c0_i32 = arith.constant 0 : i32
    %c0_i32_0 = arith.constant 0 : i32
    %c0_i32_1 = arith.constant 0 : i32
    return %c0_i32, %c0_i32_0 : i32, i32
  }
  func.func @transform_3(%arg0: i32) -> (i32, i32) {
    %c0_i32 = arith.constant 0 : i32
    %c0_i32_0 = arith.constant 0 : i32
    %c0_i32_1 = arith.constant 0 : i32
    return %c0_i32, %c0_i32_0 : i32, i32
  }
  func.func @transform_4(%arg0: i32) -> (i32, i32, i32) {
    %c0_i32 = arith.constant 0 : i32
    %c0_i32_0 = arith.constant 0 : i32
    %c0_i32_1 = arith.constant 0 : i32
    return %arg0, %c0_i32, %c0_i32_0 : i32, i32, i32
  }
}

</mosaic_0001>

<llo_original>
// kernel: _lambda_.4
$region0: #{_lambda_.4}
  #allocation0 [shape = 'u32[]', space=smem, size = 0x4, offset = 0x4, fixed_abs, tag = 'smem constant byte address 0x4 - core index']
  #allocation1 [shape = 'u32[144,128]{1,0:T(1,128)}', space=vmem, size = 0x12000, scoped, tag = 'internal scratch']
  %s0 = inlined_call_operand.vmem [shape: f32[8,82,4], index: 0, kind: input, shape index: {}]
  %s1 = inlined_call_operand.vmem [shape: bf16[16,4,128], index: 1, kind: input, shape index: {}]
  %s2 = inlined_call_operand.vmem [shape: f32[1,128], index: 2, kind: input, shape index: {}]
  %s3 = inlined_call_operand.vmem [shape: f32[72,1], index: 3, kind: input, shape index: {}]
  %s4 = inlined_call_operand.vmem [shape: f32[2,72,128], index: 4, kind: output, shape index: {}]
  %s5 = sld [smem:[#allocation0]]
  $region49: #{_lambda_.4} parent=0
    _
  %s7 = ssub.s32 1, %s5
  %s8 = scalar_select 0, %s7, %s5
  loop: start=0, step=1, limit=4
  $region2: #{_lambda_.4} parent=0 // loop_pre_header
    _
  $region3: #{_lambda_.4} parent=0 // loop_header
    %s10 = sphi 0, %s14
    %p11 = scmp.ge.s32.totalorder %s10, 4
    %s20 = sphi 0, %s22
    %s23 = sphi 0, %s20
    %s24 = sphi 0, %s23
    %s40 = sphi 0, %s24
    %s44 = sphi 0, %s44
    %s46 = sphi 0, %s44
    %s47 = sphi 0, %s46
    %s61 = sphi 0, %s47
    %s65 = sphi 0, %s65
    %s67 = sphi 0, %s65
    %s68 = sphi 0, %s67
    %s82 = sphi 0, %s68
    %s86 = sphi 0, %s86
    %s88 = sphi 0, %s86
    %s89 = sphi 0, %s88
    %s103 = sphi 0, %s89
    %s109 = sphi 0, %s111
    %s112 = sphi 0, %s109
    %s113 = sphi 0, %s112
    %s129 = sphi 0, %s113
  $region4: #{_lambda_.4} parent=0 // loop_header_branch
    %13 = sbr.rel (%p11) target = $region8
  $region5: #{_lambda_.4} parent=0 // loop_body
    %s15 = ssub.s32 %s10, 1
    %s16 = ssub.s32 %s10, 2
    %s17 = sadd.s32 %s10, 1
    %s18 = ssub.s32 %s10, %s17
    %p19 = scmp.eq.s32.totalorder %s18, 0
    %s21 = sadd.s32 %s20, 1
    %s22 = scalar_select %p19, %s20, %s21
    %p25 = pneg %p19
    %p26 = scmp.eq.s32.totalorder %s10, 1
    %p27 = por %p25, %p26
    %p28 = scmp.ne.s32.totalorder %s20, %s23
    %p29 = scmp.eq.s32.totalorder %s10, 0
    %p30 = por %p28, %p29
    %p31 = scmp.ne.s32.totalorder %s20, %s23
    %p32 = scmp.eq.s32.totalorder %s15, 1
    %p33 = por %p31, %p32
    %p34 = scmp.ne.s32.totalorder %s23, %s24
    %p35 = scmp.eq.s32.totalorder %s15, 0
    %p36 = por %p34, %p35
    %p37 = scmp.ne.s32.totalorder %s23, %s24
    %p38 = scmp.eq.s32.totalorder %s16, 1
    %p39 = por %p37, %p38
    %p41 = scmp.ne.s32.totalorder %s24, %s40
    %p42 = scmp.eq.s32.totalorder %s16, 0
    %p43 = por %p41, %p42
    %s45 = sadd.s32 %s44, 1
    %p48 = scmp.eq.s32.totalorder %s10, 1
    %p49 = scmp.ne.s32.totalorder %s44, %s46
    %p50 = scmp.eq.s32.totalorder %s10, 0
    %p51 = por %p49, %p50
    %p52 = scmp.ne.s32.totalorder %s44, %s46
    %p53 = scmp.eq.s32.totalorder %s15, 1
    %p54 = por %p52, %p53
    %p55 = scmp.ne.s32.totalorder %s46, %s47
    %p56 = scmp.eq.s32.totalorder %s15, 0
    %p57 = por %p55, %p56
    %p58 = scmp.ne.s32.totalorder %s46, %s47
    %p59 = scmp.eq.s32.totalorder %s16, 1
    %p60 = por %p58, %p59
    %p62 = scmp.ne.s32.totalorder %s47, %s61
    %p63 = scmp.eq.s32.totalorder %s16, 0
    %p64 = por %p62, %p63
    %s66 = sadd.s32 %s65, 1
    %p69 = scmp.eq.s32.totalorder %s10, 1
    %p70 = scmp.ne.s32.totalorder %s65, %s67
    %p71 = scmp.eq.s32.totalorder %s10, 0
    %p72 = por %p70, %p71
    %p73 = scmp.ne.s32.totalorder %s65, %s67
    %p74 = scmp.eq.s32.totalorder %s15, 1
    %p75 = por %p73, %p74
    %p76 = scmp.ne.s32.totalorder %s67, %s68
    %p77 = scmp.eq.s32.totalorder %s15, 0
    %p78 = por %p76, %p77
    %p79 = scmp.ne.s32.totalorder %s67, %s68
    %p80 = scmp.eq.s32.totalorder %s16, 1
    %p81 = por %p79, %p80
    %p83 = scmp.ne.s32.totalorder %s68, %s82
    %p84 = scmp.eq.s32.totalorder %s16, 0
    %p85 = por %p83, %p84
    %s87 = sadd.s32 %s86, 1
    %p90 = scmp.eq.s32.totalorder %s10, 1
    %p91 = scmp.ne.s32.totalorder %s86, %s88
    %p92 = scmp.eq.s32.totalorder %s10, 0
    %p93 = por %p91, %p92
    %p94 = scmp.ne.s32.totalorder %s86, %s88
    %p95 = scmp.eq.s32.totalorder %s15, 1
    %p96 = por %p94, %p95
    %p97 = scmp.ne.s32.totalorder %s88, %s89
    %p98 = scmp.eq.s32.totalorder %s15, 0
    %p99 = por %p97, %p98
    %p100 = scmp.ne.s32.totalorder %s88, %s89
    %p101 = scmp.eq.s32.totalorder %s16, 1
    %p102 = por %p100, %p101
    %p104 = scmp.ne.s32.totalorder %s89, %s103
    %p105 = scmp.eq.s32.totalorder %s16, 0
    %p106 = por %p104, %p105
    %s107 = ssub.s32 %s10, %s17
    %p108 = scmp.eq.s32.totalorder %s107, 0
    %s110 = sadd.s32 %s109, 1
    %s111 = scalar_select %p108, %s109, %s110
    %p114 = pneg %p108
    %p115 = scmp.eq.s32.totalorder %s10, 1
    %p116 = por %p114, %p115
    %p117 = scmp.ne.s32.totalorder %s109, %s112
    %p118 = scmp.eq.s32.totalorder %s10, 0
    %p119 = por %p117, %p118
    %p120 = scmp.ne.s32.totalorder %s109, %s112
    %p121 = scmp.eq.s32.totalorder %s15, 1
    %p122 = por %p120, %p121
    %p123 = scmp.ne.s32.totalorder %s112, %s113
    %p124 = scmp.eq.s32.totalorder %s15, 0
    %p125 = por %p123, %p124
    %p126 = scmp.ne.s32.totalorder %s112, %s113
    %p127 = scmp.eq.s32.totalorder %s16, 1
    %p128 = por %p126, %p127
    %p130 = scmp.ne.s32.totalorder %s113, %s129
    %p131 = scmp.eq.s32.totalorder %s16, 0
    %p132 = por %p130, %p131
    %p133 = scmp.le.s32.totalorder 1, %s10
    %p134 = scmp.lt.s32.totalorder %s10, 3
    %p135 = pnand %p133, %p134
    %p136 = pneg %p135
    // Predicated region
    $region9: #{_lambda_.4} parent=5 // pred_check
      _
    $region10: #{_lambda_.4} parent=5 // pred_check_branch
      %138 = sbr.rel (%p135) target = $region12
    $region11: #{_lambda_.4} parent=5 // pred_region
      %s139 = ssub.s32 %s10, 1
      // Predicated region
      $region13: #{_lambda_.4} parent=11 // pred_check
        %p140 = pneg %p57
      $region14: #{_lambda_.4} parent=11 // pred_check_branch
        %142 = sbr.rel (%p140) target = $region16
      $region15: #{_lambda_.4} parent=11 // pred_region
        _
      $region16: #{_lambda_.4} parent=11 // pred_fallthru
        _
      // Predicated region
      $region17: #{_lambda_.4} parent=11 // pred_check
        %p143 = pneg %p78
      $region18: #{_lambda_.4} parent=11 // pred_check_branch
        %145 = sbr.rel (%p143) target = $region20
      $region19: #{_lambda_.4} parent=11 // pred_region
        _
      $region20: #{_lambda_.4} parent=11 // pred_fallthru
        _
      // Predicated region
      $region21: #{_lambda_.4} parent=11 // pred_check
        %p146 = pneg %p99
      $region22: #{_lambda_.4} parent=11 // pred_check_branch
        %148 = sbr.rel (%p146) target = $region24
      $region23: #{_lambda_.4} parent=11 // pred_region
        _
      $region24: #{_lambda_.4} parent=11 // pred_fallthru
        _
    $region12: #{_lambda_.4} parent=5 // pred_fallthru
      _
    %p149 = scmp.lt.s32.totalorder %s10, 2
    // Predicated region
    $region25: #{_lambda_.4} parent=5 // pred_check
      %p150 = pneg %p149
    $region26: #{_lambda_.4} parent=5 // pred_check_branch
      %152 = sbr.rel (%p150) target = $region28
    $region27: #{_lambda_.4} parent=5 // pred_region
      // Predicated region
      $region29: #{_lambda_.4} parent=27 // pred_check
        %p153 = pneg %p30
      $region30: #{_lambda_.4} parent=27 // pred_check_branch
        %155 = sbr.rel (%p153) target = $region32
      $region31: #{_lambda_.4} parent=27 // pred_region
        %s156 = smul.u32 4, %s10
        %p157 = scmp.lt.s32.totalorder %s156, 7
        %s158 = scalar_select %p157, %s156, 7
        %s159 = smul.addr %s158, 11
        %s160 = smul.addr %s159, 8
        %s161 = scalar_lea.vmem %s0, %s160
        %s162 = smul.u32 4, %s10
      $region32: #{_lambda_.4} parent=27 // pred_fallthru
        _
    $region28: #{_lambda_.4} parent=5 // pred_fallthru
      _
    %p163 = scmp.le.s32.totalorder 1, %s10
    %p164 = scmp.lt.s32.totalorder %s10, 3
    %p165 = pnand %p163, %p164
    %p166 = pneg %p165
    // Predicated region
    $region33: #{_lambda_.4} parent=5 // pred_check
      _
    $region34: #{_lambda_.4} parent=5 // pred_check_branch
      %168 = sbr.rel (%p165) target = $region36
    $region35: #{_lambda_.4} parent=5 // pred_region
      %s169 = ssub.s32 %s10, 1
      %s170 = smul.u32 4, %s15
      %p171 = scmp.lt.s32.totalorder %s170, 7
      %s172 = scalar_select %p171, %s170, 7
      %s173 = smul.addr %s172, 11
      %s174 = smul.addr %s173, 8
      %s175 = scalar_lea.vmem %s0, %s174
      %p176 = pneg %p36
      %p177 = pneg %p33
      %p178 = pneg %p57
      %p179 = pneg %p54
      %p180 = pneg %p78
      %p181 = pneg %p75
      %p182 = pneg %p99
      %p183 = pneg %p96
      %p184 = pneg %p125
      %p185 = pneg %p122
      %p186 = scmp.lt.s32.totalorder %s15, 1
      %s187 = scalar_select %p186, %s15, 1
      %s188 = smul.addr %s187, 9
      %s189 = smul.addr %s188, 8
      %s190 = scalar_lea.vmem %s4, %s189
      %s191 = smul.u32 4, %s15
      %p192 = scmp.lt.s32.totalorder %s191, 7
      %s193 = scalar_select %p192, %s191, 7
      %s194 = smul.addr %s193, 11
      %s195 = smul.addr %s194, 8
      %s196 = scalar_lea.vmem %s0, %s195
      %s197 = smul.u32 4, %s15
      %p198 = scmp.lt.s32.totalorder %s15, 1
      %s199 = scalar_select %p198, %s15, 1
      %s200 = smul.addr %s199, 9
      %s201 = smul.addr %s200, 8
      %s202 = scalar_lea.vmem %s4, %s201
      %v204 = vld [vmem:[%s196] sm:$0xff]
      %v205 = vld [vmem:[%s196 + $0x8] sm:$0xff]
      %v206 = vld [vmem:[%s196 + $0x10] sm:$0xff]
      %v207 = vld [vmem:[%s196 + $0x18] sm:$0xff]
      %v208 = vld [vmem:[%s196 + $0x20] sm:$0xff]
      %v209 = vld [vmem:[%s196 + $0x28] sm:$0xff]
      %v210 = vld [vmem:[%s196 + $0x30] sm:$0xff]
      %v211 = vld [vmem:[%s196 + $0x38] sm:$0xff]
      %v212 = vld [vmem:[%s196 + $0x40] sm:$0xff]
      %v213 = vpack.c.bf16 %v205, %v204
      %v214 = vpack.c.bf16 %v207, %v206
      %v215 = vpack.c.bf16 %v209, %v208
      %v216 = vpack.c.bf16 %v211, %v210
      %v217 = vpack.c.bf16 %v212, %v212
      %v218 = vld [vmem:[%s1] sm:$0x3]
      %s219 = scalar_lea.vmem %s196, 88
      %v220 = vld [vmem:[%s219] sm:$0xff]
      %v221 = vld [vmem:[%s219 + $0x8] sm:$0xff]
      %v222 = vld [vmem:[%s219 + $0x10] sm:$0xff]
      %v223 = vld [vmem:[%s219 + $0x18] sm:$0xff]
      %v224 = vld [vmem:[%s219 + $0x20] sm:$0xff]
      %v225 = vld [vmem:[%s219 + $0x28] sm:$0xff]
      %v226 = vld [vmem:[%s219 + $0x30] sm:$0xff]
      %v227 = vld [vmem:[%s219 + $0x38] sm:$0xff]
      %v228 = vld [vmem:[%s219 + $0x40] sm:$0xff]
      %v229 = vpack.c.bf16 %v221, %v220
      %v230 = vpack.c.bf16 %v223, %v222
      %v231 = vpack.c.bf16 %v225, %v224
      %v232 = vpack.c.bf16 %v227, %v226
      %v233 = vpack.c.bf16 %v228, %v228
      %s234 = scalar_lea.vmem %s1, 2
      %v235 = vld [vmem:[%s234] sm:$0x3]
      %vm236 = vcmask 31744
      %v238 = vsel %vm236, %v229, 0
      %v241 = vsel %vm236, %v230, 0
      %v244 = vsel %vm236, %v231, 0
      %v247 = vsel %vm236, %v232, 0
      %v250 = vsel %vm236, %v233, 0
      %vm252 = vcmask 1041408
      %v254 = vsel %vm252, %v235, 0
      %256 = vmatprep.subr.bf16.mxu0 0
      %257 = vmatpush1.bf16.msra.mxu0 %v254
      %258 = vmatprep.subr.bf16.mxu0 0
      %259 = vmatpush1.bf16.msra.mxu0 0
      %260 = vmatprep.subr.bf16.mxu0 0
      %261 = vmatpush1.bf16.msra.mxu0 0
      %262 = vmatprep.subr.bf16.mxu0 0
      %263 = vmatpush1.bf16.msra.mxu0 0
      %264 = vmatprep.subr.bf16.mxu0 0
      %265 = vmatpush1.bf16.msra.mxu0 0
      %266 = vmatprep.subr.bf16.mxu0 0
      %267 = vmatpush1.bf16.msra.mxu0 0
      %268 = vmatprep.subr.bf16.mxu0 0
      %269 = vmatpush1.bf16.msra.mxu0 0
      %270 = vmatprep.subr.bf16.mxu0 0
      %271 = vmatpush1.bf16.msra.mxu0 0
      %272 = vmatprep.subr.bf16.mxu0 0
      %273 = vmatpush1.bf16.msra.mxu0 0
      %274 = vmatprep.subr.bf16.mxu0 0
      %275 = vmatpush1.bf16.msra.mxu0 0
      %276 = vmatprep.subr.bf16.mxu0 0
      %277 = vmatpush1.bf16.msra.mxu0 0
      %278 = vmatprep.subr.bf16.mxu0 0
      %279 = vmatpush1.bf16.msra.mxu0 0
      %280 = vmatprep.subr.bf16.mxu0 0
      %281 = vmatpush1.bf16.msra.mxu0 0
      %282 = vmatprep.subr.bf16.mxu0 0
      %283 = vmatpush1.bf16.msra.mxu0 0
      %284 = vmatprep.subr.bf16.mxu0 0
      %285 = vmatpush1.bf16.msra.mxu0 0
      %286 = vmatprep.subr.bf16.mxu0 0
      %287 = vmatpush1.bf16.msra.mxu0 0
      %288 = vmatprep.mubr.bf16.mxu0 0
      %289 = vmatmul.mubr.bf16.gmra.mrb[0].mxu0 %v238
      %v290 = vpop.f32.mrb[0].mxu0
      %v291 = vadd.f32 0.0, %v290
      %v292 = vpop.f32.mrb[0].mxu0
      %v293 = vpop.f32.mrb[0].mxu0
      %v294 = vadd.f32 0.0, %v293
      %v295 = vpop.f32.mrb[0].mxu0
      %296 = vmatprep.mubr.bf16.mxu0 0
      %297 = vmatmul.mubr.bf16.gmra.mrb[0].mxu0 %v241
      %v298 = vpop.f32.mrb[0].mxu0
      %v299 = vadd.f32 0.0, %v298
      %v300 = vpop.f32.mrb[0].mxu0
      %v301 = vpop.f32.mrb[0].mxu0
      %v302 = vadd.f32 0.0, %v301
      %v303 = vpop.f32.mrb[0].mxu0
      %304 = vmatprep.mubr.bf16.mxu0 0
      %305 = vmatmul.mubr.bf16.gmra.mrb[0].mxu0 %v244
      %v306 = vpop.f32.mrb[0].mxu0
      %v307 = vadd.f32 0.0, %v306
      %v308 = vpop.f32.mrb[0].mxu0
      %v309 = vpop.f32.mrb[0].mxu0
      %v310 = vadd.f32 0.0, %v309
      %v311 = vpop.f32.mrb[0].mxu0
      %312 = vmatprep.mubr.bf16.mxu0 0
      %313 = vmatmul.mubr.bf16.gmra.mrb[0].mxu0 %v247
      %v314 = vpop.f32.mrb[0].mxu0
      %v315 = vadd.f32 0.0, %v314
      %v316 = vpop.f32.mrb[0].mxu0
      %v317 = vpop.f32.mrb[0].mxu0
      %v318 = vadd.f32 0.0, %v317
      %v319 = vpop.f32.mrb[0].mxu0
      %320 = vmatprep.mubr.bf16.mxu0 0
      %321 = vmatmul.mubr.bf16.gmra.mrb[0].mxu0 %v250
      %v322 = vpop.f32.mrb[0].mxu0
      %v323 = vadd.f32 0.0, %v322
      %v324 = vpop.f32.mrb[0].mxu0
      %v325 = vpop.f32.mrb[0].mxu0
      %v326 = vpop.f32.mrb[0].mxu0
      %327 = vdwg.mxu0
      %v329 = vsel %vm236, %v213, 0
      %v332 = vsel %vm236, %v214, 0
      %v335 = vsel %vm236, %v215, 0
      %v338 = vsel %vm236, %v216, 0
      %v341 = vsel %vm236, %v217, 0
      %v344 = vsel %vm252, %v218, 0
      %346 = vmatprep.subr.bf16.mxu0 0
      %347 = vmatpush1.bf16.msra.mxu0 %v344
      %348 = vmatprep.subr.bf16.mxu0 0
      %349 = vmatpush1.bf16.msra.mxu0 0
      %350 = vmatprep.subr.bf16.mxu0 0
      %351 = vmatpush1.bf16.msra.mxu0 0
      %352 = vmatprep.subr.bf16.mxu0 0
      %353 = vmatpush1.bf16.msra.mxu0 0
      %354 = vmatprep.subr.bf16.mxu0 0
      %355 = vmatpush1.bf16.msra.mxu0 0
      %356 = vmatprep.subr.bf16.mxu0 0
      %357 = vmatpush1.bf16.msra.mxu0 0
      %358 = vmatprep.subr.bf16.mxu0 0
      %359 = vmatpush1.bf16.msra.mxu0 0
      %360 = vmatprep.subr.bf16.mxu0 0
      %361 = vmatpush1.bf16.msra.mxu0 0
      %362 = vmatprep.subr.bf16.mxu0 0
      %363 = vmatpush1.bf16.msra.mxu0 0
      %364 = vmatprep.subr.bf16.mxu0 0
      %365 = vmatpush1.bf16.msra.mxu0 0
      %366 = vmatprep.subr.bf16.mxu0 0
      %367 = vmatpush1.bf16.msra.mxu0 0
      %368 = vmatprep.subr.bf16.mxu0 0
      %369 = vmatpush1.bf16.msra.mxu0 0
      %370 = vmatprep.subr.bf16.mxu0 0
      %371 = vmatpush1.bf16.msra.mxu0 0
      %372 = vmatprep.subr.bf16.mxu0 0
      %373 = vmatpush1.bf16.msra.mxu0 0
      %374 = vmatprep.subr.bf16.mxu0 0
      %375 = vmatpush1.bf16.msra.mxu0 0
      %376 = vmatprep.subr.bf16.mxu0 0
      %377 = vmatpush1.bf16.msra.mxu0 0
      %378 = vmatprep.mubr.bf16.mxu0 0
      %379 = vmatmul.mubr.bf16.gmra.mrb[0].mxu0 %v329
      %v380 = vpop.f32.mrb[0].mxu0
      %v381 = vadd.f32 %v291, %v380
      %v382 = vpop.f32.mrb[0].mxu0
      %v383 = vpop.f32.mrb[0].mxu0
      %v384 = vadd.f32 %v294, %v383
      %v385 = vpop.f32.mrb[0].mxu0
      %386 = vmatprep.mubr.bf16.mxu0 0
      %387 = vmatmul.mubr.bf16.gmra.mrb[0].mxu0 %v332
      %v388 = vpop.f32.mrb[0].mxu0
      %v389 = vadd.f32 %v299, %v388
      %v390 = vpop.f32.mrb[0].mxu0
      %v391 = vpop.f32.mrb[0].mxu0
      %v392 = vadd.f32 %v302, %v391
      %v393 = vpop.f32.mrb[0].mxu0
      %394 = vmatprep.mubr.bf16.mxu0 0
      %395 = vmatmul.mubr.bf16.gmra.mrb[0].mxu0 %v335
      %v396 = vpop.f32.mrb[0].mxu0
      %v397 = vadd.f32 %v307, %v396
      %v398 = vpop.f32.mrb[0].mxu0
      %v399 = vpop.f32.mrb[0].mxu0
      %v400 = vadd.f32 %v310, %v399
      %v401 = vpop.f32.mrb[0].mxu0
      %402 = vmatprep.mubr.bf16.mxu0 0
      %403 = vmatmul.mubr.bf16.gmra.mrb[0].mxu0 %v338
      %v404 = vpop.f32.mrb[0].mxu0
      %v405 = vadd.f32 %v315, %v404
      %v406 = vpop.f32.mrb[0].mxu0
      %v407 = vpop.f32.mrb[0].mxu0
      %v408 = vadd.f32 %v318, %v407
      %v409 = vpop.f32.mrb[0].mxu0
      %410 = vmatprep.mubr.bf16.mxu0 0
      %411 = vmatmul.mubr.bf16.gmra.mrb[0].mxu0 %v341
      %v412 = vpop.f32.mrb[0].mxu0
      %v413 = vadd.f32 %v323, %v412
      %v414 = vpop.f32.mrb[0].mxu0
      %v415 = vpop.f32.mrb[0].mxu0
      %v416 = vpop.f32.mrb[0].mxu0
      %417 = vdwg.mxu0
      %v418 = vld [vmem:[%s196 + $0x1] sm:$0xff]
      %v419 = vld [vmem:[%s196 + $0x9] sm:$0xff]
      %v420 = vld [vmem:[%s196 + $0x11] sm:$0xff]
      %v421 = vld [vmem:[%s196 + $0x19] sm:$0xff]
      %v422 = vld [vmem:[%s196 + $0x21] sm:$0xff]
      %v423 = vld [vmem:[%s196 + $0x29] sm:$0xff]
      %v424 = vld [vmem:[%s196 + $0x31] sm:$0xff]
      %v425 = vld [vmem:[%s196 + $0x39] sm:$0xff]
      %v426 = vld [vmem:[%s196 + $0x41] sm:$0xff]
      %v427 = vpack.c.bf16 %v419, %v418
      %v428 = vpack.c.bf16 %v421, %v420
      %v429 = vpack.c.bf16 %v423, %v422
      %v430 = vpack.c.bf16 %v425, %v424
      %v431 = vpack.c.bf16 %v426, %v426
      %s432 = scalar_lea.vmem %s1, 4
      %v433 = vld [vmem:[%s432] sm:$0x3]
      %v435 = vsel %vm236, %v427, 0
      %v438 = vsel %vm236, %v428, 0
      %v441 = vsel %vm236, %v429, 0
      %v444 = vsel %vm236, %v430, 0
      %v447 = vsel %vm236, %v431, 0
      %v450 = vsel %vm252, %v433, 0
      %452 = vmatprep.subr.bf16.mxu0 0
      %453 = vmatpush1.bf16.msra.mxu0 %v450
      %454 = vmatprep.subr.bf16.mxu0 0
      %455 = vmatpush1.bf16.msra.mxu0 0
      %456 = vmatprep.subr.bf16.mxu0 0
      %457 = vmatpush1.bf16.msra.mxu0 0
      %458 = vmatprep.subr.bf16.mxu0 0
      %459 = vmatpush1.bf16.msra.mxu0 0
      %460 = vmatprep.subr.bf16.mxu0 0
      %461 = vmatpush1.bf16.msra.mxu0 0
      %462 = vmatprep.subr.bf16.mxu0 0
      %463 = vmatpush1.bf16.msra.mxu0 0
      %464 = vmatprep.subr.bf16.mxu0 0
      %465 = vmatpush1.bf16.msra.mxu0 0
      %466 = vmatprep.subr.bf16.mxu0 0
      %467 = vmatpush1.bf16.msra.mxu0 0
      %468 = vmatprep.subr.bf16.mxu0 0
      %469 = vmatpush1.bf16.msra.mxu0 0
      %470 = vmatprep.subr.bf16.mxu0 0
      %471 = vmatpush1.bf16.msra.mxu0 0
      %472 = vmatprep.subr.bf16.mxu0 0
      %473 = vmatpush1.bf16.msra.mxu0 0
      %474 = vmatprep.subr.bf16.mxu0 0
      %475 = vmatpush1.bf16.msra.mxu0 0
      %476 = vmatprep.subr.bf16.mxu0 0
      %477 = vmatpush1.bf16.msra.mxu0 0
      %478 = vmatprep.subr.bf16.mxu0 0
      %479 = vmatpush1.bf16.msra.mxu0 0
      %480 = vmatprep.subr.bf16.mxu0 0
      %481 = vmatpush1.bf16.msra.mxu0 0
      %482 = vmatprep.subr.bf16.mxu0 0
      %483 = vmatpush1.bf16.msra.mxu0 0
      %484 = vmatprep.mubr.bf16.mxu0 0
      %485 = vmatmul.mubr.bf16.gmra.mrb[0].mxu0 %v435
      %v486 = vpop.f32.mrb[0].mxu0
      %v487 = vadd.f32 0.0, %v486
      %v488 = vpop.f32.mrb[0].mxu0
      %v489 = vpop.f32.mrb[0].mxu0
      %v490 = vadd.f32 0.0, %v489
      %v491 = vpop.f32.mrb[0].mxu0
      %492 = vmatprep.mubr.bf16.mxu0 0
      %493 = vmatmul.mubr.bf16.gmra.mrb[0].mxu0 %v438
      %v494 = vpop.f32.mrb[0].mxu0
      %v495 = vadd.f32 0.0, %v494
      %v496 = vpop.f32.mrb[0].mxu0
      %v497 = vpop.f32.mrb[0].mxu0
      %v498 = vadd.f32 0.0, %v497
      %v499 = vpop.f32.mrb[0].mxu0
      %500 = vmatprep.mubr.bf16.mxu0 0
      %501 = vmatmul.mubr.bf16.gmra.mrb[0].mxu0 %v441
      %v502 = vpop.f32.mrb[0].mxu0
      %v503 = vadd.f32 0.0, %v502
      %v504 = vpop.f32.mrb[0].mxu0
      %v505 = vpop.f32.mrb[0].mxu0
      %v506 = vadd.f32 0.0, %v505
      %v507 = vpop.f32.mrb[0].mxu0
      %508 = vmatprep.mubr.bf16.mxu0 0
      %509 = vmatmul.mubr.bf16.gmra.mrb[0].mxu0 %v444
      %v510 = vpop.f32.mrb[0].mxu0
      %v511 = vadd.f32 0.0, %v510
      %v512 = vpop.f32.mrb[0].mxu0
      %v513 = vpop.f32.mrb[0].mxu0
      %v514 = vadd.f32 0.0, %v513
      %v515 = vpop.f32.mrb[0].mxu0
      %516 = vmatprep.mubr.bf16.mxu0 0
      %517 = vmatmul.mubr.bf16.gmra.mrb[0].mxu0 %v447
      %v518 = vpop.f32.mrb[0].mxu0
      %v519 = vadd.f32 0.0, %v518
      %v520 = vpop.f32.mrb[0].mxu0
      %v521 = vpop.f32.mrb[0].mxu0
      %v522 = vpop.f32.mrb[0].mxu0
      %523 = vdwg.mxu0
      %v524 = vadd.f32 %v381, %v487
      %v525 = vadd.f32 %v384, %v490
      %v526 = vadd.f32 %v389, %v495
      %v527 = vadd.f32 %v392, %v498
      %v528 = vadd.f32 %v397, %v503
      %v529 = vadd.f32 %v400, %v506
      %v530 = vadd.f32 %v405, %v511
      %v531 = vadd.f32 %v408, %v514
      %v532 = vadd.f32 %v413, %v519
      %v533 = vld [vmem:[%s219 + $0x1] sm:$0xff]
      %v534 = vld [vmem:[%s219 + $0x9] sm:$0xff]
      %v535 = vld [vmem:[%s219 + $0x11] sm:$0xff]
      %v536 = vld [vmem:[%s219 + $0x19] sm:$0xff]
      %v537 = vld [vmem:[%s219 + $0x21] sm:$0xff]
      %v538 = vld [vmem:[%s219 + $0x29] sm:$0xff]
      %v539 = vld [vmem:[%s219 + $0x31] sm:$0xff]
      %v540 = vld [vmem:[%s219 + $0x39] sm:$0xff]
      %v541 = vld [vmem:[%s219 + $0x41] sm:$0xff]
      %v542 = vpack.c.bf16 %v534, %v533
      %v543 = vpack.c.bf16 %v536, %v535
      %v544 = vpack.c.bf16 %v538, %v537
      %v545 = vpack.c.bf16 %v540, %v539
      %v546 = vpack.c.bf16 %v541, %v541
      %s547 = scalar_lea.vmem %s1, 6
      %v548 = vld [vmem:[%s547] sm:$0x3]
      %v550 = vsel %vm236, %v542, 0
      %v553 = vsel %vm236, %v543, 0
      %v556 = vsel %vm236, %v544, 0
      %v559 = vsel %vm236, %v545, 0
      %v562 = vsel %vm236, %v546, 0
      %v565 = vsel %vm252, %v548, 0
      %567 = vmatprep.subr.bf16.mxu0 0
      %568 = vmatpush1.bf16.msra.mxu0 %v565
      %569 = vmatprep.subr.bf16.mxu0 0
      %570 = vmatpush1.bf16.msra.mxu0 0
      %571 = vmatprep.subr.bf16.mxu0 0
      %572 = vmatpush1.bf16.msra.mxu0 0
      %573 = vmatprep.subr.bf16.mxu0 0
      %574 = vmatpush1.bf16.msra.mxu0 0
      %575 = vmatprep.subr.bf16.mxu0 0
      %576 = vmatpush1.bf16.msra.mxu0 0
      %577 = vmatprep.subr.bf16.mxu0 0
      %578 = vmatpush1.bf16.msra.mxu0 0
      %579 = vmatprep.subr.bf16.mxu0 0
      %580 = vmatpush1.bf16.msra.mxu0 0
      %581 = vmatprep.subr.bf16.mxu0 0
      %582 = vmatpush1.bf16.msra.mxu0 0
      %583 = vmatprep.subr.bf16.mxu0 0
      %584 = vmatpush1.bf16.msra.mxu0 0
      %585 = vmatprep.subr.bf16.mxu0 0
      %586 = vmatpush1.bf16.msra.mxu0 0
      %587 = vmatprep.subr.bf16.mxu0 0
      %588 = vmatpush1.bf16.msra.mxu0 0
      %589 = vmatprep.subr.bf16.mxu0 0
      %590 = vmatpush1.bf16.msra.mxu0 0
      %591 = vmatprep.subr.bf16.mxu0 0
      %592 = vmatpush1.bf16.msra.mxu0 0
      %593 = vmatprep.subr.bf16.mxu0 0
      %594 = vmatpush1.bf16.msra.mxu0 0
      %595 = vmatprep.subr.bf16.mxu0 0
      %596 = vmatpush1.bf16.msra.mxu0 0
      %597 = vmatprep.subr.bf16.mxu0 0
      %598 = vmatpush1.bf16.msra.mxu0 0
      %599 = vmatprep.mubr.bf16.mxu0 0
      %600 = vmatmul.mubr.bf16.gmra.mrb[0].mxu0 %v550
      %v601 = vpop.f32.mrb[0].mxu0
      %v602 = vadd.f32 0.0, %v601
      %v603 = vpop.f32.mrb[0].mxu0
      %v604 = vpop.f32.mrb[0].mxu0
      %v605 = vadd.f32 0.0, %v604
      %v606 = vpop.f32.mrb[0].mxu0
      %607 = vmatprep.mubr.bf16.mxu0 0
      %608 = vmatmul.mubr.bf16.gmra.mrb[0].mxu0 %v553
      %v609 = vpop.f32.mrb[0].mxu0
      %v610 = vadd.f32 0.0, %v609
      %v611 = vpop.f32.mrb[0].mxu0
      %v612 = vpop.f32.mrb[0].mxu0
      %v613 = vadd.f32 0.0, %v612
      %v614 = vpop.f32.mrb[0].mxu0
      %615 = vmatprep.mubr.bf16.mxu0 0
      %616 = vmatmul.mubr.bf16.gmra.mrb[0].mxu0 %v556
      %v617 = vpop.f32.mrb[0].mxu0
      %v618 = vadd.f32 0.0, %v617
      %v619 = vpop.f32.mrb[0].mxu0
      %v620 = vpop.f32.mrb[0].mxu0
      %v621 = vadd.f32 0.0, %v620
      %v622 = vpop.f32.mrb[0].mxu0
      %623 = vmatprep.mubr.bf16.mxu0 0
      %624 = vmatmul.mubr.bf16.gmra.mrb[0].mxu0 %v559
      %v625 = vpop.f32.mrb[0].mxu0
      %v626 = vadd.f32 0.0, %v625
      %v627 = vpop.f32.mrb[0].mxu0
      %v628 = vpop.f32.mrb[0].mxu0
      %v629 = vadd.f32 0.0, %v628
      %v630 = vpop.f32.mrb[0].mxu0
      %631 = vmatprep.mubr.bf16.mxu0 0
      %632 = vmatmul.mubr.bf16.gmra.mrb[0].mxu0 %v562
      %v633 = vpop.f32.mrb[0].mxu0
      %v634 = vadd.f32 0.0, %v633
      %v635 = vpop.f32.mrb[0].mxu0
      %v636 = vpop.f32.mrb[0].mxu0
      %v637 = vpop.f32.mrb[0].mxu0
      %638 = vdwg.mxu0
      %v639 = vadd.f32 %v524, %v602
      %v640 = vadd.f32 %v525, %v605
      %v641 = vadd.f32 %v526, %v610
      %v642 = vadd.f32 %v527, %v613
      %v643 = vadd.f32 %v528, %v618
      %v644 = vadd.f32 %v529, %v621
      %v645 = vadd.f32 %v530, %v626
      %v646 = vadd.f32 %v531, %v629
      %v647 = vadd.f32 %v532, %v634
      %s648 = scalar_lea.vmem %s196, 176
      %v649 = vld [vmem:[%s648] sm:$0xff]
      %v650 = vld [vmem:[%s648 + $0x8] sm:$0xff]
      %v651 = vld [vmem:[%s648 + $0x10] sm:$0xff]
      %v652 = vld [vmem:[%s648 + $0x18] sm:$0xff]
      %v653 = vld [vmem:[%s648 + $0x20] sm:$0xff]
      %v654 = vld [vmem:[%s648 + $0x28] sm:$0xff]
      %v655 = vld [vmem:[%s648 + $0x30] sm:$0xff]
      %v656 = vld [vmem:[%s648 + $0x38] sm:$0xff]
      %v657 = vld [vmem:[%s648 + $0x40] sm:$0xff]
      %v658 = vpack.c.bf16 %v650, %v649
      %v659 = vpack.c.bf16 %v652, %v651
      %v660 = vpack.c.bf16 %v654, %v653
      %v661 = vpack.c.bf16 %v656, %v655
      %v662 = vpack.c.bf16 %v657, %v657
      %s663 = scalar_lea.vmem %s1, 8
      %v664 = vld [vmem:[%s663] sm:$0x3]
      %v666 = vsel %vm236, %v658, 0
      %v669 = vsel %vm236, %v659, 0
      %v672 = vsel %vm236, %v660, 0
      %v675 = vsel %vm236, %v661, 0
      %v678 = vsel %vm236, %v662, 0
      %v681 = vsel %vm252, %v664, 0
      %683 = vmatprep.subr.bf16.mxu0 0
      %684 = vmatpush1.bf16.msra.mxu0 %v681
      %685 = vmatprep.subr.bf16.mxu0 0
      %686 = vmatpush1.bf16.msra.mxu0 0
      %687 = vmatprep.subr.bf16.mxu0 0
      %688 = vmatpush1.bf16.msra.mxu0 0
      %689 = vmatprep.subr.bf16.mxu0 0
      %690 = vmatpush1.bf16.msra.mxu0 0
      %691 = vmatprep.subr.bf16.mxu0 0
      %692 = vmatpush1.bf16.msra.mxu0 0
      %693 = vmatprep.subr.bf16.mxu0 0
      %694 = vmatpush1.bf16.msra.mxu0 0
      %695 = vmatprep.subr.bf16.mxu0 0
      %696 = vmatpush1.bf16.msra.mxu0 0
      %697 = vmatprep.subr.bf16.mxu0 0
      %698 = vmatpush1.bf16.msra.mxu0 0
      %699 = vmatprep.subr.bf16.mxu0 0
      %700 = vmatpush1.bf16.msra.mxu0 0
      %701 = vmatprep.subr.bf16.mxu0 0
      %702 = vmatpush1.bf16.msra.mxu0 0
      %703 = vmatprep.subr.bf16.mxu0 0
      %704 = vmatpush1.bf16.msra.mxu0 0
      %705 = vmatprep.subr.bf16.mxu0 0
      %706 = vmatpush1.bf16.msra.mxu0 0
      %707 = vmatprep.subr.bf16.mxu0 0
      %708 = vmatpush1.bf16.msra.mxu0 0
      %709 = vmatprep.subr.bf16.mxu0 0
      %710 = vmatpush1.bf16.msra.mxu0 0
      %711 = vmatprep.subr.bf16.mxu0 0
      %712 = vmatpush1.bf16.msra.mxu0 0
      %713 = vmatprep.subr.bf16.mxu0 0
      %714 = vmatpush1.bf16.msra.mxu0 0
      %715 = vmatprep.mubr.bf16.mxu0 0
      %716 = vmatmul.mubr.bf16.gmra.mrb[0].mxu0 %v666
      %v717 = vpop.f32.mrb[0].mxu0
      %v718 = vadd.f32 0.0, %v717
      %v719 = vpop.f32.mrb[0].mxu0
      %v720 = vpop.f32.mrb[0].mxu0
      %v721 = vadd.f32 0.0, %v720
      %v722 = vpop.f32.mrb[0].mxu0
      %723 = vmatprep.mubr.bf16.mxu0 0
      %724 = vmatmul.mubr.bf16.gmra.mrb[0].mxu0 %v669
      %v725 = vpop.f32.mrb[0].mxu0
      %v726 = vadd.f32 0.0, %v725
      %v727 = vpop.f32.mrb[0].mxu0
      %v728 = vpop.f32.mrb[0].mxu0
      %v729 = vadd.f32 0.0, %v728
      %v730 = vpop.f32.mrb[0].mxu0
      %731 = vmatprep.mubr.bf16.mxu0 0
      %732 = vmatmul.mubr.bf16.gmra.mrb[0].mxu0 %v672
      %v733 = vpop.f32.mrb[0].mxu0
      %v734 = vadd.f32 0.0, %v733
      %v735 = vpop.f32.mrb[0].mxu0
      %v736 = vpop.f32.mrb[0].mxu0
      %v737 = vadd.f32 0.0, %v736
      %v738 = vpop.f32.mrb[0].mxu0
      %739 = vmatprep.mubr.bf16.mxu0 0
      %740 = vmatmul.mubr.bf16.gmra.mrb[0].mxu0 %v675
      %v741 = vpop.f32.mrb[0].mxu0
      %v742 = vadd.f32 0.0, %v741
      %v743 = vpop.f32.mrb[0].mxu0
      %v744 = vpop.f32.mrb[0].mxu0
      %v745 = vadd.f32 0.0, %v744
      %v746 = vpop.f32.mrb[0].mxu0
      %747 = vmatprep.mubr.bf16.mxu0 0
      %748 = vmatmul.mubr.bf16.gmra.mrb[0].mxu0 %v678
      %v749 = vpop.f32.mrb[0].mxu0
      %v750 = vadd.f32 0.0, %v749
      %v751 = vpop.f32.mrb[0].mxu0
      %v752 = vpop.f32.mrb[0].mxu0
      %v753 = vpop.f32.mrb[0].mxu0
      %754 = vdwg.mxu0
      %v755 = vadd.f32 %v639, %v718
      %v756 = vadd.f32 %v640, %v721
      %v757 = vadd.f32 %v641, %v726
      %v758 = vadd.f32 %v642, %v729
      %v759 = vadd.f32 %v643, %v734
      %v760 = vadd.f32 %v644, %v737
      %v761 = vadd.f32 %v645, %v742
      %v762 = vadd.f32 %v646, %v745
      %v763 = vadd.f32 %v647, %v750
      %s764 = scalar_lea.vmem %s196, 264
      %v765 = vld [vmem:[%s764] sm:$0xff]
      %v766 = vld [vmem:[%s764 + $0x8] sm:$0xff]
      %v767 = vld [vmem:[%s764 + $0x10] sm:$0xff]
      %v768 = vld [vmem:[%s764 + $0x18] sm:$0xff]
      %v769 = vld [vmem:[%s764 + $0x20] sm:$0xff]
      %v770 = vld [vmem:[%s764 + $0x28] sm:$0xff]
      %v771 = vld [vmem:[%s764 + $0x30] sm:$0xff]
      %v772 = vld [vmem:[%s764 + $0x38] sm:$0xff]
      %v773 = vld [vmem:[%s764 + $0x40] sm:$0xff]
      %v774 = vpack.c.bf16 %v766, %v765
      %v775 = vpack.c.bf16 %v768, %v767
      %v776 = vpack.c.bf16 %v770, %v769
      %v777 = vpack.c.bf16 %v772, %v771
      %v778 = vpack.c.bf16 %v773, %v773
      %s779 = scalar_lea.vmem %s1, 10
      %v780 = vld [vmem:[%s779] sm:$0x3]
      %v782 = vsel %vm236, %v774, 0
      %v785 = vsel %vm236, %v775, 0
      %v788 = vsel %vm236, %v776, 0
      %v791 = vsel %vm236, %v777, 0
      %v794 = vsel %vm236, %v778, 0
      %v797 = vsel %vm252, %v780, 0
      %799 = vmatprep.subr.bf16.mxu0 0
      %800 = vmatpush1.bf16.msra.mxu0 %v797
      %801 = vmatprep.subr.bf16.mxu0 0
      %802 = vmatpush1.bf16.msra.mxu0 0
      %803 = vmatprep.subr.bf16.mxu0 0
      %804 = vmatpush1.bf16.msra.mxu0 0
      %805 = vmatprep.subr.bf16.mxu0 0
      %806 = vmatpush1.bf16.msra.mxu0 0
      %807 = vmatprep.subr.bf16.mxu0 0
      %808 = vmatpush1.bf16.msra.mxu0 0
      %809 = vmatprep.subr.bf16.mxu0 0
      %810 = vmatpush1.bf16.msra.mxu0 0
      %811 = vmatprep.subr.bf16.mxu0 0
      %812 = vmatpush1.bf16.msra.mxu0 0
      %813 = vmatprep.subr.bf16.mxu0 0
      %814 = vmatpush1.bf16.msra.mxu0 0
      %815 = vmatprep.subr.bf16.mxu0 0
      %816 = vmatpush1.bf16.msra.mxu0 0
      %817 = vmatprep.subr.bf16.mxu0 0
      %818 = vmatpush1.bf16.msra.mxu0 0
      %819 = vmatprep.subr.bf16.mxu0 0
      %820 = vmatpush1.bf16.msra.mxu0 0
      %821 = vmatprep.subr.bf16.mxu0 0
      %822 = vmatpush1.bf16.msra.mxu0 0
      %823 = vmatprep.subr.bf16.mxu0 0
      %824 = vmatpush1.bf16.msra.mxu0 0
      %825 = vmatprep.subr.bf16.mxu0 0
      %826 = vmatpush1.bf16.msra.mxu0 0
      %827 = vmatprep.subr.bf16.mxu0 0
      %828 = vmatpush1.bf16.msra.mxu0 0
      %829 = vmatprep.subr.bf16.mxu0 0
      %830 = vmatpush1.bf16.msra.mxu0 0
      %831 = vmatprep.mubr.bf16.mxu0 0
      %832 = vmatmul.mubr.bf16.gmra.mrb[0].mxu0 %v782
      %v833 = vpop.f32.mrb[0].mxu0
      %v834 = vadd.f32 0.0, %v833
      %v835 = vpop.f32.mrb[0].mxu0
      %v836 = vpop.f32.mrb[0].mxu0
      %v837 = vadd.f32 0.0, %v836
      %v838 = vpop.f32.mrb[0].mxu0
      %839 = vmatprep.mubr.bf16.mxu0 0
      %840 = vmatmul.mubr.bf16.gmra.mrb[0].mxu0 %v785
      %v841 = vpop.f32.mrb[0].mxu0
      %v842 = vadd.f32 0.0, %v841
      %v843 = vpop.f32.mrb[0].mxu0
      %v844 = vpop.f32.mrb[0].mxu0
      %v845 = vadd.f32 0.0, %v844
      %v846 = vpop.f32.mrb[0].mxu0
      %847 = vmatprep.mubr.bf16.mxu0 0
      %848 = vmatmul.mubr.bf16.gmra.mrb[0].mxu0 %v788
      %v849 = vpop.f32.mrb[0].mxu0
      %v850 = vadd.f32 0.0, %v849
      %v851 = vpop.f32.mrb[0].mxu0
      %v852 = vpop.f32.mrb[0].mxu0
      %v853 = vadd.f32 0.0, %v852
      %v854 = vpop.f32.mrb[0].mxu0
      %855 = vmatprep.mubr.bf16.mxu0 0
      %856 = vmatmul.mubr.bf16.gmra.mrb[0].mxu0 %v791
      %v857 = vpop.f32.mrb[0].mxu0
      %v858 = vadd.f32 0.0, %v857
      %v859 = vpop.f32.mrb[0].mxu0
      %v860 = vpop.f32.mrb[0].mxu0
      %v861 = vadd.f32 0.0, %v860
      %v862 = vpop.f32.mrb[0].mxu0
      %863 = vmatprep.mubr.bf16.mxu0 0
      %864 = vmatmul.mubr.bf16.gmra.mrb[0].mxu0 %v794
      %v865 = vpop.f32.mrb[0].mxu0
      %v866 = vadd.f32 0.0, %v865
      %v867 = vpop.f32.mrb[0].mxu0
      %v868 = vpop.f32.mrb[0].mxu0
      %v869 = vpop.f32.mrb[0].mxu0
      %870 = vdwg.mxu0
      %v871 = vadd.f32 %v755, %v834
      %v872 = vadd.f32 %v756, %v837
      %v873 = vadd.f32 %v757, %v842
      %v874 = vadd.f32 %v758, %v845
      %v875 = vadd.f32 %v759, %v850
      %v876 = vadd.f32 %v760, %v853
      %v877 = vadd.f32 %v761, %v858
      %v878 = vadd.f32 %v762, %v861
      %v879 = vadd.f32 %v763, %v866
      %v880 = vld [vmem:[%s648 + $0x1] sm:$0xff]
      %v881 = vld [vmem:[%s648 + $0x9] sm:$0xff]
      %v882 = vld [vmem:[%s648 + $0x11] sm:$0xff]
      %v883 = vld [vmem:[%s648 + $0x19] sm:$0xff]
      %v884 = vld [vmem:[%s648 + $0x21] sm:$0xff]
      %v885 = vld [vmem:[%s648 + $0x29] sm:$0xff]
      %v886 = vld [vmem:[%s648 + $0x31] sm:$0xff]
      %v887 = vld [vmem:[%s648 + $0x39] sm:$0xff]
      %v888 = vld [vmem:[%s648 + $0x41] sm:$0xff]
      %v889 = vpack.c.bf16 %v881, %v880
      %v890 = vpack.c.bf16 %v883, %v882
      %v891 = vpack.c.bf16 %v885, %v884
      %v892 = vpack.c.bf16 %v887, %v886
      %v893 = vpack.c.bf16 %v888, %v888
      %s894 = scalar_lea.vmem %s1, 12
      %v895 = vld [vmem:[%s894] sm:$0x3]
      %v897 = vsel %vm236, %v889, 0
      %v900 = vsel %vm236, %v890, 0
      %v903 = vsel %vm236, %v891, 0
      %v906 = vsel %vm236, %v892, 0
      %v909 = vsel %vm236, %v893, 0
      %v912 = vsel %vm252, %v895, 0
      %914 = vmatprep.subr.bf16.mxu0 0
      %915 = vmatpush1.bf16.msra.mxu0 %v912
      %916 = vmatprep.subr.bf16.mxu0 0
      %917 = vmatpush1.bf16.msra.mxu0 0
      %918 = vmatprep.subr.bf16.mxu0 0
      %919 = vmatpush1.bf16.msra.mxu0 0
      %920 = vmatprep.subr.bf16.mxu0 0
      %921 = vmatpush1.bf16.msra.mxu0 0
      %922 = vmatprep.subr.bf16.mxu0 0
      %923 = vmatpush1.bf16.msra.mxu0 0
      %924 = vmatprep.subr.bf16.mxu0 0
      %925 = vmatpush1.bf16.msra.mxu0 0
      %926 = vmatprep.subr.bf16.mxu0 0
      %927 = vmatpush1.bf16.msra.mxu0 0
      %928 = vmatprep.subr.bf16.mxu0 0
      %929 = vmatpush1.bf16.msra.mxu0 0
      %930 = vmatprep.subr.bf16.mxu0 0
      %931 = vmatpush1.bf16.msra.mxu0 0
      %932 = vmatprep.subr.bf16.mxu0 0
      %933 = vmatpush1.bf16.msra.mxu0 0
      %934 = vmatprep.subr.bf16.mxu0 0
      %935 = vmatpush1.bf16.msra.mxu0 0
      %936 = vmatprep.subr.bf16.mxu0 0
      %937 = vmatpush1.bf16.msra.mxu0 0
      %938 = vmatprep.subr.bf16.mxu0 0
      %939 = vmatpush1.bf16.msra.mxu0 0
      %940 = vmatprep.subr.bf16.mxu0 0
      %941 = vmatpush1.bf16.msra.mxu0 0
      %942 = vmatprep.subr.bf16.mxu0 0
      %943 = vmatpush1.bf16.msra.mxu0 0
      %944 = vmatprep.subr.bf16.mxu0 0
      %945 = vmatpush1.bf16.msra.mxu0 0
      %946 = vmatprep.mubr.bf16.mxu0 0
      %947 = vmatmul.mubr.bf16.gmra.mrb[0].mxu0 %v897
      %v948 = vpop.f32.mrb[0].mxu0
      %v949 = vadd.f32 0.0, %v948
      %v950 = vpop.f32.mrb[0].mxu0
      %v951 = vpop.f32.mrb[0].mxu0
      %v952 = vadd.f32 0.0, %v951
      %v953 = vpop.f32.mrb[0].mxu0
      %954 = vmatprep.mubr.bf16.mxu0 0
      %955 = vmatmul.mubr.bf16.gmra.mrb[0].mxu0 %v900
      %v956 = vpop.f32.mrb[0].mxu0
      %v957 = vadd.f32 0.0, %v956
      %v958 = vpop.f32.mrb[0].mxu0
      %v959 = vpop.f32.mrb[0].mxu0
      %v960 = vadd.f32 0.0, %v959
      %v961 = vpop.f32.mrb[0].mxu0
      %962 = vmatprep.mubr.bf16.mxu0 0
      %963 = vmatmul.mubr.bf16.gmra.mrb[0].mxu0 %v903
      %v964 = vpop.f32.mrb[0].mxu0
      %v965 = vadd.f32 0.0, %v964
      %v966 = vpop.f32.mrb[0].mxu0
      %v967 = vpop.f32.mrb[0].mxu0
      %v968 = vadd.f32 0.0, %v967
      %v969 = vpop.f32.mrb[0].mxu0
      %970 = vmatprep.mubr.bf16.mxu0 0
      %971 = vmatmul.mubr.bf16.gmra.mrb[0].mxu0 %v906
      %v972 = vpop.f32.mrb[0].mxu0
      %v973 = vadd.f32 0.0, %v972
      %v974 = vpop.f32.mrb[0].mxu0
      %v975 = vpop.f32.mrb[0].mxu0
      %v976 = vadd.f32 0.0, %v975
      %v977 = vpop.f32.mrb[0].mxu0
      %978 = vmatprep.mubr.bf16.mxu0 0
      %979 = vmatmul.mubr.bf16.gmra.mrb[0].mxu0 %v909
      %v980 = vpop.f32.mrb[0].mxu0
      %v981 = vadd.f32 0.0, %v980
      %v982 = vpop.f32.mrb[0].mxu0
      %v983 = vpop.f32.mrb[0].mxu0
      %v984 = vpop.f32.mrb[0].mxu0
      %985 = vdwg.mxu0
      %v986 = vadd.f32 %v871, %v949
      %v987 = vadd.f32 %v872, %v952
      %v988 = vadd.f32 %v873, %v957
      %v989 = vadd.f32 %v874, %v960
      %v990 = vadd.f32 %v875, %v965
      %v991 = vadd.f32 %v876, %v968
      %v992 = vadd.f32 %v877, %v973
      %v993 = vadd.f32 %v878, %v976
      %v994 = vadd.f32 %v879, %v981
      %v995 = vld [vmem:[%s764 + $0x1] sm:$0xff]
      %v996 = vld [vmem:[%s764 + $0x9] sm:$0xff]
      %v997 = vld [vmem:[%s764 + $0x11] sm:$0xff]
      %v998 = vld [vmem:[%s764 + $0x19] sm:$0xff]
      %v999 = vld [vmem:[%s764 + $0x21] sm:$0xff]
      %v1000 = vld [vmem:[%s764 + $0x29] sm:$0xff]
      %v1001 = vld [vmem:[%s764 + $0x31] sm:$0xff]
      %v1002 = vld [vmem:[%s764 + $0x39] sm:$0xff]
      %v1003 = vld [vmem:[%s764 + $0x41] sm:$0xff]
      %v1004 = vpack.c.bf16 %v996, %v995
      %v1005 = vpack.c.bf16 %v998, %v997
      %v1006 = vpack.c.bf16 %v1000, %v999
      %v1007 = vpack.c.bf16 %v1002, %v1001
      %v1008 = vpack.c.bf16 %v1003, %v1003
      %s1009 = scalar_lea.vmem %s1, 14
      %v1010 = vld [vmem:[%s1009] sm:$0x3]
      %v1012 = vsel %vm236, %v1004, 0
      %v1015 = vsel %vm236, %v1005, 0
      %v1018 = vsel %vm236, %v1006, 0
      %v1021 = vsel %vm236, %v1007, 0
      %v1024 = vsel %vm236, %v1008, 0
      %v1027 = vsel %vm252, %v1010, 0
      %1029 = vmatprep.subr.bf16.mxu0 0
      %1030 = vmatpush1.bf16.msra.mxu0 %v1027
      %1031 = vmatprep.subr.bf16.mxu0 0
      %1032 = vmatpush1.bf16.msra.mxu0 0
      %1033 = vmatprep.subr.bf16.mxu0 0
      %1034 = vmatpush1.bf16.msra.mxu0 0
      %1035 = vmatprep.subr.bf16.mxu0 0
      %1036 = vmatpush1.bf16.msra.mxu0 0
      %1037 = vmatprep.subr.bf16.mxu0 0
      %1038 = vmatpush1.bf16.msra.mxu0 0
      %1039 = vmatprep.subr.bf16.mxu0 0
      %1040 = vmatpush1.bf16.msra.mxu0 0
      %1041 = vmatprep.subr.bf16.mxu0 0
      %1042 = vmatpush1.bf16.msra.mxu0 0
      %1043 = vmatprep.subr.bf16.mxu0 0
      %1044 = vmatpush1.bf16.msra.mxu0 0
      %1045 = vmatprep.subr.bf16.mxu0 0
      %1046 = vmatpush1.bf16.msra.mxu0 0
      %1047 = vmatprep.subr.bf16.mxu0 0
      %1048 = vmatpush1.bf16.msra.mxu0 0
      %1049 = vmatprep.subr.bf16.mxu0 0
      %1050 = vmatpush1.bf16.msra.mxu0 0
      %1051 = vmatprep.subr.bf16.mxu0 0
      %1052 = vmatpush1.bf16.msra.mxu0 0
      %1053 = vmatprep.subr.bf16.mxu0 0
      %1054 = vmatpush1.bf16.msra.mxu0 0
      %1055 = vmatprep.subr.bf16.mxu0 0
      %1056 = vmatpush1.bf16.msra.mxu0 0
      %1057 = vmatprep.subr.bf16.mxu0 0
      %1058 = vmatpush1.bf16.msra.mxu0 0
      %1059 = vmatprep.subr.bf16.mxu0 0
      %1060 = vmatpush1.bf16.msra.mxu0 0
      %1061 = vmatprep.mubr.bf16.mxu0 0
      %1062 = vmatmul.mubr.bf16.gmra.mrb[0].mxu0 %v1012
      %v1063 = vpop.f32.mrb[0].mxu0
      %v1064 = vadd.f32 0.0, %v1063
      %v1065 = vpop.f32.mrb[0].mxu0
      %v1066 = vpop.f32.mrb[0].mxu0
      %v1067 = vadd.f32 0.0, %v1066
      %v1068 = vpop.f32.mrb[0].mxu0
      %1069 = vmatprep.mubr.bf16.mxu0 0
      %1070 = vmatmul.mubr.bf16.gmra.mrb[0].mxu0 %v1015
      %v1071 = vpop.f32.mrb[0].mxu0
      %v1072 = vadd.f32 0.0, %v1071
      %v1073 = vpop.f32.mrb[0].mxu0
      %v1074 = vpop.f32.mrb[0].mxu0
      %v1075 = vadd.f32 0.0, %v1074
      %v1076 = vpop.f32.mrb[0].mxu0
      %1077 = vmatprep.mubr.bf16.mxu0 0
      %1078 = vmatmul.mubr.bf16.gmra.mrb[0].mxu0 %v1018
      %v1079 = vpop.f32.mrb[0].mxu0
      %v1080 = vadd.f32 0.0, %v1079
      %v1081 = vpop.f32.mrb[0].mxu0
      %v1082 = vpop.f32.mrb[0].mxu0
      %v1083 = vadd.f32 0.0, %v1082
      %v1084 = vpop.f32.mrb[0].mxu0
      %1085 = vmatprep.mubr.bf16.mxu0 0
      %1086 = vmatmul.mubr.bf16.gmra.mrb[0].mxu0 %v1021
      %v1087 = vpop.f32.mrb[0].mxu0
      %v1088 = vadd.f32 0.0, %v1087
      %v1089 = vpop.f32.mrb[0].mxu0
      %v1090 = vpop.f32.mrb[0].mxu0
      %v1091 = vadd.f32 0.0, %v1090
      %v1092 = vpop.f32.mrb[0].mxu0
      %1093 = vmatprep.mubr.bf16.mxu0 0
      %1094 = vmatmul.mubr.bf16.gmra.mrb[0].mxu0 %v1024
      %v1095 = vpop.f32.mrb[0].mxu0
      %v1096 = vadd.f32 0.0, %v1095
      %v1097 = vpop.f32.mrb[0].mxu0
      %v1098 = vpop.f32.mrb[0].mxu0
      %v1099 = vpop.f32.mrb[0].mxu0
      %1100 = vdwg.mxu0
      %v1101 = vadd.f32 %v986, %v1064
      %v1102 = vadd.f32 %v987, %v1067
      %v1103 = vadd.f32 %v988, %v1072
      %v1104 = vadd.f32 %v989, %v1075
      %v1105 = vadd.f32 %v990, %v1080
      %v1106 = vadd.f32 %v991, %v1083
      %v1107 = vadd.f32 %v992, %v1088
      %v1108 = vadd.f32 %v993, %v1091
      %v1109 = vadd.f32 %v994, %v1096
      %v1110 = vld [vmem:[%s196 + $0x9] sm:$0xff]
      %v1111 = vld [vmem:[%s196 + $0x11] sm:$0xff]
      %v1112 = vld [vmem:[%s196 + $0x19] sm:$0xff]
      %v1113 = vld [vmem:[%s196 + $0x21] sm:$0xff]
      %v1114 = vld [vmem:[%s196 + $0x29] sm:$0xff]
      %v1115 = vld [vmem:[%s196 + $0x31] sm:$0xff]
      %v1116 = vld [vmem:[%s196 + $0x39] sm:$0xff]
      %v1117 = vld [vmem:[%s196 + $0x41] sm:$0xff]
      %v1118 = vld [vmem:[%s196 + $0x49] sm:$0xff]
      %v1119 = vpack.c.bf16 %v1111, %v1110
      %v1120 = vpack.c.bf16 %v1113, %v1112
      %v1121 = vpack.c.bf16 %v1115, %v1114
      %v1122 = vpack.c.bf16 %v1117, %v1116
      %v1123 = vpack.c.bf16 %v1118, %v1118
      %s1124 = scalar_lea.vmem %s1, 16
      %v1125 = vld [vmem:[%s1124] sm:$0x3]
      %v1127 = vsel %vm236, %v1119, 0
      %v1130 = vsel %vm236, %v1120, 0
      %v1133 = vsel %vm236, %v1121, 0
      %v1136 = vsel %vm236, %v1122, 0
      %v1139 = vsel %vm236, %v1123, 0
      %v1142 = vsel %vm252, %v1125, 0
      %1144 = vmatprep.subr.bf16.mxu0 0
      %1145 = vmatpush1.bf16.msra.mxu0 %v1142
      %1146 = vmatprep.subr.bf16.mxu0 0
      %1147 = vmatpush1.bf16.msra.mxu0 0
      %1148 = vmatprep.subr.bf16.mxu0 0
      %1149 = vmatpush1.bf16.msra.mxu0 0
      %1150 = vmatprep.subr.bf16.mxu0 0
      %1151 = vmatpush1.bf16.msra.mxu0 0
      %1152 = vmatprep.subr.bf16.mxu0 0
      %1153 = vmatpush1.bf16.msra.mxu0 0
      %1154 = vmatprep.subr.bf16.mxu0 0
      %1155 = vmatpush1.bf16.msra.mxu0 0
      %1156 = vmatprep.subr.bf16.mxu0 0
      %1157 = vmatpush1.bf16.msra.mxu0 0
      %1158 = vmatprep.subr.bf16.mxu0 0
      %1159 = vmatpush1.bf16.msra.mxu0 0
      %1160 = vmatprep.subr.bf16.mxu0 0
      %1161 = vmatpush1.bf16.msra.mxu0 0
      %1162 = vmatprep.subr.bf16.mxu0 0
      %1163 = vmatpush1.bf16.msra.mxu0 0
      %1164 = vmatprep.subr.bf16.mxu0 0
      %1165 = vmatpush1.bf16.msra.mxu0 0
      %1166 = vmatprep.subr.bf16.mxu0 0
      %1167 = vmatpush1.bf16.msra.mxu0 0
      %1168 = vmatprep.subr.bf16.mxu0 0
      %1169 = vmatpush1.bf16.msra.mxu0 0
      %1170 = vmatprep.subr.bf16.mxu0 0
      %1171 = vmatpush1.bf16.msra.mxu0 0
      %1172 = vmatprep.subr.bf16.mxu0 0
      %1173 = vmatpush1.bf16.msra.mxu0 0
      %1174 = vmatprep.subr.bf16.mxu0 0
      %1175 = vmatpush1.bf16.msra.mxu0 0
      %1176 = vmatprep.mubr.bf16.mxu0 0
      %1177 = vmatmul.mubr.bf16.gmra.mrb[0].mxu0 %v1127
      %v1178 = vpop.f32.mrb[0].mxu0
      %v1179 = vadd.f32 0.0, %v1178
      %v1180 = vpop.f32.mrb[0].mxu0
      %v1181 = vpop.f32.mrb[0].mxu0
      %v1182 = vadd.f32 0.0, %v1181
      %v1183 = vpop.f32.mrb[0].mxu0
      %1184 = vmatprep.mubr.bf16.mxu0 0
      %1185 = vmatmul.mubr.bf16.gmra.mrb[0].mxu0 %v1130
      %v1186 = vpop.f32.mrb[0].mxu0
      %v1187 = vadd.f32 0.0, %v1186
      %v1188 = vpop.f32.mrb[0].mxu0
      %v1189 = vpop.f32.mrb[0].mxu0
      %v1190 = vadd.f32 0.0, %v1189
      %v1191 = vpop.f32.mrb[0].mxu0
      %1192 = vmatprep.mubr.bf16.mxu0 0
      %1193 = vmatmul.mubr.bf16.gmra.mrb[0].mxu0 %v1133
      %v1194 = vpop.f32.mrb[0].mxu0
      %v1195 = vadd.f32 0.0, %v1194
      %v1196 = vpop.f32.mrb[0].mxu0
      %v1197 = vpop.f32.mrb[0].mxu0
      %v1198 = vadd.f32 0.0, %v1197
      %v1199 = vpop.f32.mrb[0].mxu0
      %1200 = vmatprep.mubr.bf16.mxu0 0
      %1201 = vmatmul.mubr.bf16.gmra.mrb[0].mxu0 %v1136
      %v1202 = vpop.f32.mrb[0].mxu0
      %v1203 = vadd.f32 0.0, %v1202
      %v1204 = vpop.f32.mrb[0].mxu0
      %v1205 = vpop.f32.mrb[0].mxu0
      %v1206 = vadd.f32 0.0, %v1205
      %v1207 = vpop.f32.mrb[0].mxu0
      %1208 = vmatprep.mubr.bf16.mxu0 0
      %1209 = vmatmul.mubr.bf16.gmra.mrb[0].mxu0 %v1139
      %v1210 = vpop.f32.mrb[0].mxu0
      %v1211 = vadd.f32 0.0, %v1210
      %v1212 = vpop.f32.mrb[0].mxu0
      %v1213 = vpop.f32.mrb[0].mxu0
      %v1214 = vpop.f32.mrb[0].mxu0
      %1215 = vdwg.mxu0
      %v1216 = vadd.f32 %v1101, %v1179
      %v1217 = vadd.f32 %v1102, %v1182
      %v1218 = vadd.f32 %v1103, %v1187
      %v1219 = vadd.f32 %v1104, %v1190
      %v1220 = vadd.f32 %v1105, %v1195
      %v1221 = vadd.f32 %v1106, %v1198
      %v1222 = vadd.f32 %v1107, %v1203
      %v1223 = vadd.f32 %v1108, %v1206
      %v1224 = vadd.f32 %v1109, %v1211
      %v1225 = vld [vmem:[%s219 + $0x9] sm:$0xff]
      %v1226 = vld [vmem:[%s219 + $0x11] sm:$0xff]
      %v1227 = vld [vmem:[%s219 + $0x19] sm:$0xff]
      %v1228 = vld [vmem:[%s219 + $0x21] sm:$0xff]
      %v1229 = vld [vmem:[%s219 + $0x29] sm:$0xff]
      %v1230 = vld [vmem:[%s219 + $0x31] sm:$0xff]
      %v1231 = vld [vmem:[%s219 + $0x39] sm:$0xff]
      %v1232 = vld [vmem:[%s219 + $0x41] sm:$0xff]
      %v1233 = vld [vmem:[%s219 + $0x49] sm:$0xff]
      %v1234 = vpack.c.bf16 %v1226, %v1225
      %v1235 = vpack.c.bf16 %v1228, %v1227
      %v1236 = vpack.c.bf16 %v1230, %v1229
      %v1237 = vpack.c.bf16 %v1232, %v1231
      %v1238 = vpack.c.bf16 %v1233, %v1233
      %s1239 = scalar_lea.vmem %s1, 18
      %v1240 = vld [vmem:[%s1239] sm:$0x3]
      %v1242 = vsel %vm236, %v1234, 0
      %v1245 = vsel %vm236, %v1235, 0
      %v1248 = vsel %vm236, %v1236, 0
      %v1251 = vsel %vm236, %v1237, 0
      %v1254 = vsel %vm236, %v1238, 0
      %v1257 = vsel %vm252, %v1240, 0
      %1259 = vmatprep.subr.bf16.mxu0 0
      %1260 = vmatpush1.bf16.msra.mxu0 %v1257
      %1261 = vmatprep.subr.bf16.mxu0 0
      %1262 = vmatpush1.bf16.msra.mxu0 0
      %1263 = vmatprep.subr.bf16.mxu0 0
      %1264 = vmatpush1.bf16.msra.mxu0 0
      %1265 = vmatprep.subr.bf16.mxu0 0
      %1266 = vmatpush1.bf16.msra.mxu0 0
      %1267 = vmatprep.subr.bf16.mxu0 0
      %1268 = vmatpush1.bf16.msra.mxu0 0
      %1269 = vmatprep.subr.bf16.mxu0 0
      %1270 = vmatpush1.bf16.msra.mxu0 0
      %1271 = vmatprep.subr.bf16.mxu0 0
      %1272 = vmatpush1.bf16.msra.mxu0 0
      %1273 = vmatprep.subr.bf16.mxu0 0
      %1274 = vmatpush1.bf16.msra.mxu0 0
      %1275 = vmatprep.subr.bf16.mxu0 0
      %1276 = vmatpush1.bf16.msra.mxu0 0
      %1277 = vmatprep.subr.bf16.mxu0 0
      %1278 = vmatpush1.bf16.msra.mxu0 0
      %1279 = vmatprep.subr.bf16.mxu0 0
      %1280 = vmatpush1.bf16.msra.mxu0 0
      %1281 = vmatprep.subr.bf16.mxu0 0
      %1282 = vmatpush1.bf16.msra.mxu0 0
      %1283 = vmatprep.subr.bf16.mxu0 0
      %1284 = vmatpush1.bf16.msra.mxu0 0
      %1285 = vmatprep.subr.bf16.mxu0 0
      %1286 = vmatpush1.bf16.msra.mxu0 0
      %1287 = vmatprep.subr.bf16.mxu0 0
      %1288 = vmatpush1.bf16.msra.mxu0 0
      %1289 = vmatprep.subr.bf16.mxu0 0
      %1290 = vmatpush1.bf16.msra.mxu0 0
      %1291 = vmatprep.mubr.bf16.mxu0 0
      %1292 = vmatmul.mubr.bf16.gmra.mrb[0].mxu0 %v1242
      %v1293 = vpop.f32.mrb[0].mxu0
      %v1294 = vadd.f32 0.0, %v1293
      %v1295 = vpop.f32.mrb[0].mxu0
      %v1296 = vpop.f32.mrb[0].mxu0
      %v1297 = vadd.f32 0.0, %v1296
      %v1298 = vpop.f32.mrb[0].mxu0
      %1299 = vmatprep.mubr.bf16.mxu0 0
      %1300 = vmatmul.mubr.bf16.gmra.mrb[0].mxu0 %v1245
      %v1301 = vpop.f32.mrb[0].mxu0
      %v1302 = vadd.f32 0.0, %v1301
      %v1303 = vpop.f32.mrb[0].mxu0
      %v1304 = vpop.f32.mrb[0].mxu0
      %v1305 = vadd.f32 0.0, %v1304
      %v1306 = vpop.f32.mrb[0].mxu0
      %1307 = vmatprep.mubr.bf16.mxu0 0
      %1308 = vmatmul.mubr.bf16.gmra.mrb[0].mxu0 %v1248
      %v1309 = vpop.f32.mrb[0].mxu0
      %v1310 = vadd.f32 0.0, %v1309
      %v1311 = vpop.f32.mrb[0].mxu0
      %v1312 = vpop.f32.mrb[0].mxu0
      %v1313 = vadd.f32 0.0, %v1312
      %v1314 = vpop.f32.mrb[0].mxu0
      %1315 = vmatprep.mubr.bf16.mxu0 0
      %1316 = vmatmul.mubr.bf16.gmra.mrb[0].mxu0 %v1251
      %v1317 = vpop.f32.mrb[0].mxu0
      %v1318 = vadd.f32 0.0, %v1317
      %v1319 = vpop.f32.mrb[0].mxu0
      %v1320 = vpop.f32.mrb[0].mxu0
      %v1321 = vadd.f32 0.0, %v1320
      %v1322 = vpop.f32.mrb[0].mxu0
      %1323 = vmatprep.mubr.bf16.mxu0 0
      %1324 = vmatmul.mubr.bf16.gmra.mrb[0].mxu0 %v1254
      %v1325 = vpop.f32.mrb[0].mxu0
      %v1326 = vadd.f32 0.0, %v1325
      %v1327 = vpop.f32.mrb[0].mxu0
      %v1328 = vpop.f32.mrb[0].mxu0
      %v1329 = vpop.f32.mrb[0].mxu0
      %1330 = vdwg.mxu0
      %v1331 = vadd.f32 %v1216, %v1294
      %v1332 = vadd.f32 %v1217, %v1297
      %v1333 = vadd.f32 %v1218, %v1302
      %v1334 = vadd.f32 %v1219, %v1305
      %v1335 = vadd.f32 %v1220, %v1310
      %v1336 = vadd.f32 %v1221, %v1313
      %v1337 = vadd.f32 %v1222, %v1318
      %v1338 = vadd.f32 %v1223, %v1321
      %v1339 = vadd.f32 %v1224, %v1326
      %v1340 = vld [vmem:[%s196 + $0xa] sm:$0xff]
      %v1341 = vld [vmem:[%s196 + $0x12] sm:$0xff]
      %v1342 = vld [vmem:[%s196 + $0x1a] sm:$0xff]
      %v1343 = vld [vmem:[%s196 + $0x22] sm:$0xff]
      %v1344 = vld [vmem:[%s196 + $0x2a] sm:$0xff]
      %v1345 = vld [vmem:[%s196 + $0x32] sm:$0xff]
      %v1346 = vld [vmem:[%s196 + $0x3a] sm:$0xff]
      %v1347 = vld [vmem:[%s196 + $0x42] sm:$0xff]
      %v1348 = vld [vmem:[%s196 + $0x4a] sm:$0xff]
      %v1349 = vpack.c.bf16 %v1341, %v1340
      %v1350 = vpack.c.bf16 %v1343, %v1342
      %v1351 = vpack.c.bf16 %v1345, %v1344
      %v1352 = vpack.c.bf16 %v1347, %v1346
      %v1353 = vpack.c.bf16 %v1348, %v1348
      %s1354 = scalar_lea.vmem %s1, 20
      %v1355 = vld [vmem:[%s1354] sm:$0x3]
      %v1357 = vsel %vm236, %v1349, 0
      %v1360 = vsel %vm236, %v1350, 0
      %v1363 = vsel %vm236, %v1351, 0
      %v1366 = vsel %vm236, %v1352, 0
      %v1369 = vsel %vm236, %v1353, 0
      %v1372 = vsel %vm252, %v1355, 0
      %1374 = vmatprep.subr.bf16.mxu0 0
      %1375 = vmatpush1.bf16.msra.mxu0 %v1372
      %1376 = vmatprep.subr.bf16.mxu0 0
      %1377 = vmatpush1.bf16.msra.mxu0 0
      %1378 = vmatprep.subr.bf16.mxu0 0
      %1379 = vmatpush1.bf16.msra.mxu0 0
      %1380 = vmatprep.subr.bf16.mxu0 0
      %1381 = vmatpush1.bf16.msra.mxu0 0
      %1382 = vmatprep.subr.bf16.mxu0 0
      %1383 = vmatpush1.bf16.msra.mxu0 0
      %1384 = vmatprep.subr.bf16.mxu0 0
      %1385 = vmatpush1.bf16.msra.mxu0 0
      %1386 = vmatprep.subr.bf16.mxu0 0
      %1387 = vmatpush1.bf16.msra.mxu0 0
      %1388 = vmatprep.subr.bf16.mxu0 0
      %1389 = vmatpush1.bf16.msra.mxu0 0
      %1390 = vmatprep.subr.bf16.mxu0 0
      %1391 = vmatpush1.bf16.msra.mxu0 0
      %1392 = vmatprep.subr.bf16.mxu0 0
      %1393 = vmatpush1.bf16.msra.mxu0 0
      %1394 = vmatprep.subr.bf16.mxu0 0
      %1395 = vmatpush1.bf16.msra.mxu0 0
      %1396 = vmatprep.subr.bf16.mxu0 0
      %1397 = vmatpush1.bf16.msra.mxu0 0
      %1398 = vmatprep.subr.bf16.mxu0 0
      %1399 = vmatpush1.bf16.msra.mxu0 0
      %1400 = vmatprep.subr.bf16.mxu0 0
      %1401 = vmatpush1.bf16.msra.mxu0 0
      %1402 = vmatprep.subr.bf16.mxu0 0
      %1403 = vmatpush1.bf16.msra.mxu0 0
      %1404 = vmatprep.subr.bf16.mxu0 0
      %1405 = vmatpush1.bf16.msra.mxu0 0
      %1406 = vmatprep.mubr.bf16.mxu0 0
      %1407 = vmatmul.mubr.bf16.gmra.mrb[0].mxu0 %v1357
      %v1408 = vpop.f32.mrb[0].mxu0
      %v1409 = vadd.f32 0.0, %v1408
      %v1410 = vpop.f32.mrb[0].mxu0
      %v1411 = vpop.f32.mrb[0].mxu0
      %v1412 = vadd.f32 0.0, %v1411
      %v1413 = vpop.f32.mrb[0].mxu0
      %1414 = vmatprep.mubr.bf16.mxu0 0
      %1415 = vmatmul.mubr.bf16.gmra.mrb[0].mxu0 %v1360
      %v1416 = vpop.f32.mrb[0].mxu0
      %v1417 = vadd.f32 0.0, %v1416
      %v1418 = vpop.f32.mrb[0].mxu0
      %v1419 = vpop.f32.mrb[0].mxu0
      %v1420 = vadd.f32 0.0, %v1419
      %v1421 = vpop.f32.mrb[0].mxu0
      %1422 = vmatprep.mubr.bf16.mxu0 0
      %1423 = vmatmul.mubr.bf16.gmra.mrb[0].mxu0 %v1363
      %v1424 = vpop.f32.mrb[0].mxu0
      %v1425 = vadd.f32 0.0, %v1424
      %v1426 = vpop.f32.mrb[0].mxu0
      %v1427 = vpop.f32.mrb[0].mxu0
      %v1428 = vadd.f32 0.0, %v1427
      %v1429 = vpop.f32.mrb[0].mxu0
      %1430 = vmatprep.mubr.bf16.mxu0 0
      %1431 = vmatmul.mubr.bf16.gmra.mrb[0].mxu0 %v1366
      %v1432 = vpop.f32.mrb[0].mxu0
      %v1433 = vadd.f32 0.0, %v1432
      %v1434 = vpop.f32.mrb[0].mxu0
      %v1435 = vpop.f32.mrb[0].mxu0
      %v1436 = vadd.f32 0.0, %v1435
      %v1437 = vpop.f32.mrb[0].mxu0
      %1438 = vmatprep.mubr.bf16.mxu0 0
      %1439 = vmatmul.mubr.bf16.gmra.mrb[0].mxu0 %v1369
      %v1440 = vpop.f32.mrb[0].mxu0
      %v1441 = vadd.f32 0.0, %v1440
      %v1442 = vpop.f32.mrb[0].mxu0
      %v1443 = vpop.f32.mrb[0].mxu0
      %v1444 = vpop.f32.mrb[0].mxu0
      %1445 = vdwg.mxu0
      %v1446 = vadd.f32 %v1331, %v1409
      %v1447 = vadd.f32 %v1332, %v1412
      %v1448 = vadd.f32 %v1333, %v1417
      %v1449 = vadd.f32 %v1334, %v1420
      %v1450 = vadd.f32 %v1335, %v1425
      %v1451 = vadd.f32 %v1336, %v1428
      %v1452 = vadd.f32 %v1337, %v1433
      %v1453 = vadd.f32 %v1338, %v1436
      %v1454 = vadd.f32 %v1339, %v1441
      %v1455 = vld [vmem:[%s219 + $0xa] sm:$0xff]
      %v1456 = vld [vmem:[%s219 + $0x12] sm:$0xff]
      %v1457 = vld [vmem:[%s219 + $0x1a] sm:$0xff]
      %v1458 = vld [vmem:[%s219 + $0x22] sm:$0xff]
      %v1459 = vld [vmem:[%s219 + $0x2a] sm:$0xff]
      %v1460 = vld [vmem:[%s219 + $0x32] sm:$0xff]
      %v1461 = vld [vmem:[%s219 + $0x3a] sm:$0xff]
      %v1462 = vld [vmem:[%s219 + $0x42] sm:$0xff]
      %v1463 = vld [vmem:[%s219 + $0x4a] sm:$0xff]
      %v1464 = vpack.c.bf16 %v1456, %v1455
      %v1465 = vpack.c.bf16 %v1458, %v1457
      %v1466 = vpack.c.bf16 %v1460, %v1459
      %v1467 = vpack.c.bf16 %v1462, %v1461
      %v1468 = vpack.c.bf16 %v1463, %v1463
      %s1469 = scalar_lea.vmem %s1, 22
      %v1470 = vld [vmem:[%s1469] sm:$0x3]
      %v1472 = vsel %vm236, %v1464, 0
      %v1475 = vsel %vm236, %v1465, 0
      %v1478 = vsel %vm236, %v1466, 0
      %v1481 = vsel %vm236, %v1467, 0
      %v1484 = vsel %vm236, %v1468, 0
      %v1487 = vsel %vm252, %v1470, 0
      %1489 = vmatprep.subr.bf16.mxu0 0
      %1490 = vmatpush1.bf16.msra.mxu0 %v1487
      %1491 = vmatprep.subr.bf16.mxu0 0
      %1492 = vmatpush1.bf16.msra.mxu0 0
      %1493 = vmatprep.subr.bf16.mxu0 0
      %1494 = vmatpush1.bf16.msra.mxu0 0
      %1495 = vmatprep.subr.bf16.mxu0 0
      %1496 = vmatpush1.bf16.msra.mxu0 0
      %1497 = vmatprep.subr.bf16.mxu0 0
      %1498 = vmatpush1.bf16.msra.mxu0 0
      %1499 = vmatprep.subr.bf16.mxu0 0
      %1500 = vmatpush1.bf16.msra.mxu0 0
      %1501 = vmatprep.subr.bf16.mxu0 0
      %1502 = vmatpush1.bf16.msra.mxu0 0
      %1503 = vmatprep.subr.bf16.mxu0 0
      %1504 = vmatpush1.bf16.msra.mxu0 0
      %1505 = vmatprep.subr.bf16.mxu0 0
      %1506 = vmatpush1.bf16.msra.mxu0 0
      %1507 = vmatprep.subr.bf16.mxu0 0
      %1508 = vmatpush1.bf16.msra.mxu0 0
      %1509 = vmatprep.subr.bf16.mxu0 0
      %1510 = vmatpush1.bf16.msra.mxu0 0
      %1511 = vmatprep.subr.bf16.mxu0 0
      %1512 = vmatpush1.bf16.msra.mxu0 0
      %1513 = vmatprep.subr.bf16.mxu0 0
      %1514 = vmatpush1.bf16.msra.mxu0 0
      %1515 = vmatprep.subr.bf16.mxu0 0
      %1516 = vmatpush1.bf16.msra.mxu0 0
      %1517 = vmatprep.subr.bf16.mxu0 0
      %1518 = vmatpush1.bf16.msra.mxu0 0
      %1519 = vmatprep.subr.bf16.mxu0 0
      %1520 = vmatpush1.bf16.msra.mxu0 0
      %1521 = vmatprep.mubr.bf16.mxu0 0
      %1522 = vmatmul.mubr.bf16.gmra.mrb[0].mxu0 %v1472
      %v1523 = vpop.f32.mrb[0].mxu0
      %v1524 = vadd.f32 0.0, %v1523
      %v1525 = vpop.f32.mrb[0].mxu0
      %v1526 = vpop.f32.mrb[0].mxu0
      %v1527 = vadd.f32 0.0, %v1526
      %v1528 = vpop.f32.mrb[0].mxu0
      %1529 = vmatprep.mubr.bf16.mxu0 0
      %1530 = vmatmul.mubr.bf16.gmra.mrb[0].mxu0 %v1475
      %v1531 = vpop.f32.mrb[0].mxu0
      %v1532 = vadd.f32 0.0, %v1531
      %v1533 = vpop.f32.mrb[0].mxu0
      %v1534 = vpop.f32.mrb[0].mxu0
      %v1535 = vadd.f32 0.0, %v1534
      %v1536 = vpop.f32.mrb[0].mxu0
      %1537 = vmatprep.mubr.bf16.mxu0 0
      %1538 = vmatmul.mubr.bf16.gmra.mrb[0].mxu0 %v1478
      %v1539 = vpop.f32.mrb[0].mxu0
      %v1540 = vadd.f32 0.0, %v1539
      %v1541 = vpop.f32.mrb[0].mxu0
      %v1542 = vpop.f32.mrb[0].mxu0
      %v1543 = vadd.f32 0.0, %v1542
      %v1544 = vpop.f32.mrb[0].mxu0
      %1545 = vmatprep.mubr.bf16.mxu0 0
      %1546 = vmatmul.mubr.bf16.gmra.mrb[0].mxu0 %v1481
      %v1547 = vpop.f32.mrb[0].mxu0
      %v1548 = vadd.f32 0.0, %v1547
      %v1549 = vpop.f32.mrb[0].mxu0
      %v1550 = vpop.f32.mrb[0].mxu0
      %v1551 = vadd.f32 0.0, %v1550
      %v1552 = vpop.f32.mrb[0].mxu0
      %1553 = vmatprep.mubr.bf16.mxu0 0
      %1554 = vmatmul.mubr.bf16.gmra.mrb[0].mxu0 %v1484
      %v1555 = vpop.f32.mrb[0].mxu0
      %v1556 = vadd.f32 0.0, %v1555
      %v1557 = vpop.f32.mrb[0].mxu0
      %v1558 = vpop.f32.mrb[0].mxu0
      %v1559 = vpop.f32.mrb[0].mxu0
      %1560 = vdwg.mxu0
      %v1561 = vadd.f32 %v1446, %v1524
      %v1562 = vadd.f32 %v1447, %v1527
      %v1563 = vadd.f32 %v1448, %v1532
      %v1564 = vadd.f32 %v1449, %v1535
      %v1565 = vadd.f32 %v1450, %v1540
      %v1566 = vadd.f32 %v1451, %v1543
      %v1567 = vadd.f32 %v1452, %v1548
      %v1568 = vadd.f32 %v1453, %v1551
      %v1569 = vadd.f32 %v1454, %v1556
      %v1570 = vld [vmem:[%s648 + $0x9] sm:$0xff]
      %v1571 = vld [vmem:[%s648 + $0x11] sm:$0xff]
      %v1572 = vld [vmem:[%s648 + $0x19] sm:$0xff]
      %v1573 = vld [vmem:[%s648 + $0x21] sm:$0xff]
      %v1574 = vld [vmem:[%s648 + $0x29] sm:$0xff]
      %v1575 = vld [vmem:[%s648 + $0x31] sm:$0xff]
      %v1576 = vld [vmem:[%s648 + $0x39] sm:$0xff]
      %v1577 = vld [vmem:[%s648 + $0x41] sm:$0xff]
      %v1578 = vld [vmem:[%s648 + $0x49] sm:$0xff]
      %v1579 = vpack.c.bf16 %v1571, %v1570
      %v1580 = vpack.c.bf16 %v1573, %v1572
      %v1581 = vpack.c.bf16 %v1575, %v1574
      %v1582 = vpack.c.bf16 %v1577, %v1576
      %v1583 = vpack.c.bf16 %v1578, %v1578
      %s1584 = scalar_lea.vmem %s1, 24
      %v1585 = vld [vmem:[%s1584] sm:$0x3]
      %v1587 = vsel %vm236, %v1579, 0
      %v1590 = vsel %vm236, %v1580, 0
      %v1593 = vsel %vm236, %v1581, 0
      %v1596 = vsel %vm236, %v1582, 0
      %v1599 = vsel %vm236, %v1583, 0
      %v1602 = vsel %vm252, %v1585, 0
      %1604 = vmatprep.subr.bf16.mxu0 0
      %1605 = vmatpush1.bf16.msra.mxu0 %v1602
      %1606 = vmatprep.subr.bf16.mxu0 0
      %1607 = vmatpush1.bf16.msra.mxu0 0
      %1608 = vmatprep.subr.bf16.mxu0 0
      %1609 = vmatpush1.bf16.msra.mxu0 0
      %1610 = vmatprep.subr.bf16.mxu0 0
      %1611 = vmatpush1.bf16.msra.mxu0 0
      %1612 = vmatprep.subr.bf16.mxu0 0
      %1613 = vmatpush1.bf16.msra.mxu0 0
      %1614 = vmatprep.subr.bf16.mxu0 0
      %1615 = vmatpush1.bf16.msra.mxu0 0
      %1616 = vmatprep.subr.bf16.mxu0 0
      %1617 = vmatpush1.bf16.msra.mxu0 0
      %1618 = vmatprep.subr.bf16.mxu0 0
      %1619 = vmatpush1.bf16.msra.mxu0 0
      %1620 = vmatprep.subr.bf16.mxu0 0
      %1621 = vmatpush1.bf16.msra.mxu0 0
      %1622 = vmatprep.subr.bf16.mxu0 0
      %1623 = vmatpush1.bf16.msra.mxu0 0
      %1624 = vmatprep.subr.bf16.mxu0 0
      %1625 = vmatpush1.bf16.msra.mxu0 0
      %1626 = vmatprep.subr.bf16.mxu0 0
      %1627 = vmatpush1.bf16.msra.mxu0 0
      %1628 = vmatprep.subr.bf16.mxu0 0
      %1629 = vmatpush1.bf16.msra.mxu0 0
      %1630 = vmatprep.subr.bf16.mxu0 0
      %1631 = vmatpush1.bf16.msra.mxu0 0
      %1632 = vmatprep.subr.bf16.mxu0 0
      %1633 = vmatpush1.bf16.msra.mxu0 0
      %1634 = vmatprep.subr.bf16.mxu0 0
      %1635 = vmatpush1.bf16.msra.mxu0 0
      %1636 = vmatprep.mubr.bf16.mxu0 0
      %1637 = vmatmul.mubr.bf16.gmra.mrb[0].mxu0 %v1587
      %v1638 = vpop.f32.mrb[0].mxu0
      %v1639 = vadd.f32 0.0, %v1638
      %v1640 = vpop.f32.mrb[0].mxu0
      %v1641 = vpop.f32.mrb[0].mxu0
      %v1642 = vadd.f32 0.0, %v1641
      %v1643 = vpop.f32.mrb[0].mxu0
      %1644 = vmatprep.mubr.bf16.mxu0 0
      %1645 = vmatmul.mubr.bf16.gmra.mrb[0].mxu0 %v1590
      %v1646 = vpop.f32.mrb[0].mxu0
      %v1647 = vadd.f32 0.0, %v1646
      %v1648 = vpop.f32.mrb[0].mxu0
      %v1649 = vpop.f32.mrb[0].mxu0
      %v1650 = vadd.f32 0.0, %v1649
      %v1651 = vpop.f32.mrb[0].mxu0
      %1652 = vmatprep.mubr.bf16.mxu0 0
      %1653 = vmatmul.mubr.bf16.gmra.mrb[0].mxu0 %v1593
      %v1654 = vpop.f32.mrb[0].mxu0
      %v1655 = vadd.f32 0.0, %v1654
      %v1656 = vpop.f32.mrb[0].mxu0
      %v1657 = vpop.f32.mrb[0].mxu0
      %v1658 = vadd.f32 0.0, %v1657
      %v1659 = vpop.f32.mrb[0].mxu0
      %1660 = vmatprep.mubr.bf16.mxu0 0
      %1661 = vmatmul.mubr.bf16.gmra.mrb[0].mxu0 %v1596
      %v1662 = vpop.f32.mrb[0].mxu0
      %v1663 = vadd.f32 0.0, %v1662
      %v1664 = vpop.f32.mrb[0].mxu0
      %v1665 = vpop.f32.mrb[0].mxu0
      %v1666 = vadd.f32 0.0, %v1665
      %v1667 = vpop.f32.mrb[0].mxu0
      %1668 = vmatprep.mubr.bf16.mxu0 0
      %1669 = vmatmul.mubr.bf16.gmra.mrb[0].mxu0 %v1599
      %v1670 = vpop.f32.mrb[0].mxu0
      %v1671 = vadd.f32 0.0, %v1670
      %v1672 = vpop.f32.mrb[0].mxu0
      %v1673 = vpop.f32.mrb[0].mxu0
      %v1674 = vpop.f32.mrb[0].mxu0
      %1675 = vdwg.mxu0
      %v1676 = vadd.f32 %v1561, %v1639
      %v1677 = vadd.f32 %v1562, %v1642
      %v1678 = vadd.f32 %v1563, %v1647
      %v1679 = vadd.f32 %v1564, %v1650
      %v1680 = vadd.f32 %v1565, %v1655
      %v1681 = vadd.f32 %v1566, %v1658
      %v1682 = vadd.f32 %v1567, %v1663
      %v1683 = vadd.f32 %v1568, %v1666
      %v1684 = vadd.f32 %v1569, %v1671
      %v1685 = vld [vmem:[%s764 + $0x9] sm:$0xff]
      %v1686 = vld [vmem:[%s764 + $0x11] sm:$0xff]
      %v1687 = vld [vmem:[%s764 + $0x19] sm:$0xff]
      %v1688 = vld [vmem:[%s764 + $0x21] sm:$0xff]
      %v1689 = vld [vmem:[%s764 + $0x29] sm:$0xff]
      %v1690 = vld [vmem:[%s764 + $0x31] sm:$0xff]
      %v1691 = vld [vmem:[%s764 + $0x39] sm:$0xff]
      %v1692 = vld [vmem:[%s764 + $0x41] sm:$0xff]
      %v1693 = vld [vmem:[%s764 + $0x49] sm:$0xff]
      %v1694 = vpack.c.bf16 %v1686, %v1685
      %v1695 = vpack.c.bf16 %v1688, %v1687
      %v1696 = vpack.c.bf16 %v1690, %v1689
      %v1697 = vpack.c.bf16 %v1692, %v1691
      %v1698 = vpack.c.bf16 %v1693, %v1693
      %s1699 = scalar_lea.vmem %s1, 26
      %v1700 = vld [vmem:[%s1699] sm:$0x3]
      %v1702 = vsel %vm236, %v1694, 0
      %v1705 = vsel %vm236, %v1695, 0
      %v1708 = vsel %vm236, %v1696, 0
      %v1711 = vsel %vm236, %v1697, 0
      %v1714 = vsel %vm236, %v1698, 0
      %v1717 = vsel %vm252, %v1700, 0
      %1719 = vmatprep.subr.bf16.mxu0 0
      %1720 = vmatpush1.bf16.msra.mxu0 %v1717
      %1721 = vmatprep.subr.bf16.mxu0 0
      %1722 = vmatpush1.bf16.msra.mxu0 0
      %1723 = vmatprep.subr.bf16.mxu0 0
      %1724 = vmatpush1.bf16.msra.mxu0 0
      %1725 = vmatprep.subr.bf16.mxu0 0
      %1726 = vmatpush1.bf16.msra.mxu0 0
      %1727 = vmatprep.subr.bf16.mxu0 0
      %1728 = vmatpush1.bf16.msra.mxu0 0
      %1729 = vmatprep.subr.bf16.mxu0 0
      %1730 = vmatpush1.bf16.msra.mxu0 0
      %1731 = vmatprep.subr.bf16.mxu0 0
      %1732 = vmatpush1.bf16.msra.mxu0 0
      %1733 = vmatprep.subr.bf16.mxu0 0
      %1734 = vmatpush1.bf16.msra.mxu0 0
      %1735 = vmatprep.subr.bf16.mxu0 0
      %1736 = vmatpush1.bf16.msra.mxu0 0
      %1737 = vmatprep.subr.bf16.mxu0 0
      %1738 = vmatpush1.bf16.msra.mxu0 0
      %1739 = vmatprep.subr.bf16.mxu0 0
      %1740 = vmatpush1.bf16.msra.mxu0 0
      %1741 = vmatprep.subr.bf16.mxu0 0
      %1742 = vmatpush1.bf16.msra.mxu0 0
      %1743 = vmatprep.subr.bf16.mxu0 0
      %1744 = vmatpush1.bf16.msra.mxu0 0
      %1745 = vmatprep.subr.bf16.mxu0 0
      %1746 = vmatpush1.bf16.msra.mxu0 0
      %1747 = vmatprep.subr.bf16.mxu0 0
      %1748 = vmatpush1.bf16.msra.mxu0 0
      %1749 = vmatprep.subr.bf16.mxu0 0
      %1750 = vmatpush1.bf16.msra.mxu0 0
      %1751 = vmatprep.mubr.bf16.mxu0 0
      %1752 = vmatmul.mubr.bf16.gmra.mrb[0].mxu0 %v1702
      %v1753 = vpop.f32.mrb[0].mxu0
      %v1754 = vadd.f32 0.0, %v1753
      %v1755 = vpop.f32.mrb[0].mxu0
      %v1756 = vpop.f32.mrb[0].mxu0
      %v1757 = vadd.f32 0.0, %v1756
      %v1758 = vpop.f32.mrb[0].mxu0
      %1759 = vmatprep.mubr.bf16.mxu0 0
      %1760 = vmatmul.mubr.bf16.gmra.mrb[0].mxu0 %v1705
      %v1761 = vpop.f32.mrb[0].mxu0
      %v1762 = vadd.f32 0.0, %v1761
      %v1763 = vpop.f32.mrb[0].mxu0
      %v1764 = vpop.f32.mrb[0].mxu0
      %v1765 = vadd.f32 0.0, %v1764
      %v1766 = vpop.f32.mrb[0].mxu0
      %1767 = vmatprep.mubr.bf16.mxu0 0
      %1768 = vmatmul.mubr.bf16.gmra.mrb[0].mxu0 %v1708
      %v1769 = vpop.f32.mrb[0].mxu0
      %v1770 = vadd.f32 0.0, %v1769
      %v1771 = vpop.f32.mrb[0].mxu0
      %v1772 = vpop.f32.mrb[0].mxu0
      %v1773 = vadd.f32 0.0, %v1772
      %v1774 = vpop.f32.mrb[0].mxu0
      %1775 = vmatprep.mubr.bf16.mxu0 0
      %1776 = vmatmul.mubr.bf16.gmra.mrb[0].mxu0 %v1711
      %v1777 = vpop.f32.mrb[0].mxu0
      %v1778 = vadd.f32 0.0, %v1777
      %v1779 = vpop.f32.mrb[0].mxu0
      %v1780 = vpop.f32.mrb[0].mxu0
      %v1781 = vadd.f32 0.0, %v1780
      %v1782 = vpop.f32.mrb[0].mxu0
      %1783 = vmatprep.mubr.bf16.mxu0 0
      %1784 = vmatmul.mubr.bf16.gmra.mrb[0].mxu0 %v1714
      %v1785 = vpop.f32.mrb[0].mxu0
      %v1786 = vadd.f32 0.0, %v1785
      %v1787 = vpop.f32.mrb[0].mxu0
      %v1788 = vpop.f32.mrb[0].mxu0
      %v1789 = vpop.f32.mrb[0].mxu0
      %1790 = vdwg.mxu0
      %v1791 = vadd.f32 %v1676, %v1754
      %v1792 = vadd.f32 %v1677, %v1757
      %v1793 = vadd.f32 %v1678, %v1762
      %v1794 = vadd.f32 %v1679, %v1765
      %v1795 = vadd.f32 %v1680, %v1770
      %v1796 = vadd.f32 %v1681, %v1773
      %v1797 = vadd.f32 %v1682, %v1778
      %v1798 = vadd.f32 %v1683, %v1781
      %v1799 = vadd.f32 %v1684, %v1786
      %v1800 = vld [vmem:[%s648 + $0xa] sm:$0xff]
      %v1801 = vld [vmem:[%s648 + $0x12] sm:$0xff]
      %v1802 = vld [vmem:[%s648 + $0x1a] sm:$0xff]
      %v1803 = vld [vmem:[%s648 + $0x22] sm:$0xff]
      %v1804 = vld [vmem:[%s648 + $0x2a] sm:$0xff]
      %v1805 = vld [vmem:[%s648 + $0x32] sm:$0xff]
      %v1806 = vld [vmem:[%s648 + $0x3a] sm:$0xff]
      %v1807 = vld [vmem:[%s648 + $0x42] sm:$0xff]
      %v1808 = vld [vmem:[%s648 + $0x4a] sm:$0xff]
      %v1809 = vpack.c.bf16 %v1801, %v1800
      %v1810 = vpack.c.bf16 %v1803, %v1802
      %v1811 = vpack.c.bf16 %v1805, %v1804
      %v1812 = vpack.c.bf16 %v1807, %v1806
      %v1813 = vpack.c.bf16 %v1808, %v1808
      %s1814 = scalar_lea.vmem %s1, 28
      %v1815 = vld [vmem:[%s1814] sm:$0x3]
      %v1817 = vsel %vm236, %v1809, 0
      %v1820 = vsel %vm236, %v1810, 0
      %v1823 = vsel %vm236, %v1811, 0
      %v1826 = vsel %vm236, %v1812, 0
      %v1829 = vsel %vm236, %v1813, 0
      %v1832 = vsel %vm252, %v1815, 0
      %1834 = vmatprep.subr.bf16.mxu0 0
      %1835 = vmatpush1.bf16.msra.mxu0 %v1832
      %1836 = vmatprep.subr.bf16.mxu0 0
      %1837 = vmatpush1.bf16.msra.mxu0 0
      %1838 = vmatprep.subr.bf16.mxu0 0
      %1839 = vmatpush1.bf16.msra.mxu0 0
      %1840 = vmatprep.subr.bf16.mxu0 0
      %1841 = vmatpush1.bf16.msra.mxu0 0
      %1842 = vmatprep.subr.bf16.mxu0 0
      %1843 = vmatpush1.bf16.msra.mxu0 0
      %1844 = vmatprep.subr.bf16.mxu0 0
      %1845 = vmatpush1.bf16.msra.mxu0 0
      %1846 = vmatprep.subr.bf16.mxu0 0
      %1847 = vmatpush1.bf16.msra.mxu0 0
      %1848 = vmatprep.subr.bf16.mxu0 0
      %1849 = vmatpush1.bf16.msra.mxu0 0
      %1850 = vmatprep.subr.bf16.mxu0 0
      %1851 = vmatpush1.bf16.msra.mxu0 0
      %1852 = vmatprep.subr.bf16.mxu0 0
      %1853 = vmatpush1.bf16.msra.mxu0 0
      %1854 = vmatprep.subr.bf16.mxu0 0
      %1855 = vmatpush1.bf16.msra.mxu0 0
      %1856 = vmatprep.subr.bf16.mxu0 0
      %1857 = vmatpush1.bf16.msra.mxu0 0
      %1858 = vmatprep.subr.bf16.mxu0 0
      %1859 = vmatpush1.bf16.msra.mxu0 0
      %1860 = vmatprep.subr.bf16.mxu0 0
      %1861 = vmatpush1.bf16.msra.mxu0 0
      %1862 = vmatprep.subr.bf16.mxu0 0
      %1863 = vmatpush1.bf16.msra.mxu0 0
      %1864 = vmatprep.subr.bf16.mxu0 0
      %1865 = vmatpush1.bf16.msra.mxu0 0
      %1866 = vmatprep.mubr.bf16.mxu0 0
      %1867 = vmatmul.mubr.bf16.gmra.mrb[0].mxu0 %v1817
      %v1868 = vpop.f32.mrb[0].mxu0
      %v1869 = vadd.f32 0.0, %v1868
      %v1870 = vpop.f32.mrb[0].mxu0
      %v1871 = vpop.f32.mrb[0].mxu0
      %v1872 = vadd.f32 0.0, %v1871
      %v1873 = vpop.f32.mrb[0].mxu0
      %1874 = vmatprep.mubr.bf16.mxu0 0
      %1875 = vmatmul.mubr.bf16.gmra.mrb[0].mxu0 %v1820
      %v1876 = vpop.f32.mrb[0].mxu0
      %v1877 = vadd.f32 0.0, %v1876
      %v1878 = vpop.f32.mrb[0].mxu0
      %v1879 = vpop.f32.mrb[0].mxu0
      %v1880 = vadd.f32 0.0, %v1879
      %v1881 = vpop.f32.mrb[0].mxu0
      %1882 = vmatprep.mubr.bf16.mxu0 0
      %1883 = vmatmul.mubr.bf16.gmra.mrb[0].mxu0 %v1823
      %v1884 = vpop.f32.mrb[0].mxu0
      %v1885 = vadd.f32 0.0, %v1884
      %v1886 = vpop.f32.mrb[0].mxu0
      %v1887 = vpop.f32.mrb[0].mxu0
      %v1888 = vadd.f32 0.0, %v1887
      %v1889 = vpop.f32.mrb[0].mxu0
      %1890 = vmatprep.mubr.bf16.mxu0 0
      %1891 = vmatmul.mubr.bf16.gmra.mrb[0].mxu0 %v1826
      %v1892 = vpop.f32.mrb[0].mxu0
      %v1893 = vadd.f32 0.0, %v1892
      %v1894 = vpop.f32.mrb[0].mxu0
      %v1895 = vpop.f32.mrb[0].mxu0
      %v1896 = vadd.f32 0.0, %v1895
      %v1897 = vpop.f32.mrb[0].mxu0
      %1898 = vmatprep.mubr.bf16.mxu0 0
      %1899 = vmatmul.mubr.bf16.gmra.mrb[0].mxu0 %v1829
      %v1900 = vpop.f32.mrb[0].mxu0
      %v1901 = vadd.f32 0.0, %v1900
      %v1902 = vpop.f32.mrb[0].mxu0
      %v1903 = vpop.f32.mrb[0].mxu0
      %v1904 = vpop.f32.mrb[0].mxu0
      %1905 = vdwg.mxu0
      %v1906 = vadd.f32 %v1791, %v1869
      %v1907 = vadd.f32 %v1792, %v1872
      %v1908 = vadd.f32 %v1793, %v1877
      %v1909 = vadd.f32 %v1794, %v1880
      %v1910 = vadd.f32 %v1795, %v1885
      %v1911 = vadd.f32 %v1796, %v1888
      %v1912 = vadd.f32 %v1797, %v1893
      %v1913 = vadd.f32 %v1798, %v1896
      %v1914 = vadd.f32 %v1799, %v1901
      %v1915 = vld [vmem:[%s764 + $0xa] sm:$0xff]
      %v1916 = vld [vmem:[%s764 + $0x12] sm:$0xff]
      %v1917 = vld [vmem:[%s764 + $0x1a] sm:$0xff]
      %v1918 = vld [vmem:[%s764 + $0x22] sm:$0xff]
      %v1919 = vld [vmem:[%s764 + $0x2a] sm:$0xff]
      %v1920 = vld [vmem:[%s764 + $0x32] sm:$0xff]
      %v1921 = vld [vmem:[%s764 + $0x3a] sm:$0xff]
      %v1922 = vld [vmem:[%s764 + $0x42] sm:$0xff]
      %v1923 = vld [vmem:[%s764 + $0x4a] sm:$0xff]
      %v1924 = vpack.c.bf16 %v1916, %v1915
      %v1925 = vpack.c.bf16 %v1918, %v1917
      %v1926 = vpack.c.bf16 %v1920, %v1919
      %v1927 = vpack.c.bf16 %v1922, %v1921
      %v1928 = vpack.c.bf16 %v1923, %v1923
      %s1929 = scalar_lea.vmem %s1, 30
      %v1930 = vld [vmem:[%s1929] sm:$0x3]
      %v1932 = vsel %vm236, %v1924, 0
      %v1935 = vsel %vm236, %v1925, 0
      %v1938 = vsel %vm236, %v1926, 0
      %v1941 = vsel %vm236, %v1927, 0
      %v1944 = vsel %vm236, %v1928, 0
      %v1947 = vsel %vm252, %v1930, 0
      %1949 = vmatprep.subr.bf16.mxu0 0
      %1950 = vmatpush1.bf16.msra.mxu0 %v1947
      %1951 = vmatprep.subr.bf16.mxu0 0
      %1952 = vmatpush1.bf16.msra.mxu0 0
      %1953 = vmatprep.subr.bf16.mxu0 0
      %1954 = vmatpush1.bf16.msra.mxu0 0
      %1955 = vmatprep.subr.bf16.mxu0 0
      %1956 = vmatpush1.bf16.msra.mxu0 0
      %1957 = vmatprep.subr.bf16.mxu0 0
      %1958 = vmatpush1.bf16.msra.mxu0 0
      %1959 = vmatprep.subr.bf16.mxu0 0
      %1960 = vmatpush1.bf16.msra.mxu0 0
      %1961 = vmatprep.subr.bf16.mxu0 0
      %1962 = vmatpush1.bf16.msra.mxu0 0
      %1963 = vmatprep.subr.bf16.mxu0 0
      %1964 = vmatpush1.bf16.msra.mxu0 0
      %1965 = vmatprep.subr.bf16.mxu0 0
      %1966 = vmatpush1.bf16.msra.mxu0 0
      %1967 = vmatprep.subr.bf16.mxu0 0
      %1968 = vmatpush1.bf16.msra.mxu0 0
      %1969 = vmatprep.subr.bf16.mxu0 0
      %1970 = vmatpush1.bf16.msra.mxu0 0
      %1971 = vmatprep.subr.bf16.mxu0 0
      %1972 = vmatpush1.bf16.msra.mxu0 0
      %1973 = vmatprep.subr.bf16.mxu0 0
      %1974 = vmatpush1.bf16.msra.mxu0 0
      %1975 = vmatprep.subr.bf16.mxu0 0
      %1976 = vmatpush1.bf16.msra.mxu0 0
      %1977 = vmatprep.subr.bf16.mxu0 0
      %1978 = vmatpush1.bf16.msra.mxu0 0
      %1979 = vmatprep.subr.bf16.mxu0 0
      %1980 = vmatpush1.bf16.msra.mxu0 0
      %1981 = vmatprep.mubr.bf16.mxu0 0
      %1982 = vmatmul.mubr.bf16.gmra.mrb[0].mxu0 %v1932
      %v1983 = vpop.f32.mrb[0].mxu0
      %v1984 = vadd.f32 0.0, %v1983
      %v1985 = vpop.f32.mrb[0].mxu0
      %v1986 = vpop.f32.mrb[0].mxu0
      %v1987 = vadd.f32 0.0, %v1986
      %v1988 = vpop.f32.mrb[0].mxu0
      %1989 = vmatprep.mubr.bf16.mxu0 0
      %1990 = vmatmul.mubr.bf16.gmra.mrb[0].mxu0 %v1935
      %v1991 = vpop.f32.mrb[0].mxu0
      %v1992 = vadd.f32 0.0, %v1991
      %v1993 = vpop.f32.mrb[0].mxu0
      %v1994 = vpop.f32.mrb[0].mxu0
      %v1995 = vadd.f32 0.0, %v1994
      %v1996 = vpop.f32.mrb[0].mxu0
      %1997 = vmatprep.mubr.bf16.mxu0 0
      %1998 = vmatmul.mubr.bf16.gmra.mrb[0].mxu0 %v1938
      %v1999 = vpop.f32.mrb[0].mxu0
      %v2000 = vadd.f32 0.0, %v1999
      %v2001 = vpop.f32.mrb[0].mxu0
      %v2002 = vpop.f32.mrb[0].mxu0
      %v2003 = vadd.f32 0.0, %v2002
      %v2004 = vpop.f32.mrb[0].mxu0
      %2005 = vmatprep.mubr.bf16.mxu0 0
      %2006 = vmatmul.mubr.bf16.gmra.mrb[0].mxu0 %v1941
      %v2007 = vpop.f32.mrb[0].mxu0
      %v2008 = vadd.f32 0.0, %v2007
      %v2009 = vpop.f32.mrb[0].mxu0
      %v2010 = vpop.f32.mrb[0].mxu0
      %v2011 = vadd.f32 0.0, %v2010
      %v2012 = vpop.f32.mrb[0].mxu0
      %2013 = vmatprep.mubr.bf16.mxu0 0
      %2014 = vmatmul.mubr.bf16.gmra.mrb[0].mxu0 %v1944
      %v2015 = vpop.f32.mrb[0].mxu0
      %v2016 = vadd.f32 0.0, %v2015
      %v2017 = vpop.f32.mrb[0].mxu0
      %v2018 = vpop.f32.mrb[0].mxu0
      %v2019 = vpop.f32.mrb[0].mxu0
      %2020 = vdwg.mxu0
      %v2021 = vadd.f32 %v1906, %v1984
      %v2022 = vadd.f32 %v1907, %v1987
      %v2023 = vadd.f32 %v1908, %v1992
      %v2024 = vadd.f32 %v1909, %v1995
      %v2025 = vadd.f32 %v1910, %v2000
      %v2026 = vadd.f32 %v1911, %v2003
      %v2027 = vadd.f32 %v1912, %v2008
      %v2028 = vadd.f32 %v1913, %v2011
      %v2029 = vadd.f32 %v1914, %v2016
      %v2030 = vld [vmem:[%s2] sm:$0x1]
      %v2032 = vlaneseq
      %v2033 = vshrl.u32 %v2032, 7
      %v2034 = vsub.s32 0, %v2033
      %v2035 = vrot.slane %v2030, %v2034
      %v2037 = vadd.f32 %v2021, %v2035
      %v2038 = vadd.f32 %v2022, %v2035
      %v2039 = vadd.f32 %v2023, %v2035
      %v2040 = vadd.f32 %v2024, %v2035
      %v2041 = vadd.f32 %v2025, %v2035
      %v2042 = vadd.f32 %v2026, %v2035
      %v2043 = vadd.f32 %v2027, %v2035
      %v2044 = vadd.f32 %v2028, %v2035
      %v2045 = vadd.f32 %v2029, %v2035
      %v2046 = vld [vmem:[%s3] sm:$0xff]
      %v2047 = vld [vmem:[%s3 + $0x8] sm:$0xff]
      %v2048 = vld [vmem:[%s3 + $0x10] sm:$0xff]
      %v2049 = vld [vmem:[%s3 + $0x18] sm:$0xff]
      %v2050 = vld [vmem:[%s3 + $0x20] sm:$0xff]
      %v2051 = vld [vmem:[%s3 + $0x28] sm:$0xff]
      %v2052 = vld [vmem:[%s3 + $0x30] sm:$0xff]
      %v2053 = vld [vmem:[%s3 + $0x38] sm:$0xff]
      %v2054 = vld [vmem:[%s3 + $0x40] sm:$0xff]
      %2056 = vset.pattern.permute.xlu0 0
      %2057 = vperm.xlu0 %2056, %v2046
      %v2058 = vpop.permute.xlu0 %2057
      %2061 = vset.pattern.permute.xlu0 0
      %2062 = vperm.xlu0 %2061, %v2047
      %v2063 = vpop.permute.xlu0 %2062
      %2066 = vset.pattern.permute.xlu0 0
      %2067 = vperm.xlu0 %2066, %v2048
      %v2068 = vpop.permute.xlu0 %2067
      %2071 = vset.pattern.permute.xlu0 0
      %2072 = vperm.xlu0 %2071, %v2049
      %v2073 = vpop.permute.xlu0 %2072
      %2076 = vset.pattern.permute.xlu0 0
      %2077 = vperm.xlu0 %2076, %v2050
      %v2078 = vpop.permute.xlu0 %2077
      %2081 = vset.pattern.permute.xlu0 0
      %2082 = vperm.xlu0 %2081, %v2051
      %v2083 = vpop.permute.xlu0 %2082
      %2086 = vset.pattern.permute.xlu0 0
      %2087 = vperm.xlu0 %2086, %v2052
      %v2088 = vpop.permute.xlu0 %2087
      %2091 = vset.pattern.permute.xlu0 0
      %2092 = vperm.xlu0 %2091, %v2053
      %v2093 = vpop.permute.xlu0 %2092
      %2096 = vset.pattern.permute.xlu0 0
      %2097 = vperm.xlu0 %2096, %v2054
      %v2098 = vpop.permute.xlu0 %2097
      %v2100 = vmul.f32 %v2037, %v2058
      %v2101 = vmul.f32 %v2038, %v2063
      %v2102 = vmul.f32 %v2039, %v2068
      %v2103 = vmul.f32 %v2040, %v2073
      %v2104 = vmul.f32 %v2041, %v2078
      %v2105 = vmul.f32 %v2042, %v2083
      %v2106 = vmul.f32 %v2043, %v2088
      %v2107 = vmul.f32 %v2044, %v2093
      %v2108 = vmul.f32 %v2045, %v2098
      %v2109 = vadd.f32 %v2100, %v2101
      %v2110 = vadd.f32 %v2109, %v2102
      %v2111 = vadd.f32 %v2110, %v2103
      %v2112 = vadd.f32 %v2111, %v2104
      %v2113 = vadd.f32 %v2112, %v2105
      %v2114 = vadd.f32 %v2113, %v2106
      %v2115 = vadd.f32 %v2114, %v2107
      %v2116 = vadd.f32 %v2115, %v2108
      %v2117 = vrot.slane %v2116, 4
      %v2118 = vadd.f32 %v2116, %v2117
      %v2119 = vrot.slane %v2118, 2
      %v2120 = vadd.f32 %v2118, %v2119
      %v2121 = vrot.slane %v2120, 1
      %v2122 = vadd.f32 %v2120, %v2121
      %v2123 = vmul.f32 %v2122, 0.015625
      %v2124 = vmul.f32 %v2037, %v2037
      %v2125 = vmul.f32 %v2038, %v2038
      %v2126 = vmul.f32 %v2039, %v2039
      %v2127 = vmul.f32 %v2040, %v2040
      %v2128 = vmul.f32 %v2041, %v2041
      %v2129 = vmul.f32 %v2042, %v2042
      %v2130 = vmul.f32 %v2043, %v2043
      %v2131 = vmul.f32 %v2044, %v2044
      %v2132 = vmul.f32 %v2045, %v2045
      %v2133 = vmul.f32 %v2124, %v2058
      %v2134 = vmul.f32 %v2125, %v2063
      %v2135 = vmul.f32 %v2126, %v2068
      %v2136 = vmul.f32 %v2127, %v2073
      %v2137 = vmul.f32 %v2128, %v2078
      %v2138 = vmul.f32 %v2129, %v2083
      %v2139 = vmul.f32 %v2130, %v2088
      %v2140 = vmul.f32 %v2131, %v2093
      %v2141 = vmul.f32 %v2132, %v2098
      %v2142 = vadd.f32 %v2133, %v2134
      %v2143 = vadd.f32 %v2142, %v2135
      %v2144 = vadd.f32 %v2143, %v2136
      %v2145 = vadd.f32 %v2144, %v2137
      %v2146 = vadd.f32 %v2145, %v2138
      %v2147 = vadd.f32 %v2146, %v2139
      %v2148 = vadd.f32 %v2147, %v2140
      %v2149 = vadd.f32 %v2148, %v2141
      %v2150 = vrot.slane %v2149, 4
      %v2151 = vadd.f32 %v2149, %v2150
      %v2152 = vrot.slane %v2151, 2
      %v2153 = vadd.f32 %v2151, %v2152
      %v2154 = vrot.slane %v2153, 1
      %v2155 = vadd.f32 %v2153, %v2154
      %v2156 = vmul.f32 %v2155, 0.015625
      %v2157 = vmul.f32 %v2123, %v2123
      %v2158 = vsub.f32 %v2156, %v2157
      %v2159 = vmax.f32 %v2158, 0.0
      %v2160 = vsub.f32 %v2037, %v2123
      %v2161 = vsub.f32 %v2038, %v2123
      %v2162 = vsub.f32 %v2039, %v2123
      %v2163 = vsub.f32 %v2040, %v2123
      %v2164 = vsub.f32 %v2041, %v2123
      %v2165 = vsub.f32 %v2042, %v2123
      %v2166 = vsub.f32 %v2043, %v2123
      %v2167 = vsub.f32 %v2044, %v2123
      %v2168 = vsub.f32 %v2045, %v2123
      %v2169 = vadd.f32 %v2159, 1e-05
      %v2170 = vrsqrt.pop %v2169
      %v2171 = vmul.f32 %v2160, %v2170
      %v2172 = vmul.f32 %v2161, %v2170
      %v2173 = vmul.f32 %v2162, %v2170
      %v2174 = vmul.f32 %v2163, %v2170
      %v2175 = vmul.f32 %v2164, %v2170
      %v2176 = vmul.f32 %v2165, %v2170
      %v2177 = vmul.f32 %v2166, %v2170
      %v2178 = vmul.f32 %v2167, %v2170
      %v2179 = vmul.f32 %v2168, %v2170
      %vm2180 = vcmp.ge.f32.partialorder %v2171, 0.0
      %vm2181 = vcmp.ge.f32.partialorder %v2172, 0.0
      %vm2182 = vcmp.ge.f32.partialorder %v2173, 0.0
      %vm2183 = vcmp.ge.f32.partialorder %v2174, 0.0
      %vm2184 = vcmp.ge.f32.partialorder %v2175, 0.0
      %vm2185 = vcmp.ge.f32.partialorder %v2176, 0.0
      %vm2186 = vcmp.ge.f32.partialorder %v2177, 0.0
      %vm2187 = vcmp.ge.f32.partialorder %v2178, 0.0
      %vm2188 = vcmp.ge.f32.partialorder %v2179, 0.0
      %v2189 = vmul.f32 %v2171, 0.2
      %v2190 = vmul.f32 %v2172, 0.2
      %v2191 = vmul.f32 %v2173, 0.2
      %v2192 = vmul.f32 %v2174, 0.2
      %v2193 = vmul.f32 %v2175, 0.2
      %v2194 = vmul.f32 %v2176, 0.2
      %v2195 = vmul.f32 %v2177, 0.2
      %v2196 = vmul.f32 %v2178, 0.2
      %v2197 = vmul.f32 %v2179, 0.2
      %v2198 = vsel %vm2180, %v2171, %v2189
      %v2199 = vsel %vm2181, %v2172, %v2190
      %v2200 = vsel %vm2182, %v2173, %v2191
      %v2201 = vsel %vm2183, %v2174, %v2192
      %v2202 = vsel %vm2184, %v2175, %v2193
      %v2203 = vsel %vm2185, %v2176, %v2194
      %v2204 = vsel %vm2186, %v2177, %v2195
      %v2205 = vsel %vm2187, %v2178, %v2196
      %v2206 = vsel %vm2188, %v2179, %v2197
      %2207 = vst [vmem:[%s202] sm:$0xff] %v2198
      %2208 = vst [vmem:[%s202 + $0x8] sm:$0xff] %v2199
      %2209 = vst [vmem:[%s202 + $0x10] sm:$0xff] %v2200
      %2210 = vst [vmem:[%s202 + $0x18] sm:$0xff] %v2201
      %2211 = vst [vmem:[%s202 + $0x20] sm:$0xff] %v2202
      %2212 = vst [vmem:[%s202 + $0x28] sm:$0xff] %v2203
      %2213 = vst [vmem:[%s202 + $0x30] sm:$0xff] %v2204
      %2214 = vst [vmem:[%s202 + $0x38] sm:$0xff] %v2205
      %2215 = vst [vmem:[%s202 + $0x40] sm:$0xff] %v2206
      %p2216 = scmp.lt.s32.totalorder %s15, 1
      %s2217 = scalar_select %p2216, %s15, 1
      %s2218 = smul.addr %s2217, 9
      %s2219 = smul.addr %s2218, 8
      %s2220 = scalar_lea.vmem %s4, %s2219
      // Predicated region
      $region37: #{_lambda_.4} parent=35 // pred_check
        %p2221 = pneg %p122
      $region38: #{_lambda_.4} parent=35 // pred_check_branch
        %2223 = sbr.rel (%p2221) target = $region40
      $region39: #{_lambda_.4} parent=35 // pred_region
        _
      $region40: #{_lambda_.4} parent=35 // pred_fallthru
        _
    $region36: #{_lambda_.4} parent=5 // pred_fallthru
      _
    %p2224 = scmp.le.s32.totalorder 2, %s10
    // Predicated region
    $region41: #{_lambda_.4} parent=5 // pred_check
      %p2225 = pneg %p2224
    $region42: #{_lambda_.4} parent=5 // pred_check_branch
      %2227 = sbr.rel (%p2225) target = $region44
    $region43: #{_lambda_.4} parent=5 // pred_region
      %s2228 = ssub.s32 %s10, 2
      // Predicated region
      $region45: #{_lambda_.4} parent=43 // pred_check
        %p2229 = pneg %p128
      $region46: #{_lambda_.4} parent=43 // pred_check_branch
        %2231 = sbr.rel (%p2229) target = $region48
      $region47: #{_lambda_.4} parent=43 // pred_region
        %p2232 = scmp.lt.s32.totalorder %s16, 1
        %s2233 = scalar_select %p2232, %s16, 1
        %s2234 = smul.addr %s2233, 9
        %s2235 = smul.addr %s2234, 8
        %s2236 = scalar_lea.vmem %s4, %s2235
      $region48: #{_lambda_.4} parent=43 // pred_fallthru
        _
    $region44: #{_lambda_.4} parent=5 // pred_fallthru
      _
  $region6: #{_lambda_.4} parent=0 // loop_footer
    %s14 = sadd.s32 1, %s10
  $region7: #{_lambda_.4} parent=0 // loop_footer_branch
    %9 = sbr.rel target = $region3
  $region8: #{_lambda_.4} parent=0 // loop_exit
    _

// kernel: _lambda_.5
$region0: #{_lambda_.5}
  #allocation0 [shape = 'u32[]', space=smem, size = 0x4, offset = 0x4, fixed_abs, tag = 'smem constant byte address 0x4 - core index']
  #allocation1 [shape = 'u32[144,128]{1,0:T(1,128)}', space=vmem, size = 0x12000, scoped, tag = 'internal scratch']
  %s0 = inlined_call_operand.vmem [shape: f32[8,26,8], index: 0, kind: input, shape index: {}]
  %s1 = inlined_call_operand.vmem [shape: bf16[16,8,128], index: 1, kind: input, shape index: {}]
  %s2 = inlined_call_operand.vmem [shape: f32[1,128], index: 2, kind: input, shape index: {}]
  %s3 = inlined_call_operand.vmem [shape: f32[20,1], index: 3, kind: input, shape index: {}]
  %s4 = inlined_call_operand.vmem [shape: f32[2,20,128], index: 4, kind: output, shape index: {}]
  %s5 = sld [smem:[#allocation0]]
  $region49: #{_lambda_.5} parent=0
    _
  %s7 = ssub.s32 1, %s5
  %s8 = scalar_select 0, %s7, %s5
  loop: start=0, step=1, limit=4
  $region2: #{_lambda_.5} parent=0 // loop_pre_header
    _
  $region3: #{_lambda_.5} parent=0 // loop_header
    %s10 = sphi 0, %s14
    %p11 = scmp.ge.s32.totalorder %s10, 4
    %s20 = sphi 0, %s22
    %s23 = sphi 0, %s20
    %s24 = sphi 0, %s23
    %s40 = sphi 0, %s24
    %s44 = sphi 0, %s44
    %s46 = sphi 0, %s44
    %s47 = sphi 0, %s46
    %s61 = sphi 0, %s47
    %s65 = sphi 0, %s65
    %s67 = sphi 0, %s65
    %s68 = sphi 0, %s67
    %s82 = sphi 0, %s68
    %s86 = sphi 0, %s86
    %s88 = sphi 0, %s86
    %s89 = sphi 0, %s88
    %s103 = sphi 0, %s89
    %s109 = sphi 0, %s111
    %s112 = sphi 0, %s109
    %s113 = sphi 0, %s112
    %s129 = sphi 0, %s113
  $region4: #{_lambda_.5} parent=0 // loop_header_branch
    %13 = sbr.rel (%p11) target = $region8
  $region5: #{_lambda_.5} parent=0 // loop_body
    %s15 = ssub.s32 %s10, 1
    %s16 = ssub.s32 %s10, 2
    %s17 = sadd.s32 %s10, 1
    %s18 = ssub.s32 %s10, %s17
    %p19 = scmp.eq.s32.totalorder %s18, 0
    %s21 = sadd.s32 %s20, 1
    %s22 = scalar_select %p19, %s20, %s21
    %p25 = pneg %p19
    %p26 = scmp.eq.s32.totalorder %s10, 1
    %p27 = por %p25, %p26
    %p28 = scmp.ne.s32.totalorder %s20, %s23
    %p29 = scmp.eq.s32.totalorder %s10, 0
    %p30 = por %p28, %p29
    %p31 = scmp.ne.s32.totalorder %s20, %s23
    %p32 = scmp.eq.s32.totalorder %s15, 1
    %p33 = por %p31, %p32
    %p34 = scmp.ne.s32.totalorder %s23, %s24
    %p35 = scmp.eq.s32.totalorder %s15, 0
    %p36 = por %p34, %p35
    %p37 = scmp.ne.s32.totalorder %s23, %s24
    %p38 = scmp.eq.s32.totalorder %s16, 1
    %p39 = por %p37, %p38
    %p41 = scmp.ne.s32.totalorder %s24, %s40
    %p42 = scmp.eq.s32.totalorder %s16, 0
    %p43 = por %p41, %p42
    %s45 = sadd.s32 %s44, 1
    %p48 = scmp.eq.s32.totalorder %s10, 1
    %p49 = scmp.ne.s32.totalorder %s44, %s46
    %p50 = scmp.eq.s32.totalorder %s10, 0
    %p51 = por %p49, %p50
    %p52 = scmp.ne.s32.totalorder %s44, %s46
    %p53 = scmp.eq.s32.totalorder %s15, 1
    %p54 = por %p52, %p53
    %p55 = scmp.ne.s32.totalorder %s46, %s47
    %p56 = scmp.eq.s32.totalorder %s15, 0
    %p57 = por %p55, %p56
    %p58 = scmp.ne.s32.totalorder %s46, %s47
    %p59 = scmp.eq.s32.totalorder %s16, 1
    %p60 = por %p58, %p59
    %p62 = scmp.ne.s32.totalorder %s47, %s61
    %p63 = scmp.eq.s32.totalorder %s16, 0
    %p64 = por %p62, %p63
    %s66 = sadd.s32 %s65, 1
    %p69 = scmp.eq.s32.totalorder %s10, 1
    %p70 = scmp.ne.s32.totalorder %s65, %s67
    %p71 = scmp.eq.s32.totalorder %s10, 0
    %p72 = por %p70, %p71
    %p73 = scmp.ne.s32.totalorder %s65, %s67
    %p74 = scmp.eq.s32.totalorder %s15, 1
    %p75 = por %p73, %p74
    %p76 = scmp.ne.s32.totalorder %s67, %s68
    %p77 = scmp.eq.s32.totalorder %s15, 0
    %p78 = por %p76, %p77
    %p79 = scmp.ne.s32.totalorder %s67, %s68
    %p80 = scmp.eq.s32.totalorder %s16, 1
    %p81 = por %p79, %p80
    %p83 = scmp.ne.s32.totalorder %s68, %s82
    %p84 = scmp.eq.s32.totalorder %s16, 0
    %p85 = por %p83, %p84
    %s87 = sadd.s32 %s86, 1
    %p90 = scmp.eq.s32.totalorder %s10, 1
    %p91 = scmp.ne.s32.totalorder %s86, %s88
    %p92 = scmp.eq.s32.totalorder %s10, 0
    %p93 = por %p91, %p92
    %p94 = scmp.ne.s32.totalorder %s86, %s88
    %p95 = scmp.eq.s32.totalorder %s15, 1
    %p96 = por %p94, %p95
    %p97 = scmp.ne.s32.totalorder %s88, %s89
    %p98 = scmp.eq.s32.totalorder %s15, 0
    %p99 = por %p97, %p98
    %p100 = scmp.ne.s32.totalorder %s88, %s89
    %p101 = scmp.eq.s32.totalorder %s16, 1
    %p102 = por %p100, %p101
    %p104 = scmp.ne.s32.totalorder %s89, %s103
    %p105 = scmp.eq.s32.totalorder %s16, 0
    %p106 = por %p104, %p105
    %s107 = ssub.s32 %s10, %s17
    %p108 = scmp.eq.s32.totalorder %s107, 0
    %s110 = sadd.s32 %s109, 1
    %s111 = scalar_select %p108, %s109, %s110
    %p114 = pneg %p108
    %p115 = scmp.eq.s32.totalorder %s10, 1
    %p116 = por %p114, %p115
    %p117 = scmp.ne.s32.totalorder %s109, %s112
    %p118 = scmp.eq.s32.totalorder %s10, 0
    %p119 = por %p117, %p118
    %p120 = scmp.ne.s32.totalorder %s109, %s112
    %p121 = scmp.eq.s32.totalorder %s15, 1
    %p122 = por %p120, %p121
    %p123 = scmp.ne.s32.totalorder %s112, %s113
    %p124 = scmp.eq.s32.totalorder %s15, 0
    %p125 = por %p123, %p124
    %p126 = scmp.ne.s32.totalorder %s112, %s113
    %p127 = scmp.eq.s32.totalorder %s16, 1
    %p128 = por %p126, %p127
    %p130 = scmp.ne.s32.totalorder %s113, %s129
    %p131 = scmp.eq.s32.totalorder %s16, 0
    %p132 = por %p130, %p131
    %p133 = scmp.le.s32.totalorder 1, %s10
    %p134 = scmp.lt.s32.totalorder %s10, 3
    %p135 = pnand %p133, %p134
    %p136 = pneg %p135
    // Predicated region
    $region9: #{_lambda_.5} parent=5 // pred_check
      _
    $region10: #{_lambda_.5} parent=5 // pred_check_branch
      %138 = sbr.rel (%p135) target = $region12
    $region11: #{_lambda_.5} parent=5 // pred_region
      %s139 = ssub.s32 %s10, 1
      // Predicated region
      $region13: #{_lambda_.5} parent=11 // pred_check
        %p140 = pneg %p57
      $region14: #{_lambda_.5} parent=11 // pred_check_branch
        %142 = sbr.rel (%p140) target = $region16
      $region15: #{_lambda_.5} parent=11 // pred_region
        _
      $region16: #{_lambda_.5} parent=11 // pred_fallthru
        _
      // Predicated region
      $region17: #{_lambda_.5} parent=11 // pred_check
        %p143 = pneg %p78
      $region18: #{_lambda_.5} parent=11 // pred_check_branch
        %145 = sbr.rel (%p143) target = $region20
      $region19: #{_lambda_.5} parent=11 // pred_region
        _
      $region20: #{_lambda_.5} parent=11 // pred_fallthru
        _
      // Predicated region
      $region21: #{_lambda_.5} parent=11 // pred_check
        %p146 = pneg %p99
      $region22: #{_lambda_.5} parent=11 // pred_check_branch
        %148 = sbr.rel (%p146) target = $region24
      $region23: #{_lambda_.5} parent=11 // pred_region
        _
      $region24: #{_lambda_.5} parent=11 // pred_fallthru
        _
    $region12: #{_lambda_.5} parent=5 // pred_fallthru
      _
    %p149 = scmp.lt.s32.totalorder %s10, 2
    // Predicated region
    $region25: #{_lambda_.5} parent=5 // pred_check
      %p150 = pneg %p149
    $region26: #{_lambda_.5} parent=5 // pred_check_branch
      %152 = sbr.rel (%p150) target = $region28
    $region27: #{_lambda_.5} parent=5 // pred_region
      // Predicated region
      $region29: #{_lambda_.5} parent=27 // pred_check
        %p153 = pneg %p30
      $region30: #{_lambda_.5} parent=27 // pred_check_branch
        %155 = sbr.rel (%p153) target = $region32
      $region31: #{_lambda_.5} parent=27 // pred_region
        %s156 = smul.u32 4, %s10
        %p157 = scmp.lt.s32.totalorder %s156, 7
        %s158 = scalar_select %p157, %s156, 7
        %s159 = smul.addr %s158, 4
        %s160 = smul.addr %s159, 8
        %s161 = scalar_lea.vmem %s0, %s160
        %s162 = smul.u32 4, %s10
      $region32: #{_lambda_.5} parent=27 // pred_fallthru
        _
    $region28: #{_lambda_.5} parent=5 // pred_fallthru
      _
    %p163 = scmp.le.s32.totalorder 1, %s10
    %p164 = scmp.lt.s32.totalorder %s10, 3
    %p165 = pnand %p163, %p164
    %p166 = pneg %p165
    // Predicated region
    $region33: #{_lambda_.5} parent=5 // pred_check
      _
    $region34: #{_lambda_.5} parent=5 // pred_check_branch
      %168 = sbr.rel (%p165) target = $region36
    $region35: #{_lambda_.5} parent=5 // pred_region
      %s169 = ssub.s32 %s10, 1
      %s170 = smul.u32 4, %s15
      %p171 = scmp.lt.s32.totalorder %s170, 7
      %s172 = scalar_select %p171, %s170, 7
      %s173 = smul.addr %s172, 4
      %s174 = smul.addr %s173, 8
      %s175 = scalar_lea.vmem %s0, %s174
      %p176 = pneg %p36
      %p177 = pneg %p33
      %p178 = pneg %p57
      %p179 = pneg %p54
      %p180 = pneg %p78
      %p181 = pneg %p75
      %p182 = pneg %p99
      %p183 = pneg %p96
      %p184 = pneg %p125
      %p185 = pneg %p122
      %p186 = scmp.lt.s32.totalorder %s15, 1
      %s187 = scalar_select %p186, %s15, 1
      %s188 = smul.addr %s187, 3
      %s189 = smul.addr %s188, 8
      %s190 = scalar_lea.vmem %s4, %s189
      %s191 = smul.u32 4, %s15
      %p192 = scmp.lt.s32.totalorder %s191, 7
      %s193 = scalar_select %p192, %s191, 7
      %s194 = smul.addr %s193, 4
      %s195 = smul.addr %s194, 8
      %s196 = scalar_lea.vmem %s0, %s195
      %s197 = smul.u32 4, %s15
      %p198 = scmp.lt.s32.totalorder %s15, 1
      %s199 = scalar_select %p198, %s15, 1
      %s200 = smul.addr %s199, 3
      %s201 = smul.addr %s200, 8
      %s202 = scalar_lea.vmem %s4, %s201
      %v204 = vld [vmem:[%s196] sm:$0xff]
      %v205 = vld [vmem:[%s196 + $0x8] sm:$0xff]
      %v206 = vld [vmem:[%s196 + $0x10] sm:$0xf]
      %v207 = vpack.c.bf16 %v205, %v204
      %v208 = vpack.c.bf16 %v206, %v206
      %v209 = vld [vmem:[%s1] sm:$0xf]
      %s210 = scalar_lea.vmem %s196, 32
      %v211 = vld [vmem:[%s210] sm:$0xff]
      %v212 = vld [vmem:[%s210 + $0x8] sm:$0xff]
      %v213 = vld [vmem:[%s210 + $0x10] sm:$0xf]
      %v214 = vpack.c.bf16 %v212, %v211
      %v215 = vpack.c.bf16 %v213, %v213
      %s216 = scalar_lea.vmem %s1, 4
      %v217 = vld [vmem:[%s216] sm:$0xf]
      %vm218 = vcmask 64512
      %v220 = vsel %vm218, %v214, 0
      %v223 = vsel %vm218, %v215, 0
      %vm225 = vcmask 1043456
      %v227 = vsel %vm225, %v217, 0
      %229 = vmatprep.subr.bf16.mxu0 0
      %230 = vmatpush1.bf16.msra.mxu0 %v227
      %231 = vmatprep.subr.bf16.mxu0 0
      %232 = vmatpush1.bf16.msra.mxu0 0
      %233 = vmatprep.subr.bf16.mxu0 0
      %234 = vmatpush1.bf16.msra.mxu0 0
      %235 = vmatprep.subr.bf16.mxu0 0
      %236 = vmatpush1.bf16.msra.mxu0 0
      %237 = vmatprep.subr.bf16.mxu0 0
      %238 = vmatpush1.bf16.msra.mxu0 0
      %239 = vmatprep.subr.bf16.mxu0 0
      %240 = vmatpush1.bf16.msra.mxu0 0
      %241 = vmatprep.subr.bf16.mxu0 0
      %242 = vmatpush1.bf16.msra.mxu0 0
      %243 = vmatprep.subr.bf16.mxu0 0
      %244 = vmatpush1.bf16.msra.mxu0 0
      %245 = vmatprep.subr.bf16.mxu0 0
      %246 = vmatpush1.bf16.msra.mxu0 0
      %247 = vmatprep.subr.bf16.mxu0 0
      %248 = vmatpush1.bf16.msra.mxu0 0
      %249 = vmatprep.subr.bf16.mxu0 0
      %250 = vmatpush1.bf16.msra.mxu0 0
      %251 = vmatprep.subr.bf16.mxu0 0
      %252 = vmatpush1.bf16.msra.mxu0 0
      %253 = vmatprep.subr.bf16.mxu0 0
      %254 = vmatpush1.bf16.msra.mxu0 0
      %255 = vmatprep.subr.bf16.mxu0 0
      %256 = vmatpush1.bf16.msra.mxu0 0
      %257 = vmatprep.subr.bf16.mxu0 0
      %258 = vmatpush1.bf16.msra.mxu0 0
      %259 = vmatprep.subr.bf16.mxu0 0
      %260 = vmatpush1.bf16.msra.mxu0 0
      %261 = vmatprep.mubr.bf16.mxu0 0
      %262 = vmatmul.mubr.bf16.gmra.mrb[0].mxu0 %v220
      %v263 = vpop.f32.mrb[0].mxu0
      %v264 = vadd.f32 0.0, %v263
      %v265 = vpop.f32.mrb[0].mxu0
      %v266 = vpop.f32.mrb[0].mxu0
      %v267 = vadd.f32 0.0, %v266
      %v268 = vpop.f32.mrb[0].mxu0
      %269 = vmatprep.mubr.bf16.mxu0 0
      %270 = vmatmul.mubr.bf16.gmra.mrb[0].mxu0 %v223
      %v271 = vpop.f32.mrb[0].mxu0
      %v272 = vadd.f32 0.0, %v271
      %v273 = vpop.f32.mrb[0].mxu0
      %v274 = vpop.f32.mrb[0].mxu0
      %v275 = vpop.f32.mrb[0].mxu0
      %276 = vdwg.mxu0
      %v278 = vsel %vm218, %v207, 0
      %v281 = vsel %vm218, %v208, 0
      %v284 = vsel %vm225, %v209, 0
      %286 = vmatprep.subr.bf16.mxu0 0
      %287 = vmatpush1.bf16.msra.mxu0 %v284
      %288 = vmatprep.subr.bf16.mxu0 0
      %289 = vmatpush1.bf16.msra.mxu0 0
      %290 = vmatprep.subr.bf16.mxu0 0
      %291 = vmatpush1.bf16.msra.mxu0 0
      %292 = vmatprep.subr.bf16.mxu0 0
      %293 = vmatpush1.bf16.msra.mxu0 0
      %294 = vmatprep.subr.bf16.mxu0 0
      %295 = vmatpush1.bf16.msra.mxu0 0
      %296 = vmatprep.subr.bf16.mxu0 0
      %297 = vmatpush1.bf16.msra.mxu0 0
      %298 = vmatprep.subr.bf16.mxu0 0
      %299 = vmatpush1.bf16.msra.mxu0 0
      %300 = vmatprep.subr.bf16.mxu0 0
      %301 = vmatpush1.bf16.msra.mxu0 0
      %302 = vmatprep.subr.bf16.mxu0 0
      %303 = vmatpush1.bf16.msra.mxu0 0
      %304 = vmatprep.subr.bf16.mxu0 0
      %305 = vmatpush1.bf16.msra.mxu0 0
      %306 = vmatprep.subr.bf16.mxu0 0
      %307 = vmatpush1.bf16.msra.mxu0 0
      %308 = vmatprep.subr.bf16.mxu0 0
      %309 = vmatpush1.bf16.msra.mxu0 0
      %310 = vmatprep.subr.bf16.mxu0 0
      %311 = vmatpush1.bf16.msra.mxu0 0
      %312 = vmatprep.subr.bf16.mxu0 0
      %313 = vmatpush1.bf16.msra.mxu0 0
      %314 = vmatprep.subr.bf16.mxu0 0
      %315 = vmatpush1.bf16.msra.mxu0 0
      %316 = vmatprep.subr.bf16.mxu0 0
      %317 = vmatpush1.bf16.msra.mxu0 0
      %318 = vmatprep.mubr.bf16.mxu0 0
      %319 = vmatmul.mubr.bf16.gmra.mrb[0].mxu0 %v278
      %v320 = vpop.f32.mrb[0].mxu0
      %v321 = vadd.f32 %v264, %v320
      %v322 = vpop.f32.mrb[0].mxu0
      %v323 = vpop.f32.mrb[0].mxu0
      %v324 = vadd.f32 %v267, %v323
      %v325 = vpop.f32.mrb[0].mxu0
      %326 = vmatprep.mubr.bf16.mxu0 0
      %327 = vmatmul.mubr.bf16.gmra.mrb[0].mxu0 %v281
      %v328 = vpop.f32.mrb[0].mxu0
      %v329 = vadd.f32 %v272, %v328
      %v330 = vpop.f32.mrb[0].mxu0
      %v331 = vpop.f32.mrb[0].mxu0
      %v332 = vpop.f32.mrb[0].mxu0
      %333 = vdwg.mxu0
      %v334 = vld [vmem:[%s196 + $0x1] sm:$0xff]
      %v335 = vld [vmem:[%s196 + $0x9] sm:$0xff]
      %v336 = vld [vmem:[%s196 + $0x11] sm:$0xf]
      %v337 = vpack.c.bf16 %v335, %v334
      %v338 = vpack.c.bf16 %v336, %v336
      %s339 = scalar_lea.vmem %s1, 8
      %v340 = vld [vmem:[%s339] sm:$0xf]
      %v342 = vsel %vm218, %v337, 0
      %v345 = vsel %vm218, %v338, 0
      %v348 = vsel %vm225, %v340, 0
      %350 = vmatprep.subr.bf16.mxu0 0
      %351 = vmatpush1.bf16.msra.mxu0 %v348
      %352 = vmatprep.subr.bf16.mxu0 0
      %353 = vmatpush1.bf16.msra.mxu0 0
      %354 = vmatprep.subr.bf16.mxu0 0
      %355 = vmatpush1.bf16.msra.mxu0 0
      %356 = vmatprep.subr.bf16.mxu0 0
      %357 = vmatpush1.bf16.msra.mxu0 0
      %358 = vmatprep.subr.bf16.mxu0 0
      %359 = vmatpush1.bf16.msra.mxu0 0
      %360 = vmatprep.subr.bf16.mxu0 0
      %361 = vmatpush1.bf16.msra.mxu0 0
      %362 = vmatprep.subr.bf16.mxu0 0
      %363 = vmatpush1.bf16.msra.mxu0 0
      %364 = vmatprep.subr.bf16.mxu0 0
      %365 = vmatpush1.bf16.msra.mxu0 0
      %366 = vmatprep.subr.bf16.mxu0 0
      %367 = vmatpush1.bf16.msra.mxu0 0
      %368 = vmatprep.subr.bf16.mxu0 0
      %369 = vmatpush1.bf16.msra.mxu0 0
      %370 = vmatprep.subr.bf16.mxu0 0
      %371 = vmatpush1.bf16.msra.mxu0 0
      %372 = vmatprep.subr.bf16.mxu0 0
      %373 = vmatpush1.bf16.msra.mxu0 0
      %374 = vmatprep.subr.bf16.mxu0 0
      %375 = vmatpush1.bf16.msra.mxu0 0
      %376 = vmatprep.subr.bf16.mxu0 0
      %377 = vmatpush1.bf16.msra.mxu0 0
      %378 = vmatprep.subr.bf16.mxu0 0
      %379 = vmatpush1.bf16.msra.mxu0 0
      %380 = vmatprep.subr.bf16.mxu0 0
      %381 = vmatpush1.bf16.msra.mxu0 0
      %382 = vmatprep.mubr.bf16.mxu0 0
      %383 = vmatmul.mubr.bf16.gmra.mrb[0].mxu0 %v342
      %v384 = vpop.f32.mrb[0].mxu0
      %v385 = vadd.f32 0.0, %v384
      %v386 = vpop.f32.mrb[0].mxu0
      %v387 = vpop.f32.mrb[0].mxu0
      %v388 = vadd.f32 0.0, %v387
      %v389 = vpop.f32.mrb[0].mxu0
      %390 = vmatprep.mubr.bf16.mxu0 0
      %391 = vmatmul.mubr.bf16.gmra.mrb[0].mxu0 %v345
      %v392 = vpop.f32.mrb[0].mxu0
      %v393 = vadd.f32 0.0, %v392
      %v394 = vpop.f32.mrb[0].mxu0
      %v395 = vpop.f32.mrb[0].mxu0
      %v396 = vpop.f32.mrb[0].mxu0
      %397 = vdwg.mxu0
      %v398 = vadd.f32 %v321, %v385
      %v399 = vadd.f32 %v324, %v388
      %v400 = vadd.f32 %v329, %v393
      %v401 = vld [vmem:[%s210 + $0x1] sm:$0xff]
      %v402 = vld [vmem:[%s210 + $0x9] sm:$0xff]
      %v403 = vld [vmem:[%s210 + $0x11] sm:$0xf]
      %v404 = vpack.c.bf16 %v402, %v401
      %v405 = vpack.c.bf16 %v403, %v403
      %s406 = scalar_lea.vmem %s1, 12
      %v407 = vld [vmem:[%s406] sm:$0xf]
      %v409 = vsel %vm218, %v404, 0
      %v412 = vsel %vm218, %v405, 0
      %v415 = vsel %vm225, %v407, 0
      %417 = vmatprep.subr.bf16.mxu0 0
      %418 = vmatpush1.bf16.msra.mxu0 %v415
      %419 = vmatprep.subr.bf16.mxu0 0
      %420 = vmatpush1.bf16.msra.mxu0 0
      %421 = vmatprep.subr.bf16.mxu0 0
      %422 = vmatpush1.bf16.msra.mxu0 0
      %423 = vmatprep.subr.bf16.mxu0 0
      %424 = vmatpush1.bf16.msra.mxu0 0
      %425 = vmatprep.subr.bf16.mxu0 0
      %426 = vmatpush1.bf16.msra.mxu0 0
      %427 = vmatprep.subr.bf16.mxu0 0
      %428 = vmatpush1.bf16.msra.mxu0 0
      %429 = vmatprep.subr.bf16.mxu0 0
      %430 = vmatpush1.bf16.msra.mxu0 0
      %431 = vmatprep.subr.bf16.mxu0 0
      %432 = vmatpush1.bf16.msra.mxu0 0
      %433 = vmatprep.subr.bf16.mxu0 0
      %434 = vmatpush1.bf16.msra.mxu0 0
      %435 = vmatprep.subr.bf16.mxu0 0
      %436 = vmatpush1.bf16.msra.mxu0 0
      %437 = vmatprep.subr.bf16.mxu0 0
      %438 = vmatpush1.bf16.msra.mxu0 0
      %439 = vmatprep.subr.bf16.mxu0 0
      %440 = vmatpush1.bf16.msra.mxu0 0
      %441 = vmatprep.subr.bf16.mxu0 0
      %442 = vmatpush1.bf16.msra.mxu0 0
      %443 = vmatprep.subr.bf16.mxu0 0
      %444 = vmatpush1.bf16.msra.mxu0 0
      %445 = vmatprep.subr.bf16.mxu0 0
      %446 = vmatpush1.bf16.msra.mxu0 0
      %447 = vmatprep.subr.bf16.mxu0 0
      %448 = vmatpush1.bf16.msra.mxu0 0
      %449 = vmatprep.mubr.bf16.mxu0 0
      %450 = vmatmul.mubr.bf16.gmra.mrb[0].mxu0 %v409
      %v451 = vpop.f32.mrb[0].mxu0
      %v452 = vadd.f32 0.0, %v451
      %v453 = vpop.f32.mrb[0].mxu0
      %v454 = vpop.f32.mrb[0].mxu0
      %v455 = vadd.f32 0.0, %v454
      %v456 = vpop.f32.mrb[0].mxu0
      %457 = vmatprep.mubr.bf16.mxu0 0
      %458 = vmatmul.mubr.bf16.gmra.mrb[0].mxu0 %v412
      %v459 = vpop.f32.mrb[0].mxu0
      %v460 = vadd.f32 0.0, %v459
      %v461 = vpop.f32.mrb[0].mxu0
      %v462 = vpop.f32.mrb[0].mxu0
      %v463 = vpop.f32.mrb[0].mxu0
      %464 = vdwg.mxu0
      %v465 = vadd.f32 %v398, %v452
      %v466 = vadd.f32 %v399, %v455
      %v467 = vadd.f32 %v400, %v460
      %s468 = scalar_lea.vmem %s196, 64
      %v469 = vld [vmem:[%s468] sm:$0xff]
      %v470 = vld [vmem:[%s468 + $0x8] sm:$0xff]
      %v471 = vld [vmem:[%s468 + $0x10] sm:$0xf]
      %v472 = vpack.c.bf16 %v470, %v469
      %v473 = vpack.c.bf16 %v471, %v471
      %s474 = scalar_lea.vmem %s1, 16
      %v475 = vld [vmem:[%s474] sm:$0xf]
      %v477 = vsel %vm218, %v472, 0
      %v480 = vsel %vm218, %v473, 0
      %v483 = vsel %vm225, %v475, 0
      %485 = vmatprep.subr.bf16.mxu0 0
      %486 = vmatpush1.bf16.msra.mxu0 %v483
      %487 = vmatprep.subr.bf16.mxu0 0
      %488 = vmatpush1.bf16.msra.mxu0 0
      %489 = vmatprep.subr.bf16.mxu0 0
      %490 = vmatpush1.bf16.msra.mxu0 0
      %491 = vmatprep.subr.bf16.mxu0 0
      %492 = vmatpush1.bf16.msra.mxu0 0
      %493 = vmatprep.subr.bf16.mxu0 0
      %494 = vmatpush1.bf16.msra.mxu0 0
      %495 = vmatprep.subr.bf16.mxu0 0
      %496 = vmatpush1.bf16.msra.mxu0 0
      %497 = vmatprep.subr.bf16.mxu0 0
      %498 = vmatpush1.bf16.msra.mxu0 0
      %499 = vmatprep.subr.bf16.mxu0 0
      %500 = vmatpush1.bf16.msra.mxu0 0
      %501 = vmatprep.subr.bf16.mxu0 0
      %502 = vmatpush1.bf16.msra.mxu0 0
      %503 = vmatprep.subr.bf16.mxu0 0
      %504 = vmatpush1.bf16.msra.mxu0 0
      %505 = vmatprep.subr.bf16.mxu0 0
      %506 = vmatpush1.bf16.msra.mxu0 0
      %507 = vmatprep.subr.bf16.mxu0 0
      %508 = vmatpush1.bf16.msra.mxu0 0
      %509 = vmatprep.subr.bf16.mxu0 0
      %510 = vmatpush1.bf16.msra.mxu0 0
      %511 = vmatprep.subr.bf16.mxu0 0
      %512 = vmatpush1.bf16.msra.mxu0 0
      %513 = vmatprep.subr.bf16.mxu0 0
      %514 = vmatpush1.bf16.msra.mxu0 0
      %515 = vmatprep.subr.bf16.mxu0 0
      %516 = vmatpush1.bf16.msra.mxu0 0
      %517 = vmatprep.mubr.bf16.mxu0 0
      %518 = vmatmul.mubr.bf16.gmra.mrb[0].mxu0 %v477
      %v519 = vpop.f32.mrb[0].mxu0
      %v520 = vadd.f32 0.0, %v519
      %v521 = vpop.f32.mrb[0].mxu0
      %v522 = vpop.f32.mrb[0].mxu0
      %v523 = vadd.f32 0.0, %v522
      %v524 = vpop.f32.mrb[0].mxu0
      %525 = vmatprep.mubr.bf16.mxu0 0
      %526 = vmatmul.mubr.bf16.gmra.mrb[0].mxu0 %v480
      %v527 = vpop.f32.mrb[0].mxu0
      %v528 = vadd.f32 0.0, %v527
      %v529 = vpop.f32.mrb[0].mxu0
      %v530 = vpop.f32.mrb[0].mxu0
      %v531 = vpop.f32.mrb[0].mxu0
      %532 = vdwg.mxu0
      %v533 = vadd.f32 %v465, %v520
      %v534 = vadd.f32 %v466, %v523
      %v535 = vadd.f32 %v467, %v528
      %s536 = scalar_lea.vmem %s196, 96
      %v537 = vld [vmem:[%s536] sm:$0xff]
      %v538 = vld [vmem:[%s536 + $0x8] sm:$0xff]
      %v539 = vld [vmem:[%s536 + $0x10] sm:$0xf]
      %v540 = vpack.c.bf16 %v538, %v537
      %v541 = vpack.c.bf16 %v539, %v539
      %s542 = scalar_lea.vmem %s1, 20
      %v543 = vld [vmem:[%s542] sm:$0xf]
      %v545 = vsel %vm218, %v540, 0
      %v548 = vsel %vm218, %v541, 0
      %v551 = vsel %vm225, %v543, 0
      %553 = vmatprep.subr.bf16.mxu0 0
      %554 = vmatpush1.bf16.msra.mxu0 %v551
      %555 = vmatprep.subr.bf16.mxu0 0
      %556 = vmatpush1.bf16.msra.mxu0 0
      %557 = vmatprep.subr.bf16.mxu0 0
      %558 = vmatpush1.bf16.msra.mxu0 0
      %559 = vmatprep.subr.bf16.mxu0 0
      %560 = vmatpush1.bf16.msra.mxu0 0
      %561 = vmatprep.subr.bf16.mxu0 0
      %562 = vmatpush1.bf16.msra.mxu0 0
      %563 = vmatprep.subr.bf16.mxu0 0
      %564 = vmatpush1.bf16.msra.mxu0 0
      %565 = vmatprep.subr.bf16.mxu0 0
      %566 = vmatpush1.bf16.msra.mxu0 0
      %567 = vmatprep.subr.bf16.mxu0 0
      %568 = vmatpush1.bf16.msra.mxu0 0
      %569 = vmatprep.subr.bf16.mxu0 0
      %570 = vmatpush1.bf16.msra.mxu0 0
      %571 = vmatprep.subr.bf16.mxu0 0
      %572 = vmatpush1.bf16.msra.mxu0 0
      %573 = vmatprep.subr.bf16.mxu0 0
      %574 = vmatpush1.bf16.msra.mxu0 0
      %575 = vmatprep.subr.bf16.mxu0 0
      %576 = vmatpush1.bf16.msra.mxu0 0
      %577 = vmatprep.subr.bf16.mxu0 0
      %578 = vmatpush1.bf16.msra.mxu0 0
      %579 = vmatprep.subr.bf16.mxu0 0
      %580 = vmatpush1.bf16.msra.mxu0 0
      %581 = vmatprep.subr.bf16.mxu0 0
      %582 = vmatpush1.bf16.msra.mxu0 0
      %583 = vmatprep.subr.bf16.mxu0 0
      %584 = vmatpush1.bf16.msra.mxu0 0
      %585 = vmatprep.mubr.bf16.mxu0 0
      %586 = vmatmul.mubr.bf16.gmra.mrb[0].mxu0 %v545
      %v587 = vpop.f32.mrb[0].mxu0
      %v588 = vadd.f32 0.0, %v587
      %v589 = vpop.f32.mrb[0].mxu0
      %v590 = vpop.f32.mrb[0].mxu0
      %v591 = vadd.f32 0.0, %v590
      %v592 = vpop.f32.mrb[0].mxu0
      %593 = vmatprep.mubr.bf16.mxu0 0
      %594 = vmatmul.mubr.bf16.gmra.mrb[0].mxu0 %v548
      %v595 = vpop.f32.mrb[0].mxu0
      %v596 = vadd.f32 0.0, %v595
      %v597 = vpop.f32.mrb[0].mxu0
      %v598 = vpop.f32.mrb[0].mxu0
      %v599 = vpop.f32.mrb[0].mxu0
      %600 = vdwg.mxu0
      %v601 = vadd.f32 %v533, %v588
      %v602 = vadd.f32 %v534, %v591
      %v603 = vadd.f32 %v535, %v596
      %v604 = vld [vmem:[%s468 + $0x1] sm:$0xff]
      %v605 = vld [vmem:[%s468 + $0x9] sm:$0xff]
      %v606 = vld [vmem:[%s468 + $0x11] sm:$0xf]
      %v607 = vpack.c.bf16 %v605, %v604
      %v608 = vpack.c.bf16 %v606, %v606
      %s609 = scalar_lea.vmem %s1, 24
      %v610 = vld [vmem:[%s609] sm:$0xf]
      %v612 = vsel %vm218, %v607, 0
      %v615 = vsel %vm218, %v608, 0
      %v618 = vsel %vm225, %v610, 0
      %620 = vmatprep.subr.bf16.mxu0 0
      %621 = vmatpush1.bf16.msra.mxu0 %v618
      %622 = vmatprep.subr.bf16.mxu0 0
      %623 = vmatpush1.bf16.msra.mxu0 0
      %624 = vmatprep.subr.bf16.mxu0 0
      %625 = vmatpush1.bf16.msra.mxu0 0
      %626 = vmatprep.subr.bf16.mxu0 0
      %627 = vmatpush1.bf16.msra.mxu0 0
      %628 = vmatprep.subr.bf16.mxu0 0
      %629 = vmatpush1.bf16.msra.mxu0 0
      %630 = vmatprep.subr.bf16.mxu0 0
      %631 = vmatpush1.bf16.msra.mxu0 0
      %632 = vmatprep.subr.bf16.mxu0 0
      %633 = vmatpush1.bf16.msra.mxu0 0
      %634 = vmatprep.subr.bf16.mxu0 0
      %635 = vmatpush1.bf16.msra.mxu0 0
      %636 = vmatprep.subr.bf16.mxu0 0
      %637 = vmatpush1.bf16.msra.mxu0 0
      %638 = vmatprep.subr.bf16.mxu0 0
      %639 = vmatpush1.bf16.msra.mxu0 0
      %640 = vmatprep.subr.bf16.mxu0 0
      %641 = vmatpush1.bf16.msra.mxu0 0
      %642 = vmatprep.subr.bf16.mxu0 0
      %643 = vmatpush1.bf16.msra.mxu0 0
      %644 = vmatprep.subr.bf16.mxu0 0
      %645 = vmatpush1.bf16.msra.mxu0 0
      %646 = vmatprep.subr.bf16.mxu0 0
      %647 = vmatpush1.bf16.msra.mxu0 0
      %648 = vmatprep.subr.bf16.mxu0 0
      %649 = vmatpush1.bf16.msra.mxu0 0
      %650 = vmatprep.subr.bf16.mxu0 0
      %651 = vmatpush1.bf16.msra.mxu0 0
      %652 = vmatprep.mubr.bf16.mxu0 0
      %653 = vmatmul.mubr.bf16.gmra.mrb[0].mxu0 %v612
      %v654 = vpop.f32.mrb[0].mxu0
      %v655 = vadd.f32 0.0, %v654
      %v656 = vpop.f32.mrb[0].mxu0
      %v657 = vpop.f32.mrb[0].mxu0
      %v658 = vadd.f32 0.0, %v657
      %v659 = vpop.f32.mrb[0].mxu0
      %660 = vmatprep.mubr.bf16.mxu0 0
      %661 = vmatmul.mubr.bf16.gmra.mrb[0].mxu0 %v615
      %v662 = vpop.f32.mrb[0].mxu0
      %v663 = vadd.f32 0.0, %v662
      %v664 = vpop.f32.mrb[0].mxu0
      %v665 = vpop.f32.mrb[0].mxu0
      %v666 = vpop.f32.mrb[0].mxu0
      %667 = vdwg.mxu0
      %v668 = vadd.f32 %v601, %v655
      %v669 = vadd.f32 %v602, %v658
      %v670 = vadd.f32 %v603, %v663
      %v671 = vld [vmem:[%s536 + $0x1] sm:$0xff]
      %v672 = vld [vmem:[%s536 + $0x9] sm:$0xff]
      %v673 = vld [vmem:[%s536 + $0x11] sm:$0xf]
      %v674 = vpack.c.bf16 %v672, %v671
      %v675 = vpack.c.bf16 %v673, %v673
      %s676 = scalar_lea.vmem %s1, 28
      %v677 = vld [vmem:[%s676] sm:$0xf]
      %v679 = vsel %vm218, %v674, 0
      %v682 = vsel %vm218, %v675, 0
      %v685 = vsel %vm225, %v677, 0
      %687 = vmatprep.subr.bf16.mxu0 0
      %688 = vmatpush1.bf16.msra.mxu0 %v685
      %689 = vmatprep.subr.bf16.mxu0 0
      %690 = vmatpush1.bf16.msra.mxu0 0
      %691 = vmatprep.subr.bf16.mxu0 0
      %692 = vmatpush1.bf16.msra.mxu0 0
      %693 = vmatprep.subr.bf16.mxu0 0
      %694 = vmatpush1.bf16.msra.mxu0 0
      %695 = vmatprep.subr.bf16.mxu0 0
      %696 = vmatpush1.bf16.msra.mxu0 0
      %697 = vmatprep.subr.bf16.mxu0 0
      %698 = vmatpush1.bf16.msra.mxu0 0
      %699 = vmatprep.subr.bf16.mxu0 0
      %700 = vmatpush1.bf16.msra.mxu0 0
      %701 = vmatprep.subr.bf16.mxu0 0
      %702 = vmatpush1.bf16.msra.mxu0 0
      %703 = vmatprep.subr.bf16.mxu0 0
      %704 = vmatpush1.bf16.msra.mxu0 0
      %705 = vmatprep.subr.bf16.mxu0 0
      %706 = vmatpush1.bf16.msra.mxu0 0
      %707 = vmatprep.subr.bf16.mxu0 0
      %708 = vmatpush1.bf16.msra.mxu0 0
      %709 = vmatprep.subr.bf16.mxu0 0
      %710 = vmatpush1.bf16.msra.mxu0 0
      %711 = vmatprep.subr.bf16.mxu0 0
      %712 = vmatpush1.bf16.msra.mxu0 0
      %713 = vmatprep.subr.bf16.mxu0 0
      %714 = vmatpush1.bf16.msra.mxu0 0
      %715 = vmatprep.subr.bf16.mxu0 0
      %716 = vmatpush1.bf16.msra.mxu0 0
      %717 = vmatprep.subr.bf16.mxu0 0
      %718 = vmatpush1.bf16.msra.mxu0 0
      %719 = vmatprep.mubr.bf16.mxu0 0
      %720 = vmatmul.mubr.bf16.gmra.mrb[0].mxu0 %v679
      %v721 = vpop.f32.mrb[0].mxu0
      %v722 = vadd.f32 0.0, %v721
      %v723 = vpop.f32.mrb[0].mxu0
      %v724 = vpop.f32.mrb[0].mxu0
      %v725 = vadd.f32 0.0, %v724
      %v726 = vpop.f32.mrb[0].mxu0
      %727 = vmatprep.mubr.bf16.mxu0 0
      %728 = vmatmul.mubr.bf16.gmra.mrb[0].mxu0 %v682
      %v729 = vpop.f32.mrb[0].mxu0
      %v730 = vadd.f32 0.0, %v729
      %v731 = vpop.f32.mrb[0].mxu0
      %v732 = vpop.f32.mrb[0].mxu0
      %v733 = vpop.f32.mrb[0].mxu0
      %734 = vdwg.mxu0
      %v735 = vadd.f32 %v668, %v722
      %v736 = vadd.f32 %v669, %v725
      %v737 = vadd.f32 %v670, %v730
      %v738 = vld [vmem:[%s196 + $0x5] sm:$0xff]
      %v739 = vld [vmem:[%s196 + $0xd] sm:$0xff]
      %v740 = vld [vmem:[%s196 + $0x15] sm:$0xf]
      %v741 = vpack.c.bf16 %v739, %v738
      %v742 = vpack.c.bf16 %v740, %v740
      %s743 = scalar_lea.vmem %s1, 32
      %v744 = vld [vmem:[%s743] sm:$0xf]
      %v746 = vsel %vm218, %v741, 0
      %v749 = vsel %vm218, %v742, 0
      %v752 = vsel %vm225, %v744, 0
      %754 = vmatprep.subr.bf16.mxu0 0
      %755 = vmatpush1.bf16.msra.mxu0 %v752
      %756 = vmatprep.subr.bf16.mxu0 0
      %757 = vmatpush1.bf16.msra.mxu0 0
      %758 = vmatprep.subr.bf16.mxu0 0
      %759 = vmatpush1.bf16.msra.mxu0 0
      %760 = vmatprep.subr.bf16.mxu0 0
      %761 = vmatpush1.bf16.msra.mxu0 0
      %762 = vmatprep.subr.bf16.mxu0 0
      %763 = vmatpush1.bf16.msra.mxu0 0
      %764 = vmatprep.subr.bf16.mxu0 0
      %765 = vmatpush1.bf16.msra.mxu0 0
      %766 = vmatprep.subr.bf16.mxu0 0
      %767 = vmatpush1.bf16.msra.mxu0 0
      %768 = vmatprep.subr.bf16.mxu0 0
      %769 = vmatpush1.bf16.msra.mxu0 0
      %770 = vmatprep.subr.bf16.mxu0 0
      %771 = vmatpush1.bf16.msra.mxu0 0
      %772 = vmatprep.subr.bf16.mxu0 0
      %773 = vmatpush1.bf16.msra.mxu0 0
      %774 = vmatprep.subr.bf16.mxu0 0
      %775 = vmatpush1.bf16.msra.mxu0 0
      %776 = vmatprep.subr.bf16.mxu0 0
      %777 = vmatpush1.bf16.msra.mxu0 0
      %778 = vmatprep.subr.bf16.mxu0 0
      %779 = vmatpush1.bf16.msra.mxu0 0
      %780 = vmatprep.subr.bf16.mxu0 0
      %781 = vmatpush1.bf16.msra.mxu0 0
      %782 = vmatprep.subr.bf16.mxu0 0
      %783 = vmatpush1.bf16.msra.mxu0 0
      %784 = vmatprep.subr.bf16.mxu0 0
      %785 = vmatpush1.bf16.msra.mxu0 0
      %786 = vmatprep.mubr.bf16.mxu0 0
      %787 = vmatmul.mubr.bf16.gmra.mrb[0].mxu0 %v746
      %v788 = vpop.f32.mrb[0].mxu0
      %v789 = vadd.f32 0.0, %v788
      %v790 = vpop.f32.mrb[0].mxu0
      %v791 = vpop.f32.mrb[0].mxu0
      %v792 = vadd.f32 0.0, %v791
      %v793 = vpop.f32.mrb[0].mxu0
      %794 = vmatprep.mubr.bf16.mxu0 0
      %795 = vmatmul.mubr.bf16.gmra.mrb[0].mxu0 %v749
      %v796 = vpop.f32.mrb[0].mxu0
      %v797 = vadd.f32 0.0, %v796
      %v798 = vpop.f32.mrb[0].mxu0
      %v799 = vpop.f32.mrb[0].mxu0
      %v800 = vpop.f32.mrb[0].mxu0
      %801 = vdwg.mxu0
      %v802 = vadd.f32 %v735, %v789
      %v803 = vadd.f32 %v736, %v792
      %v804 = vadd.f32 %v737, %v797
      %v805 = vld [vmem:[%s210 + $0x5] sm:$0xff]
      %v806 = vld [vmem:[%s210 + $0xd] sm:$0xff]
      %v807 = vld [vmem:[%s210 + $0x15] sm:$0xf]
      %v808 = vpack.c.bf16 %v806, %v805
      %v809 = vpack.c.bf16 %v807, %v807
      %s810 = scalar_lea.vmem %s1, 36
      %v811 = vld [vmem:[%s810] sm:$0xf]
      %v813 = vsel %vm218, %v808, 0
      %v816 = vsel %vm218, %v809, 0
      %v819 = vsel %vm225, %v811, 0
      %821 = vmatprep.subr.bf16.mxu0 0
      %822 = vmatpush1.bf16.msra.mxu0 %v819
      %823 = vmatprep.subr.bf16.mxu0 0
      %824 = vmatpush1.bf16.msra.mxu0 0
      %825 = vmatprep.subr.bf16.mxu0 0
      %826 = vmatpush1.bf16.msra.mxu0 0
      %827 = vmatprep.subr.bf16.mxu0 0
      %828 = vmatpush1.bf16.msra.mxu0 0
      %829 = vmatprep.subr.bf16.mxu0 0
      %830 = vmatpush1.bf16.msra.mxu0 0
      %831 = vmatprep.subr.bf16.mxu0 0
      %832 = vmatpush1.bf16.msra.mxu0 0
      %833 = vmatprep.subr.bf16.mxu0 0
      %834 = vmatpush1.bf16.msra.mxu0 0
      %835 = vmatprep.subr.bf16.mxu0 0
      %836 = vmatpush1.bf16.msra.mxu0 0
      %837 = vmatprep.subr.bf16.mxu0 0
      %838 = vmatpush1.bf16.msra.mxu0 0
      %839 = vmatprep.subr.bf16.mxu0 0
      %840 = vmatpush1.bf16.msra.mxu0 0
      %841 = vmatprep.subr.bf16.mxu0 0
      %842 = vmatpush1.bf16.msra.mxu0 0
      %843 = vmatprep.subr.bf16.mxu0 0
      %844 = vmatpush1.bf16.msra.mxu0 0
      %845 = vmatprep.subr.bf16.mxu0 0
      %846 = vmatpush1.bf16.msra.mxu0 0
      %847 = vmatprep.subr.bf16.mxu0 0
      %848 = vmatpush1.bf16.msra.mxu0 0
      %849 = vmatprep.subr.bf16.mxu0 0
      %850 = vmatpush1.bf16.msra.mxu0 0
      %851 = vmatprep.subr.bf16.mxu0 0
      %852 = vmatpush1.bf16.msra.mxu0 0
      %853 = vmatprep.mubr.bf16.mxu0 0
      %854 = vmatmul.mubr.bf16.gmra.mrb[0].mxu0 %v813
      %v855 = vpop.f32.mrb[0].mxu0
      %v856 = vadd.f32 0.0, %v855
      %v857 = vpop.f32.mrb[0].mxu0
      %v858 = vpop.f32.mrb[0].mxu0
      %v859 = vadd.f32 0.0, %v858
      %v860 = vpop.f32.mrb[0].mxu0
      %861 = vmatprep.mubr.bf16.mxu0 0
      %862 = vmatmul.mubr.bf16.gmra.mrb[0].mxu0 %v816
      %v863 = vpop.f32.mrb[0].mxu0
      %v864 = vadd.f32 0.0, %v863
      %v865 = vpop.f32.mrb[0].mxu0
      %v866 = vpop.f32.mrb[0].mxu0
      %v867 = vpop.f32.mrb[0].mxu0
      %868 = vdwg.mxu0
      %v869 = vadd.f32 %v802, %v856
      %v870 = vadd.f32 %v803, %v859
      %v871 = vadd.f32 %v804, %v864
      %v872 = vld [vmem:[%s196 + $0x6] sm:$0xff]
      %v873 = vld [vmem:[%s196 + $0xe] sm:$0xff]
      %v874 = vld [vmem:[%s196 + $0x16] sm:$0xf]
      %v875 = vpack.c.bf16 %v873, %v872
      %v876 = vpack.c.bf16 %v874, %v874
      %s877 = scalar_lea.vmem %s1, 40
      %v878 = vld [vmem:[%s877] sm:$0xf]
      %v880 = vsel %vm218, %v875, 0
      %v883 = vsel %vm218, %v876, 0
      %v886 = vsel %vm225, %v878, 0
      %888 = vmatprep.subr.bf16.mxu0 0
      %889 = vmatpush1.bf16.msra.mxu0 %v886
      %890 = vmatprep.subr.bf16.mxu0 0
      %891 = vmatpush1.bf16.msra.mxu0 0
      %892 = vmatprep.subr.bf16.mxu0 0
      %893 = vmatpush1.bf16.msra.mxu0 0
      %894 = vmatprep.subr.bf16.mxu0 0
      %895 = vmatpush1.bf16.msra.mxu0 0
      %896 = vmatprep.subr.bf16.mxu0 0
      %897 = vmatpush1.bf16.msra.mxu0 0
      %898 = vmatprep.subr.bf16.mxu0 0
      %899 = vmatpush1.bf16.msra.mxu0 0
      %900 = vmatprep.subr.bf16.mxu0 0
      %901 = vmatpush1.bf16.msra.mxu0 0
      %902 = vmatprep.subr.bf16.mxu0 0
      %903 = vmatpush1.bf16.msra.mxu0 0
      %904 = vmatprep.subr.bf16.mxu0 0
      %905 = vmatpush1.bf16.msra.mxu0 0
      %906 = vmatprep.subr.bf16.mxu0 0
      %907 = vmatpush1.bf16.msra.mxu0 0
      %908 = vmatprep.subr.bf16.mxu0 0
      %909 = vmatpush1.bf16.msra.mxu0 0
      %910 = vmatprep.subr.bf16.mxu0 0
      %911 = vmatpush1.bf16.msra.mxu0 0
      %912 = vmatprep.subr.bf16.mxu0 0
      %913 = vmatpush1.bf16.msra.mxu0 0
      %914 = vmatprep.subr.bf16.mxu0 0
      %915 = vmatpush1.bf16.msra.mxu0 0
      %916 = vmatprep.subr.bf16.mxu0 0
      %917 = vmatpush1.bf16.msra.mxu0 0
      %918 = vmatprep.subr.bf16.mxu0 0
      %919 = vmatpush1.bf16.msra.mxu0 0
      %920 = vmatprep.mubr.bf16.mxu0 0
      %921 = vmatmul.mubr.bf16.gmra.mrb[0].mxu0 %v880
      %v922 = vpop.f32.mrb[0].mxu0
      %v923 = vadd.f32 0.0, %v922
      %v924 = vpop.f32.mrb[0].mxu0
      %v925 = vpop.f32.mrb[0].mxu0
      %v926 = vadd.f32 0.0, %v925
      %v927 = vpop.f32.mrb[0].mxu0
      %928 = vmatprep.mubr.bf16.mxu0 0
      %929 = vmatmul.mubr.bf16.gmra.mrb[0].mxu0 %v883
      %v930 = vpop.f32.mrb[0].mxu0
      %v931 = vadd.f32 0.0, %v930
      %v932 = vpop.f32.mrb[0].mxu0
      %v933 = vpop.f32.mrb[0].mxu0
      %v934 = vpop.f32.mrb[0].mxu0
      %935 = vdwg.mxu0
      %v936 = vadd.f32 %v869, %v923
      %v937 = vadd.f32 %v870, %v926
      %v938 = vadd.f32 %v871, %v931
      %v939 = vld [vmem:[%s210 + $0x6] sm:$0xff]
      %v940 = vld [vmem:[%s210 + $0xe] sm:$0xff]
      %v941 = vld [vmem:[%s210 + $0x16] sm:$0xf]
      %v942 = vpack.c.bf16 %v940, %v939
      %v943 = vpack.c.bf16 %v941, %v941
      %s944 = scalar_lea.vmem %s1, 44
      %v945 = vld [vmem:[%s944] sm:$0xf]
      %v947 = vsel %vm218, %v942, 0
      %v950 = vsel %vm218, %v943, 0
      %v953 = vsel %vm225, %v945, 0
      %955 = vmatprep.subr.bf16.mxu0 0
      %956 = vmatpush1.bf16.msra.mxu0 %v953
      %957 = vmatprep.subr.bf16.mxu0 0
      %958 = vmatpush1.bf16.msra.mxu0 0
      %959 = vmatprep.subr.bf16.mxu0 0
      %960 = vmatpush1.bf16.msra.mxu0 0
      %961 = vmatprep.subr.bf16.mxu0 0
      %962 = vmatpush1.bf16.msra.mxu0 0
      %963 = vmatprep.subr.bf16.mxu0 0
      %964 = vmatpush1.bf16.msra.mxu0 0
      %965 = vmatprep.subr.bf16.mxu0 0
      %966 = vmatpush1.bf16.msra.mxu0 0
      %967 = vmatprep.subr.bf16.mxu0 0
      %968 = vmatpush1.bf16.msra.mxu0 0
      %969 = vmatprep.subr.bf16.mxu0 0
      %970 = vmatpush1.bf16.msra.mxu0 0
      %971 = vmatprep.subr.bf16.mxu0 0
      %972 = vmatpush1.bf16.msra.mxu0 0
      %973 = vmatprep.subr.bf16.mxu0 0
      %974 = vmatpush1.bf16.msra.mxu0 0
      %975 = vmatprep.subr.bf16.mxu0 0
      %976 = vmatpush1.bf16.msra.mxu0 0
      %977 = vmatprep.subr.bf16.mxu0 0
      %978 = vmatpush1.bf16.msra.mxu0 0
      %979 = vmatprep.subr.bf16.mxu0 0
      %980 = vmatpush1.bf16.msra.mxu0 0
      %981 = vmatprep.subr.bf16.mxu0 0
      %982 = vmatpush1.bf16.msra.mxu0 0
      %983 = vmatprep.subr.bf16.mxu0 0
      %984 = vmatpush1.bf16.msra.mxu0 0
      %985 = vmatprep.subr.bf16.mxu0 0
      %986 = vmatpush1.bf16.msra.mxu0 0
      %987 = vmatprep.mubr.bf16.mxu0 0
      %988 = vmatmul.mubr.bf16.gmra.mrb[0].mxu0 %v947
      %v989 = vpop.f32.mrb[0].mxu0
      %v990 = vadd.f32 0.0, %v989
      %v991 = vpop.f32.mrb[0].mxu0
      %v992 = vpop.f32.mrb[0].mxu0
      %v993 = vadd.f32 0.0, %v992
      %v994 = vpop.f32.mrb[0].mxu0
      %995 = vmatprep.mubr.bf16.mxu0 0
      %996 = vmatmul.mubr.bf16.gmra.mrb[0].mxu0 %v950
      %v997 = vpop.f32.mrb[0].mxu0
      %v998 = vadd.f32 0.0, %v997
      %v999 = vpop.f32.mrb[0].mxu0
      %v1000 = vpop.f32.mrb[0].mxu0
      %v1001 = vpop.f32.mrb[0].mxu0
      %1002 = vdwg.mxu0
      %v1003 = vadd.f32 %v936, %v990
      %v1004 = vadd.f32 %v937, %v993
      %v1005 = vadd.f32 %v938, %v998
      %v1006 = vld [vmem:[%s468 + $0x5] sm:$0xff]
      %v1007 = vld [vmem:[%s468 + $0xd] sm:$0xff]
      %v1008 = vld [vmem:[%s468 + $0x15] sm:$0xf]
      %v1009 = vpack.c.bf16 %v1007, %v1006
      %v1010 = vpack.c.bf16 %v1008, %v1008
      %s1011 = scalar_lea.vmem %s1, 48
      %v1012 = vld [vmem:[%s1011] sm:$0xf]
      %v1014 = vsel %vm218, %v1009, 0
      %v1017 = vsel %vm218, %v1010, 0
      %v1020 = vsel %vm225, %v1012, 0
      %1022 = vmatprep.subr.bf16.mxu0 0
      %1023 = vmatpush1.bf16.msra.mxu0 %v1020
      %1024 = vmatprep.subr.bf16.mxu0 0
      %1025 = vmatpush1.bf16.msra.mxu0 0
      %1026 = vmatprep.subr.bf16.mxu0 0
      %1027 = vmatpush1.bf16.msra.mxu0 0
      %1028 = vmatprep.subr.bf16.mxu0 0
      %1029 = vmatpush1.bf16.msra.mxu0 0
      %1030 = vmatprep.subr.bf16.mxu0 0
      %1031 = vmatpush1.bf16.msra.mxu0 0
      %1032 = vmatprep.subr.bf16.mxu0 0
      %1033 = vmatpush1.bf16.msra.mxu0 0
      %1034 = vmatprep.subr.bf16.mxu0 0
      %1035 = vmatpush1.bf16.msra.mxu0 0
      %1036 = vmatprep.subr.bf16.mxu0 0
      %1037 = vmatpush1.bf16.msra.mxu0 0
      %1038 = vmatprep.subr.bf16.mxu0 0
      %1039 = vmatpush1.bf16.msra.mxu0 0
      %1040 = vmatprep.subr.bf16.mxu0 0
      %1041 = vmatpush1.bf16.msra.mxu0 0
      %1042 = vmatprep.subr.bf16.mxu0 0
      %1043 = vmatpush1.bf16.msra.mxu0 0
      %1044 = vmatprep.subr.bf16.mxu0 0
      %1045 = vmatpush1.bf16.msra.mxu0 0
      %1046 = vmatprep.subr.bf16.mxu0 0
      %1047 = vmatpush1.bf16.msra.mxu0 0
      %1048 = vmatprep.subr.bf16.mxu0 0
      %1049 = vmatpush1.bf16.msra.mxu0 0
      %1050 = vmatprep.subr.bf16.mxu0 0
      %1051 = vmatpush1.bf16.msra.mxu0 0
      %1052 = vmatprep.subr.bf16.mxu0 0
      %1053 = vmatpush1.bf16.msra.mxu0 0
      %1054 = vmatprep.mubr.bf16.mxu0 0
      %1055 = vmatmul.mubr.bf16.gmra.mrb[0].mxu0 %v1014
      %v1056 = vpop.f32.mrb[0].mxu0
      %v1057 = vadd.f32 0.0, %v1056
      %v1058 = vpop.f32.mrb[0].mxu0
      %v1059 = vpop.f32.mrb[0].mxu0
      %v1060 = vadd.f32 0.0, %v1059
      %v1061 = vpop.f32.mrb[0].mxu0
      %1062 = vmatprep.mubr.bf16.mxu0 0
      %1063 = vmatmul.mubr.bf16.gmra.mrb[0].mxu0 %v1017
      %v1064 = vpop.f32.mrb[0].mxu0
      %v1065 = vadd.f32 0.0, %v1064
      %v1066 = vpop.f32.mrb[0].mxu0
      %v1067 = vpop.f32.mrb[0].mxu0
      %v1068 = vpop.f32.mrb[0].mxu0
      %1069 = vdwg.mxu0
      %v1070 = vadd.f32 %v1003, %v1057
      %v1071 = vadd.f32 %v1004, %v1060
      %v1072 = vadd.f32 %v1005, %v1065
      %v1073 = vld [vmem:[%s536 + $0x5] sm:$0xff]
      %v1074 = vld [vmem:[%s536 + $0xd] sm:$0xff]
      %v1075 = vld [vmem:[%s536 + $0x15] sm:$0xf]
      %v1076 = vpack.c.bf16 %v1074, %v1073
      %v1077 = vpack.c.bf16 %v1075, %v1075
      %s1078 = scalar_lea.vmem %s1, 52
      %v1079 = vld [vmem:[%s1078] sm:$0xf]
      %v1081 = vsel %vm218, %v1076, 0
      %v1084 = vsel %vm218, %v1077, 0
      %v1087 = vsel %vm225, %v1079, 0
      %1089 = vmatprep.subr.bf16.mxu0 0
      %1090 = vmatpush1.bf16.msra.mxu0 %v1087
      %1091 = vmatprep.subr.bf16.mxu0 0
      %1092 = vmatpush1.bf16.msra.mxu0 0
      %1093 = vmatprep.subr.bf16.mxu0 0
      %1094 = vmatpush1.bf16.msra.mxu0 0
      %1095 = vmatprep.subr.bf16.mxu0 0
      %1096 = vmatpush1.bf16.msra.mxu0 0
      %1097 = vmatprep.subr.bf16.mxu0 0
      %1098 = vmatpush1.bf16.msra.mxu0 0
      %1099 = vmatprep.subr.bf16.mxu0 0
      %1100 = vmatpush1.bf16.msra.mxu0 0
      %1101 = vmatprep.subr.bf16.mxu0 0
      %1102 = vmatpush1.bf16.msra.mxu0 0
      %1103 = vmatprep.subr.bf16.mxu0 0
      %1104 = vmatpush1.bf16.msra.mxu0 0
      %1105 = vmatprep.subr.bf16.mxu0 0
      %1106 = vmatpush1.bf16.msra.mxu0 0
      %1107 = vmatprep.subr.bf16.mxu0 0
      %1108 = vmatpush1.bf16.msra.mxu0 0
      %1109 = vmatprep.subr.bf16.mxu0 0
      %1110 = vmatpush1.bf16.msra.mxu0 0
      %1111 = vmatprep.subr.bf16.mxu0 0
      %1112 = vmatpush1.bf16.msra.mxu0 0
      %1113 = vmatprep.subr.bf16.mxu0 0
      %1114 = vmatpush1.bf16.msra.mxu0 0
      %1115 = vmatprep.subr.bf16.mxu0 0
      %1116 = vmatpush1.bf16.msra.mxu0 0
      %1117 = vmatprep.subr.bf16.mxu0 0
      %1118 = vmatpush1.bf16.msra.mxu0 0
      %1119 = vmatprep.subr.bf16.mxu0 0
      %1120 = vmatpush1.bf16.msra.mxu0 0
      %1121 = vmatprep.mubr.bf16.mxu0 0
      %1122 = vmatmul.mubr.bf16.gmra.mrb[0].mxu0 %v1081
      %v1123 = vpop.f32.mrb[0].mxu0
      %v1124 = vadd.f32 0.0, %v1123
      %v1125 = vpop.f32.mrb[0].mxu0
      %v1126 = vpop.f32.mrb[0].mxu0
      %v1127 = vadd.f32 0.0, %v1126
      %v1128 = vpop.f32.mrb[0].mxu0
      %1129 = vmatprep.mubr.bf16.mxu0 0
      %1130 = vmatmul.mubr.bf16.gmra.mrb[0].mxu0 %v1084
      %v1131 = vpop.f32.mrb[0].mxu0
      %v1132 = vadd.f32 0.0, %v1131
      %v1133 = vpop.f32.mrb[0].mxu0
      %v1134 = vpop.f32.mrb[0].mxu0
      %v1135 = vpop.f32.mrb[0].mxu0
      %1136 = vdwg.mxu0
      %v1137 = vadd.f32 %v1070, %v1124
      %v1138 = vadd.f32 %v1071, %v1127
      %v1139 = vadd.f32 %v1072, %v1132
      %v1140 = vld [vmem:[%s468 + $0x6] sm:$0xff]
      %v1141 = vld [vmem:[%s468 + $0xe] sm:$0xff]
      %v1142 = vld [vmem:[%s468 + $0x16] sm:$0xf]
      %v1143 = vpack.c.bf16 %v1141, %v1140
      %v1144 = vpack.c.bf16 %v1142, %v1142
      %s1145 = scalar_lea.vmem %s1, 56
      %v1146 = vld [vmem:[%s1145] sm:$0xf]
      %v1148 = vsel %vm218, %v1143, 0
      %v1151 = vsel %vm218, %v1144, 0
      %v1154 = vsel %vm225, %v1146, 0
      %1156 = vmatprep.subr.bf16.mxu0 0
      %1157 = vmatpush1.bf16.msra.mxu0 %v1154
      %1158 = vmatprep.subr.bf16.mxu0 0
      %1159 = vmatpush1.bf16.msra.mxu0 0
      %1160 = vmatprep.subr.bf16.mxu0 0
      %1161 = vmatpush1.bf16.msra.mxu0 0
      %1162 = vmatprep.subr.bf16.mxu0 0
      %1163 = vmatpush1.bf16.msra.mxu0 0
      %1164 = vmatprep.subr.bf16.mxu0 0
      %1165 = vmatpush1.bf16.msra.mxu0 0
      %1166 = vmatprep.subr.bf16.mxu0 0
      %1167 = vmatpush1.bf16.msra.mxu0 0
      %1168 = vmatprep.subr.bf16.mxu0 0
      %1169 = vmatpush1.bf16.msra.mxu0 0
      %1170 = vmatprep.subr.bf16.mxu0 0
      %1171 = vmatpush1.bf16.msra.mxu0 0
      %1172 = vmatprep.subr.bf16.mxu0 0
      %1173 = vmatpush1.bf16.msra.mxu0 0
      %1174 = vmatprep.subr.bf16.mxu0 0
      %1175 = vmatpush1.bf16.msra.mxu0 0
      %1176 = vmatprep.subr.bf16.mxu0 0
      %1177 = vmatpush1.bf16.msra.mxu0 0
      %1178 = vmatprep.subr.bf16.mxu0 0
      %1179 = vmatpush1.bf16.msra.mxu0 0
      %1180 = vmatprep.subr.bf16.mxu0 0
      %1181 = vmatpush1.bf16.msra.mxu0 0
      %1182 = vmatprep.subr.bf16.mxu0 0
      %1183 = vmatpush1.bf16.msra.mxu0 0
      %1184 = vmatprep.subr.bf16.mxu0 0
      %1185 = vmatpush1.bf16.msra.mxu0 0
      %1186 = vmatprep.subr.bf16.mxu0 0
      %1187 = vmatpush1.bf16.msra.mxu0 0
      %1188 = vmatprep.mubr.bf16.mxu0 0
      %1189 = vmatmul.mubr.bf16.gmra.mrb[0].mxu0 %v1148
      %v1190 = vpop.f32.mrb[0].mxu0
      %v1191 = vadd.f32 0.0, %v1190
      %v1192 = vpop.f32.mrb[0].mxu0
      %v1193 = vpop.f32.mrb[0].mxu0
      %v1194 = vadd.f32 0.0, %v1193
      %v1195 = vpop.f32.mrb[0].mxu0
      %1196 = vmatprep.mubr.bf16.mxu0 0
      %1197 = vmatmul.mubr.bf16.gmra.mrb[0].mxu0 %v1151
      %v1198 = vpop.f32.mrb[0].mxu0
      %v1199 = vadd.f32 0.0, %v1198
      %v1200 = vpop.f32.mrb[0].mxu0
      %v1201 = vpop.f32.mrb[0].mxu0
      %v1202 = vpop.f32.mrb[0].mxu0
      %1203 = vdwg.mxu0
      %v1204 = vadd.f32 %v1137, %v1191
      %v1205 = vadd.f32 %v1138, %v1194
      %v1206 = vadd.f32 %v1139, %v1199
      %v1207 = vld [vmem:[%s536 + $0x6] sm:$0xff]
      %v1208 = vld [vmem:[%s536 + $0xe] sm:$0xff]
      %v1209 = vld [vmem:[%s536 + $0x16] sm:$0xf]
      %v1210 = vpack.c.bf16 %v1208, %v1207
      %v1211 = vpack.c.bf16 %v1209, %v1209
      %s1212 = scalar_lea.vmem %s1, 60
      %v1213 = vld [vmem:[%s1212] sm:$0xf]
      %v1215 = vsel %vm218, %v1210, 0
      %v1218 = vsel %vm218, %v1211, 0
      %v1221 = vsel %vm225, %v1213, 0
      %1223 = vmatprep.subr.bf16.mxu0 0
      %1224 = vmatpush1.bf16.msra.mxu0 %v1221
      %1225 = vmatprep.subr.bf16.mxu0 0
      %1226 = vmatpush1.bf16.msra.mxu0 0
      %1227 = vmatprep.subr.bf16.mxu0 0
      %1228 = vmatpush1.bf16.msra.mxu0 0
      %1229 = vmatprep.subr.bf16.mxu0 0
      %1230 = vmatpush1.bf16.msra.mxu0 0
      %1231 = vmatprep.subr.bf16.mxu0 0
      %1232 = vmatpush1.bf16.msra.mxu0 0
      %1233 = vmatprep.subr.bf16.mxu0 0
      %1234 = vmatpush1.bf16.msra.mxu0 0
      %1235 = vmatprep.subr.bf16.mxu0 0
      %1236 = vmatpush1.bf16.msra.mxu0 0
      %1237 = vmatprep.subr.bf16.mxu0 0
      %1238 = vmatpush1.bf16.msra.mxu0 0
      %1239 = vmatprep.subr.bf16.mxu0 0
      %1240 = vmatpush1.bf16.msra.mxu0 0
      %1241 = vmatprep.subr.bf16.mxu0 0
      %1242 = vmatpush1.bf16.msra.mxu0 0
      %1243 = vmatprep.subr.bf16.mxu0 0
      %1244 = vmatpush1.bf16.msra.mxu0 0
      %1245 = vmatprep.subr.bf16.mxu0 0
      %1246 = vmatpush1.bf16.msra.mxu0 0
      %1247 = vmatprep.subr.bf16.mxu0 0
      %1248 = vmatpush1.bf16.msra.mxu0 0
      %1249 = vmatprep.subr.bf16.mxu0 0
      %1250 = vmatpush1.bf16.msra.mxu0 0
      %1251 = vmatprep.subr.bf16.mxu0 0
      %1252 = vmatpush1.bf16.msra.mxu0 0
      %1253 = vmatprep.subr.bf16.mxu0 0
      %1254 = vmatpush1.bf16.msra.mxu0 0
      %1255 = vmatprep.mubr.bf16.mxu0 0
      %1256 = vmatmul.mubr.bf16.gmra.mrb[0].mxu0 %v1215
      %v1257 = vpop.f32.mrb[0].mxu0
      %v1258 = vadd.f32 0.0, %v1257
      %v1259 = vpop.f32.mrb[0].mxu0
      %v1260 = vpop.f32.mrb[0].mxu0
      %v1261 = vadd.f32 0.0, %v1260
      %v1262 = vpop.f32.mrb[0].mxu0
      %1263 = vmatprep.mubr.bf16.mxu0 0
      %1264 = vmatmul.mubr.bf16.gmra.mrb[0].mxu0 %v1218
      %v1265 = vpop.f32.mrb[0].mxu0
      %v1266 = vadd.f32 0.0, %v1265
      %v1267 = vpop.f32.mrb[0].mxu0
      %v1268 = vpop.f32.mrb[0].mxu0
      %v1269 = vpop.f32.mrb[0].mxu0
      %1270 = vdwg.mxu0
      %v1271 = vadd.f32 %v1204, %v1258
      %v1272 = vadd.f32 %v1205, %v1261
      %v1273 = vadd.f32 %v1206, %v1266
      %v1274 = vld [vmem:[%s2] sm:$0x1]
      %v1276 = vlaneseq
      %v1277 = vshrl.u32 %v1276, 7
      %v1278 = vsub.s32 0, %v1277
      %v1279 = vrot.slane %v1274, %v1278
      %v1281 = vadd.f32 %v1271, %v1279
      %v1282 = vadd.f32 %v1272, %v1279
      %v1283 = vadd.f32 %v1273, %v1279
      %v1284 = vld [vmem:[%s3] sm:$0xff]
      %v1285 = vld [vmem:[%s3 + $0x8] sm:$0xff]
      %v1286 = vld [vmem:[%s3 + $0x10] sm:$0xf]
      %1288 = vset.pattern.permute.xlu0 0
      %1289 = vperm.xlu0 %1288, %v1284
      %v1290 = vpop.permute.xlu0 %1289
      %1293 = vset.pattern.permute.xlu0 0
      %1294 = vperm.xlu0 %1293, %v1285
      %v1295 = vpop.permute.xlu0 %1294
      %1298 = vset.pattern.permute.xlu0 0
      %1299 = vperm.xlu0 %1298, %v1286
      %v1300 = vpop.permute.xlu0 %1299
      %v1302 = vmul.f32 %v1281, %v1290
      %v1303 = vmul.f32 %v1282, %v1295
      %v1304 = vmul.f32 %v1283, %v1300
      %v1305 = vadd.f32 %v1302, %v1303
      %v1306 = vsel %vm225, %v1304, 0.0
      %v1307 = vadd.f32 %v1305, %v1306
      %v1308 = vrot.slane %v1307, 4
      %v1309 = vadd.f32 %v1307, %v1308
      %v1310 = vrot.slane %v1309, 2
      %v1311 = vadd.f32 %v1309, %v1310
      %v1312 = vrot.slane %v1311, 1
      %v1313 = vadd.f32 %v1311, %v1312
      %v1314 = vmul.f32 %v1313, 0.0625
      %v1315 = vmul.f32 %v1281, %v1281
      %v1316 = vmul.f32 %v1282, %v1282
      %v1317 = vmul.f32 %v1283, %v1283
      %v1318 = vmul.f32 %v1315, %v1290
      %v1319 = vmul.f32 %v1316, %v1295
      %v1320 = vmul.f32 %v1317, %v1300
      %v1321 = vadd.f32 %v1318, %v1319
      %v1322 = vsel %vm225, %v1320, 0.0
      %v1323 = vadd.f32 %v1321, %v1322
      %v1324 = vrot.slane %v1323, 4
      %v1325 = vadd.f32 %v1323, %v1324
      %v1326 = vrot.slane %v1325, 2
      %v1327 = vadd.f32 %v1325, %v1326
      %v1328 = vrot.slane %v1327, 1
      %v1329 = vadd.f32 %v1327, %v1328
      %v1330 = vmul.f32 %v1329, 0.0625
      %v1331 = vmul.f32 %v1314, %v1314
      %v1332 = vsub.f32 %v1330, %v1331
      %v1333 = vmax.f32 %v1332, 0.0
      %v1334 = vsub.f32 %v1281, %v1314
      %v1335 = vsub.f32 %v1282, %v1314
      %v1336 = vsub.f32 %v1283, %v1314
      %v1337 = vadd.f32 %v1333, 1e-05
      %v1338 = vrsqrt.pop %v1337
      %v1339 = vmul.f32 %v1334, %v1338
      %v1340 = vmul.f32 %v1335, %v1338
      %v1341 = vmul.f32 %v1336, %v1338
      %vm1342 = vcmp.ge.f32.partialorder %v1339, 0.0
      %vm1343 = vcmp.ge.f32.partialorder %v1340, 0.0
      %vm1344 = vcmp.ge.f32.partialorder %v1341, 0.0
      %v1345 = vmul.f32 %v1339, 0.2
      %v1346 = vmul.f32 %v1340, 0.2
      %v1347 = vmul.f32 %v1341, 0.2
      %v1348 = vsel %vm1342, %v1339, %v1345
      %v1349 = vsel %vm1343, %v1340, %v1346
      %v1350 = vsel %vm1344, %v1341, %v1347
      %1351 = vst [vmem:[%s202] sm:$0xff] %v1348
      %1352 = vst [vmem:[%s202 + $0x8] sm:$0xff] %v1349
      %1353 = vst [vmem:[%s202 + $0x10] sm:$0xf] %v1350
      %p1354 = scmp.lt.s32.totalorder %s15, 1
      %s1355 = scalar_select %p1354, %s15, 1
      %s1356 = smul.addr %s1355, 3
      %s1357 = smul.addr %s1356, 8
      %s1358 = scalar_lea.vmem %s4, %s1357
      // Predicated region
      $region37: #{_lambda_.5} parent=35 // pred_check
        %p1359 = pneg %p122
      $region38: #{_lambda_.5} parent=35 // pred_check_branch
        %1361 = sbr.rel (%p1359) target = $region40
      $region39: #{_lambda_.5} parent=35 // pred_region
        _
      $region40: #{_lambda_.5} parent=35 // pred_fallthru
        _
    $region36: #{_lambda_.5} parent=5 // pred_fallthru
      _
    %p1362 = scmp.le.s32.totalorder 2, %s10
    // Predicated region
    $region41: #{_lambda_.5} parent=5 // pred_check
      %p1363 = pneg %p1362
    $region42: #{_lambda_.5} parent=5 // pred_check_branch
      %1365 = sbr.rel (%p1363) target = $region44
    $region43: #{_lambda_.5} parent=5 // pred_region
      %s1366 = ssub.s32 %s10, 2
      // Predicated region
      $region45: #{_lambda_.5} parent=43 // pred_check
        %p1367 = pneg %p128
      $region46: #{_lambda_.5} parent=43 // pred_check_branch
        %1369 = sbr.rel (%p1367) target = $region48
      $region47: #{_lambda_.5} parent=43 // pred_region
        %p1370 = scmp.lt.s32.totalorder %s16, 1
        %s1371 = scalar_select %p1370, %s16, 1
        %s1372 = smul.addr %s1371, 3
        %s1373 = smul.addr %s1372, 8
        %s1374 = scalar_lea.vmem %s4, %s1373
      $region48: #{_lambda_.5} parent=43 // pred_fallthru
        _
    $region44: #{_lambda_.5} parent=5 // pred_fallthru
      _
  $region6: #{_lambda_.5} parent=0 // loop_footer
    %s14 = sadd.s32 1, %s10
  $region7: #{_lambda_.5} parent=0 // loop_footer_branch
    %9 = sbr.rel target = $region3
  $region8: #{_lambda_.5} parent=0 // loop_exit
    _

// kernel: _lambda_.6
$region0: #{_lambda_.6}
  #allocation0 [shape = 'u32[]', space=smem, size = 0x4, offset = 0x4, fixed_abs, tag = 'smem constant byte address 0x4 - core index']
  #allocation1 [shape = 'u32[144,128]{1,0:T(1,128)}', space=vmem, size = 0x12000, scoped, tag = 'internal scratch']
  %s0 = inlined_call_operand.vmem [shape: f32[2,39,16], index: 0, kind: input, shape index: {}]
  %s1 = inlined_call_operand.vmem [shape: bf16[16,16,128], index: 1, kind: input, shape index: {}]
  %s2 = inlined_call_operand.vmem [shape: f32[1,128], index: 2, kind: input, shape index: {}]
  %s3 = inlined_call_operand.vmem [shape: f32[18,1], index: 3, kind: input, shape index: {}]
  %s4 = inlined_call_operand.vmem [shape: f32[2,18,128], index: 4, kind: output, shape index: {}]
  %s5 = sld [smem:[#allocation0]]
  $region49: #{_lambda_.6} parent=0
    _
  %s7 = ssub.s32 1, %s5
  %s8 = scalar_select 0, %s7, %s5
  loop: start=0, step=1, limit=4
  $region2: #{_lambda_.6} parent=0 // loop_pre_header
    _
  $region3: #{_lambda_.6} parent=0 // loop_header
    %s10 = sphi 0, %s14
    %p11 = scmp.ge.s32.totalorder %s10, 4
    %s20 = sphi 0, %s22
    %s23 = sphi 0, %s20
    %s24 = sphi 0, %s23
    %s40 = sphi 0, %s24
    %s44 = sphi 0, %s44
    %s46 = sphi 0, %s44
    %s47 = sphi 0, %s46
    %s61 = sphi 0, %s47
    %s65 = sphi 0, %s65
    %s67 = sphi 0, %s65
    %s68 = sphi 0, %s67
    %s82 = sphi 0, %s68
    %s86 = sphi 0, %s86
    %s88 = sphi 0, %s86
    %s89 = sphi 0, %s88
    %s103 = sphi 0, %s89
    %s109 = sphi 0, %s111
    %s112 = sphi 0, %s109
    %s113 = sphi 0, %s112
    %s129 = sphi 0, %s113
  $region4: #{_lambda_.6} parent=0 // loop_header_branch
    %13 = sbr.rel (%p11) target = $region8
  $region5: #{_lambda_.6} parent=0 // loop_body
    %s15 = ssub.s32 %s10, 1
    %s16 = ssub.s32 %s10, 2
    %s17 = sadd.s32 %s10, 1
    %s18 = ssub.s32 %s10, %s17
    %p19 = scmp.eq.s32.totalorder %s18, 0
    %s21 = sadd.s32 %s20, 1
    %s22 = scalar_select %p19, %s20, %s21
    %p25 = pneg %p19
    %p26 = scmp.eq.s32.totalorder %s10, 1
    %p27 = por %p25, %p26
    %p28 = scmp.ne.s32.totalorder %s20, %s23
    %p29 = scmp.eq.s32.totalorder %s10, 0
    %p30 = por %p28, %p29
    %p31 = scmp.ne.s32.totalorder %s20, %s23
    %p32 = scmp.eq.s32.totalorder %s15, 1
    %p33 = por %p31, %p32
    %p34 = scmp.ne.s32.totalorder %s23, %s24
    %p35 = scmp.eq.s32.totalorder %s15, 0
    %p36 = por %p34, %p35
    %p37 = scmp.ne.s32.totalorder %s23, %s24
    %p38 = scmp.eq.s32.totalorder %s16, 1
    %p39 = por %p37, %p38
    %p41 = scmp.ne.s32.totalorder %s24, %s40
    %p42 = scmp.eq.s32.totalorder %s16, 0
    %p43 = por %p41, %p42
    %s45 = sadd.s32 %s44, 1
    %p48 = scmp.eq.s32.totalorder %s10, 1
    %p49 = scmp.ne.s32.totalorder %s44, %s46
    %p50 = scmp.eq.s32.totalorder %s10, 0
    %p51 = por %p49, %p50
    %p52 = scmp.ne.s32.totalorder %s44, %s46
    %p53 = scmp.eq.s32.totalorder %s15, 1
    %p54 = por %p52, %p53
    %p55 = scmp.ne.s32.totalorder %s46, %s47
    %p56 = scmp.eq.s32.totalorder %s15, 0
    %p57 = por %p55, %p56
    %p58 = scmp.ne.s32.totalorder %s46, %s47
    %p59 = scmp.eq.s32.totalorder %s16, 1
    %p60 = por %p58, %p59
    %p62 = scmp.ne.s32.totalorder %s47, %s61
    %p63 = scmp.eq.s32.totalorder %s16, 0
    %p64 = por %p62, %p63
    %s66 = sadd.s32 %s65, 1
    %p69 = scmp.eq.s32.totalorder %s10, 1
    %p70 = scmp.ne.s32.totalorder %s65, %s67
    %p71 = scmp.eq.s32.totalorder %s10, 0
    %p72 = por %p70, %p71
    %p73 = scmp.ne.s32.totalorder %s65, %s67
    %p74 = scmp.eq.s32.totalorder %s15, 1
    %p75 = por %p73, %p74
    %p76 = scmp.ne.s32.totalorder %s67, %s68
    %p77 = scmp.eq.s32.totalorder %s15, 0
    %p78 = por %p76, %p77
    %p79 = scmp.ne.s32.totalorder %s67, %s68
    %p80 = scmp.eq.s32.totalorder %s16, 1
    %p81 = por %p79, %p80
    %p83 = scmp.ne.s32.totalorder %s68, %s82
    %p84 = scmp.eq.s32.totalorder %s16, 0
    %p85 = por %p83, %p84
    %s87 = sadd.s32 %s86, 1
    %p90 = scmp.eq.s32.totalorder %s10, 1
    %p91 = scmp.ne.s32.totalorder %s86, %s88
    %p92 = scmp.eq.s32.totalorder %s10, 0
    %p93 = por %p91, %p92
    %p94 = scmp.ne.s32.totalorder %s86, %s88
    %p95 = scmp.eq.s32.totalorder %s15, 1
    %p96 = por %p94, %p95
    %p97 = scmp.ne.s32.totalorder %s88, %s89
    %p98 = scmp.eq.s32.totalorder %s15, 0
    %p99 = por %p97, %p98
    %p100 = scmp.ne.s32.totalorder %s88, %s89
    %p101 = scmp.eq.s32.totalorder %s16, 1
    %p102 = por %p100, %p101
    %p104 = scmp.ne.s32.totalorder %s89, %s103
    %p105 = scmp.eq.s32.totalorder %s16, 0
    %p106 = por %p104, %p105
    %s107 = ssub.s32 %s10, %s17
    %p108 = scmp.eq.s32.totalorder %s107, 0
    %s110 = sadd.s32 %s109, 1
    %s111 = scalar_select %p108, %s109, %s110
    %p114 = pneg %p108
    %p115 = scmp.eq.s32.totalorder %s10, 1
    %p116 = por %p114, %p115
    %p117 = scmp.ne.s32.totalorder %s109, %s112
    %p118 = scmp.eq.s32.totalorder %s10, 0
    %p119 = por %p117, %p118
    %p120 = scmp.ne.s32.totalorder %s109, %s112
    %p121 = scmp.eq.s32.totalorder %s15, 1
    %p122 = por %p120, %p121
    %p123 = scmp.ne.s32.totalorder %s112, %s113
    %p124 = scmp.eq.s32.totalorder %s15, 0
    %p125 = por %p123, %p124
    %p126 = scmp.ne.s32.totalorder %s112, %s113
    %p127 = scmp.eq.s32.totalorder %s16, 1
    %p128 = por %p126, %p127
    %p130 = scmp.ne.s32.totalorder %s113, %s129
    %p131 = scmp.eq.s32.totalorder %s16, 0
    %p132 = por %p130, %p131
    %p133 = scmp.le.s32.totalorder 1, %s10
    %p134 = scmp.lt.s32.totalorder %s10, 3
    %p135 = pnand %p133, %p134
    %p136 = pneg %p135
    // Predicated region
    $region9: #{_lambda_.6} parent=5 // pred_check
      _
    $region10: #{_lambda_.6} parent=5 // pred_check_branch
      %138 = sbr.rel (%p135) target = $region12
    $region11: #{_lambda_.6} parent=5 // pred_region
      %s139 = ssub.s32 %s10, 1
      // Predicated region
      $region13: #{_lambda_.6} parent=11 // pred_check
        %p140 = pneg %p57
      $region14: #{_lambda_.6} parent=11 // pred_check_branch
        %142 = sbr.rel (%p140) target = $region16
      $region15: #{_lambda_.6} parent=11 // pred_region
        _
      $region16: #{_lambda_.6} parent=11 // pred_fallthru
        _
      // Predicated region
      $region17: #{_lambda_.6} parent=11 // pred_check
        %p143 = pneg %p78
      $region18: #{_lambda_.6} parent=11 // pred_check_branch
        %145 = sbr.rel (%p143) target = $region20
      $region19: #{_lambda_.6} parent=11 // pred_region
        _
      $region20: #{_lambda_.6} parent=11 // pred_fallthru
        _
      // Predicated region
      $region21: #{_lambda_.6} parent=11 // pred_check
        %p146 = pneg %p99
      $region22: #{_lambda_.6} parent=11 // pred_check_branch
        %148 = sbr.rel (%p146) target = $region24
      $region23: #{_lambda_.6} parent=11 // pred_region
        _
      $region24: #{_lambda_.6} parent=11 // pred_fallthru
        _
    $region12: #{_lambda_.6} parent=5 // pred_fallthru
      _
    %p149 = scmp.lt.s32.totalorder %s10, 2
    // Predicated region
    $region25: #{_lambda_.6} parent=5 // pred_check
      %p150 = pneg %p149
    $region26: #{_lambda_.6} parent=5 // pred_check_branch
      %152 = sbr.rel (%p150) target = $region28
    $region27: #{_lambda_.6} parent=5 // pred_region
      // Predicated region
      $region29: #{_lambda_.6} parent=27 // pred_check
        %p153 = pneg %p30
      $region30: #{_lambda_.6} parent=27 // pred_check_branch
        %155 = sbr.rel (%p153) target = $region32
      $region31: #{_lambda_.6} parent=27 // pred_region
        %p156 = scmp.lt.s32.totalorder %s10, 1
        %s157 = scalar_select %p156, %s10, 1
        %s158 = smul.addr %s157, 5
        %s159 = smul.addr %s158, 8
        %s160 = scalar_lea.vmem %s0, %s159
      $region32: #{_lambda_.6} parent=27 // pred_fallthru
        _
    $region28: #{_lambda_.6} parent=5 // pred_fallthru
      _
    %p161 = scmp.le.s32.totalorder 1, %s10
    %p162 = scmp.lt.s32.totalorder %s10, 3
    %p163 = pnand %p161, %p162
    %p164 = pneg %p163
    // Predicated region
    $region33: #{_lambda_.6} parent=5 // pred_check
      _
    $region34: #{_lambda_.6} parent=5 // pred_check_branch
      %166 = sbr.rel (%p163) target = $region36
    $region35: #{_lambda_.6} parent=5 // pred_region
      %s167 = ssub.s32 %s10, 1
      %p168 = scmp.lt.s32.totalorder %s15, 1
      %s169 = scalar_select %p168, %s15, 1
      %s170 = smul.addr %s169, 5
      %s171 = smul.addr %s170, 8
      %s172 = scalar_lea.vmem %s0, %s171
      %p173 = pneg %p36
      %p174 = pneg %p33
      %p175 = pneg %p57
      %p176 = pneg %p54
      %p177 = pneg %p78
      %p178 = pneg %p75
      %p179 = pneg %p99
      %p180 = pneg %p96
      %p181 = pneg %p125
      %p182 = pneg %p122
      %p183 = scmp.lt.s32.totalorder %s15, 1
      %s184 = scalar_select %p183, %s15, 1
      %s185 = smul.addr %s184, 3
      %s186 = smul.addr %s185, 8
      %s187 = scalar_lea.vmem %s4, %s186
      %p188 = scmp.lt.s32.totalorder %s15, 1
      %s189 = scalar_select %p188, %s15, 1
      %s190 = smul.addr %s189, 5
      %s191 = smul.addr %s190, 8
      %s192 = scalar_lea.vmem %s0, %s191
      %p193 = scmp.lt.s32.totalorder %s15, 1
      %s194 = scalar_select %p193, %s15, 1
      %s195 = smul.addr %s194, 3
      %s196 = smul.addr %s195, 8
      %s197 = scalar_lea.vmem %s4, %s196
      %v199 = vld [vmem:[%s192] sm:$0xff]
      %v200 = vld [vmem:[%s192 + $0x8] sm:$0xff]
      %v201 = vld [vmem:[%s192 + $0x10] sm:$0x3]
      %v202 = vpack.c.bf16 %v200, %v199
      %v203 = vpack.c.bf16 %v201, %v201
      %v204 = vld [vmem:[%s1] sm:$0xf]
      %v205 = vld [vmem:[%s1 + $0x4] sm:$0xf]
      %v206 = vld [vmem:[%s192 + $0x1] sm:$0xff]
      %v207 = vld [vmem:[%s192 + $0x9] sm:$0xff]
      %v208 = vld [vmem:[%s192 + $0x11] sm:$0x3]
      %v209 = vpack.c.bf16 %v207, %v206
      %v210 = vpack.c.bf16 %v208, %v208
      %s211 = scalar_lea.vmem %s1, 8
      %v212 = vld [vmem:[%s211] sm:$0xf]
      %v213 = vld [vmem:[%s211 + $0x4] sm:$0xf]
      %v216 = vunpack.c.l.b16 %v212
      %v217 = vunpack.c.l.b16 %v213
      %v218 = vpack.c.b16 %v217, %v216
      %vm220 = vcmask 130048
      %v222 = vsel %vm220, %v209, 0
      %v225 = vsel %vm220, %v210, 0
      %227 = vmatprep.subr.bf16.mxu0 0
      %228 = vmatpush1.bf16.msra.mxu0 %v218
      %229 = vmatprep.subr.bf16.mxu0 0
      %230 = vmatpush1.bf16.msra.mxu0 0
      %231 = vmatprep.subr.bf16.mxu0 0
      %232 = vmatpush1.bf16.msra.mxu0 0
      %233 = vmatprep.subr.bf16.mxu0 0
      %234 = vmatpush1.bf16.msra.mxu0 0
      %235 = vmatprep.subr.bf16.mxu0 0
      %236 = vmatpush1.bf16.msra.mxu0 0
      %237 = vmatprep.subr.bf16.mxu0 0
      %238 = vmatpush1.bf16.msra.mxu0 0
      %239 = vmatprep.subr.bf16.mxu0 0
      %240 = vmatpush1.bf16.msra.mxu0 0
      %241 = vmatprep.subr.bf16.mxu0 0
      %242 = vmatpush1.bf16.msra.mxu0 0
      %243 = vmatprep.subr.bf16.mxu0 0
      %244 = vmatpush1.bf16.msra.mxu0 0
      %245 = vmatprep.subr.bf16.mxu0 0
      %246 = vmatpush1.bf16.msra.mxu0 0
      %247 = vmatprep.subr.bf16.mxu0 0
      %248 = vmatpush1.bf16.msra.mxu0 0
      %249 = vmatprep.subr.bf16.mxu0 0
      %250 = vmatpush1.bf16.msra.mxu0 0
      %251 = vmatprep.subr.bf16.mxu0 0
      %252 = vmatpush1.bf16.msra.mxu0 0
      %253 = vmatprep.subr.bf16.mxu0 0
      %254 = vmatpush1.bf16.msra.mxu0 0
      %255 = vmatprep.subr.bf16.mxu0 0
      %256 = vmatpush1.bf16.msra.mxu0 0
      %257 = vmatprep.subr.bf16.mxu0 0
      %258 = vmatpush1.bf16.msra.mxu0 0
      %259 = vmatprep.mubr.bf16.mxu0 0
      %260 = vmatmul.mubr.bf16.gmra.mrb[0].mxu0 %v222
      %v261 = vpop.f32.mrb[0].mxu0
      %v262 = vadd.f32 0.0, %v261
      %v263 = vpop.f32.mrb[0].mxu0
      %v264 = vpop.f32.mrb[0].mxu0
      %v265 = vadd.f32 0.0, %v264
      %v266 = vpop.f32.mrb[0].mxu0
      %267 = vmatprep.mubr.bf16.mxu0 0
      %268 = vmatmul.mubr.bf16.gmra.mrb[0].mxu0 %v225
      %v269 = vpop.f32.mrb[0].mxu0
      %v270 = vadd.f32 0.0, %v269
      %v271 = vpop.f32.mrb[0].mxu0
      %v272 = vpop.f32.mrb[0].mxu0
      %v273 = vpop.f32.mrb[0].mxu0
      %274 = vdwg.mxu0
      %v277 = vunpack.c.l.b16 %v204
      %v278 = vunpack.c.l.b16 %v205
      %v279 = vpack.c.b16 %v278, %v277
      %v282 = vsel %vm220, %v202, 0
      %v285 = vsel %vm220, %v203, 0
      %287 = vmatprep.subr.bf16.mxu0 0
      %288 = vmatpush1.bf16.msra.mxu0 %v279
      %289 = vmatprep.subr.bf16.mxu0 0
      %290 = vmatpush1.bf16.msra.mxu0 0
      %291 = vmatprep.subr.bf16.mxu0 0
      %292 = vmatpush1.bf16.msra.mxu0 0
      %293 = vmatprep.subr.bf16.mxu0 0
      %294 = vmatpush1.bf16.msra.mxu0 0
      %295 = vmatprep.subr.bf16.mxu0 0
      %296 = vmatpush1.bf16.msra.mxu0 0
      %297 = vmatprep.subr.bf16.mxu0 0
      %298 = vmatpush1.bf16.msra.mxu0 0
      %299 = vmatprep.subr.bf16.mxu0 0
      %300 = vmatpush1.bf16.msra.mxu0 0
      %301 = vmatprep.subr.bf16.mxu0 0
      %302 = vmatpush1.bf16.msra.mxu0 0
      %303 = vmatprep.subr.bf16.mxu0 0
      %304 = vmatpush1.bf16.msra.mxu0 0
      %305 = vmatprep.subr.bf16.mxu0 0
      %306 = vmatpush1.bf16.msra.mxu0 0
      %307 = vmatprep.subr.bf16.mxu0 0
      %308 = vmatpush1.bf16.msra.mxu0 0
      %309 = vmatprep.subr.bf16.mxu0 0
      %310 = vmatpush1.bf16.msra.mxu0 0
      %311 = vmatprep.subr.bf16.mxu0 0
      %312 = vmatpush1.bf16.msra.mxu0 0
      %313 = vmatprep.subr.bf16.mxu0 0
      %314 = vmatpush1.bf16.msra.mxu0 0
      %315 = vmatprep.subr.bf16.mxu0 0
      %316 = vmatpush1.bf16.msra.mxu0 0
      %317 = vmatprep.subr.bf16.mxu0 0
      %318 = vmatpush1.bf16.msra.mxu0 0
      %319 = vmatprep.mubr.bf16.mxu0 0
      %320 = vmatmul.mubr.bf16.gmra.mrb[0].mxu0 %v282
      %v321 = vpop.f32.mrb[0].mxu0
      %v322 = vadd.f32 %v262, %v321
      %v323 = vpop.f32.mrb[0].mxu0
      %v324 = vpop.f32.mrb[0].mxu0
      %v325 = vadd.f32 %v265, %v324
      %v326 = vpop.f32.mrb[0].mxu0
      %327 = vmatprep.mubr.bf16.mxu0 0
      %328 = vmatmul.mubr.bf16.gmra.mrb[0].mxu0 %v285
      %v329 = vpop.f32.mrb[0].mxu0
      %v330 = vadd.f32 %v270, %v329
      %v331 = vpop.f32.mrb[0].mxu0
      %v332 = vpop.f32.mrb[0].mxu0
      %v333 = vpop.f32.mrb[0].mxu0
      %334 = vdwg.mxu0
      %v335 = vld [vmem:[%s192 + $0x2] sm:$0xff]
      %v336 = vld [vmem:[%s192 + $0xa] sm:$0xff]
      %v337 = vld [vmem:[%s192 + $0x12] sm:$0x3]
      %v338 = vpack.c.bf16 %v336, %v335
      %v339 = vpack.c.bf16 %v337, %v337
      %s340 = scalar_lea.vmem %s1, 16
      %v341 = vld [vmem:[%s340] sm:$0xf]
      %v342 = vld [vmem:[%s340 + $0x4] sm:$0xf]
      %v345 = vunpack.c.l.b16 %v341
      %v346 = vunpack.c.l.b16 %v342
      %v347 = vpack.c.b16 %v346, %v345
      %v350 = vsel %vm220, %v338, 0
      %v353 = vsel %vm220, %v339, 0
      %355 = vmatprep.subr.bf16.mxu0 0
      %356 = vmatpush1.bf16.msra.mxu0 %v347
      %357 = vmatprep.subr.bf16.mxu0 0
      %358 = vmatpush1.bf16.msra.mxu0 0
      %359 = vmatprep.subr.bf16.mxu0 0
      %360 = vmatpush1.bf16.msra.mxu0 0
      %361 = vmatprep.subr.bf16.mxu0 0
      %362 = vmatpush1.bf16.msra.mxu0 0
      %363 = vmatprep.subr.bf16.mxu0 0
      %364 = vmatpush1.bf16.msra.mxu0 0
      %365 = vmatprep.subr.bf16.mxu0 0
      %366 = vmatpush1.bf16.msra.mxu0 0
      %367 = vmatprep.subr.bf16.mxu0 0
      %368 = vmatpush1.bf16.msra.mxu0 0
      %369 = vmatprep.subr.bf16.mxu0 0
      %370 = vmatpush1.bf16.msra.mxu0 0
      %371 = vmatprep.subr.bf16.mxu0 0
      %372 = vmatpush1.bf16.msra.mxu0 0
      %373 = vmatprep.subr.bf16.mxu0 0
      %374 = vmatpush1.bf16.msra.mxu0 0
      %375 = vmatprep.subr.bf16.mxu0 0
      %376 = vmatpush1.bf16.msra.mxu0 0
      %377 = vmatprep.subr.bf16.mxu0 0
      %378 = vmatpush1.bf16.msra.mxu0 0
      %379 = vmatprep.subr.bf16.mxu0 0
      %380 = vmatpush1.bf16.msra.mxu0 0
      %381 = vmatprep.subr.bf16.mxu0 0
      %382 = vmatpush1.bf16.msra.mxu0 0
      %383 = vmatprep.subr.bf16.mxu0 0
      %384 = vmatpush1.bf16.msra.mxu0 0
      %385 = vmatprep.subr.bf16.mxu0 0
      %386 = vmatpush1.bf16.msra.mxu0 0
      %387 = vmatprep.mubr.bf16.mxu0 0
      %388 = vmatmul.mubr.bf16.gmra.mrb[0].mxu0 %v350
      %v389 = vpop.f32.mrb[0].mxu0
      %v390 = vadd.f32 0.0, %v389
      %v391 = vpop.f32.mrb[0].mxu0
      %v392 = vpop.f32.mrb[0].mxu0
      %v393 = vadd.f32 0.0, %v392
      %v394 = vpop.f32.mrb[0].mxu0
      %395 = vmatprep.mubr.bf16.mxu0 0
      %396 = vmatmul.mubr.bf16.gmra.mrb[0].mxu0 %v353
      %v397 = vpop.f32.mrb[0].mxu0
      %v398 = vadd.f32 0.0, %v397
      %v399 = vpop.f32.mrb[0].mxu0
      %v400 = vpop.f32.mrb[0].mxu0
      %v401 = vpop.f32.mrb[0].mxu0
      %402 = vdwg.mxu0
      %v403 = vadd.f32 %v322, %v390
      %v404 = vadd.f32 %v325, %v393
      %v405 = vadd.f32 %v330, %v398
      %v406 = vld [vmem:[%s192 + $0x3] sm:$0xff]
      %v407 = vld [vmem:[%s192 + $0xb] sm:$0xff]
      %v408 = vld [vmem:[%s192 + $0x13] sm:$0x3]
      %v409 = vpack.c.bf16 %v407, %v406
      %v410 = vpack.c.bf16 %v408, %v408
      %s411 = scalar_lea.vmem %s1, 24
      %v412 = vld [vmem:[%s411] sm:$0xf]
      %v413 = vld [vmem:[%s411 + $0x4] sm:$0xf]
      %v416 = vunpack.c.l.b16 %v412
      %v417 = vunpack.c.l.b16 %v413
      %v418 = vpack.c.b16 %v417, %v416
      %v421 = vsel %vm220, %v409, 0
      %v424 = vsel %vm220, %v410, 0
      %426 = vmatprep.subr.bf16.mxu0 0
      %427 = vmatpush1.bf16.msra.mxu0 %v418
      %428 = vmatprep.subr.bf16.mxu0 0
      %429 = vmatpush1.bf16.msra.mxu0 0
      %430 = vmatprep.subr.bf16.mxu0 0
      %431 = vmatpush1.bf16.msra.mxu0 0
      %432 = vmatprep.subr.bf16.mxu0 0
      %433 = vmatpush1.bf16.msra.mxu0 0
      %434 = vmatprep.subr.bf16.mxu0 0
      %435 = vmatpush1.bf16.msra.mxu0 0
      %436 = vmatprep.subr.bf16.mxu0 0
      %437 = vmatpush1.bf16.msra.mxu0 0
      %438 = vmatprep.subr.bf16.mxu0 0
      %439 = vmatpush1.bf16.msra.mxu0 0
      %440 = vmatprep.subr.bf16.mxu0 0
      %441 = vmatpush1.bf16.msra.mxu0 0
      %442 = vmatprep.subr.bf16.mxu0 0
      %443 = vmatpush1.bf16.msra.mxu0 0
      %444 = vmatprep.subr.bf16.mxu0 0
      %445 = vmatpush1.bf16.msra.mxu0 0
      %446 = vmatprep.subr.bf16.mxu0 0
      %447 = vmatpush1.bf16.msra.mxu0 0
      %448 = vmatprep.subr.bf16.mxu0 0
      %449 = vmatpush1.bf16.msra.mxu0 0
      %450 = vmatprep.subr.bf16.mxu0 0
      %451 = vmatpush1.bf16.msra.mxu0 0
      %452 = vmatprep.subr.bf16.mxu0 0
      %453 = vmatpush1.bf16.msra.mxu0 0
      %454 = vmatprep.subr.bf16.mxu0 0
      %455 = vmatpush1.bf16.msra.mxu0 0
      %456 = vmatprep.subr.bf16.mxu0 0
      %457 = vmatpush1.bf16.msra.mxu0 0
      %458 = vmatprep.mubr.bf16.mxu0 0
      %459 = vmatmul.mubr.bf16.gmra.mrb[0].mxu0 %v421
      %v460 = vpop.f32.mrb[0].mxu0
      %v461 = vadd.f32 0.0, %v460
      %v462 = vpop.f32.mrb[0].mxu0
      %v463 = vpop.f32.mrb[0].mxu0
      %v464 = vadd.f32 0.0, %v463
      %v465 = vpop.f32.mrb[0].mxu0
      %466 = vmatprep.mubr.bf16.mxu0 0
      %467 = vmatmul.mubr.bf16.gmra.mrb[0].mxu0 %v424
      %v468 = vpop.f32.mrb[0].mxu0
      %v469 = vadd.f32 0.0, %v468
      %v470 = vpop.f32.mrb[0].mxu0
      %v471 = vpop.f32.mrb[0].mxu0
      %v472 = vpop.f32.mrb[0].mxu0
      %473 = vdwg.mxu0
      %v474 = vadd.f32 %v403, %v461
      %v475 = vadd.f32 %v404, %v464
      %v476 = vadd.f32 %v405, %v469
      %v477 = vld [vmem:[%s192 + $0x6] sm:$0xff]
      %v478 = vld [vmem:[%s192 + $0xe] sm:$0xff]
      %v479 = vld [vmem:[%s192 + $0x16] sm:$0x3]
      %v480 = vpack.c.bf16 %v478, %v477
      %v481 = vpack.c.bf16 %v479, %v479
      %s482 = scalar_lea.vmem %s1, 32
      %v483 = vld [vmem:[%s482] sm:$0xf]
      %v484 = vld [vmem:[%s482 + $0x4] sm:$0xf]
      %v487 = vunpack.c.l.b16 %v483
      %v488 = vunpack.c.l.b16 %v484
      %v489 = vpack.c.b16 %v488, %v487
      %v492 = vsel %vm220, %v480, 0
      %v495 = vsel %vm220, %v481, 0
      %497 = vmatprep.subr.bf16.mxu0 0
      %498 = vmatpush1.bf16.msra.mxu0 %v489
      %499 = vmatprep.subr.bf16.mxu0 0
      %500 = vmatpush1.bf16.msra.mxu0 0
      %501 = vmatprep.subr.bf16.mxu0 0
      %502 = vmatpush1.bf16.msra.mxu0 0
      %503 = vmatprep.subr.bf16.mxu0 0
      %504 = vmatpush1.bf16.msra.mxu0 0
      %505 = vmatprep.subr.bf16.mxu0 0
      %506 = vmatpush1.bf16.msra.mxu0 0
      %507 = vmatprep.subr.bf16.mxu0 0
      %508 = vmatpush1.bf16.msra.mxu0 0
      %509 = vmatprep.subr.bf16.mxu0 0
      %510 = vmatpush1.bf16.msra.mxu0 0
      %511 = vmatprep.subr.bf16.mxu0 0
      %512 = vmatpush1.bf16.msra.mxu0 0
      %513 = vmatprep.subr.bf16.mxu0 0
      %514 = vmatpush1.bf16.msra.mxu0 0
      %515 = vmatprep.subr.bf16.mxu0 0
      %516 = vmatpush1.bf16.msra.mxu0 0
      %517 = vmatprep.subr.bf16.mxu0 0
      %518 = vmatpush1.bf16.msra.mxu0 0
      %519 = vmatprep.subr.bf16.mxu0 0
      %520 = vmatpush1.bf16.msra.mxu0 0
      %521 = vmatprep.subr.bf16.mxu0 0
      %522 = vmatpush1.bf16.msra.mxu0 0
      %523 = vmatprep.subr.bf16.mxu0 0
      %524 = vmatpush1.bf16.msra.mxu0 0
      %525 = vmatprep.subr.bf16.mxu0 0
      %526 = vmatpush1.bf16.msra.mxu0 0
      %527 = vmatprep.subr.bf16.mxu0 0
      %528 = vmatpush1.bf16.msra.mxu0 0
      %529 = vmatprep.mubr.bf16.mxu0 0
      %530 = vmatmul.mubr.bf16.gmra.mrb[0].mxu0 %v492
      %v531 = vpop.f32.mrb[0].mxu0
      %v532 = vadd.f32 0.0, %v531
      %v533 = vpop.f32.mrb[0].mxu0
      %v534 = vpop.f32.mrb[0].mxu0
      %v535 = vadd.f32 0.0, %v534
      %v536 = vpop.f32.mrb[0].mxu0
      %537 = vmatprep.mubr.bf16.mxu0 0
      %538 = vmatmul.mubr.bf16.gmra.mrb[0].mxu0 %v495
      %v539 = vpop.f32.mrb[0].mxu0
      %v540 = vadd.f32 0.0, %v539
      %v541 = vpop.f32.mrb[0].mxu0
      %v542 = vpop.f32.mrb[0].mxu0
      %v543 = vpop.f32.mrb[0].mxu0
      %544 = vdwg.mxu0
      %v545 = vadd.f32 %v474, %v532
      %v546 = vadd.f32 %v475, %v535
      %v547 = vadd.f32 %v476, %v540
      %v548 = vld [vmem:[%s192 + $0x7] sm:$0xff]
      %v549 = vld [vmem:[%s192 + $0xf] sm:$0xff]
      %v550 = vld [vmem:[%s192 + $0x17] sm:$0x3]
      %v551 = vpack.c.bf16 %v549, %v548
      %v552 = vpack.c.bf16 %v550, %v550
      %s553 = scalar_lea.vmem %s1, 40
      %v554 = vld [vmem:[%s553] sm:$0xf]
      %v555 = vld [vmem:[%s553 + $0x4] sm:$0xf]
      %v558 = vunpack.c.l.b16 %v554
      %v559 = vunpack.c.l.b16 %v555
      %v560 = vpack.c.b16 %v559, %v558
      %v563 = vsel %vm220, %v551, 0
      %v566 = vsel %vm220, %v552, 0
      %568 = vmatprep.subr.bf16.mxu0 0
      %569 = vmatpush1.bf16.msra.mxu0 %v560
      %570 = vmatprep.subr.bf16.mxu0 0
      %571 = vmatpush1.bf16.msra.mxu0 0
      %572 = vmatprep.subr.bf16.mxu0 0
      %573 = vmatpush1.bf16.msra.mxu0 0
      %574 = vmatprep.subr.bf16.mxu0 0
      %575 = vmatpush1.bf16.msra.mxu0 0
      %576 = vmatprep.subr.bf16.mxu0 0
      %577 = vmatpush1.bf16.msra.mxu0 0
      %578 = vmatprep.subr.bf16.mxu0 0
      %579 = vmatpush1.bf16.msra.mxu0 0
      %580 = vmatprep.subr.bf16.mxu0 0
      %581 = vmatpush1.bf16.msra.mxu0 0
      %582 = vmatprep.subr.bf16.mxu0 0
      %583 = vmatpush1.bf16.msra.mxu0 0
      %584 = vmatprep.subr.bf16.mxu0 0
      %585 = vmatpush1.bf16.msra.mxu0 0
      %586 = vmatprep.subr.bf16.mxu0 0
      %587 = vmatpush1.bf16.msra.mxu0 0
      %588 = vmatprep.subr.bf16.mxu0 0
      %589 = vmatpush1.bf16.msra.mxu0 0
      %590 = vmatprep.subr.bf16.mxu0 0
      %591 = vmatpush1.bf16.msra.mxu0 0
      %592 = vmatprep.subr.bf16.mxu0 0
      %593 = vmatpush1.bf16.msra.mxu0 0
      %594 = vmatprep.subr.bf16.mxu0 0
      %595 = vmatpush1.bf16.msra.mxu0 0
      %596 = vmatprep.subr.bf16.mxu0 0
      %597 = vmatpush1.bf16.msra.mxu0 0
      %598 = vmatprep.subr.bf16.mxu0 0
      %599 = vmatpush1.bf16.msra.mxu0 0
      %600 = vmatprep.mubr.bf16.mxu0 0
      %601 = vmatmul.mubr.bf16.gmra.mrb[0].mxu0 %v563
      %v602 = vpop.f32.mrb[0].mxu0
      %v603 = vadd.f32 0.0, %v602
      %v604 = vpop.f32.mrb[0].mxu0
      %v605 = vpop.f32.mrb[0].mxu0
      %v606 = vadd.f32 0.0, %v605
      %v607 = vpop.f32.mrb[0].mxu0
      %608 = vmatprep.mubr.bf16.mxu0 0
      %609 = vmatmul.mubr.bf16.gmra.mrb[0].mxu0 %v566
      %v610 = vpop.f32.mrb[0].mxu0
      %v611 = vadd.f32 0.0, %v610
      %v612 = vpop.f32.mrb[0].mxu0
      %v613 = vpop.f32.mrb[0].mxu0
      %v614 = vpop.f32.mrb[0].mxu0
      %615 = vdwg.mxu0
      %v616 = vadd.f32 %v545, %v603
      %v617 = vadd.f32 %v546, %v606
      %v618 = vadd.f32 %v547, %v611
      %v619 = vld [vmem:[%s192 + $0x8] sm:$0xff]
      %v620 = vld [vmem:[%s192 + $0x10] sm:$0xff]
      %v621 = vld [vmem:[%s192 + $0x18] sm:$0x3]
      %v622 = vpack.c.bf16 %v620, %v619
      %v623 = vpack.c.bf16 %v621, %v621
      %s624 = scalar_lea.vmem %s1, 48
      %v625 = vld [vmem:[%s624] sm:$0xf]
      %v626 = vld [vmem:[%s624 + $0x4] sm:$0xf]
      %v629 = vunpack.c.l.b16 %v625
      %v630 = vunpack.c.l.b16 %v626
      %v631 = vpack.c.b16 %v630, %v629
      %v634 = vsel %vm220, %v622, 0
      %v637 = vsel %vm220, %v623, 0
      %639 = vmatprep.subr.bf16.mxu0 0
      %640 = vmatpush1.bf16.msra.mxu0 %v631
      %641 = vmatprep.subr.bf16.mxu0 0
      %642 = vmatpush1.bf16.msra.mxu0 0
      %643 = vmatprep.subr.bf16.mxu0 0
      %644 = vmatpush1.bf16.msra.mxu0 0
      %645 = vmatprep.subr.bf16.mxu0 0
      %646 = vmatpush1.bf16.msra.mxu0 0
      %647 = vmatprep.subr.bf16.mxu0 0
      %648 = vmatpush1.bf16.msra.mxu0 0
      %649 = vmatprep.subr.bf16.mxu0 0
      %650 = vmatpush1.bf16.msra.mxu0 0
      %651 = vmatprep.subr.bf16.mxu0 0
      %652 = vmatpush1.bf16.msra.mxu0 0
      %653 = vmatprep.subr.bf16.mxu0 0
      %654 = vmatpush1.bf16.msra.mxu0 0
      %655 = vmatprep.subr.bf16.mxu0 0
      %656 = vmatpush1.bf16.msra.mxu0 0
      %657 = vmatprep.subr.bf16.mxu0 0
      %658 = vmatpush1.bf16.msra.mxu0 0
      %659 = vmatprep.subr.bf16.mxu0 0
      %660 = vmatpush1.bf16.msra.mxu0 0
      %661 = vmatprep.subr.bf16.mxu0 0
      %662 = vmatpush1.bf16.msra.mxu0 0
      %663 = vmatprep.subr.bf16.mxu0 0
      %664 = vmatpush1.bf16.msra.mxu0 0
      %665 = vmatprep.subr.bf16.mxu0 0
      %666 = vmatpush1.bf16.msra.mxu0 0
      %667 = vmatprep.subr.bf16.mxu0 0
      %668 = vmatpush1.bf16.msra.mxu0 0
      %669 = vmatprep.subr.bf16.mxu0 0
      %670 = vmatpush1.bf16.msra.mxu0 0
      %671 = vmatprep.mubr.bf16.mxu0 0
      %672 = vmatmul.mubr.bf16.gmra.mrb[0].mxu0 %v634
      %v673 = vpop.f32.mrb[0].mxu0
      %v674 = vadd.f32 0.0, %v673
      %v675 = vpop.f32.mrb[0].mxu0
      %v676 = vpop.f32.mrb[0].mxu0
      %v677 = vadd.f32 0.0, %v676
      %v678 = vpop.f32.mrb[0].mxu0
      %679 = vmatprep.mubr.bf16.mxu0 0
      %680 = vmatmul.mubr.bf16.gmra.mrb[0].mxu0 %v637
      %v681 = vpop.f32.mrb[0].mxu0
      %v682 = vadd.f32 0.0, %v681
      %v683 = vpop.f32.mrb[0].mxu0
      %v684 = vpop.f32.mrb[0].mxu0
      %v685 = vpop.f32.mrb[0].mxu0
      %686 = vdwg.mxu0
      %v687 = vadd.f32 %v616, %v674
      %v688 = vadd.f32 %v617, %v677
      %v689 = vadd.f32 %v618, %v682
      %v690 = vld [vmem:[%s192 + $0x9] sm:$0xff]
      %v691 = vld [vmem:[%s192 + $0x11] sm:$0xff]
      %v692 = vld [vmem:[%s192 + $0x19] sm:$0x3]
      %v693 = vpack.c.bf16 %v691, %v690
      %v694 = vpack.c.bf16 %v692, %v692
      %s695 = scalar_lea.vmem %s1, 56
      %v696 = vld [vmem:[%s695] sm:$0xf]
      %v697 = vld [vmem:[%s695 + $0x4] sm:$0xf]
      %v700 = vunpack.c.l.b16 %v696
      %v701 = vunpack.c.l.b16 %v697
      %v702 = vpack.c.b16 %v701, %v700
      %v705 = vsel %vm220, %v693, 0
      %v708 = vsel %vm220, %v694, 0
      %710 = vmatprep.subr.bf16.mxu0 0
      %711 = vmatpush1.bf16.msra.mxu0 %v702
      %712 = vmatprep.subr.bf16.mxu0 0
      %713 = vmatpush1.bf16.msra.mxu0 0
      %714 = vmatprep.subr.bf16.mxu0 0
      %715 = vmatpush1.bf16.msra.mxu0 0
      %716 = vmatprep.subr.bf16.mxu0 0
      %717 = vmatpush1.bf16.msra.mxu0 0
      %718 = vmatprep.subr.bf16.mxu0 0
      %719 = vmatpush1.bf16.msra.mxu0 0
      %720 = vmatprep.subr.bf16.mxu0 0
      %721 = vmatpush1.bf16.msra.mxu0 0
      %722 = vmatprep.subr.bf16.mxu0 0
      %723 = vmatpush1.bf16.msra.mxu0 0
      %724 = vmatprep.subr.bf16.mxu0 0
      %725 = vmatpush1.bf16.msra.mxu0 0
      %726 = vmatprep.subr.bf16.mxu0 0
      %727 = vmatpush1.bf16.msra.mxu0 0
      %728 = vmatprep.subr.bf16.mxu0 0
      %729 = vmatpush1.bf16.msra.mxu0 0
      %730 = vmatprep.subr.bf16.mxu0 0
      %731 = vmatpush1.bf16.msra.mxu0 0
      %732 = vmatprep.subr.bf16.mxu0 0
      %733 = vmatpush1.bf16.msra.mxu0 0
      %734 = vmatprep.subr.bf16.mxu0 0
      %735 = vmatpush1.bf16.msra.mxu0 0
      %736 = vmatprep.subr.bf16.mxu0 0
      %737 = vmatpush1.bf16.msra.mxu0 0
      %738 = vmatprep.subr.bf16.mxu0 0
      %739 = vmatpush1.bf16.msra.mxu0 0
      %740 = vmatprep.subr.bf16.mxu0 0
      %741 = vmatpush1.bf16.msra.mxu0 0
      %742 = vmatprep.mubr.bf16.mxu0 0
      %743 = vmatmul.mubr.bf16.gmra.mrb[0].mxu0 %v705
      %v744 = vpop.f32.mrb[0].mxu0
      %v745 = vadd.f32 0.0, %v744
      %v746 = vpop.f32.mrb[0].mxu0
      %v747 = vpop.f32.mrb[0].mxu0
      %v748 = vadd.f32 0.0, %v747
      %v749 = vpop.f32.mrb[0].mxu0
      %750 = vmatprep.mubr.bf16.mxu0 0
      %751 = vmatmul.mubr.bf16.gmra.mrb[0].mxu0 %v708
      %v752 = vpop.f32.mrb[0].mxu0
      %v753 = vadd.f32 0.0, %v752
      %v754 = vpop.f32.mrb[0].mxu0
      %v755 = vpop.f32.mrb[0].mxu0
      %v756 = vpop.f32.mrb[0].mxu0
      %757 = vdwg.mxu0
      %v758 = vadd.f32 %v687, %v745
      %v759 = vadd.f32 %v688, %v748
      %v760 = vadd.f32 %v689, %v753
      %v761 = vld [vmem:[%s192 + $0xc] sm:$0xff]
      %v762 = vld [vmem:[%s192 + $0x14] sm:$0xff]
      %v763 = vld [vmem:[%s192 + $0x1c] sm:$0x3]
      %v764 = vpack.c.bf16 %v762, %v761
      %v765 = vpack.c.bf16 %v763, %v763
      %s766 = scalar_lea.vmem %s1, 64
      %v767 = vld [vmem:[%s766] sm:$0xf]
      %v768 = vld [vmem:[%s766 + $0x4] sm:$0xf]
      %v771 = vunpack.c.l.b16 %v767
      %v772 = vunpack.c.l.b16 %v768
      %v773 = vpack.c.b16 %v772, %v771
      %v776 = vsel %vm220, %v764, 0
      %v779 = vsel %vm220, %v765, 0
      %781 = vmatprep.subr.bf16.mxu0 0
      %782 = vmatpush1.bf16.msra.mxu0 %v773
      %783 = vmatprep.subr.bf16.mxu0 0
      %784 = vmatpush1.bf16.msra.mxu0 0
      %785 = vmatprep.subr.bf16.mxu0 0
      %786 = vmatpush1.bf16.msra.mxu0 0
      %787 = vmatprep.subr.bf16.mxu0 0
      %788 = vmatpush1.bf16.msra.mxu0 0
      %789 = vmatprep.subr.bf16.mxu0 0
      %790 = vmatpush1.bf16.msra.mxu0 0
      %791 = vmatprep.subr.bf16.mxu0 0
      %792 = vmatpush1.bf16.msra.mxu0 0
      %793 = vmatprep.subr.bf16.mxu0 0
      %794 = vmatpush1.bf16.msra.mxu0 0
      %795 = vmatprep.subr.bf16.mxu0 0
      %796 = vmatpush1.bf16.msra.mxu0 0
      %797 = vmatprep.subr.bf16.mxu0 0
      %798 = vmatpush1.bf16.msra.mxu0 0
      %799 = vmatprep.subr.bf16.mxu0 0
      %800 = vmatpush1.bf16.msra.mxu0 0
      %801 = vmatprep.subr.bf16.mxu0 0
      %802 = vmatpush1.bf16.msra.mxu0 0
      %803 = vmatprep.subr.bf16.mxu0 0
      %804 = vmatpush1.bf16.msra.mxu0 0
      %805 = vmatprep.subr.bf16.mxu0 0
      %806 = vmatpush1.bf16.msra.mxu0 0
      %807 = vmatprep.subr.bf16.mxu0 0
      %808 = vmatpush1.bf16.msra.mxu0 0
      %809 = vmatprep.subr.bf16.mxu0 0
      %810 = vmatpush1.bf16.msra.mxu0 0
      %811 = vmatprep.subr.bf16.mxu0 0
      %812 = vmatpush1.bf16.msra.mxu0 0
      %813 = vmatprep.mubr.bf16.mxu0 0
      %814 = vmatmul.mubr.bf16.gmra.mrb[0].mxu0 %v776
      %v815 = vpop.f32.mrb[0].mxu0
      %v816 = vadd.f32 0.0, %v815
      %v817 = vpop.f32.mrb[0].mxu0
      %v818 = vpop.f32.mrb[0].mxu0
      %v819 = vadd.f32 0.0, %v818
      %v820 = vpop.f32.mrb[0].mxu0
      %821 = vmatprep.mubr.bf16.mxu0 0
      %822 = vmatmul.mubr.bf16.gmra.mrb[0].mxu0 %v779
      %v823 = vpop.f32.mrb[0].mxu0
      %v824 = vadd.f32 0.0, %v823
      %v825 = vpop.f32.mrb[0].mxu0
      %v826 = vpop.f32.mrb[0].mxu0
      %v827 = vpop.f32.mrb[0].mxu0
      %828 = vdwg.mxu0
      %v829 = vadd.f32 %v758, %v816
      %v830 = vadd.f32 %v759, %v819
      %v831 = vadd.f32 %v760, %v824
      %v832 = vld [vmem:[%s192 + $0xd] sm:$0xff]
      %v833 = vld [vmem:[%s192 + $0x15] sm:$0xff]
      %v834 = vld [vmem:[%s192 + $0x1d] sm:$0x3]
      %v835 = vpack.c.bf16 %v833, %v832
      %v836 = vpack.c.bf16 %v834, %v834
      %s837 = scalar_lea.vmem %s1, 72
      %v838 = vld [vmem:[%s837] sm:$0xf]
      %v839 = vld [vmem:[%s837 + $0x4] sm:$0xf]
      %v842 = vunpack.c.l.b16 %v838
      %v843 = vunpack.c.l.b16 %v839
      %v844 = vpack.c.b16 %v843, %v842
      %v847 = vsel %vm220, %v835, 0
      %v850 = vsel %vm220, %v836, 0
      %852 = vmatprep.subr.bf16.mxu0 0
      %853 = vmatpush1.bf16.msra.mxu0 %v844
      %854 = vmatprep.subr.bf16.mxu0 0
      %855 = vmatpush1.bf16.msra.mxu0 0
      %856 = vmatprep.subr.bf16.mxu0 0
      %857 = vmatpush1.bf16.msra.mxu0 0
      %858 = vmatprep.subr.bf16.mxu0 0
      %859 = vmatpush1.bf16.msra.mxu0 0
      %860 = vmatprep.subr.bf16.mxu0 0
      %861 = vmatpush1.bf16.msra.mxu0 0
      %862 = vmatprep.subr.bf16.mxu0 0
      %863 = vmatpush1.bf16.msra.mxu0 0
      %864 = vmatprep.subr.bf16.mxu0 0
      %865 = vmatpush1.bf16.msra.mxu0 0
      %866 = vmatprep.subr.bf16.mxu0 0
      %867 = vmatpush1.bf16.msra.mxu0 0
      %868 = vmatprep.subr.bf16.mxu0 0
      %869 = vmatpush1.bf16.msra.mxu0 0
      %870 = vmatprep.subr.bf16.mxu0 0
      %871 = vmatpush1.bf16.msra.mxu0 0
      %872 = vmatprep.subr.bf16.mxu0 0
      %873 = vmatpush1.bf16.msra.mxu0 0
      %874 = vmatprep.subr.bf16.mxu0 0
      %875 = vmatpush1.bf16.msra.mxu0 0
      %876 = vmatprep.subr.bf16.mxu0 0
      %877 = vmatpush1.bf16.msra.mxu0 0
      %878 = vmatprep.subr.bf16.mxu0 0
      %879 = vmatpush1.bf16.msra.mxu0 0
      %880 = vmatprep.subr.bf16.mxu0 0
      %881 = vmatpush1.bf16.msra.mxu0 0
      %882 = vmatprep.subr.bf16.mxu0 0
      %883 = vmatpush1.bf16.msra.mxu0 0
      %884 = vmatprep.mubr.bf16.mxu0 0
      %885 = vmatmul.mubr.bf16.gmra.mrb[0].mxu0 %v847
      %v886 = vpop.f32.mrb[0].mxu0
      %v887 = vadd.f32 0.0, %v886
      %v888 = vpop.f32.mrb[0].mxu0
      %v889 = vpop.f32.mrb[0].mxu0
      %v890 = vadd.f32 0.0, %v889
      %v891 = vpop.f32.mrb[0].mxu0
      %892 = vmatprep.mubr.bf16.mxu0 0
      %893 = vmatmul.mubr.bf16.gmra.mrb[0].mxu0 %v850
      %v894 = vpop.f32.mrb[0].mxu0
      %v895 = vadd.f32 0.0, %v894
      %v896 = vpop.f32.mrb[0].mxu0
      %v897 = vpop.f32.mrb[0].mxu0
      %v898 = vpop.f32.mrb[0].mxu0
      %899 = vdwg.mxu0
      %v900 = vadd.f32 %v829, %v887
      %v901 = vadd.f32 %v830, %v890
      %v902 = vadd.f32 %v831, %v895
      %v903 = vld [vmem:[%s192 + $0xe] sm:$0xff]
      %v904 = vld [vmem:[%s192 + $0x16] sm:$0xff]
      %v905 = vld [vmem:[%s192 + $0x1e] sm:$0x3]
      %v906 = vpack.c.bf16 %v904, %v903
      %v907 = vpack.c.bf16 %v905, %v905
      %s908 = scalar_lea.vmem %s1, 80
      %v909 = vld [vmem:[%s908] sm:$0xf]
      %v910 = vld [vmem:[%s908 + $0x4] sm:$0xf]
      %v913 = vunpack.c.l.b16 %v909
      %v914 = vunpack.c.l.b16 %v910
      %v915 = vpack.c.b16 %v914, %v913
      %v918 = vsel %vm220, %v906, 0
      %v921 = vsel %vm220, %v907, 0
      %923 = vmatprep.subr.bf16.mxu0 0
      %924 = vmatpush1.bf16.msra.mxu0 %v915
      %925 = vmatprep.subr.bf16.mxu0 0
      %926 = vmatpush1.bf16.msra.mxu0 0
      %927 = vmatprep.subr.bf16.mxu0 0
      %928 = vmatpush1.bf16.msra.mxu0 0
      %929 = vmatprep.subr.bf16.mxu0 0
      %930 = vmatpush1.bf16.msra.mxu0 0
      %931 = vmatprep.subr.bf16.mxu0 0
      %932 = vmatpush1.bf16.msra.mxu0 0
      %933 = vmatprep.subr.bf16.mxu0 0
      %934 = vmatpush1.bf16.msra.mxu0 0
      %935 = vmatprep.subr.bf16.mxu0 0
      %936 = vmatpush1.bf16.msra.mxu0 0
      %937 = vmatprep.subr.bf16.mxu0 0
      %938 = vmatpush1.bf16.msra.mxu0 0
      %939 = vmatprep.subr.bf16.mxu0 0
      %940 = vmatpush1.bf16.msra.mxu0 0
      %941 = vmatprep.subr.bf16.mxu0 0
      %942 = vmatpush1.bf16.msra.mxu0 0
      %943 = vmatprep.subr.bf16.mxu0 0
      %944 = vmatpush1.bf16.msra.mxu0 0
      %945 = vmatprep.subr.bf16.mxu0 0
      %946 = vmatpush1.bf16.msra.mxu0 0
      %947 = vmatprep.subr.bf16.mxu0 0
      %948 = vmatpush1.bf16.msra.mxu0 0
      %949 = vmatprep.subr.bf16.mxu0 0
      %950 = vmatpush1.bf16.msra.mxu0 0
      %951 = vmatprep.subr.bf16.mxu0 0
      %952 = vmatpush1.bf16.msra.mxu0 0
      %953 = vmatprep.subr.bf16.mxu0 0
      %954 = vmatpush1.bf16.msra.mxu0 0
      %955 = vmatprep.mubr.bf16.mxu0 0
      %956 = vmatmul.mubr.bf16.gmra.mrb[0].mxu0 %v918
      %v957 = vpop.f32.mrb[0].mxu0
      %v958 = vadd.f32 0.0, %v957
      %v959 = vpop.f32.mrb[0].mxu0
      %v960 = vpop.f32.mrb[0].mxu0
      %v961 = vadd.f32 0.0, %v960
      %v962 = vpop.f32.mrb[0].mxu0
      %963 = vmatprep.mubr.bf16.mxu0 0
      %964 = vmatmul.mubr.bf16.gmra.mrb[0].mxu0 %v921
      %v965 = vpop.f32.mrb[0].mxu0
      %v966 = vadd.f32 0.0, %v965
      %v967 = vpop.f32.mrb[0].mxu0
      %v968 = vpop.f32.mrb[0].mxu0
      %v969 = vpop.f32.mrb[0].mxu0
      %970 = vdwg.mxu0
      %v971 = vadd.f32 %v900, %v958
      %v972 = vadd.f32 %v901, %v961
      %v973 = vadd.f32 %v902, %v966
      %v974 = vld [vmem:[%s192 + $0xf] sm:$0xff]
      %v975 = vld [vmem:[%s192 + $0x17] sm:$0xff]
      %v976 = vld [vmem:[%s192 + $0x1f] sm:$0x3]
      %v977 = vpack.c.bf16 %v975, %v974
      %v978 = vpack.c.bf16 %v976, %v976
      %s979 = scalar_lea.vmem %s1, 88
      %v980 = vld [vmem:[%s979] sm:$0xf]
      %v981 = vld [vmem:[%s979 + $0x4] sm:$0xf]
      %v984 = vunpack.c.l.b16 %v980
      %v985 = vunpack.c.l.b16 %v981
      %v986 = vpack.c.b16 %v985, %v984
      %v989 = vsel %vm220, %v977, 0
      %v992 = vsel %vm220, %v978, 0
      %994 = vmatprep.subr.bf16.mxu0 0
      %995 = vmatpush1.bf16.msra.mxu0 %v986
      %996 = vmatprep.subr.bf16.mxu0 0
      %997 = vmatpush1.bf16.msra.mxu0 0
      %998 = vmatprep.subr.bf16.mxu0 0
      %999 = vmatpush1.bf16.msra.mxu0 0
      %1000 = vmatprep.subr.bf16.mxu0 0
      %1001 = vmatpush1.bf16.msra.mxu0 0
      %1002 = vmatprep.subr.bf16.mxu0 0
      %1003 = vmatpush1.bf16.msra.mxu0 0
      %1004 = vmatprep.subr.bf16.mxu0 0
      %1005 = vmatpush1.bf16.msra.mxu0 0
      %1006 = vmatprep.subr.bf16.mxu0 0
      %1007 = vmatpush1.bf16.msra.mxu0 0
      %1008 = vmatprep.subr.bf16.mxu0 0
      %1009 = vmatpush1.bf16.msra.mxu0 0
      %1010 = vmatprep.subr.bf16.mxu0 0
      %1011 = vmatpush1.bf16.msra.mxu0 0
      %1012 = vmatprep.subr.bf16.mxu0 0
      %1013 = vmatpush1.bf16.msra.mxu0 0
      %1014 = vmatprep.subr.bf16.mxu0 0
      %1015 = vmatpush1.bf16.msra.mxu0 0
      %1016 = vmatprep.subr.bf16.mxu0 0
      %1017 = vmatpush1.bf16.msra.mxu0 0
      %1018 = vmatprep.subr.bf16.mxu0 0
      %1019 = vmatpush1.bf16.msra.mxu0 0
      %1020 = vmatprep.subr.bf16.mxu0 0
      %1021 = vmatpush1.bf16.msra.mxu0 0
      %1022 = vmatprep.subr.bf16.mxu0 0
      %1023 = vmatpush1.bf16.msra.mxu0 0
      %1024 = vmatprep.subr.bf16.mxu0 0
      %1025 = vmatpush1.bf16.msra.mxu0 0
      %1026 = vmatprep.mubr.bf16.mxu0 0
      %1027 = vmatmul.mubr.bf16.gmra.mrb[0].mxu0 %v989
      %v1028 = vpop.f32.mrb[0].mxu0
      %v1029 = vadd.f32 0.0, %v1028
      %v1030 = vpop.f32.mrb[0].mxu0
      %v1031 = vpop.f32.mrb[0].mxu0
      %v1032 = vadd.f32 0.0, %v1031
      %v1033 = vpop.f32.mrb[0].mxu0
      %1034 = vmatprep.mubr.bf16.mxu0 0
      %1035 = vmatmul.mubr.bf16.gmra.mrb[0].mxu0 %v992
      %v1036 = vpop.f32.mrb[0].mxu0
      %v1037 = vadd.f32 0.0, %v1036
      %v1038 = vpop.f32.mrb[0].mxu0
      %v1039 = vpop.f32.mrb[0].mxu0
      %v1040 = vpop.f32.mrb[0].mxu0
      %1041 = vdwg.mxu0
      %v1042 = vadd.f32 %v971, %v1029
      %v1043 = vadd.f32 %v972, %v1032
      %v1044 = vadd.f32 %v973, %v1037
      %v1045 = vld [vmem:[%s192 + $0x12] sm:$0xff]
      %v1046 = vld [vmem:[%s192 + $0x1a] sm:$0xff]
      %v1047 = vld [vmem:[%s192 + $0x22] sm:$0x3]
      %v1048 = vpack.c.bf16 %v1046, %v1045
      %v1049 = vpack.c.bf16 %v1047, %v1047
      %s1050 = scalar_lea.vmem %s1, 96
      %v1051 = vld [vmem:[%s1050] sm:$0xf]
      %v1052 = vld [vmem:[%s1050 + $0x4] sm:$0xf]
      %v1055 = vunpack.c.l.b16 %v1051
      %v1056 = vunpack.c.l.b16 %v1052
      %v1057 = vpack.c.b16 %v1056, %v1055
      %v1060 = vsel %vm220, %v1048, 0
      %v1063 = vsel %vm220, %v1049, 0
      %1065 = vmatprep.subr.bf16.mxu0 0
      %1066 = vmatpush1.bf16.msra.mxu0 %v1057
      %1067 = vmatprep.subr.bf16.mxu0 0
      %1068 = vmatpush1.bf16.msra.mxu0 0
      %1069 = vmatprep.subr.bf16.mxu0 0
      %1070 = vmatpush1.bf16.msra.mxu0 0
      %1071 = vmatprep.subr.bf16.mxu0 0
      %1072 = vmatpush1.bf16.msra.mxu0 0
      %1073 = vmatprep.subr.bf16.mxu0 0
      %1074 = vmatpush1.bf16.msra.mxu0 0
      %1075 = vmatprep.subr.bf16.mxu0 0
      %1076 = vmatpush1.bf16.msra.mxu0 0
      %1077 = vmatprep.subr.bf16.mxu0 0
      %1078 = vmatpush1.bf16.msra.mxu0 0
      %1079 = vmatprep.subr.bf16.mxu0 0
      %1080 = vmatpush1.bf16.msra.mxu0 0
      %1081 = vmatprep.subr.bf16.mxu0 0
      %1082 = vmatpush1.bf16.msra.mxu0 0
      %1083 = vmatprep.subr.bf16.mxu0 0
      %1084 = vmatpush1.bf16.msra.mxu0 0
      %1085 = vmatprep.subr.bf16.mxu0 0
      %1086 = vmatpush1.bf16.msra.mxu0 0
      %1087 = vmatprep.subr.bf16.mxu0 0
      %1088 = vmatpush1.bf16.msra.mxu0 0
      %1089 = vmatprep.subr.bf16.mxu0 0
      %1090 = vmatpush1.bf16.msra.mxu0 0
      %1091 = vmatprep.subr.bf16.mxu0 0
      %1092 = vmatpush1.bf16.msra.mxu0 0
      %1093 = vmatprep.subr.bf16.mxu0 0
      %1094 = vmatpush1.bf16.msra.mxu0 0
      %1095 = vmatprep.subr.bf16.mxu0 0
      %1096 = vmatpush1.bf16.msra.mxu0 0
      %1097 = vmatprep.mubr.bf16.mxu0 0
      %1098 = vmatmul.mubr.bf16.gmra.mrb[0].mxu0 %v1060
      %v1099 = vpop.f32.mrb[0].mxu0
      %v1100 = vadd.f32 0.0, %v1099
      %v1101 = vpop.f32.mrb[0].mxu0
      %v1102 = vpop.f32.mrb[0].mxu0
      %v1103 = vadd.f32 0.0, %v1102
      %v1104 = vpop.f32.mrb[0].mxu0
      %1105 = vmatprep.mubr.bf16.mxu0 0
      %1106 = vmatmul.mubr.bf16.gmra.mrb[0].mxu0 %v1063
      %v1107 = vpop.f32.mrb[0].mxu0
      %v1108 = vadd.f32 0.0, %v1107
      %v1109 = vpop.f32.mrb[0].mxu0
      %v1110 = vpop.f32.mrb[0].mxu0
      %v1111 = vpop.f32.mrb[0].mxu0
      %1112 = vdwg.mxu0
      %v1113 = vadd.f32 %v1042, %v1100
      %v1114 = vadd.f32 %v1043, %v1103
      %v1115 = vadd.f32 %v1044, %v1108
      %v1116 = vld [vmem:[%s192 + $0x13] sm:$0xff]
      %v1117 = vld [vmem:[%s192 + $0x1b] sm:$0xff]
      %v1118 = vld [vmem:[%s192 + $0x23] sm:$0x3]
      %v1119 = vpack.c.bf16 %v1117, %v1116
      %v1120 = vpack.c.bf16 %v1118, %v1118
      %s1121 = scalar_lea.vmem %s1, 104
      %v1122 = vld [vmem:[%s1121] sm:$0xf]
      %v1123 = vld [vmem:[%s1121 + $0x4] sm:$0xf]
      %v1126 = vunpack.c.l.b16 %v1122
      %v1127 = vunpack.c.l.b16 %v1123
      %v1128 = vpack.c.b16 %v1127, %v1126
      %v1131 = vsel %vm220, %v1119, 0
      %v1134 = vsel %vm220, %v1120, 0
      %1136 = vmatprep.subr.bf16.mxu0 0
      %1137 = vmatpush1.bf16.msra.mxu0 %v1128
      %1138 = vmatprep.subr.bf16.mxu0 0
      %1139 = vmatpush1.bf16.msra.mxu0 0
      %1140 = vmatprep.subr.bf16.mxu0 0
      %1141 = vmatpush1.bf16.msra.mxu0 0
      %1142 = vmatprep.subr.bf16.mxu0 0
      %1143 = vmatpush1.bf16.msra.mxu0 0
      %1144 = vmatprep.subr.bf16.mxu0 0
      %1145 = vmatpush1.bf16.msra.mxu0 0
      %1146 = vmatprep.subr.bf16.mxu0 0
      %1147 = vmatpush1.bf16.msra.mxu0 0
      %1148 = vmatprep.subr.bf16.mxu0 0
      %1149 = vmatpush1.bf16.msra.mxu0 0
      %1150 = vmatprep.subr.bf16.mxu0 0
      %1151 = vmatpush1.bf16.msra.mxu0 0
      %1152 = vmatprep.subr.bf16.mxu0 0
      %1153 = vmatpush1.bf16.msra.mxu0 0
      %1154 = vmatprep.subr.bf16.mxu0 0
      %1155 = vmatpush1.bf16.msra.mxu0 0
      %1156 = vmatprep.subr.bf16.mxu0 0
      %1157 = vmatpush1.bf16.msra.mxu0 0
      %1158 = vmatprep.subr.bf16.mxu0 0
      %1159 = vmatpush1.bf16.msra.mxu0 0
      %1160 = vmatprep.subr.bf16.mxu0 0
      %1161 = vmatpush1.bf16.msra.mxu0 0
      %1162 = vmatprep.subr.bf16.mxu0 0
      %1163 = vmatpush1.bf16.msra.mxu0 0
      %1164 = vmatprep.subr.bf16.mxu0 0
      %1165 = vmatpush1.bf16.msra.mxu0 0
      %1166 = vmatprep.subr.bf16.mxu0 0
      %1167 = vmatpush1.bf16.msra.mxu0 0
      %1168 = vmatprep.mubr.bf16.mxu0 0
      %1169 = vmatmul.mubr.bf16.gmra.mrb[0].mxu0 %v1131
      %v1170 = vpop.f32.mrb[0].mxu0
      %v1171 = vadd.f32 0.0, %v1170
      %v1172 = vpop.f32.mrb[0].mxu0
      %v1173 = vpop.f32.mrb[0].mxu0
      %v1174 = vadd.f32 0.0, %v1173
      %v1175 = vpop.f32.mrb[0].mxu0
      %1176 = vmatprep.mubr.bf16.mxu0 0
      %1177 = vmatmul.mubr.bf16.gmra.mrb[0].mxu0 %v1134
      %v1178 = vpop.f32.mrb[0].mxu0
      %v1179 = vadd.f32 0.0, %v1178
      %v1180 = vpop.f32.mrb[0].mxu0
      %v1181 = vpop.f32.mrb[0].mxu0
      %v1182 = vpop.f32.mrb[0].mxu0
      %1183 = vdwg.mxu0
      %v1184 = vadd.f32 %v1113, %v1171
      %v1185 = vadd.f32 %v1114, %v1174
      %v1186 = vadd.f32 %v1115, %v1179
      %v1187 = vld [vmem:[%s192 + $0x14] sm:$0xff]
      %v1188 = vld [vmem:[%s192 + $0x1c] sm:$0xff]
      %v1189 = vld [vmem:[%s192 + $0x24] sm:$0x3]
      %v1190 = vpack.c.bf16 %v1188, %v1187
      %v1191 = vpack.c.bf16 %v1189, %v1189
      %s1192 = scalar_lea.vmem %s1, 112
      %v1193 = vld [vmem:[%s1192] sm:$0xf]
      %v1194 = vld [vmem:[%s1192 + $0x4] sm:$0xf]
      %v1197 = vunpack.c.l.b16 %v1193
      %v1198 = vunpack.c.l.b16 %v1194
      %v1199 = vpack.c.b16 %v1198, %v1197
      %v1202 = vsel %vm220, %v1190, 0
      %v1205 = vsel %vm220, %v1191, 0
      %1207 = vmatprep.subr.bf16.mxu0 0
      %1208 = vmatpush1.bf16.msra.mxu0 %v1199
      %1209 = vmatprep.subr.bf16.mxu0 0
      %1210 = vmatpush1.bf16.msra.mxu0 0
      %1211 = vmatprep.subr.bf16.mxu0 0
      %1212 = vmatpush1.bf16.msra.mxu0 0
      %1213 = vmatprep.subr.bf16.mxu0 0
      %1214 = vmatpush1.bf16.msra.mxu0 0
      %1215 = vmatprep.subr.bf16.mxu0 0
      %1216 = vmatpush1.bf16.msra.mxu0 0
      %1217 = vmatprep.subr.bf16.mxu0 0
      %1218 = vmatpush1.bf16.msra.mxu0 0
      %1219 = vmatprep.subr.bf16.mxu0 0
      %1220 = vmatpush1.bf16.msra.mxu0 0
      %1221 = vmatprep.subr.bf16.mxu0 0
      %1222 = vmatpush1.bf16.msra.mxu0 0
      %1223 = vmatprep.subr.bf16.mxu0 0
      %1224 = vmatpush1.bf16.msra.mxu0 0
      %1225 = vmatprep.subr.bf16.mxu0 0
      %1226 = vmatpush1.bf16.msra.mxu0 0
      %1227 = vmatprep.subr.bf16.mxu0 0
      %1228 = vmatpush1.bf16.msra.mxu0 0
      %1229 = vmatprep.subr.bf16.mxu0 0
      %1230 = vmatpush1.bf16.msra.mxu0 0
      %1231 = vmatprep.subr.bf16.mxu0 0
      %1232 = vmatpush1.bf16.msra.mxu0 0
      %1233 = vmatprep.subr.bf16.mxu0 0
      %1234 = vmatpush1.bf16.msra.mxu0 0
      %1235 = vmatprep.subr.bf16.mxu0 0
      %1236 = vmatpush1.bf16.msra.mxu0 0
      %1237 = vmatprep.subr.bf16.mxu0 0
      %1238 = vmatpush1.bf16.msra.mxu0 0
      %1239 = vmatprep.mubr.bf16.mxu0 0
      %1240 = vmatmul.mubr.bf16.gmra.mrb[0].mxu0 %v1202
      %v1241 = vpop.f32.mrb[0].mxu0
      %v1242 = vadd.f32 0.0, %v1241
      %v1243 = vpop.f32.mrb[0].mxu0
      %v1244 = vpop.f32.mrb[0].mxu0
      %v1245 = vadd.f32 0.0, %v1244
      %v1246 = vpop.f32.mrb[0].mxu0
      %1247 = vmatprep.mubr.bf16.mxu0 0
      %1248 = vmatmul.mubr.bf16.gmra.mrb[0].mxu0 %v1205
      %v1249 = vpop.f32.mrb[0].mxu0
      %v1250 = vadd.f32 0.0, %v1249
      %v1251 = vpop.f32.mrb[0].mxu0
      %v1252 = vpop.f32.mrb[0].mxu0
      %v1253 = vpop.f32.mrb[0].mxu0
      %1254 = vdwg.mxu0
      %v1255 = vadd.f32 %v1184, %v1242
      %v1256 = vadd.f32 %v1185, %v1245
      %v1257 = vadd.f32 %v1186, %v1250
      %v1258 = vld [vmem:[%s192 + $0x15] sm:$0xff]
      %v1259 = vld [vmem:[%s192 + $0x1d] sm:$0xff]
      %v1260 = vld [vmem:[%s192 + $0x25] sm:$0x3]
      %v1261 = vpack.c.bf16 %v1259, %v1258
      %v1262 = vpack.c.bf16 %v1260, %v1260
      %s1263 = scalar_lea.vmem %s1, 120
      %v1264 = vld [vmem:[%s1263] sm:$0xf]
      %v1265 = vld [vmem:[%s1263 + $0x4] sm:$0xf]
      %v1268 = vunpack.c.l.b16 %v1264
      %v1269 = vunpack.c.l.b16 %v1265
      %v1270 = vpack.c.b16 %v1269, %v1268
      %v1273 = vsel %vm220, %v1261, 0
      %v1276 = vsel %vm220, %v1262, 0
      %1278 = vmatprep.subr.bf16.mxu0 0
      %1279 = vmatpush1.bf16.msra.mxu0 %v1270
      %1280 = vmatprep.subr.bf16.mxu0 0
      %1281 = vmatpush1.bf16.msra.mxu0 0
      %1282 = vmatprep.subr.bf16.mxu0 0
      %1283 = vmatpush1.bf16.msra.mxu0 0
      %1284 = vmatprep.subr.bf16.mxu0 0
      %1285 = vmatpush1.bf16.msra.mxu0 0
      %1286 = vmatprep.subr.bf16.mxu0 0
      %1287 = vmatpush1.bf16.msra.mxu0 0
      %1288 = vmatprep.subr.bf16.mxu0 0
      %1289 = vmatpush1.bf16.msra.mxu0 0
      %1290 = vmatprep.subr.bf16.mxu0 0
      %1291 = vmatpush1.bf16.msra.mxu0 0
      %1292 = vmatprep.subr.bf16.mxu0 0
      %1293 = vmatpush1.bf16.msra.mxu0 0
      %1294 = vmatprep.subr.bf16.mxu0 0
      %1295 = vmatpush1.bf16.msra.mxu0 0
      %1296 = vmatprep.subr.bf16.mxu0 0
      %1297 = vmatpush1.bf16.msra.mxu0 0
      %1298 = vmatprep.subr.bf16.mxu0 0
      %1299 = vmatpush1.bf16.msra.mxu0 0
      %1300 = vmatprep.subr.bf16.mxu0 0
      %1301 = vmatpush1.bf16.msra.mxu0 0
      %1302 = vmatprep.subr.bf16.mxu0 0
      %1303 = vmatpush1.bf16.msra.mxu0 0
      %1304 = vmatprep.subr.bf16.mxu0 0
      %1305 = vmatpush1.bf16.msra.mxu0 0
      %1306 = vmatprep.subr.bf16.mxu0 0
      %1307 = vmatpush1.bf16.msra.mxu0 0
      %1308 = vmatprep.subr.bf16.mxu0 0
      %1309 = vmatpush1.bf16.msra.mxu0 0
      %1310 = vmatprep.mubr.bf16.mxu0 0
      %1311 = vmatmul.mubr.bf16.gmra.mrb[0].mxu0 %v1273
      %v1312 = vpop.f32.mrb[0].mxu0
      %v1313 = vadd.f32 0.0, %v1312
      %v1314 = vpop.f32.mrb[0].mxu0
      %v1315 = vpop.f32.mrb[0].mxu0
      %v1316 = vadd.f32 0.0, %v1315
      %v1317 = vpop.f32.mrb[0].mxu0
      %1318 = vmatprep.mubr.bf16.mxu0 0
      %1319 = vmatmul.mubr.bf16.gmra.mrb[0].mxu0 %v1276
      %v1320 = vpop.f32.mrb[0].mxu0
      %v1321 = vadd.f32 0.0, %v1320
      %v1322 = vpop.f32.mrb[0].mxu0
      %v1323 = vpop.f32.mrb[0].mxu0
      %v1324 = vpop.f32.mrb[0].mxu0
      %1325 = vdwg.mxu0
      %v1326 = vadd.f32 %v1255, %v1313
      %v1327 = vadd.f32 %v1256, %v1316
      %v1328 = vadd.f32 %v1257, %v1321
      %v1329 = vld [vmem:[%s2] sm:$0x1]
      %v1331 = vlaneseq
      %v1332 = vshrl.u32 %v1331, 7
      %v1333 = vsub.s32 0, %v1332
      %v1334 = vrot.slane %v1329, %v1333
      %v1336 = vadd.f32 %v1326, %v1334
      %v1337 = vadd.f32 %v1327, %v1334
      %v1338 = vadd.f32 %v1328, %v1334
      %v1339 = vld [vmem:[%s3] sm:$0xff]
      %v1340 = vld [vmem:[%s3 + $0x8] sm:$0xff]
      %v1341 = vld [vmem:[%s3 + $0x10] sm:$0x3]
      %1343 = vset.pattern.permute.xlu0 0
      %1344 = vperm.xlu0 %1343, %v1339
      %v1345 = vpop.permute.xlu0 %1344
      %1348 = vset.pattern.permute.xlu0 0
      %1349 = vperm.xlu0 %1348, %v1340
      %v1350 = vpop.permute.xlu0 %1349
      %1353 = vset.pattern.permute.xlu0 0
      %1354 = vperm.xlu0 %1353, %v1341
      %v1355 = vpop.permute.xlu0 %1354
      %v1357 = vmul.f32 %v1336, %v1345
      %v1358 = vmul.f32 %v1337, %v1350
      %v1359 = vmul.f32 %v1338, %v1355
      %v1360 = vadd.f32 %v1357, %v1358
      %vm1361 = vcmask 1041408
      %v1362 = vsel %vm1361, %v1359, 0.0
      %v1363 = vadd.f32 %v1360, %v1362
      %v1364 = vrot.slane %v1363, 4
      %v1365 = vadd.f32 %v1363, %v1364
      %v1366 = vrot.slane %v1365, 2
      %v1367 = vadd.f32 %v1365, %v1366
      %v1368 = vrot.slane %v1367, 1
      %v1369 = vadd.f32 %v1367, %v1368
      %v1370 = vmul.f32 %v1369, 0.11111111
      %v1371 = vmul.f32 %v1336, %v1336
      %v1372 = vmul.f32 %v1337, %v1337
      %v1373 = vmul.f32 %v1338, %v1338
      %v1374 = vmul.f32 %v1371, %v1345
      %v1375 = vmul.f32 %v1372, %v1350
      %v1376 = vmul.f32 %v1373, %v1355
      %v1377 = vadd.f32 %v1374, %v1375
      %v1378 = vsel %vm1361, %v1376, 0.0
      %v1379 = vadd.f32 %v1377, %v1378
      %v1380 = vrot.slane %v1379, 4
      %v1381 = vadd.f32 %v1379, %v1380
      %v1382 = vrot.slane %v1381, 2
      %v1383 = vadd.f32 %v1381, %v1382
      %v1384 = vrot.slane %v1383, 1
      %v1385 = vadd.f32 %v1383, %v1384
      %v1386 = vmul.f32 %v1385, 0.11111111
      %v1387 = vmul.f32 %v1370, %v1370
      %v1388 = vsub.f32 %v1386, %v1387
      %v1389 = vmax.f32 %v1388, 0.0
      %v1390 = vsub.f32 %v1336, %v1370
      %v1391 = vsub.f32 %v1337, %v1370
      %v1392 = vsub.f32 %v1338, %v1370
      %v1393 = vadd.f32 %v1389, 1e-05
      %v1394 = vrsqrt.pop %v1393
      %v1395 = vmul.f32 %v1390, %v1394
      %v1396 = vmul.f32 %v1391, %v1394
      %v1397 = vmul.f32 %v1392, %v1394
      %vm1398 = vcmp.ge.f32.partialorder %v1395, 0.0
      %vm1399 = vcmp.ge.f32.partialorder %v1396, 0.0
      %vm1400 = vcmp.ge.f32.partialorder %v1397, 0.0
      %v1401 = vmul.f32 %v1395, 0.2
      %v1402 = vmul.f32 %v1396, 0.2
      %v1403 = vmul.f32 %v1397, 0.2
      %v1404 = vsel %vm1398, %v1395, %v1401
      %v1405 = vsel %vm1399, %v1396, %v1402
      %v1406 = vsel %vm1400, %v1397, %v1403
      %1407 = vst [vmem:[%s197] sm:$0xff] %v1404
      %1408 = vst [vmem:[%s197 + $0x8] sm:$0xff] %v1405
      %1409 = vst [vmem:[%s197 + $0x10] sm:$0x3] %v1406
      %p1410 = scmp.lt.s32.totalorder %s15, 1
      %s1411 = scalar_select %p1410, %s15, 1
      %s1412 = smul.addr %s1411, 3
      %s1413 = smul.addr %s1412, 8
      %s1414 = scalar_lea.vmem %s4, %s1413
      // Predicated region
      $region37: #{_lambda_.6} parent=35 // pred_check
        %p1415 = pneg %p122
      $region38: #{_lambda_.6} parent=35 // pred_check_branch
        %1417 = sbr.rel (%p1415) target = $region40
      $region39: #{_lambda_.6} parent=35 // pred_region
        _
      $region40: #{_lambda_.6} parent=35 // pred_fallthru
        _
    $region36: #{_lambda_.6} parent=5 // pred_fallthru
      _
    %p1418 = scmp.le.s32.totalorder 2, %s10
    // Predicated region
    $region41: #{_lambda_.6} parent=5 // pred_check
      %p1419 = pneg %p1418
    $region42: #{_lambda_.6} parent=5 // pred_check_branch
      %1421 = sbr.rel (%p1419) target = $region44
    $region43: #{_lambda_.6} parent=5 // pred_region
      %s1422 = ssub.s32 %s10, 2
      // Predicated region
      $region45: #{_lambda_.6} parent=43 // pred_check
        %p1423 = pneg %p128
      $region46: #{_lambda_.6} parent=43 // pred_check_branch
        %1425 = sbr.rel (%p1423) target = $region48
      $region47: #{_lambda_.6} parent=43 // pred_region
        %p1426 = scmp.lt.s32.totalorder %s16, 1
        %s1427 = scalar_select %p1426, %s16, 1
        %s1428 = smul.addr %s1427, 3
        %s1429 = smul.addr %s1428, 8
        %s1430 = scalar_lea.vmem %s4, %s1429
      $region48: #{_lambda_.6} parent=43 // pred_fallthru
        _
    $region44: #{_lambda_.6} parent=5 // pred_fallthru
      _
  $region6: #{_lambda_.6} parent=0 // loop_footer
    %s14 = sadd.s32 1, %s10
  $region7: #{_lambda_.6} parent=0 // loop_footer_branch
    %9 = sbr.rel target = $region3
  $region8: #{_lambda_.6} parent=0 // loop_exit
    _

// kernel: _lambda_.7
$region0: #{_lambda_.7}
  #allocation0 [shape = 'u32[]', space=smem, size = 0x4, offset = 0x4, fixed_abs, tag = 'smem constant byte address 0x4 - core index']
  #allocation1 [shape = 'u32[144,128]{1,0:T(1,128)}', space=vmem, size = 0x12000, scoped, tag = 'internal scratch']
  %s0 = inlined_call_operand.vmem [shape: f32[2,28,32], index: 0, kind: input, shape index: {}]
  %s1 = inlined_call_operand.vmem [shape: bf16[16,32,128], index: 1, kind: input, shape index: {}]
  %s2 = inlined_call_operand.vmem [shape: f32[1,128], index: 2, kind: input, shape index: {}]
  %s3 = inlined_call_operand.vmem [shape: f32[10,1], index: 3, kind: input, shape index: {}]
  %s4 = inlined_call_operand.vmem [shape: f32[2,10,128], index: 4, kind: output, shape index: {}]
  %s5 = sld [smem:[#allocation0]]
  $region49: #{_lambda_.7} parent=0
    _
  %s7 = ssub.s32 1, %s5
  %s8 = scalar_select 0, %s7, %s5
  loop: start=0, step=1, limit=4
  $region2: #{_lambda_.7} parent=0 // loop_pre_header
    _
  $region3: #{_lambda_.7} parent=0 // loop_header
    %s10 = sphi 0, %s14
    %p11 = scmp.ge.s32.totalorder %s10, 4
    %s20 = sphi 0, %s22
    %s23 = sphi 0, %s20
    %s24 = sphi 0, %s23
    %s40 = sphi 0, %s24
    %s44 = sphi 0, %s44
    %s46 = sphi 0, %s44
    %s47 = sphi 0, %s46
    %s61 = sphi 0, %s47
    %s65 = sphi 0, %s65
    %s67 = sphi 0, %s65
    %s68 = sphi 0, %s67
    %s82 = sphi 0, %s68
    %s86 = sphi 0, %s86
    %s88 = sphi 0, %s86
    %s89 = sphi 0, %s88
    %s103 = sphi 0, %s89
    %s109 = sphi 0, %s111
    %s112 = sphi 0, %s109
    %s113 = sphi 0, %s112
    %s129 = sphi 0, %s113
  $region4: #{_lambda_.7} parent=0 // loop_header_branch
    %13 = sbr.rel (%p11) target = $region8
  $region5: #{_lambda_.7} parent=0 // loop_body
    %s15 = ssub.s32 %s10, 1
    %s16 = ssub.s32 %s10, 2
    %s17 = sadd.s32 %s10, 1
    %s18 = ssub.s32 %s10, %s17
    %p19 = scmp.eq.s32.totalorder %s18, 0
    %s21 = sadd.s32 %s20, 1
    %s22 = scalar_select %p19, %s20, %s21
    %p25 = pneg %p19
    %p26 = scmp.eq.s32.totalorder %s10, 1
    %p27 = por %p25, %p26
    %p28 = scmp.ne.s32.totalorder %s20, %s23
    %p29 = scmp.eq.s32.totalorder %s10, 0
    %p30 = por %p28, %p29
    %p31 = scmp.ne.s32.totalorder %s20, %s23
    %p32 = scmp.eq.s32.totalorder %s15, 1
    %p33 = por %p31, %p32
    %p34 = scmp.ne.s32.totalorder %s23, %s24
    %p35 = scmp.eq.s32.totalorder %s15, 0
    %p36 = por %p34, %p35
    %p37 = scmp.ne.s32.totalorder %s23, %s24
    %p38 = scmp.eq.s32.totalorder %s16, 1
    %p39 = por %p37, %p38
    %p41 = scmp.ne.s32.totalorder %s24, %s40
    %p42 = scmp.eq.s32.totalorder %s16, 0
    %p43 = por %p41, %p42
    %s45 = sadd.s32 %s44, 1
    %p48 = scmp.eq.s32.totalorder %s10, 1
    %p49 = scmp.ne.s32.totalorder %s44, %s46
    %p50 = scmp.eq.s32.totalorder %s10, 0
    %p51 = por %p49, %p50
    %p52 = scmp.ne.s32.totalorder %s44, %s46
    %p53 = scmp.eq.s32.totalorder %s15, 1
    %p54 = por %p52, %p53
    %p55 = scmp.ne.s32.totalorder %s46, %s47
    %p56 = scmp.eq.s32.totalorder %s15, 0
    %p57 = por %p55, %p56
    %p58 = scmp.ne.s32.totalorder %s46, %s47
    %p59 = scmp.eq.s32.totalorder %s16, 1
    %p60 = por %p58, %p59
    %p62 = scmp.ne.s32.totalorder %s47, %s61
    %p63 = scmp.eq.s32.totalorder %s16, 0
    %p64 = por %p62, %p63
    %s66 = sadd.s32 %s65, 1
    %p69 = scmp.eq.s32.totalorder %s10, 1
    %p70 = scmp.ne.s32.totalorder %s65, %s67
    %p71 = scmp.eq.s32.totalorder %s10, 0
    %p72 = por %p70, %p71
    %p73 = scmp.ne.s32.totalorder %s65, %s67
    %p74 = scmp.eq.s32.totalorder %s15, 1
    %p75 = por %p73, %p74
    %p76 = scmp.ne.s32.totalorder %s67, %s68
    %p77 = scmp.eq.s32.totalorder %s15, 0
    %p78 = por %p76, %p77
    %p79 = scmp.ne.s32.totalorder %s67, %s68
    %p80 = scmp.eq.s32.totalorder %s16, 1
    %p81 = por %p79, %p80
    %p83 = scmp.ne.s32.totalorder %s68, %s82
    %p84 = scmp.eq.s32.totalorder %s16, 0
    %p85 = por %p83, %p84
    %s87 = sadd.s32 %s86, 1
    %p90 = scmp.eq.s32.totalorder %s10, 1
    %p91 = scmp.ne.s32.totalorder %s86, %s88
    %p92 = scmp.eq.s32.totalorder %s10, 0
    %p93 = por %p91, %p92
    %p94 = scmp.ne.s32.totalorder %s86, %s88
    %p95 = scmp.eq.s32.totalorder %s15, 1
    %p96 = por %p94, %p95
    %p97 = scmp.ne.s32.totalorder %s88, %s89
    %p98 = scmp.eq.s32.totalorder %s15, 0
    %p99 = por %p97, %p98
    %p100 = scmp.ne.s32.totalorder %s88, %s89
    %p101 = scmp.eq.s32.totalorder %s16, 1
    %p102 = por %p100, %p101
    %p104 = scmp.ne.s32.totalorder %s89, %s103
    %p105 = scmp.eq.s32.totalorder %s16, 0
    %p106 = por %p104, %p105
    %s107 = ssub.s32 %s10, %s17
    %p108 = scmp.eq.s32.totalorder %s107, 0
    %s110 = sadd.s32 %s109, 1
    %s111 = scalar_select %p108, %s109, %s110
    %p114 = pneg %p108
    %p115 = scmp.eq.s32.totalorder %s10, 1
    %p116 = por %p114, %p115
    %p117 = scmp.ne.s32.totalorder %s109, %s112
    %p118 = scmp.eq.s32.totalorder %s10, 0
    %p119 = por %p117, %p118
    %p120 = scmp.ne.s32.totalorder %s109, %s112
    %p121 = scmp.eq.s32.totalorder %s15, 1
    %p122 = por %p120, %p121
    %p123 = scmp.ne.s32.totalorder %s112, %s113
    %p124 = scmp.eq.s32.totalorder %s15, 0
    %p125 = por %p123, %p124
    %p126 = scmp.ne.s32.totalorder %s112, %s113
    %p127 = scmp.eq.s32.totalorder %s16, 1
    %p128 = por %p126, %p127
    %p130 = scmp.ne.s32.totalorder %s113, %s129
    %p131 = scmp.eq.s32.totalorder %s16, 0
    %p132 = por %p130, %p131
    %p133 = scmp.le.s32.totalorder 1, %s10
    %p134 = scmp.lt.s32.totalorder %s10, 3
    %p135 = pnand %p133, %p134
    %p136 = pneg %p135
    // Predicated region
    $region9: #{_lambda_.7} parent=5 // pred_check
      _
    $region10: #{_lambda_.7} parent=5 // pred_check_branch
      %138 = sbr.rel (%p135) target = $region12
    $region11: #{_lambda_.7} parent=5 // pred_region
      %s139 = ssub.s32 %s10, 1
      // Predicated region
      $region13: #{_lambda_.7} parent=11 // pred_check
        %p140 = pneg %p57
      $region14: #{_lambda_.7} parent=11 // pred_check_branch
        %142 = sbr.rel (%p140) target = $region16
      $region15: #{_lambda_.7} parent=11 // pred_region
        _
      $region16: #{_lambda_.7} parent=11 // pred_fallthru
        _
      // Predicated region
      $region17: #{_lambda_.7} parent=11 // pred_check
        %p143 = pneg %p78
      $region18: #{_lambda_.7} parent=11 // pred_check_branch
        %145 = sbr.rel (%p143) target = $region20
      $region19: #{_lambda_.7} parent=11 // pred_region
        _
      $region20: #{_lambda_.7} parent=11 // pred_fallthru
        _
      // Predicated region
      $region21: #{_lambda_.7} parent=11 // pred_check
        %p146 = pneg %p99
      $region22: #{_lambda_.7} parent=11 // pred_check_branch
        %148 = sbr.rel (%p146) target = $region24
      $region23: #{_lambda_.7} parent=11 // pred_region
        _
      $region24: #{_lambda_.7} parent=11 // pred_fallthru
        _
    $region12: #{_lambda_.7} parent=5 // pred_fallthru
      _
    %p149 = scmp.lt.s32.totalorder %s10, 2
    // Predicated region
    $region25: #{_lambda_.7} parent=5 // pred_check
      %p150 = pneg %p149
    $region26: #{_lambda_.7} parent=5 // pred_check_branch
      %152 = sbr.rel (%p150) target = $region28
    $region27: #{_lambda_.7} parent=5 // pred_region
      // Predicated region
      $region29: #{_lambda_.7} parent=27 // pred_check
        %p153 = pneg %p30
      $region30: #{_lambda_.7} parent=27 // pred_check_branch
        %155 = sbr.rel (%p153) target = $region32
      $region31: #{_lambda_.7} parent=27 // pred_region
        %p156 = scmp.lt.s32.totalorder %s10, 1
        %s157 = scalar_select %p156, %s10, 1
        %s158 = smul.addr %s157, 4
        %s159 = smul.addr %s158, 8
        %s160 = scalar_lea.vmem %s0, %s159
      $region32: #{_lambda_.7} parent=27 // pred_fallthru
        _
    $region28: #{_lambda_.7} parent=5 // pred_fallthru
      _
    %p161 = scmp.le.s32.totalorder 1, %s10
    %p162 = scmp.lt.s32.totalorder %s10, 3
    %p163 = pnand %p161, %p162
    %p164 = pneg %p163
    // Predicated region
    $region33: #{_lambda_.7} parent=5 // pred_check
      _
    $region34: #{_lambda_.7} parent=5 // pred_check_branch
      %166 = sbr.rel (%p163) target = $region36
    $region35: #{_lambda_.7} parent=5 // pred_region
      %s167 = ssub.s32 %s10, 1
      %p168 = scmp.lt.s32.totalorder %s15, 1
      %s169 = scalar_select %p168, %s15, 1
      %s170 = smul.addr %s169, 4
      %s171 = smul.addr %s170, 8
      %s172 = scalar_lea.vmem %s0, %s171
      %p173 = pneg %p36
      %p174 = pneg %p33
      %p175 = pneg %p57
      %p176 = pneg %p54
      %p177 = pneg %p78
      %p178 = pneg %p75
      %p179 = pneg %p99
      %p180 = pneg %p96
      %p181 = pneg %p125
      %p182 = pneg %p122
      %p183 = scmp.lt.s32.totalorder %s15, 1
      %s184 = scalar_select %p183, %s15, 1
      %s185 = smul.addr %s184, 2
      %s186 = smul.addr %s185, 8
      %s187 = scalar_lea.vmem %s4, %s186
      %p188 = scmp.lt.s32.totalorder %s15, 1
      %s189 = scalar_select %p188, %s15, 1
      %s190 = smul.addr %s189, 4
      %s191 = smul.addr %s190, 8
      %s192 = scalar_lea.vmem %s0, %s191
      %p193 = scmp.lt.s32.totalorder %s15, 1
      %s194 = scalar_select %p193, %s15, 1
      %s195 = smul.addr %s194, 2
      %s196 = smul.addr %s195, 8
      %s197 = scalar_lea.vmem %s4, %s196
      %v199 = vld [vmem:[%s192] sm:$0xff]
      %v200 = vld [vmem:[%s192 + $0x8] sm:$0x3]
      %v201 = vpack.c.bf16 %v200, %v199
      %v202 = vld [vmem:[%s1] sm:$0xf]
      %v203 = vld [vmem:[%s1 + $0x4] sm:$0xf]
      %v204 = vld [vmem:[%s1 + $0x8] sm:$0xf]
      %v205 = vld [vmem:[%s1 + $0xc] sm:$0xf]
      %v206 = vld [vmem:[%s192 + $0x1] sm:$0xff]
      %v207 = vld [vmem:[%s192 + $0x9] sm:$0x3]
      %v208 = vpack.c.bf16 %v207, %v206
      %s209 = scalar_lea.vmem %s1, 16
      %v210 = vld [vmem:[%s209] sm:$0xf]
      %v211 = vld [vmem:[%s209 + $0x4] sm:$0xf]
      %v212 = vld [vmem:[%s209 + $0x8] sm:$0xf]
      %v213 = vld [vmem:[%s209 + $0xc] sm:$0xf]
      %v218 = vunpack.c.l.b16 %v210
      %v219 = vunpack.c.l.b16 %v211
      %v220 = vunpack.c.l.b16 %v212
      %v221 = vunpack.c.l.b16 %v213
      %v222 = vpack.c.b16 %v219, %v218
      %v223 = vpack.c.b16 %v221, %v220
      %vm226 = vcmask 261120
      %v228 = vsel %vm226, %v208, 0
      %230 = vmatprep.subr.bf16.mxu0 0
      %231 = vmatpush1.bf16.msra.mxu0 %v222
      %232 = vmatprep.subr.bf16.mxu0 0
      %233 = vmatpush1.bf16.msra.mxu0 %v223
      %234 = vmatprep.subr.bf16.mxu0 0
      %235 = vmatpush1.bf16.msra.mxu0 0
      %236 = vmatprep.subr.bf16.mxu0 0
      %237 = vmatpush1.bf16.msra.mxu0 0
      %238 = vmatprep.subr.bf16.mxu0 0
      %239 = vmatpush1.bf16.msra.mxu0 0
      %240 = vmatprep.subr.bf16.mxu0 0
      %241 = vmatpush1.bf16.msra.mxu0 0
      %242 = vmatprep.subr.bf16.mxu0 0
      %243 = vmatpush1.bf16.msra.mxu0 0
      %244 = vmatprep.subr.bf16.mxu0 0
      %245 = vmatpush1.bf16.msra.mxu0 0
      %246 = vmatprep.subr.bf16.mxu0 0
      %247 = vmatpush1.bf16.msra.mxu0 0
      %248 = vmatprep.subr.bf16.mxu0 0
      %249 = vmatpush1.bf16.msra.mxu0 0
      %250 = vmatprep.subr.bf16.mxu0 0
      %251 = vmatpush1.bf16.msra.mxu0 0
      %252 = vmatprep.subr.bf16.mxu0 0
      %253 = vmatpush1.bf16.msra.mxu0 0
      %254 = vmatprep.subr.bf16.mxu0 0
      %255 = vmatpush1.bf16.msra.mxu0 0
      %256 = vmatprep.subr.bf16.mxu0 0
      %257 = vmatpush1.bf16.msra.mxu0 0
      %258 = vmatprep.subr.bf16.mxu0 0
      %259 = vmatpush1.bf16.msra.mxu0 0
      %260 = vmatprep.subr.bf16.mxu0 0
      %261 = vmatpush1.bf16.msra.mxu0 0
      %262 = vmatprep.mubr.bf16.mxu0 0
      %263 = vmatmul.mubr.bf16.gmra.mrb[0].mxu0 %v228
      %v264 = vpop.f32.mrb[0].mxu0
      %v265 = vadd.f32 0.0, %v264
      %v266 = vpop.f32.mrb[0].mxu0
      %v267 = vpop.f32.mrb[0].mxu0
      %v268 = vadd.f32 0.0, %v267
      %v269 = vpop.f32.mrb[0].mxu0
      %270 = vdwg.mxu0
      %v275 = vunpack.c.l.b16 %v202
      %v276 = vunpack.c.l.b16 %v203
      %v277 = vunpack.c.l.b16 %v204
      %v278 = vunpack.c.l.b16 %v205
      %v279 = vpack.c.b16 %v276, %v275
      %v280 = vpack.c.b16 %v278, %v277
      %v284 = vsel %vm226, %v201, 0
      %286 = vmatprep.subr.bf16.mxu0 0
      %287 = vmatpush1.bf16.msra.mxu0 %v279
      %288 = vmatprep.subr.bf16.mxu0 0
      %289 = vmatpush1.bf16.msra.mxu0 %v280
      %290 = vmatprep.subr.bf16.mxu0 0
      %291 = vmatpush1.bf16.msra.mxu0 0
      %292 = vmatprep.subr.bf16.mxu0 0
      %293 = vmatpush1.bf16.msra.mxu0 0
      %294 = vmatprep.subr.bf16.mxu0 0
      %295 = vmatpush1.bf16.msra.mxu0 0
      %296 = vmatprep.subr.bf16.mxu0 0
      %297 = vmatpush1.bf16.msra.mxu0 0
      %298 = vmatprep.subr.bf16.mxu0 0
      %299 = vmatpush1.bf16.msra.mxu0 0
      %300 = vmatprep.subr.bf16.mxu0 0
      %301 = vmatpush1.bf16.msra.mxu0 0
      %302 = vmatprep.subr.bf16.mxu0 0
      %303 = vmatpush1.bf16.msra.mxu0 0
      %304 = vmatprep.subr.bf16.mxu0 0
      %305 = vmatpush1.bf16.msra.mxu0 0
      %306 = vmatprep.subr.bf16.mxu0 0
      %307 = vmatpush1.bf16.msra.mxu0 0
      %308 = vmatprep.subr.bf16.mxu0 0
      %309 = vmatpush1.bf16.msra.mxu0 0
      %310 = vmatprep.subr.bf16.mxu0 0
      %311 = vmatpush1.bf16.msra.mxu0 0
      %312 = vmatprep.subr.bf16.mxu0 0
      %313 = vmatpush1.bf16.msra.mxu0 0
      %314 = vmatprep.subr.bf16.mxu0 0
      %315 = vmatpush1.bf16.msra.mxu0 0
      %316 = vmatprep.subr.bf16.mxu0 0
      %317 = vmatpush1.bf16.msra.mxu0 0
      %318 = vmatprep.mubr.bf16.mxu0 0
      %319 = vmatmul.mubr.bf16.gmra.mrb[0].mxu0 %v284
      %v320 = vpop.f32.mrb[0].mxu0
      %v321 = vadd.f32 %v265, %v320
      %v322 = vpop.f32.mrb[0].mxu0
      %v323 = vpop.f32.mrb[0].mxu0
      %v324 = vadd.f32 %v268, %v323
      %v325 = vpop.f32.mrb[0].mxu0
      %326 = vdwg.mxu0
      %v327 = vld [vmem:[%s192 + $0x2] sm:$0xff]
      %v328 = vld [vmem:[%s192 + $0xa] sm:$0x3]
      %v329 = vpack.c.bf16 %v328, %v327
      %s330 = scalar_lea.vmem %s1, 32
      %v331 = vld [vmem:[%s330] sm:$0xf]
      %v332 = vld [vmem:[%s330 + $0x4] sm:$0xf]
      %v333 = vld [vmem:[%s330 + $0x8] sm:$0xf]
      %v334 = vld [vmem:[%s330 + $0xc] sm:$0xf]
      %v339 = vunpack.c.l.b16 %v331
      %v340 = vunpack.c.l.b16 %v332
      %v341 = vunpack.c.l.b16 %v333
      %v342 = vunpack.c.l.b16 %v334
      %v343 = vpack.c.b16 %v340, %v339
      %v344 = vpack.c.b16 %v342, %v341
      %v348 = vsel %vm226, %v329, 0
      %350 = vmatprep.subr.bf16.mxu0 0
      %351 = vmatpush1.bf16.msra.mxu0 %v343
      %352 = vmatprep.subr.bf16.mxu0 0
      %353 = vmatpush1.bf16.msra.mxu0 %v344
      %354 = vmatprep.subr.bf16.mxu0 0
      %355 = vmatpush1.bf16.msra.mxu0 0
      %356 = vmatprep.subr.bf16.mxu0 0
      %357 = vmatpush1.bf16.msra.mxu0 0
      %358 = vmatprep.subr.bf16.mxu0 0
      %359 = vmatpush1.bf16.msra.mxu0 0
      %360 = vmatprep.subr.bf16.mxu0 0
      %361 = vmatpush1.bf16.msra.mxu0 0
      %362 = vmatprep.subr.bf16.mxu0 0
      %363 = vmatpush1.bf16.msra.mxu0 0
      %364 = vmatprep.subr.bf16.mxu0 0
      %365 = vmatpush1.bf16.msra.mxu0 0
      %366 = vmatprep.subr.bf16.mxu0 0
      %367 = vmatpush1.bf16.msra.mxu0 0
      %368 = vmatprep.subr.bf16.mxu0 0
      %369 = vmatpush1.bf16.msra.mxu0 0
      %370 = vmatprep.subr.bf16.mxu0 0
      %371 = vmatpush1.bf16.msra.mxu0 0
      %372 = vmatprep.subr.bf16.mxu0 0
      %373 = vmatpush1.bf16.msra.mxu0 0
      %374 = vmatprep.subr.bf16.mxu0 0
      %375 = vmatpush1.bf16.msra.mxu0 0
      %376 = vmatprep.subr.bf16.mxu0 0
      %377 = vmatpush1.bf16.msra.mxu0 0
      %378 = vmatprep.subr.bf16.mxu0 0
      %379 = vmatpush1.bf16.msra.mxu0 0
      %380 = vmatprep.subr.bf16.mxu0 0
      %381 = vmatpush1.bf16.msra.mxu0 0
      %382 = vmatprep.mubr.bf16.mxu0 0
      %383 = vmatmul.mubr.bf16.gmra.mrb[0].mxu0 %v348
      %v384 = vpop.f32.mrb[0].mxu0
      %v385 = vadd.f32 0.0, %v384
      %v386 = vpop.f32.mrb[0].mxu0
      %v387 = vpop.f32.mrb[0].mxu0
      %v388 = vadd.f32 0.0, %v387
      %v389 = vpop.f32.mrb[0].mxu0
      %390 = vdwg.mxu0
      %v391 = vadd.f32 %v321, %v385
      %v392 = vadd.f32 %v324, %v388
      %v393 = vld [vmem:[%s192 + $0x3] sm:$0xff]
      %v394 = vld [vmem:[%s192 + $0xb] sm:$0x3]
      %v395 = vpack.c.bf16 %v394, %v393
      %s396 = scalar_lea.vmem %s1, 48
      %v397 = vld [vmem:[%s396] sm:$0xf]
      %v398 = vld [vmem:[%s396 + $0x4] sm:$0xf]
      %v399 = vld [vmem:[%s396 + $0x8] sm:$0xf]
      %v400 = vld [vmem:[%s396 + $0xc] sm:$0xf]
      %v405 = vunpack.c.l.b16 %v397
      %v406 = vunpack.c.l.b16 %v398
      %v407 = vunpack.c.l.b16 %v399
      %v408 = vunpack.c.l.b16 %v400
      %v409 = vpack.c.b16 %v406, %v405
      %v410 = vpack.c.b16 %v408, %v407
      %v414 = vsel %vm226, %v395, 0
      %416 = vmatprep.subr.bf16.mxu0 0
      %417 = vmatpush1.bf16.msra.mxu0 %v409
      %418 = vmatprep.subr.bf16.mxu0 0
      %419 = vmatpush1.bf16.msra.mxu0 %v410
      %420 = vmatprep.subr.bf16.mxu0 0
      %421 = vmatpush1.bf16.msra.mxu0 0
      %422 = vmatprep.subr.bf16.mxu0 0
      %423 = vmatpush1.bf16.msra.mxu0 0
      %424 = vmatprep.subr.bf16.mxu0 0
      %425 = vmatpush1.bf16.msra.mxu0 0
      %426 = vmatprep.subr.bf16.mxu0 0
      %427 = vmatpush1.bf16.msra.mxu0 0
      %428 = vmatprep.subr.bf16.mxu0 0
      %429 = vmatpush1.bf16.msra.mxu0 0
      %430 = vmatprep.subr.bf16.mxu0 0
      %431 = vmatpush1.bf16.msra.mxu0 0
      %432 = vmatprep.subr.bf16.mxu0 0
      %433 = vmatpush1.bf16.msra.mxu0 0
      %434 = vmatprep.subr.bf16.mxu0 0
      %435 = vmatpush1.bf16.msra.mxu0 0
      %436 = vmatprep.subr.bf16.mxu0 0
      %437 = vmatpush1.bf16.msra.mxu0 0
      %438 = vmatprep.subr.bf16.mxu0 0
      %439 = vmatpush1.bf16.msra.mxu0 0
      %440 = vmatprep.subr.bf16.mxu0 0
      %441 = vmatpush1.bf16.msra.mxu0 0
      %442 = vmatprep.subr.bf16.mxu0 0
      %443 = vmatpush1.bf16.msra.mxu0 0
      %444 = vmatprep.subr.bf16.mxu0 0
      %445 = vmatpush1.bf16.msra.mxu0 0
      %446 = vmatprep.subr.bf16.mxu0 0
      %447 = vmatpush1.bf16.msra.mxu0 0
      %448 = vmatprep.mubr.bf16.mxu0 0
      %449 = vmatmul.mubr.bf16.gmra.mrb[0].mxu0 %v414
      %v450 = vpop.f32.mrb[0].mxu0
      %v451 = vadd.f32 0.0, %v450
      %v452 = vpop.f32.mrb[0].mxu0
      %v453 = vpop.f32.mrb[0].mxu0
      %v454 = vadd.f32 0.0, %v453
      %v455 = vpop.f32.mrb[0].mxu0
      %456 = vdwg.mxu0
      %v457 = vadd.f32 %v391, %v451
      %v458 = vadd.f32 %v392, %v454
      %v459 = vld [vmem:[%s192 + $0x5] sm:$0xff]
      %v460 = vld [vmem:[%s192 + $0xd] sm:$0x3]
      %v461 = vpack.c.bf16 %v460, %v459
      %s462 = scalar_lea.vmem %s1, 64
      %v463 = vld [vmem:[%s462] sm:$0xf]
      %v464 = vld [vmem:[%s462 + $0x4] sm:$0xf]
      %v465 = vld [vmem:[%s462 + $0x8] sm:$0xf]
      %v466 = vld [vmem:[%s462 + $0xc] sm:$0xf]
      %v471 = vunpack.c.l.b16 %v463
      %v472 = vunpack.c.l.b16 %v464
      %v473 = vunpack.c.l.b16 %v465
      %v474 = vunpack.c.l.b16 %v466
      %v475 = vpack.c.b16 %v472, %v471
      %v476 = vpack.c.b16 %v474, %v473
      %v480 = vsel %vm226, %v461, 0
      %482 = vmatprep.subr.bf16.mxu0 0
      %483 = vmatpush1.bf16.msra.mxu0 %v475
      %484 = vmatprep.subr.bf16.mxu0 0
      %485 = vmatpush1.bf16.msra.mxu0 %v476
      %486 = vmatprep.subr.bf16.mxu0 0
      %487 = vmatpush1.bf16.msra.mxu0 0
      %488 = vmatprep.subr.bf16.mxu0 0
      %489 = vmatpush1.bf16.msra.mxu0 0
      %490 = vmatprep.subr.bf16.mxu0 0
      %491 = vmatpush1.bf16.msra.mxu0 0
      %492 = vmatprep.subr.bf16.mxu0 0
      %493 = vmatpush1.bf16.msra.mxu0 0
      %494 = vmatprep.subr.bf16.mxu0 0
      %495 = vmatpush1.bf16.msra.mxu0 0
      %496 = vmatprep.subr.bf16.mxu0 0
      %497 = vmatpush1.bf16.msra.mxu0 0
      %498 = vmatprep.subr.bf16.mxu0 0
      %499 = vmatpush1.bf16.msra.mxu0 0
      %500 = vmatprep.subr.bf16.mxu0 0
      %501 = vmatpush1.bf16.msra.mxu0 0
      %502 = vmatprep.subr.bf16.mxu0 0
      %503 = vmatpush1.bf16.msra.mxu0 0
      %504 = vmatprep.subr.bf16.mxu0 0
      %505 = vmatpush1.bf16.msra.mxu0 0
      %506 = vmatprep.subr.bf16.mxu0 0
      %507 = vmatpush1.bf16.msra.mxu0 0
      %508 = vmatprep.subr.bf16.mxu0 0
      %509 = vmatpush1.bf16.msra.mxu0 0
      %510 = vmatprep.subr.bf16.mxu0 0
      %511 = vmatpush1.bf16.msra.mxu0 0
      %512 = vmatprep.subr.bf16.mxu0 0
      %513 = vmatpush1.bf16.msra.mxu0 0
      %514 = vmatprep.mubr.bf16.mxu0 0
      %515 = vmatmul.mubr.bf16.gmra.mrb[0].mxu0 %v480
      %v516 = vpop.f32.mrb[0].mxu0
      %v517 = vadd.f32 0.0, %v516
      %v518 = vpop.f32.mrb[0].mxu0
      %v519 = vpop.f32.mrb[0].mxu0
      %v520 = vadd.f32 0.0, %v519
      %v521 = vpop.f32.mrb[0].mxu0
      %522 = vdwg.mxu0
      %v523 = vadd.f32 %v457, %v517
      %v524 = vadd.f32 %v458, %v520
      %v525 = vld [vmem:[%s192 + $0x6] sm:$0xff]
      %v526 = vld [vmem:[%s192 + $0xe] sm:$0x3]
      %v527 = vpack.c.bf16 %v526, %v525
      %s528 = scalar_lea.vmem %s1, 80
      %v529 = vld [vmem:[%s528] sm:$0xf]
      %v530 = vld [vmem:[%s528 + $0x4] sm:$0xf]
      %v531 = vld [vmem:[%s528 + $0x8] sm:$0xf]
      %v532 = vld [vmem:[%s528 + $0xc] sm:$0xf]
      %v537 = vunpack.c.l.b16 %v529
      %v538 = vunpack.c.l.b16 %v530
      %v539 = vunpack.c.l.b16 %v531
      %v540 = vunpack.c.l.b16 %v532
      %v541 = vpack.c.b16 %v538, %v537
      %v542 = vpack.c.b16 %v540, %v539
      %v546 = vsel %vm226, %v527, 0
      %548 = vmatprep.subr.bf16.mxu0 0
      %549 = vmatpush1.bf16.msra.mxu0 %v541
      %550 = vmatprep.subr.bf16.mxu0 0
      %551 = vmatpush1.bf16.msra.mxu0 %v542
      %552 = vmatprep.subr.bf16.mxu0 0
      %553 = vmatpush1.bf16.msra.mxu0 0
      %554 = vmatprep.subr.bf16.mxu0 0
      %555 = vmatpush1.bf16.msra.mxu0 0
      %556 = vmatprep.subr.bf16.mxu0 0
      %557 = vmatpush1.bf16.msra.mxu0 0
      %558 = vmatprep.subr.bf16.mxu0 0
      %559 = vmatpush1.bf16.msra.mxu0 0
      %560 = vmatprep.subr.bf16.mxu0 0
      %561 = vmatpush1.bf16.msra.mxu0 0
      %562 = vmatprep.subr.bf16.mxu0 0
      %563 = vmatpush1.bf16.msra.mxu0 0
      %564 = vmatprep.subr.bf16.mxu0 0
      %565 = vmatpush1.bf16.msra.mxu0 0
      %566 = vmatprep.subr.bf16.mxu0 0
      %567 = vmatpush1.bf16.msra.mxu0 0
      %568 = vmatprep.subr.bf16.mxu0 0
      %569 = vmatpush1.bf16.msra.mxu0 0
      %570 = vmatprep.subr.bf16.mxu0 0
      %571 = vmatpush1.bf16.msra.mxu0 0
      %572 = vmatprep.subr.bf16.mxu0 0
      %573 = vmatpush1.bf16.msra.mxu0 0
      %574 = vmatprep.subr.bf16.mxu0 0
      %575 = vmatpush1.bf16.msra.mxu0 0
      %576 = vmatprep.subr.bf16.mxu0 0
      %577 = vmatpush1.bf16.msra.mxu0 0
      %578 = vmatprep.subr.bf16.mxu0 0
      %579 = vmatpush1.bf16.msra.mxu0 0
      %580 = vmatprep.mubr.bf16.mxu0 0
      %581 = vmatmul.mubr.bf16.gmra.mrb[0].mxu0 %v546
      %v582 = vpop.f32.mrb[0].mxu0
      %v583 = vadd.f32 0.0, %v582
      %v584 = vpop.f32.mrb[0].mxu0
      %v585 = vpop.f32.mrb[0].mxu0
      %v586 = vadd.f32 0.0, %v585
      %v587 = vpop.f32.mrb[0].mxu0
      %588 = vdwg.mxu0
      %v589 = vadd.f32 %v523, %v583
      %v590 = vadd.f32 %v524, %v586
      %v591 = vld [vmem:[%s192 + $0x7] sm:$0xff]
      %v592 = vld [vmem:[%s192 + $0xf] sm:$0x3]
      %v593 = vpack.c.bf16 %v592, %v591
      %s594 = scalar_lea.vmem %s1, 96
      %v595 = vld [vmem:[%s594] sm:$0xf]
      %v596 = vld [vmem:[%s594 + $0x4] sm:$0xf]
      %v597 = vld [vmem:[%s594 + $0x8] sm:$0xf]
      %v598 = vld [vmem:[%s594 + $0xc] sm:$0xf]
      %v603 = vunpack.c.l.b16 %v595
      %v604 = vunpack.c.l.b16 %v596
      %v605 = vunpack.c.l.b16 %v597
      %v606 = vunpack.c.l.b16 %v598
      %v607 = vpack.c.b16 %v604, %v603
      %v608 = vpack.c.b16 %v606, %v605
      %v612 = vsel %vm226, %v593, 0
      %614 = vmatprep.subr.bf16.mxu0 0
      %615 = vmatpush1.bf16.msra.mxu0 %v607
      %616 = vmatprep.subr.bf16.mxu0 0
      %617 = vmatpush1.bf16.msra.mxu0 %v608
      %618 = vmatprep.subr.bf16.mxu0 0
      %619 = vmatpush1.bf16.msra.mxu0 0
      %620 = vmatprep.subr.bf16.mxu0 0
      %621 = vmatpush1.bf16.msra.mxu0 0
      %622 = vmatprep.subr.bf16.mxu0 0
      %623 = vmatpush1.bf16.msra.mxu0 0
      %624 = vmatprep.subr.bf16.mxu0 0
      %625 = vmatpush1.bf16.msra.mxu0 0
      %626 = vmatprep.subr.bf16.mxu0 0
      %627 = vmatpush1.bf16.msra.mxu0 0
      %628 = vmatprep.subr.bf16.mxu0 0
      %629 = vmatpush1.bf16.msra.mxu0 0
      %630 = vmatprep.subr.bf16.mxu0 0
      %631 = vmatpush1.bf16.msra.mxu0 0
      %632 = vmatprep.subr.bf16.mxu0 0
      %633 = vmatpush1.bf16.msra.mxu0 0
      %634 = vmatprep.subr.bf16.mxu0 0
      %635 = vmatpush1.bf16.msra.mxu0 0
      %636 = vmatprep.subr.bf16.mxu0 0
      %637 = vmatpush1.bf16.msra.mxu0 0
      %638 = vmatprep.subr.bf16.mxu0 0
      %639 = vmatpush1.bf16.msra.mxu0 0
      %640 = vmatprep.subr.bf16.mxu0 0
      %641 = vmatpush1.bf16.msra.mxu0 0
      %642 = vmatprep.subr.bf16.mxu0 0
      %643 = vmatpush1.bf16.msra.mxu0 0
      %644 = vmatprep.subr.bf16.mxu0 0
      %645 = vmatpush1.bf16.msra.mxu0 0
      %646 = vmatprep.mubr.bf16.mxu0 0
      %647 = vmatmul.mubr.bf16.gmra.mrb[0].mxu0 %v612
      %v648 = vpop.f32.mrb[0].mxu0
      %v649 = vadd.f32 0.0, %v648
      %v650 = vpop.f32.mrb[0].mxu0
      %v651 = vpop.f32.mrb[0].mxu0
      %v652 = vadd.f32 0.0, %v651
      %v653 = vpop.f32.mrb[0].mxu0
      %654 = vdwg.mxu0
      %v655 = vadd.f32 %v589, %v649
      %v656 = vadd.f32 %v590, %v652
      %v657 = vld [vmem:[%s192 + $0x8] sm:$0xff]
      %v658 = vld [vmem:[%s192 + $0x10] sm:$0x3]
      %v659 = vpack.c.bf16 %v658, %v657
      %s660 = scalar_lea.vmem %s1, 112
      %v661 = vld [vmem:[%s660] sm:$0xf]
      %v662 = vld [vmem:[%s660 + $0x4] sm:$0xf]
      %v663 = vld [vmem:[%s660 + $0x8] sm:$0xf]
      %v664 = vld [vmem:[%s660 + $0xc] sm:$0xf]
      %v669 = vunpack.c.l.b16 %v661
      %v670 = vunpack.c.l.b16 %v662
      %v671 = vunpack.c.l.b16 %v663
      %v672 = vunpack.c.l.b16 %v664
      %v673 = vpack.c.b16 %v670, %v669
      %v674 = vpack.c.b16 %v672, %v671
      %v678 = vsel %vm226, %v659, 0
      %680 = vmatprep.subr.bf16.mxu0 0
      %681 = vmatpush1.bf16.msra.mxu0 %v673
      %682 = vmatprep.subr.bf16.mxu0 0
      %683 = vmatpush1.bf16.msra.mxu0 %v674
      %684 = vmatprep.subr.bf16.mxu0 0
      %685 = vmatpush1.bf16.msra.mxu0 0
      %686 = vmatprep.subr.bf16.mxu0 0
      %687 = vmatpush1.bf16.msra.mxu0 0
      %688 = vmatprep.subr.bf16.mxu0 0
      %689 = vmatpush1.bf16.msra.mxu0 0
      %690 = vmatprep.subr.bf16.mxu0 0
      %691 = vmatpush1.bf16.msra.mxu0 0
      %692 = vmatprep.subr.bf16.mxu0 0
      %693 = vmatpush1.bf16.msra.mxu0 0
      %694 = vmatprep.subr.bf16.mxu0 0
      %695 = vmatpush1.bf16.msra.mxu0 0
      %696 = vmatprep.subr.bf16.mxu0 0
      %697 = vmatpush1.bf16.msra.mxu0 0
      %698 = vmatprep.subr.bf16.mxu0 0
      %699 = vmatpush1.bf16.msra.mxu0 0
      %700 = vmatprep.subr.bf16.mxu0 0
      %701 = vmatpush1.bf16.msra.mxu0 0
      %702 = vmatprep.subr.bf16.mxu0 0
      %703 = vmatpush1.bf16.msra.mxu0 0
      %704 = vmatprep.subr.bf16.mxu0 0
      %705 = vmatpush1.bf16.msra.mxu0 0
      %706 = vmatprep.subr.bf16.mxu0 0
      %707 = vmatpush1.bf16.msra.mxu0 0
      %708 = vmatprep.subr.bf16.mxu0 0
      %709 = vmatpush1.bf16.msra.mxu0 0
      %710 = vmatprep.subr.bf16.mxu0 0
      %711 = vmatpush1.bf16.msra.mxu0 0
      %712 = vmatprep.mubr.bf16.mxu0 0
      %713 = vmatmul.mubr.bf16.gmra.mrb[0].mxu0 %v678
      %v714 = vpop.f32.mrb[0].mxu0
      %v715 = vadd.f32 0.0, %v714
      %v716 = vpop.f32.mrb[0].mxu0
      %v717 = vpop.f32.mrb[0].mxu0
      %v718 = vadd.f32 0.0, %v717
      %v719 = vpop.f32.mrb[0].mxu0
      %720 = vdwg.mxu0
      %v721 = vadd.f32 %v655, %v715
      %v722 = vadd.f32 %v656, %v718
      %v723 = vld [vmem:[%s192 + $0xa] sm:$0xff]
      %v724 = vld [vmem:[%s192 + $0x12] sm:$0x3]
      %v725 = vpack.c.bf16 %v724, %v723
      %s726 = scalar_lea.vmem %s1, 128
      %v727 = vld [vmem:[%s726] sm:$0xf]
      %v728 = vld [vmem:[%s726 + $0x4] sm:$0xf]
      %v729 = vld [vmem:[%s726 + $0x8] sm:$0xf]
      %v730 = vld [vmem:[%s726 + $0xc] sm:$0xf]
      %v735 = vunpack.c.l.b16 %v727
      %v736 = vunpack.c.l.b16 %v728
      %v737 = vunpack.c.l.b16 %v729
      %v738 = vunpack.c.l.b16 %v730
      %v739 = vpack.c.b16 %v736, %v735
      %v740 = vpack.c.b16 %v738, %v737
      %v744 = vsel %vm226, %v725, 0
      %746 = vmatprep.subr.bf16.mxu0 0
      %747 = vmatpush1.bf16.msra.mxu0 %v739
      %748 = vmatprep.subr.bf16.mxu0 0
      %749 = vmatpush1.bf16.msra.mxu0 %v740
      %750 = vmatprep.subr.bf16.mxu0 0
      %751 = vmatpush1.bf16.msra.mxu0 0
      %752 = vmatprep.subr.bf16.mxu0 0
      %753 = vmatpush1.bf16.msra.mxu0 0
      %754 = vmatprep.subr.bf16.mxu0 0
      %755 = vmatpush1.bf16.msra.mxu0 0
      %756 = vmatprep.subr.bf16.mxu0 0
      %757 = vmatpush1.bf16.msra.mxu0 0
      %758 = vmatprep.subr.bf16.mxu0 0
      %759 = vmatpush1.bf16.msra.mxu0 0
      %760 = vmatprep.subr.bf16.mxu0 0
      %761 = vmatpush1.bf16.msra.mxu0 0
      %762 = vmatprep.subr.bf16.mxu0 0
      %763 = vmatpush1.bf16.msra.mxu0 0
      %764 = vmatprep.subr.bf16.mxu0 0
      %765 = vmatpush1.bf16.msra.mxu0 0
      %766 = vmatprep.subr.bf16.mxu0 0
      %767 = vmatpush1.bf16.msra.mxu0 0
      %768 = vmatprep.subr.bf16.mxu0 0
      %769 = vmatpush1.bf16.msra.mxu0 0
      %770 = vmatprep.subr.bf16.mxu0 0
      %771 = vmatpush1.bf16.msra.mxu0 0
      %772 = vmatprep.subr.bf16.mxu0 0
      %773 = vmatpush1.bf16.msra.mxu0 0
      %774 = vmatprep.subr.bf16.mxu0 0
      %775 = vmatpush1.bf16.msra.mxu0 0
      %776 = vmatprep.subr.bf16.mxu0 0
      %777 = vmatpush1.bf16.msra.mxu0 0
      %778 = vmatprep.mubr.bf16.mxu0 0
      %779 = vmatmul.mubr.bf16.gmra.mrb[0].mxu0 %v744
      %v780 = vpop.f32.mrb[0].mxu0
      %v781 = vadd.f32 0.0, %v780
      %v782 = vpop.f32.mrb[0].mxu0
      %v783 = vpop.f32.mrb[0].mxu0
      %v784 = vadd.f32 0.0, %v783
      %v785 = vpop.f32.mrb[0].mxu0
      %786 = vdwg.mxu0
      %v787 = vadd.f32 %v721, %v781
      %v788 = vadd.f32 %v722, %v784
      %v789 = vld [vmem:[%s192 + $0xb] sm:$0xff]
      %v790 = vld [vmem:[%s192 + $0x13] sm:$0x3]
      %v791 = vpack.c.bf16 %v790, %v789
      %s792 = scalar_lea.vmem %s1, 144
      %v793 = vld [vmem:[%s792] sm:$0xf]
      %v794 = vld [vmem:[%s792 + $0x4] sm:$0xf]
      %v795 = vld [vmem:[%s792 + $0x8] sm:$0xf]
      %v796 = vld [vmem:[%s792 + $0xc] sm:$0xf]
      %v801 = vunpack.c.l.b16 %v793
      %v802 = vunpack.c.l.b16 %v794
      %v803 = vunpack.c.l.b16 %v795
      %v804 = vunpack.c.l.b16 %v796
      %v805 = vpack.c.b16 %v802, %v801
      %v806 = vpack.c.b16 %v804, %v803
      %v810 = vsel %vm226, %v791, 0
      %812 = vmatprep.subr.bf16.mxu0 0
      %813 = vmatpush1.bf16.msra.mxu0 %v805
      %814 = vmatprep.subr.bf16.mxu0 0
      %815 = vmatpush1.bf16.msra.mxu0 %v806
      %816 = vmatprep.subr.bf16.mxu0 0
      %817 = vmatpush1.bf16.msra.mxu0 0
      %818 = vmatprep.subr.bf16.mxu0 0
      %819 = vmatpush1.bf16.msra.mxu0 0
      %820 = vmatprep.subr.bf16.mxu0 0
      %821 = vmatpush1.bf16.msra.mxu0 0
      %822 = vmatprep.subr.bf16.mxu0 0
      %823 = vmatpush1.bf16.msra.mxu0 0
      %824 = vmatprep.subr.bf16.mxu0 0
      %825 = vmatpush1.bf16.msra.mxu0 0
      %826 = vmatprep.subr.bf16.mxu0 0
      %827 = vmatpush1.bf16.msra.mxu0 0
      %828 = vmatprep.subr.bf16.mxu0 0
      %829 = vmatpush1.bf16.msra.mxu0 0
      %830 = vmatprep.subr.bf16.mxu0 0
      %831 = vmatpush1.bf16.msra.mxu0 0
      %832 = vmatprep.subr.bf16.mxu0 0
      %833 = vmatpush1.bf16.msra.mxu0 0
      %834 = vmatprep.subr.bf16.mxu0 0
      %835 = vmatpush1.bf16.msra.mxu0 0
      %836 = vmatprep.subr.bf16.mxu0 0
      %837 = vmatpush1.bf16.msra.mxu0 0
      %838 = vmatprep.subr.bf16.mxu0 0
      %839 = vmatpush1.bf16.msra.mxu0 0
      %840 = vmatprep.subr.bf16.mxu0 0
      %841 = vmatpush1.bf16.msra.mxu0 0
      %842 = vmatprep.subr.bf16.mxu0 0
      %843 = vmatpush1.bf16.msra.mxu0 0
      %844 = vmatprep.mubr.bf16.mxu0 0
      %845 = vmatmul.mubr.bf16.gmra.mrb[0].mxu0 %v810
      %v846 = vpop.f32.mrb[0].mxu0
      %v847 = vadd.f32 0.0, %v846
      %v848 = vpop.f32.mrb[0].mxu0
      %v849 = vpop.f32.mrb[0].mxu0
      %v850 = vadd.f32 0.0, %v849
      %v851 = vpop.f32.mrb[0].mxu0
      %852 = vdwg.mxu0
      %v853 = vadd.f32 %v787, %v847
      %v854 = vadd.f32 %v788, %v850
      %v855 = vld [vmem:[%s192 + $0xc] sm:$0xff]
      %v856 = vld [vmem:[%s192 + $0x14] sm:$0x3]
      %v857 = vpack.c.bf16 %v856, %v855
      %s858 = scalar_lea.vmem %s1, 160
      %v859 = vld [vmem:[%s858] sm:$0xf]
      %v860 = vld [vmem:[%s858 + $0x4] sm:$0xf]
      %v861 = vld [vmem:[%s858 + $0x8] sm:$0xf]
      %v862 = vld [vmem:[%s858 + $0xc] sm:$0xf]
      %v867 = vunpack.c.l.b16 %v859
      %v868 = vunpack.c.l.b16 %v860
      %v869 = vunpack.c.l.b16 %v861
      %v870 = vunpack.c.l.b16 %v862
      %v871 = vpack.c.b16 %v868, %v867
      %v872 = vpack.c.b16 %v870, %v869
      %v876 = vsel %vm226, %v857, 0
      %878 = vmatprep.subr.bf16.mxu0 0
      %879 = vmatpush1.bf16.msra.mxu0 %v871
      %880 = vmatprep.subr.bf16.mxu0 0
      %881 = vmatpush1.bf16.msra.mxu0 %v872
      %882 = vmatprep.subr.bf16.mxu0 0
      %883 = vmatpush1.bf16.msra.mxu0 0
      %884 = vmatprep.subr.bf16.mxu0 0
      %885 = vmatpush1.bf16.msra.mxu0 0
      %886 = vmatprep.subr.bf16.mxu0 0
      %887 = vmatpush1.bf16.msra.mxu0 0
      %888 = vmatprep.subr.bf16.mxu0 0
      %889 = vmatpush1.bf16.msra.mxu0 0
      %890 = vmatprep.subr.bf16.mxu0 0
      %891 = vmatpush1.bf16.msra.mxu0 0
      %892 = vmatprep.subr.bf16.mxu0 0
      %893 = vmatpush1.bf16.msra.mxu0 0
      %894 = vmatprep.subr.bf16.mxu0 0
      %895 = vmatpush1.bf16.msra.mxu0 0
      %896 = vmatprep.subr.bf16.mxu0 0
      %897 = vmatpush1.bf16.msra.mxu0 0
      %898 = vmatprep.subr.bf16.mxu0 0
      %899 = vmatpush1.bf16.msra.mxu0 0
      %900 = vmatprep.subr.bf16.mxu0 0
      %901 = vmatpush1.bf16.msra.mxu0 0
      %902 = vmatprep.subr.bf16.mxu0 0
      %903 = vmatpush1.bf16.msra.mxu0 0
      %904 = vmatprep.subr.bf16.mxu0 0
      %905 = vmatpush1.bf16.msra.mxu0 0
      %906 = vmatprep.subr.bf16.mxu0 0
      %907 = vmatpush1.bf16.msra.mxu0 0
      %908 = vmatprep.subr.bf16.mxu0 0
      %909 = vmatpush1.bf16.msra.mxu0 0
      %910 = vmatprep.mubr.bf16.mxu0 0
      %911 = vmatmul.mubr.bf16.gmra.mrb[0].mxu0 %v876
      %v912 = vpop.f32.mrb[0].mxu0
      %v913 = vadd.f32 0.0, %v912
      %v914 = vpop.f32.mrb[0].mxu0
      %v915 = vpop.f32.mrb[0].mxu0
      %v916 = vadd.f32 0.0, %v915
      %v917 = vpop.f32.mrb[0].mxu0
      %918 = vdwg.mxu0
      %v919 = vadd.f32 %v853, %v913
      %v920 = vadd.f32 %v854, %v916
      %v921 = vld [vmem:[%s192 + $0xd] sm:$0xff]
      %v922 = vld [vmem:[%s192 + $0x15] sm:$0x3]
      %v923 = vpack.c.bf16 %v922, %v921
      %s924 = scalar_lea.vmem %s1, 176
      %v925 = vld [vmem:[%s924] sm:$0xf]
      %v926 = vld [vmem:[%s924 + $0x4] sm:$0xf]
      %v927 = vld [vmem:[%s924 + $0x8] sm:$0xf]
      %v928 = vld [vmem:[%s924 + $0xc] sm:$0xf]
      %v933 = vunpack.c.l.b16 %v925
      %v934 = vunpack.c.l.b16 %v926
      %v935 = vunpack.c.l.b16 %v927
      %v936 = vunpack.c.l.b16 %v928
      %v937 = vpack.c.b16 %v934, %v933
      %v938 = vpack.c.b16 %v936, %v935
      %v942 = vsel %vm226, %v923, 0
      %944 = vmatprep.subr.bf16.mxu0 0
      %945 = vmatpush1.bf16.msra.mxu0 %v937
      %946 = vmatprep.subr.bf16.mxu0 0
      %947 = vmatpush1.bf16.msra.mxu0 %v938
      %948 = vmatprep.subr.bf16.mxu0 0
      %949 = vmatpush1.bf16.msra.mxu0 0
      %950 = vmatprep.subr.bf16.mxu0 0
      %951 = vmatpush1.bf16.msra.mxu0 0
      %952 = vmatprep.subr.bf16.mxu0 0
      %953 = vmatpush1.bf16.msra.mxu0 0
      %954 = vmatprep.subr.bf16.mxu0 0
      %955 = vmatpush1.bf16.msra.mxu0 0
      %956 = vmatprep.subr.bf16.mxu0 0
      %957 = vmatpush1.bf16.msra.mxu0 0
      %958 = vmatprep.subr.bf16.mxu0 0
      %959 = vmatpush1.bf16.msra.mxu0 0
      %960 = vmatprep.subr.bf16.mxu0 0
      %961 = vmatpush1.bf16.msra.mxu0 0
      %962 = vmatprep.subr.bf16.mxu0 0
      %963 = vmatpush1.bf16.msra.mxu0 0
      %964 = vmatprep.subr.bf16.mxu0 0
      %965 = vmatpush1.bf16.msra.mxu0 0
      %966 = vmatprep.subr.bf16.mxu0 0
      %967 = vmatpush1.bf16.msra.mxu0 0
      %968 = vmatprep.subr.bf16.mxu0 0
      %969 = vmatpush1.bf16.msra.mxu0 0
      %970 = vmatprep.subr.bf16.mxu0 0
      %971 = vmatpush1.bf16.msra.mxu0 0
      %972 = vmatprep.subr.bf16.mxu0 0
      %973 = vmatpush1.bf16.msra.mxu0 0
      %974 = vmatprep.subr.bf16.mxu0 0
      %975 = vmatpush1.bf16.msra.mxu0 0
      %976 = vmatprep.mubr.bf16.mxu0 0
      %977 = vmatmul.mubr.bf16.gmra.mrb[0].mxu0 %v942
      %v978 = vpop.f32.mrb[0].mxu0
      %v979 = vadd.f32 0.0, %v978
      %v980 = vpop.f32.mrb[0].mxu0
      %v981 = vpop.f32.mrb[0].mxu0
      %v982 = vadd.f32 0.0, %v981
      %v983 = vpop.f32.mrb[0].mxu0
      %984 = vdwg.mxu0
      %v985 = vadd.f32 %v919, %v979
      %v986 = vadd.f32 %v920, %v982
      %v987 = vld [vmem:[%s192 + $0xf] sm:$0xff]
      %v988 = vld [vmem:[%s192 + $0x17] sm:$0x3]
      %v989 = vpack.c.bf16 %v988, %v987
      %s990 = scalar_lea.vmem %s1, 192
      %v991 = vld [vmem:[%s990] sm:$0xf]
      %v992 = vld [vmem:[%s990 + $0x4] sm:$0xf]
      %v993 = vld [vmem:[%s990 + $0x8] sm:$0xf]
      %v994 = vld [vmem:[%s990 + $0xc] sm:$0xf]
      %v999 = vunpack.c.l.b16 %v991
      %v1000 = vunpack.c.l.b16 %v992
      %v1001 = vunpack.c.l.b16 %v993
      %v1002 = vunpack.c.l.b16 %v994
      %v1003 = vpack.c.b16 %v1000, %v999
      %v1004 = vpack.c.b16 %v1002, %v1001
      %v1008 = vsel %vm226, %v989, 0
      %1010 = vmatprep.subr.bf16.mxu0 0
      %1011 = vmatpush1.bf16.msra.mxu0 %v1003
      %1012 = vmatprep.subr.bf16.mxu0 0
      %1013 = vmatpush1.bf16.msra.mxu0 %v1004
      %1014 = vmatprep.subr.bf16.mxu0 0
      %1015 = vmatpush1.bf16.msra.mxu0 0
      %1016 = vmatprep.subr.bf16.mxu0 0
      %1017 = vmatpush1.bf16.msra.mxu0 0
      %1018 = vmatprep.subr.bf16.mxu0 0
      %1019 = vmatpush1.bf16.msra.mxu0 0
      %1020 = vmatprep.subr.bf16.mxu0 0
      %1021 = vmatpush1.bf16.msra.mxu0 0
      %1022 = vmatprep.subr.bf16.mxu0 0
      %1023 = vmatpush1.bf16.msra.mxu0 0
      %1024 = vmatprep.subr.bf16.mxu0 0
      %1025 = vmatpush1.bf16.msra.mxu0 0
      %1026 = vmatprep.subr.bf16.mxu0 0
      %1027 = vmatpush1.bf16.msra.mxu0 0
      %1028 = vmatprep.subr.bf16.mxu0 0
      %1029 = vmatpush1.bf16.msra.mxu0 0
      %1030 = vmatprep.subr.bf16.mxu0 0
      %1031 = vmatpush1.bf16.msra.mxu0 0
      %1032 = vmatprep.subr.bf16.mxu0 0
      %1033 = vmatpush1.bf16.msra.mxu0 0
      %1034 = vmatprep.subr.bf16.mxu0 0
      %1035 = vmatpush1.bf16.msra.mxu0 0
      %1036 = vmatprep.subr.bf16.mxu0 0
      %1037 = vmatpush1.bf16.msra.mxu0 0
      %1038 = vmatprep.subr.bf16.mxu0 0
      %1039 = vmatpush1.bf16.msra.mxu0 0
      %1040 = vmatprep.subr.bf16.mxu0 0
      %1041 = vmatpush1.bf16.msra.mxu0 0
      %1042 = vmatprep.mubr.bf16.mxu0 0
      %1043 = vmatmul.mubr.bf16.gmra.mrb[0].mxu0 %v1008
      %v1044 = vpop.f32.mrb[0].mxu0
      %v1045 = vadd.f32 0.0, %v1044
      %v1046 = vpop.f32.mrb[0].mxu0
      %v1047 = vpop.f32.mrb[0].mxu0
      %v1048 = vadd.f32 0.0, %v1047
      %v1049 = vpop.f32.mrb[0].mxu0
      %1050 = vdwg.mxu0
      %v1051 = vadd.f32 %v985, %v1045
      %v1052 = vadd.f32 %v986, %v1048
      %v1053 = vld [vmem:[%s192 + $0x10] sm:$0xff]
      %v1054 = vld [vmem:[%s192 + $0x18] sm:$0x3]
      %v1055 = vpack.c.bf16 %v1054, %v1053
      %s1056 = scalar_lea.vmem %s1, 208
      %v1057 = vld [vmem:[%s1056] sm:$0xf]
      %v1058 = vld [vmem:[%s1056 + $0x4] sm:$0xf]
      %v1059 = vld [vmem:[%s1056 + $0x8] sm:$0xf]
      %v1060 = vld [vmem:[%s1056 + $0xc] sm:$0xf]
      %v1065 = vunpack.c.l.b16 %v1057
      %v1066 = vunpack.c.l.b16 %v1058
      %v1067 = vunpack.c.l.b16 %v1059
      %v1068 = vunpack.c.l.b16 %v1060
      %v1069 = vpack.c.b16 %v1066, %v1065
      %v1070 = vpack.c.b16 %v1068, %v1067
      %v1074 = vsel %vm226, %v1055, 0
      %1076 = vmatprep.subr.bf16.mxu0 0
      %1077 = vmatpush1.bf16.msra.mxu0 %v1069
      %1078 = vmatprep.subr.bf16.mxu0 0
      %1079 = vmatpush1.bf16.msra.mxu0 %v1070
      %1080 = vmatprep.subr.bf16.mxu0 0
      %1081 = vmatpush1.bf16.msra.mxu0 0
      %1082 = vmatprep.subr.bf16.mxu0 0
      %1083 = vmatpush1.bf16.msra.mxu0 0
      %1084 = vmatprep.subr.bf16.mxu0 0
      %1085 = vmatpush1.bf16.msra.mxu0 0
      %1086 = vmatprep.subr.bf16.mxu0 0
      %1087 = vmatpush1.bf16.msra.mxu0 0
      %1088 = vmatprep.subr.bf16.mxu0 0
      %1089 = vmatpush1.bf16.msra.mxu0 0
      %1090 = vmatprep.subr.bf16.mxu0 0
      %1091 = vmatpush1.bf16.msra.mxu0 0
      %1092 = vmatprep.subr.bf16.mxu0 0
      %1093 = vmatpush1.bf16.msra.mxu0 0
      %1094 = vmatprep.subr.bf16.mxu0 0
      %1095 = vmatpush1.bf16.msra.mxu0 0
      %1096 = vmatprep.subr.bf16.mxu0 0
      %1097 = vmatpush1.bf16.msra.mxu0 0
      %1098 = vmatprep.subr.bf16.mxu0 0
      %1099 = vmatpush1.bf16.msra.mxu0 0
      %1100 = vmatprep.subr.bf16.mxu0 0
      %1101 = vmatpush1.bf16.msra.mxu0 0
      %1102 = vmatprep.subr.bf16.mxu0 0
      %1103 = vmatpush1.bf16.msra.mxu0 0
      %1104 = vmatprep.subr.bf16.mxu0 0
      %1105 = vmatpush1.bf16.msra.mxu0 0
      %1106 = vmatprep.subr.bf16.mxu0 0
      %1107 = vmatpush1.bf16.msra.mxu0 0
      %1108 = vmatprep.mubr.bf16.mxu0 0
      %1109 = vmatmul.mubr.bf16.gmra.mrb[0].mxu0 %v1074
      %v1110 = vpop.f32.mrb[0].mxu0
      %v1111 = vadd.f32 0.0, %v1110
      %v1112 = vpop.f32.mrb[0].mxu0
      %v1113 = vpop.f32.mrb[0].mxu0
      %v1114 = vadd.f32 0.0, %v1113
      %v1115 = vpop.f32.mrb[0].mxu0
      %1116 = vdwg.mxu0
      %v1117 = vadd.f32 %v1051, %v1111
      %v1118 = vadd.f32 %v1052, %v1114
      %v1119 = vld [vmem:[%s192 + $0x11] sm:$0xff]
      %v1120 = vld [vmem:[%s192 + $0x19] sm:$0x3]
      %v1121 = vpack.c.bf16 %v1120, %v1119
      %s1122 = scalar_lea.vmem %s1, 224
      %v1123 = vld [vmem:[%s1122] sm:$0xf]
      %v1124 = vld [vmem:[%s1122 + $0x4] sm:$0xf]
      %v1125 = vld [vmem:[%s1122 + $0x8] sm:$0xf]
      %v1126 = vld [vmem:[%s1122 + $0xc] sm:$0xf]
      %v1131 = vunpack.c.l.b16 %v1123
      %v1132 = vunpack.c.l.b16 %v1124
      %v1133 = vunpack.c.l.b16 %v1125
      %v1134 = vunpack.c.l.b16 %v1126
      %v1135 = vpack.c.b16 %v1132, %v1131
      %v1136 = vpack.c.b16 %v1134, %v1133
      %v1140 = vsel %vm226, %v1121, 0
      %1142 = vmatprep.subr.bf16.mxu0 0
      %1143 = vmatpush1.bf16.msra.mxu0 %v1135
      %1144 = vmatprep.subr.bf16.mxu0 0
      %1145 = vmatpush1.bf16.msra.mxu0 %v1136
      %1146 = vmatprep.subr.bf16.mxu0 0
      %1147 = vmatpush1.bf16.msra.mxu0 0
      %1148 = vmatprep.subr.bf16.mxu0 0
      %1149 = vmatpush1.bf16.msra.mxu0 0
      %1150 = vmatprep.subr.bf16.mxu0 0
      %1151 = vmatpush1.bf16.msra.mxu0 0
      %1152 = vmatprep.subr.bf16.mxu0 0
      %1153 = vmatpush1.bf16.msra.mxu0 0
      %1154 = vmatprep.subr.bf16.mxu0 0
      %1155 = vmatpush1.bf16.msra.mxu0 0
      %1156 = vmatprep.subr.bf16.mxu0 0
      %1157 = vmatpush1.bf16.msra.mxu0 0
      %1158 = vmatprep.subr.bf16.mxu0 0
      %1159 = vmatpush1.bf16.msra.mxu0 0
      %1160 = vmatprep.subr.bf16.mxu0 0
      %1161 = vmatpush1.bf16.msra.mxu0 0
      %1162 = vmatprep.subr.bf16.mxu0 0
      %1163 = vmatpush1.bf16.msra.mxu0 0
      %1164 = vmatprep.subr.bf16.mxu0 0
      %1165 = vmatpush1.bf16.msra.mxu0 0
      %1166 = vmatprep.subr.bf16.mxu0 0
      %1167 = vmatpush1.bf16.msra.mxu0 0
      %1168 = vmatprep.subr.bf16.mxu0 0
      %1169 = vmatpush1.bf16.msra.mxu0 0
      %1170 = vmatprep.subr.bf16.mxu0 0
      %1171 = vmatpush1.bf16.msra.mxu0 0
      %1172 = vmatprep.subr.bf16.mxu0 0
      %1173 = vmatpush1.bf16.msra.mxu0 0
      %1174 = vmatprep.mubr.bf16.mxu0 0
      %1175 = vmatmul.mubr.bf16.gmra.mrb[0].mxu0 %v1140
      %v1176 = vpop.f32.mrb[0].mxu0
      %v1177 = vadd.f32 0.0, %v1176
      %v1178 = vpop.f32.mrb[0].mxu0
      %v1179 = vpop.f32.mrb[0].mxu0
      %v1180 = vadd.f32 0.0, %v1179
      %v1181 = vpop.f32.mrb[0].mxu0
      %1182 = vdwg.mxu0
      %v1183 = vadd.f32 %v1117, %v1177
      %v1184 = vadd.f32 %v1118, %v1180
      %v1185 = vld [vmem:[%s192 + $0x12] sm:$0xff]
      %v1186 = vld [vmem:[%s192 + $0x1a] sm:$0x3]
      %v1187 = vpack.c.bf16 %v1186, %v1185
      %s1188 = scalar_lea.vmem %s1, 240
      %v1189 = vld [vmem:[%s1188] sm:$0xf]
      %v1190 = vld [vmem:[%s1188 + $0x4] sm:$0xf]
      %v1191 = vld [vmem:[%s1188 + $0x8] sm:$0xf]
      %v1192 = vld [vmem:[%s1188 + $0xc] sm:$0xf]
      %v1197 = vunpack.c.l.b16 %v1189
      %v1198 = vunpack.c.l.b16 %v1190
      %v1199 = vunpack.c.l.b16 %v1191
      %v1200 = vunpack.c.l.b16 %v1192
      %v1201 = vpack.c.b16 %v1198, %v1197
      %v1202 = vpack.c.b16 %v1200, %v1199
      %v1206 = vsel %vm226, %v1187, 0
      %1208 = vmatprep.subr.bf16.mxu0 0
      %1209 = vmatpush1.bf16.msra.mxu0 %v1201
      %1210 = vmatprep.subr.bf16.mxu0 0
      %1211 = vmatpush1.bf16.msra.mxu0 %v1202
      %1212 = vmatprep.subr.bf16.mxu0 0
      %1213 = vmatpush1.bf16.msra.mxu0 0
      %1214 = vmatprep.subr.bf16.mxu0 0
      %1215 = vmatpush1.bf16.msra.mxu0 0
      %1216 = vmatprep.subr.bf16.mxu0 0
      %1217 = vmatpush1.bf16.msra.mxu0 0
      %1218 = vmatprep.subr.bf16.mxu0 0
      %1219 = vmatpush1.bf16.msra.mxu0 0
      %1220 = vmatprep.subr.bf16.mxu0 0
      %1221 = vmatpush1.bf16.msra.mxu0 0
      %1222 = vmatprep.subr.bf16.mxu0 0
      %1223 = vmatpush1.bf16.msra.mxu0 0
      %1224 = vmatprep.subr.bf16.mxu0 0
      %1225 = vmatpush1.bf16.msra.mxu0 0
      %1226 = vmatprep.subr.bf16.mxu0 0
      %1227 = vmatpush1.bf16.msra.mxu0 0
      %1228 = vmatprep.subr.bf16.mxu0 0
      %1229 = vmatpush1.bf16.msra.mxu0 0
      %1230 = vmatprep.subr.bf16.mxu0 0
      %1231 = vmatpush1.bf16.msra.mxu0 0
      %1232 = vmatprep.subr.bf16.mxu0 0
      %1233 = vmatpush1.bf16.msra.mxu0 0
      %1234 = vmatprep.subr.bf16.mxu0 0
      %1235 = vmatpush1.bf16.msra.mxu0 0
      %1236 = vmatprep.subr.bf16.mxu0 0
      %1237 = vmatpush1.bf16.msra.mxu0 0
      %1238 = vmatprep.subr.bf16.mxu0 0
      %1239 = vmatpush1.bf16.msra.mxu0 0
      %1240 = vmatprep.mubr.bf16.mxu0 0
      %1241 = vmatmul.mubr.bf16.gmra.mrb[0].mxu0 %v1206
      %v1242 = vpop.f32.mrb[0].mxu0
      %v1243 = vadd.f32 0.0, %v1242
      %v1244 = vpop.f32.mrb[0].mxu0
      %v1245 = vpop.f32.mrb[0].mxu0
      %v1246 = vadd.f32 0.0, %v1245
      %v1247 = vpop.f32.mrb[0].mxu0
      %1248 = vdwg.mxu0
      %v1249 = vadd.f32 %v1183, %v1243
      %v1250 = vadd.f32 %v1184, %v1246
      %v1251 = vld [vmem:[%s2] sm:$0x1]
      %v1253 = vlaneseq
      %v1254 = vshrl.u32 %v1253, 7
      %v1255 = vsub.s32 0, %v1254
      %v1256 = vrot.slane %v1251, %v1255
      %v1258 = vadd.f32 %v1249, %v1256
      %v1259 = vadd.f32 %v1250, %v1256
      %v1260 = vxor.u32 %v1258, 2147483648
      %v1261 = vxor.u32 %v1259, 2147483648
      %v1262 = vmul.f32 %v1260, 1.442695
      %v1263 = vpow.pop %v1262
      %v1264 = vmul.f32 %v1261, 1.442695
      %v1265 = vpow.pop %v1264
      %v1266 = vadd.f32 %v1263, 1.0
      %v1267 = vadd.f32 %v1265, 1.0
      %v1268 = vrcp.pop %v1266
      %v1269 = vmul.f32 1.0, %v1268
      %v1270 = vrcp.pop %v1267
      %v1271 = vmul.f32 1.0, %v1270
      %1272 = vst [vmem:[%s197] sm:$0xff] %v1269
      %1273 = vst [vmem:[%s197 + $0x8] sm:$0x3] %v1271
      %p1274 = scmp.lt.s32.totalorder %s15, 1
      %s1275 = scalar_select %p1274, %s15, 1
      %s1276 = smul.addr %s1275, 2
      %s1277 = smul.addr %s1276, 8
      %s1278 = scalar_lea.vmem %s4, %s1277
      // Predicated region
      $region37: #{_lambda_.7} parent=35 // pred_check
        %p1279 = pneg %p122
      $region38: #{_lambda_.7} parent=35 // pred_check_branch
        %1281 = sbr.rel (%p1279) target = $region40
      $region39: #{_lambda_.7} parent=35 // pred_region
        _
      $region40: #{_lambda_.7} parent=35 // pred_fallthru
        _
    $region36: #{_lambda_.7} parent=5 // pred_fallthru
      _
    %p1282 = scmp.le.s32.totalorder 2, %s10
    // Predicated region
    $region41: #{_lambda_.7} parent=5 // pred_check
      %p1283 = pneg %p1282
    $region42: #{_lambda_.7} parent=5 // pred_check_branch
      %1285 = sbr.rel (%p1283) target = $region44
    $region43: #{_lambda_.7} parent=5 // pred_region
      %s1286 = ssub.s32 %s10, 2
      // Predicated region
      $region45: #{_lambda_.7} parent=43 // pred_check
        %p1287 = pneg %p128
      $region46: #{_lambda_.7} parent=43 // pred_check_branch
        %1289 = sbr.rel (%p1287) target = $region48
      $region47: #{_lambda_.7} parent=43 // pred_region
        %p1290 = scmp.lt.s32.totalorder %s16, 1
        %s1291 = scalar_select %p1290, %s16, 1
        %s1292 = smul.addr %s1291, 2
        %s1293 = smul.addr %s1292, 8
        %s1294 = scalar_lea.vmem %s4, %s1293
      $region48: #{_lambda_.7} parent=43 // pred_fallthru
        _
    $region44: #{_lambda_.7} parent=5 // pred_fallthru
      _
  $region6: #{_lambda_.7} parent=0 // loop_footer
    %s14 = sadd.s32 1, %s10
  $region7: #{_lambda_.7} parent=0 // loop_footer_branch
    %9 = sbr.rel target = $region3
  $region8: #{_lambda_.7} parent=0 // loop_exit
    _

</llo_original>
